<compile_context>
chip_gen: v5e
topology: v5e:2x2
jax: 0.10.0
libtpu: 0.0.40
codegen_flags: <defaults>
</compile_context>

<pallas_src>
import math

import numpy as np
import jax
import jax.numpy as jnp
from jax import lax
from jax.experimental import pallas as pl
from jax.experimental.pallas import tpu as pltpu

# Exact f32 matmuls everywhere (kernel dots and the pure-JAX reference).
jax.config.update("jax_default_matmul_precision", "highest")


# ------------------------------ fused kernel --------------------------------


def net_fused_kernel(x_ref, m1_ref, b1_ref, sh1_ref, sw1_ref,
                     n2_ref, b2_ref, sh2_ref, sw2_ref,
                     w1s_ref, fb1_ref, fw2_ref, fb2_ref, fw3_ref, fb3_ref,
                     o_ref):
    """One grid step == one image. Everything lives in VMEM / vregs."""
    f32 = jnp.float32
    xb = x_ref[0]                                            # (30, 30)

    # ---- conv1 (1->6, 3x3) + bias + relu; layout [h, w*6 + oc] -> (28, 168) ----
    a1 = jnp.dot(xb[0:28, :], m1_ref[0], preferred_element_type=f32)
    a1 = a1 + jnp.dot(xb[1:29, :], m1_ref[1], preferred_element_type=f32)
    a1 = a1 + jnp.dot(xb[2:30, :], m1_ref[2], preferred_element_type=f32)
    a1 = jnp.maximum(a1 + b1_ref[...], 0.0)                  # (28, 168)

    # ---- maxpool 2x2 -> (14, 84), layout [h', w'*6 + c] ----
    v = jnp.maximum(a1[0:27, :], a1[1:28, :])                # pairwise max along H
    vh = jnp.dot(sh1_ref[...], v, preferred_element_type=f32)    # decimate H (14,168)
    u = jnp.maximum(vh[:, 0:162], vh[:, 6:168])              # pairwise max along W
    p1 = jnp.dot(u, sw1_ref[...], preferred_element_type=f32)    # decimate W (14,84)

    # ---- conv2 (6->16, 3x3) + bias + relu; layout [h, w*16 + oc] -> (12, 192) ----
    a2 = jnp.dot(p1[0:12, :], n2_ref[0], preferred_element_type=f32)
    a2 = a2 + jnp.dot(p1[1:13, :], n2_ref[1], preferred_element_type=f32)
    a2 = a2 + jnp.dot(p1[2:14, :], n2_ref[2], preferred_element_type=f32)
    a2 = jnp.maximum(a2 + b2_ref[...], 0.0)                  # (12, 192)

    # ---- maxpool 2x2 -> (6, 96), layout [r, c*16 + oc] ----
    v2 = jnp.maximum(a2[0:11, :], a2[1:12, :])
    vh2 = jnp.dot(sh2_ref[...], v2, preferred_element_type=f32)  # (6, 192)
    u2 = jnp.maximum(vh2[:, 0:176], vh2[:, 16:192])
    p2 = jnp.dot(u2, sw2_ref[...], preferred_element_type=f32)   # (6, 96)

    # ---- fc1 (576->128) + relu; torch-order flatten folded into 6 row-matmuls ----
    h1 = fb1_ref[...]                                        # (1, 128)
    for r in range(6):
        h1 = h1 + jnp.dot(p2[r:r + 1, :], w1s_ref[r], preferred_element_type=f32)
    h1 = jnp.maximum(h1, 0.0)

    # ---- fc2 + relu, fc3, log_softmax (dim=1) ----
    h2 = jnp.maximum(
        jnp.dot(h1, fw2_ref[...], preferred_element_type=f32) + fb2_ref[...], 0.0)
    z = jnp.dot(h2, fw3_ref[...], preferred_element_type=f32) + fb3_ref[...]  # (1,10)
    m = jnp.max(z, axis=1, keepdims=True)
    lse = m + jnp.log(jnp.sum(jnp.exp(z - m), axis=1, keepdims=True))
    o_ref[0] = z - lse


# ------------------------------ pallas_call glue ------------------------------


_KP_ORDER = ["m1", "b1i", "sh1", "sw1", "n2", "b2i", "sh2", "sw2",
             "w1s", "fb1", "fw2", "fb2", "fw3", "fb3"]


def _const_spec(shape):
    zeros = (0,) * len(shape)
    return pl.BlockSpec(shape, lambda b, zeros=zeros: zeros)


def net_forward(x_nchw, kp):
    assert x_nchw.shape[1:] == (1, 30, 30), x_nchw.shape
    B = x_nchw.shape[0]
    x = x_nchw.reshape(B, 30, 30).astype(jnp.float32)        # squeeze C=1 (metadata only)
    weights = [kp[k] for k in _KP_ORDER]

    in_specs = [pl.BlockSpec((1, 30, 30), lambda b: (b, 0, 0))]
    in_specs += [_const_spec(tuple(w.shape)) for w in weights]

    out = pl.pallas_call(
        net_fused_kernel,
        out_shape=jax.ShapeDtypeStruct((B, 1, 10), jnp.float32),
        grid=(B,),
        in_specs=in_specs,
        out_specs=pl.BlockSpec((1, 1, 10), lambda b: (b, 0, 0)),
        compiler_params=pltpu.CompilerParams(dimension_semantics=("parallel",)),
    )(x, *weights)
    return out.reshape(B, 10)


# -------------------------- host-side layout plumbing --------------------------


def prepare_params(raw):
    """Fold conv/fc weights into the banded / interleaved layouts the kernel uses."""
    w1 = np.asarray(raw["conv1_w"], np.float32)   # (6, 1, 3, 3)
    b1 = np.asarray(raw["conv1_b"], np.float32)
    w2 = np.asarray(raw["conv2_w"], np.float32)   # (16, 6, 3, 3)
    b2 = np.asarray(raw["conv2_b"], np.float32)
    fc1_w = np.asarray(raw["fc1_w"], np.float32)  # (576, 128), rows in torch flatten order
    fc1_b = np.asarray(raw["fc1_b"], np.float32)
    fc2_w = np.asarray(raw["fc2_w"], np.float32)  # (128, 64)
    fc2_b = np.asarray(raw["fc2_b"], np.float32)
    fc3_w = np.asarray(raw["fc3_w"], np.float32)  # (64, 10)
    fc3_b = np.asarray(raw["fc3_b"], np.float32)

    # conv1 as 3 banded matmuls: m1[i, w+j, w*6+oc] = w1[oc, 0, i, j]
    m1 = np.zeros((3, 30, 168), np.float32)
    for i in range(3):
        for j in range(3):
            for w in range(28):
                m1[i, w + j, w * 6:(w + 1) * 6] = w1[:, 0, i, j]
    b1i = np.tile(b1, 28)[None, :]                           # (1, 168)

    # conv2 as 3 banded matmuls: n2[i, (w+j)*6+ic, w*16+oc] = w2[oc, ic, i, j]
    n2 = np.zeros((3, 84, 192), np.float32)
    for i in range(3):
        for j in range(3):
            for w in range(12):
                n2[i, (w + j) * 6:(w + j) * 6 + 6, w * 16:(w + 1) * 16] = w2[:, :, i, j].T
    b2i = np.tile(b2, 12)[None, :]                           # (1, 192)

    # 2x2 max-pool decimation (0/1 selection) matrices.
    sh1 = np.zeros((14, 27), np.float32)
    sh1[np.arange(14), 2 * np.arange(14)] = 1.0
    sw1 = np.zeros((162, 84), np.float32)
    for wp in range(14):
        for c in range(6):
            sw1[12 * wp + c, 6 * wp + c] = 1.0
    sh2 = np.zeros((6, 11), np.float32)
    sh2[np.arange(6), 2 * np.arange(6)] = 1.0
    sw2 = np.zeros((176, 96), np.float32)
    for cp in range(6):
        for oc in range(16):
            sw2[32 * cp + oc, 16 * cp + oc] = 1.0

    # fc1 weights re-blocked per spatial row r: w1s[r, c*16+oc, :] = fc1_w[oc*36+r*6+c, :]
    w1s = fc1_w.reshape(16, 6, 6, 128).transpose(1, 2, 0, 3).reshape(6, 96, 128)

    kp = {
        "m1": m1, "b1i": b1i, "sh1": sh1, "sw1": sw1,
        "n2": n2, "b2i": b2i, "sh2": sh2, "sw2": sw2,
        "w1s": w1s, "fb1": fc1_b[None, :],
        "fw2": fc2_w, "fb2": fc2_b[None, :],
        "fw3": fc3_w, "fb3": fc3_b[None, :],
    }
    return {k: jnp.asarray(v) for k, v in kp.items()}


def init_raw_params(key):
    """Deterministic synthetic params with the same shapes as the torch module.
    fc weights are stored in (in_features, out_features) matmul layout."""
    ks = jax.random.split(key, 10)

    def unif(k, shape, fan_in):
        bound = 1.0 / math.sqrt(fan_in)
        return jax.random.uniform(k, shape, jnp.float32, -bound, bound)

    return {
        "conv1_w": unif(ks[0], (6, 1, 3, 3), 9),
        "conv1_b": unif(ks[1], (6,), 9),
        "conv2_w": unif(ks[2], (16, 6, 3, 3), 54),
        "conv2_b": unif(ks[3], (16,), 54),
        "fc1_w": unif(ks[4], (576, 128), 576),
        "fc1_b": unif(ks[5], (128,), 576),
        "fc2_w": unif(ks[6], (128, 64), 128),
        "fc2_b": unif(ks[7], (64,), 128),
        "fc3_w": unif(ks[8], (64, 10), 64),
        "fc3_b": unif(ks[9], (10,), 64),
    }


# --------------------------- pure-JAX reference ------------------------------


def reference_forward(x_nchw, raw):
    dn = ("NCHW", "OIHW", "NCHW")
    y = lax.conv_general_dilated(x_nchw, raw["conv1_w"], (1, 1), "VALID",
                                 dimension_numbers=dn)
    y = jnp.maximum(y + raw["conv1_b"][None, :, None, None], 0.0)
    B, C, H, W = y.shape
    y = y.reshape(B, C, H // 2, 2, W // 2, 2).max(axis=(3, 5))
    y = lax.conv_general_dilated(y, raw["conv2_w"], (1, 1), "VALID",
                                 dimension_numbers=dn)
    y = jnp.maximum(y + raw["conv2_b"][None, :, None, None], 0.0)
    B, C, H, W = y.shape
    y = y.reshape(B, C, H // 2, 2, W // 2, 2).max(axis=(3, 5))
    f = y.reshape(B, -1)                                     # torch NCHW flatten order
    h1 = jnp.maximum(f @ raw["fc1_w"] + raw["fc1_b"], 0.0)
    h2 = jnp.maximum(h1 @ raw["fc2_w"] + raw["fc2_b"], 0.0)
    z = h2 @ raw["fc3_w"] + raw["fc3_b"]
    return jax.nn.log_softmax(z, axis=1)


# ----------------------------------- main -------------------------------------


if __name__ == "__main__":
    key = jax.random.PRNGKey(0)
    k_param, k_x = jax.random.split(key)

    raw = init_raw_params(k_param)
    kp = prepare_params(raw)
    # 30x30 input => 28 -> 14 -> 12 -> 6, matching fc1's expected 16*6*6 features.
    x = jax.random.normal(k_x, (2, 1, 30, 30), jnp.float32)

    out = jax.jit(net_forward)(x, kp)
    out = jax.block_until_ready(out)

    assert out.shape == (2, 10), out.shape
    assert bool(jnp.all(jnp.isfinite(out)))
    # rows of exp(log_softmax) must sum to 1
    assert bool(jnp.allclose(jnp.sum(jnp.exp(out), axis=1), 1.0, atol=1e-5))
    # matches the plain-JAX reference of the torch module
    ref = reference_forward(x, raw)
    assert bool(jnp.allclose(out, ref, atol=2e-2, rtol=2e-2)), \
        float(jnp.max(jnp.abs(out - ref)))

    print("KERNEL_OK")
</pallas_src>

<mosaic_0001>
module attributes {stable_mosaic.version = 11 : i64} {
  func.func @net_fused_kernel(%arg0: i32, %arg1: memref<1x30x30xf32, #tpu.memory_space<vmem>>, %arg2: memref<3x30x168xf32, #tpu.memory_space<vmem>>, %arg3: memref<1x168xf32, #tpu.memory_space<vmem>>, %arg4: memref<14x27xf32, #tpu.memory_space<vmem>>, %arg5: memref<162x84xf32, #tpu.memory_space<vmem>>, %arg6: memref<3x84x192xf32, #tpu.memory_space<vmem>>, %arg7: memref<1x192xf32, #tpu.memory_space<vmem>>, %arg8: memref<6x11xf32, #tpu.memory_space<vmem>>, %arg9: memref<176x96xf32, #tpu.memory_space<vmem>>, %arg10: memref<6x96x128xf32, #tpu.memory_space<vmem>>, %arg11: memref<1x128xf32, #tpu.memory_space<vmem>>, %arg12: memref<128x64xf32, #tpu.memory_space<vmem>>, %arg13: memref<1x64xf32, #tpu.memory_space<vmem>>, %arg14: memref<64x10xf32, #tpu.memory_space<vmem>>, %arg15: memref<1x10xf32, #tpu.memory_space<vmem>>, %arg16: memref<1x1x10xf32, #tpu.memory_space<vmem>>) attributes {dimension_semantics = [#tpu.dimension_semantics<parallel>], iteration_bounds = array<i64: 2>, scalar_prefetch = 0 : i64, scratch_operands = 0 : i64, tpu.core_type = #tpu.core_type<tc>, window_params = [{transform_indices = @transform_0, window_bounds = array<i64: 1, 30, 30>}, {pipeline_mode = #tpu.pipeline_mode<synchronous>, transform_indices = @transform_1, window_bounds = array<i64: 3, 30, 168>}, {pipeline_mode = #tpu.pipeline_mode<synchronous>, transform_indices = @transform_2, window_bounds = array<i64: 1, 168>}, {pipeline_mode = #tpu.pipeline_mode<synchronous>, transform_indices = @transform_3, window_bounds = array<i64: 14, 27>}, {pipeline_mode = #tpu.pipeline_mode<synchronous>, transform_indices = @transform_4, window_bounds = array<i64: 162, 84>}, {pipeline_mode = #tpu.pipeline_mode<synchronous>, transform_indices = @transform_5, window_bounds = array<i64: 3, 84, 192>}, {pipeline_mode = #tpu.pipeline_mode<synchronous>, transform_indices = @transform_6, window_bounds = array<i64: 1, 192>}, {pipeline_mode = #tpu.pipeline_mode<synchronous>, transform_indices = @transform_7, window_bounds = array<i64: 6, 11>}, {pipeline_mode = #tpu.pipeline_mode<synchronous>, transform_indices = @transform_8, window_bounds = array<i64: 176, 96>}, {pipeline_mode = #tpu.pipeline_mode<synchronous>, transform_indices = @transform_9, window_bounds = array<i64: 6, 96, 128>}, {pipeline_mode = #tpu.pipeline_mode<synchronous>, transform_indices = @transform_10, window_bounds = array<i64: 1, 128>}, {pipeline_mode = #tpu.pipeline_mode<synchronous>, transform_indices = @transform_11, window_bounds = array<i64: 128, 64>}, {pipeline_mode = #tpu.pipeline_mode<synchronous>, transform_indices = @transform_12, window_bounds = array<i64: 1, 64>}, {pipeline_mode = #tpu.pipeline_mode<synchronous>, transform_indices = @transform_13, window_bounds = array<i64: 64, 10>}, {pipeline_mode = #tpu.pipeline_mode<synchronous>, transform_indices = @transform_14, window_bounds = array<i64: 1, 10>}, {transform_indices = @transform_15, window_bounds = array<i64: 1, 1, 10>}]} {
    %c0 = arith.constant 0 : index
    %c0_0 = arith.constant 0 : index
    %c0_1 = arith.constant 0 : index
    %0 = vector.load %arg1[%c0, %c0_0, %c0_1] : memref<1x30x30xf32, #tpu.memory_space<vmem>>, vector<1x30x30xf32>
    %1 = vector.shape_cast %0 : vector<1x30x30xf32> to vector<30x30xf32>
    %2 = vector.extract_strided_slice %1 {offsets = [0, 0], sizes = [28, 30], strides = [1, 1]} : vector<30x30xf32> to vector<28x30xf32>
    %c0_2 = arith.constant 0 : index
    %c0_3 = arith.constant 0 : index
    %c0_4 = arith.constant 0 : index
    %3 = vector.load %arg2[%c0_2, %c0_3, %c0_4] : memref<3x30x168xf32, #tpu.memory_space<vmem>>, vector<1x30x168xf32>
    %4 = vector.shape_cast %3 : vector<1x30x168xf32> to vector<30x168xf32>
    %cst = arith.constant dense<0.000000e+00> : vector<28x168xf32>
    %5 = tpu.matmul %2, %4, %cst {dimension_numbers = #tpu.dot_dimension_numbers<[1], [0], [0], [1], [0, 0, 1, 1], [], []>, precision = #tpu.contract_precision<fp32>} : vector<28x30xf32>, vector<30x168xf32>, vector<28x168xf32> -> vector<28x168xf32>
    %6 = vector.extract_strided_slice %1 {offsets = [1, 0], sizes = [28, 30], strides = [1, 1]} : vector<30x30xf32> to vector<28x30xf32>
    %c1 = arith.constant 1 : index
    %c0_5 = arith.constant 0 : index
    %c0_6 = arith.constant 0 : index
    %7 = vector.load %arg2[%c1, %c0_5, %c0_6] : memref<3x30x168xf32, #tpu.memory_space<vmem>>, vector<1x30x168xf32>
    %8 = vector.shape_cast %7 : vector<1x30x168xf32> to vector<30x168xf32>
    %cst_7 = arith.constant dense<0.000000e+00> : vector<28x168xf32>
    %9 = tpu.matmul %6, %8, %cst_7 {dimension_numbers = #tpu.dot_dimension_numbers<[1], [0], [0], [1], [0, 0, 1, 1], [], []>, precision = #tpu.contract_precision<fp32>} : vector<28x30xf32>, vector<30x168xf32>, vector<28x168xf32> -> vector<28x168xf32>
    %10 = arith.addf %5, %9 : vector<28x168xf32>
    %11 = vector.extract_strided_slice %1 {offsets = [2, 0], sizes = [28, 30], strides = [1, 1]} : vector<30x30xf32> to vector<28x30xf32>
    %c2 = arith.constant 2 : index
    %c0_8 = arith.constant 0 : index
    %c0_9 = arith.constant 0 : index
    %12 = vector.load %arg2[%c2, %c0_8, %c0_9] : memref<3x30x168xf32, #tpu.memory_space<vmem>>, vector<1x30x168xf32>
    %13 = vector.shape_cast %12 : vector<1x30x168xf32> to vector<30x168xf32>
    %cst_10 = arith.constant dense<0.000000e+00> : vector<28x168xf32>
    %14 = tpu.matmul %11, %13, %cst_10 {dimension_numbers = #tpu.dot_dimension_numbers<[1], [0], [0], [1], [0, 0, 1, 1], [], []>, precision = #tpu.contract_precision<fp32>} : vector<28x30xf32>, vector<30x168xf32>, vector<28x168xf32> -> vector<28x168xf32>
    %15 = arith.addf %10, %14 : vector<28x168xf32>
    %c0_11 = arith.constant 0 : index
    %c0_12 = arith.constant 0 : index
    %16 = vector.load %arg3[%c0_11, %c0_12] : memref<1x168xf32, #tpu.memory_space<vmem>>, vector<1x168xf32>
    %17 = vector.broadcast %16 : vector<1x168xf32> to vector<28x168xf32>
    %18 = arith.addf %15, %17 : vector<28x168xf32>
    %cst_13 = arith.constant 0.000000e+00 : f32
    %19 = vector.broadcast %cst_13 : f32 to vector<28x168xf32>
    %20 = arith.maximumf %18, %19 : vector<28x168xf32>
    %21 = vector.extract_strided_slice %20 {offsets = [0, 0], sizes = [27, 168], strides = [1, 1]} : vector<28x168xf32> to vector<27x168xf32>
    %22 = vector.extract_strided_slice %20 {offsets = [1, 0], sizes = [27, 168], strides = [1, 1]} : vector<28x168xf32> to vector<27x168xf32>
    %23 = arith.maximumf %21, %22 : vector<27x168xf32>
    %c0_14 = arith.constant 0 : index
    %c0_15 = arith.constant 0 : index
    %24 = vector.load %arg4[%c0_14, %c0_15] : memref<14x27xf32, #tpu.memory_space<vmem>>, vector<14x27xf32>
    %cst_16 = arith.constant dense<0.000000e+00> : vector<14x168xf32>
    %25 = tpu.matmul %24, %23, %cst_16 {dimension_numbers = #tpu.dot_dimension_numbers<[1], [0], [0], [1], [0, 0, 1, 1], [], []>, precision = #tpu.contract_precision<fp32>} : vector<14x27xf32>, vector<27x168xf32>, vector<14x168xf32> -> vector<14x168xf32>
    %26 = vector.extract_strided_slice %25 {offsets = [0, 0], sizes = [14, 162], strides = [1, 1]} : vector<14x168xf32> to vector<14x162xf32>
    %27 = vector.extract_strided_slice %25 {offsets = [0, 6], sizes = [14, 162], strides = [1, 1]} : vector<14x168xf32> to vector<14x162xf32>
    %28 = arith.maximumf %26, %27 : vector<14x162xf32>
    %c0_17 = arith.constant 0 : index
    %c0_18 = arith.constant 0 : index
    %29 = vector.load %arg5[%c0_17, %c0_18] : memref<162x84xf32, #tpu.memory_space<vmem>>, vector<162x84xf32>
    %cst_19 = arith.constant dense<0.000000e+00> : vector<14x84xf32>
    %30 = tpu.matmul %28, %29, %cst_19 {dimension_numbers = #tpu.dot_dimension_numbers<[1], [0], [0], [1], [0, 0, 1, 1], [], []>, precision = #tpu.contract_precision<fp32>} : vector<14x162xf32>, vector<162x84xf32>, vector<14x84xf32> -> vector<14x84xf32>
    %31 = vector.extract_strided_slice %30 {offsets = [0, 0], sizes = [12, 84], strides = [1, 1]} : vector<14x84xf32> to vector<12x84xf32>
    %c0_20 = arith.constant 0 : index
    %c0_21 = arith.constant 0 : index
    %c0_22 = arith.constant 0 : index
    %32 = vector.load %arg6[%c0_20, %c0_21, %c0_22] : memref<3x84x192xf32, #tpu.memory_space<vmem>>, vector<1x84x192xf32>
    %33 = vector.shape_cast %32 : vector<1x84x192xf32> to vector<84x192xf32>
    %cst_23 = arith.constant dense<0.000000e+00> : vector<12x192xf32>
    %34 = tpu.matmul %31, %33, %cst_23 {dimension_numbers = #tpu.dot_dimension_numbers<[1], [0], [0], [1], [0, 0, 1, 1], [], []>, precision = #tpu.contract_precision<fp32>} : vector<12x84xf32>, vector<84x192xf32>, vector<12x192xf32> -> vector<12x192xf32>
    %35 = vector.extract_strided_slice %30 {offsets = [1, 0], sizes = [12, 84], strides = [1, 1]} : vector<14x84xf32> to vector<12x84xf32>
    %c1_24 = arith.constant 1 : index
    %c0_25 = arith.constant 0 : index
    %c0_26 = arith.constant 0 : index
    %36 = vector.load %arg6[%c1_24, %c0_25, %c0_26] : memref<3x84x192xf32, #tpu.memory_space<vmem>>, vector<1x84x192xf32>
    %37 = vector.shape_cast %36 : vector<1x84x192xf32> to vector<84x192xf32>
    %cst_27 = arith.constant dense<0.000000e+00> : vector<12x192xf32>
    %38 = tpu.matmul %35, %37, %cst_27 {dimension_numbers = #tpu.dot_dimension_numbers<[1], [0], [0], [1], [0, 0, 1, 1], [], []>, precision = #tpu.contract_precision<fp32>} : vector<12x84xf32>, vector<84x192xf32>, vector<12x192xf32> -> vector<12x192xf32>
    %39 = arith.addf %34, %38 : vector<12x192xf32>
    %40 = vector.extract_strided_slice %30 {offsets = [2, 0], sizes = [12, 84], strides = [1, 1]} : vector<14x84xf32> to vector<12x84xf32>
    %c2_28 = arith.constant 2 : index
    %c0_29 = arith.constant 0 : index
    %c0_30 = arith.constant 0 : index
    %41 = vector.load %arg6[%c2_28, %c0_29, %c0_30] : memref<3x84x192xf32, #tpu.memory_space<vmem>>, vector<1x84x192xf32>
    %42 = vector.shape_cast %41 : vector<1x84x192xf32> to vector<84x192xf32>
    %cst_31 = arith.constant dense<0.000000e+00> : vector<12x192xf32>
    %43 = tpu.matmul %40, %42, %cst_31 {dimension_numbers = #tpu.dot_dimension_numbers<[1], [0], [0], [1], [0, 0, 1, 1], [], []>, precision = #tpu.contract_precision<fp32>} : vector<12x84xf32>, vector<84x192xf32>, vector<12x192xf32> -> vector<12x192xf32>
    %44 = arith.addf %39, %43 : vector<12x192xf32>
    %c0_32 = arith.constant 0 : index
    %c0_33 = arith.constant 0 : index
    %45 = vector.load %arg7[%c0_32, %c0_33] : memref<1x192xf32, #tpu.memory_space<vmem>>, vector<1x192xf32>
    %46 = vector.broadcast %45 : vector<1x192xf32> to vector<12x192xf32>
    %47 = arith.addf %44, %46 : vector<12x192xf32>
    %cst_34 = arith.constant 0.000000e+00 : f32
    %48 = vector.broadcast %cst_34 : f32 to vector<12x192xf32>
    %49 = arith.maximumf %47, %48 : vector<12x192xf32>
    %50 = vector.extract_strided_slice %49 {offsets = [0, 0], sizes = [11, 192], strides = [1, 1]} : vector<12x192xf32> to vector<11x192xf32>
    %51 = vector.extract_strided_slice %49 {offsets = [1, 0], sizes = [11, 192], strides = [1, 1]} : vector<12x192xf32> to vector<11x192xf32>
    %52 = arith.maximumf %50, %51 : vector<11x192xf32>
    %c0_35 = arith.constant 0 : index
    %c0_36 = arith.constant 0 : index
    %53 = vector.load %arg8[%c0_35, %c0_36] : memref<6x11xf32, #tpu.memory_space<vmem>>, vector<6x11xf32>
    %cst_37 = arith.constant dense<0.000000e+00> : vector<6x192xf32>
    %54 = tpu.matmul %53, %52, %cst_37 {dimension_numbers = #tpu.dot_dimension_numbers<[1], [0], [0], [1], [0, 0, 1, 1], [], []>, precision = #tpu.contract_precision<fp32>} : vector<6x11xf32>, vector<11x192xf32>, vector<6x192xf32> -> vector<6x192xf32>
    %55 = vector.extract_strided_slice %54 {offsets = [0, 0], sizes = [6, 176], strides = [1, 1]} : vector<6x192xf32> to vector<6x176xf32>
    %56 = vector.extract_strided_slice %54 {offsets = [0, 16], sizes = [6, 176], strides = [1, 1]} : vector<6x192xf32> to vector<6x176xf32>
    %57 = arith.maximumf %55, %56 : vector<6x176xf32>
    %c0_38 = arith.constant 0 : index
    %c0_39 = arith.constant 0 : index
    %58 = vector.load %arg9[%c0_38, %c0_39] : memref<176x96xf32, #tpu.memory_space<vmem>>, vector<176x96xf32>
    %cst_40 = arith.constant dense<0.000000e+00> : vector<6x96xf32>
    %59 = tpu.matmul %57, %58, %cst_40 {dimension_numbers = #tpu.dot_dimension_numbers<[1], [0], [0], [1], [0, 0, 1, 1], [], []>, precision = #tpu.contract_precision<fp32>} : vector<6x176xf32>, vector<176x96xf32>, vector<6x96xf32> -> vector<6x96xf32>
    %c0_41 = arith.constant 0 : index
    %c0_42 = arith.constant 0 : index
    %60 = vector.load %arg11[%c0_41, %c0_42] : memref<1x128xf32, #tpu.memory_space<vmem>>, vector<1x128xf32>
    %61 = vector.extract_strided_slice %59 {offsets = [0, 0], sizes = [1, 96], strides = [1, 1]} : vector<6x96xf32> to vector<1x96xf32>
    %c0_43 = arith.constant 0 : index
    %c0_44 = arith.constant 0 : index
    %c0_45 = arith.constant 0 : index
    %62 = vector.load %arg10[%c0_43, %c0_44, %c0_45] : memref<6x96x128xf32, #tpu.memory_space<vmem>>, vector<1x96x128xf32>
    %63 = vector.shape_cast %62 : vector<1x96x128xf32> to vector<96x128xf32>
    %cst_46 = arith.constant dense<0.000000e+00> : vector<1x128xf32>
    %64 = tpu.matmul %61, %63, %cst_46 {dimension_numbers = #tpu.dot_dimension_numbers<[1], [0], [0], [1], [0, 0, 1, 1], [], []>, precision = #tpu.contract_precision<fp32>} : vector<1x96xf32>, vector<96x128xf32>, vector<1x128xf32> -> vector<1x128xf32>
    %65 = arith.addf %60, %64 : vector<1x128xf32>
    %66 = vector.extract_strided_slice %59 {offsets = [1, 0], sizes = [1, 96], strides = [1, 1]} : vector<6x96xf32> to vector<1x96xf32>
    %c1_47 = arith.constant 1 : index
    %c0_48 = arith.constant 0 : index
    %c0_49 = arith.constant 0 : index
    %67 = vector.load %arg10[%c1_47, %c0_48, %c0_49] : memref<6x96x128xf32, #tpu.memory_space<vmem>>, vector<1x96x128xf32>
    %68 = vector.shape_cast %67 : vector<1x96x128xf32> to vector<96x128xf32>
    %cst_50 = arith.constant dense<0.000000e+00> : vector<1x128xf32>
    %69 = tpu.matmul %66, %68, %cst_50 {dimension_numbers = #tpu.dot_dimension_numbers<[1], [0], [0], [1], [0, 0, 1, 1], [], []>, precision = #tpu.contract_precision<fp32>} : vector<1x96xf32>, vector<96x128xf32>, vector<1x128xf32> -> vector<1x128xf32>
    %70 = arith.addf %65, %69 : vector<1x128xf32>
    %71 = vector.extract_strided_slice %59 {offsets = [2, 0], sizes = [1, 96], strides = [1, 1]} : vector<6x96xf32> to vector<1x96xf32>
    %c2_51 = arith.constant 2 : index
    %c0_52 = arith.constant 0 : index
    %c0_53 = arith.constant 0 : index
    %72 = vector.load %arg10[%c2_51, %c0_52, %c0_53] : memref<6x96x128xf32, #tpu.memory_space<vmem>>, vector<1x96x128xf32>
    %73 = vector.shape_cast %72 : vector<1x96x128xf32> to vector<96x128xf32>
    %cst_54 = arith.constant dense<0.000000e+00> : vector<1x128xf32>
    %74 = tpu.matmul %71, %73, %cst_54 {dimension_numbers = #tpu.dot_dimension_numbers<[1], [0], [0], [1], [0, 0, 1, 1], [], []>, precision = #tpu.contract_precision<fp32>} : vector<1x96xf32>, vector<96x128xf32>, vector<1x128xf32> -> vector<1x128xf32>
    %75 = arith.addf %70, %74 : vector<1x128xf32>
    %76 = vector.extract_strided_slice %59 {offsets = [3, 0], sizes = [1, 96], strides = [1, 1]} : vector<6x96xf32> to vector<1x96xf32>
    %c3 = arith.constant 3 : index
    %c0_55 = arith.constant 0 : index
    %c0_56 = arith.constant 0 : index
    %77 = vector.load %arg10[%c3, %c0_55, %c0_56] : memref<6x96x128xf32, #tpu.memory_space<vmem>>, vector<1x96x128xf32>
    %78 = vector.shape_cast %77 : vector<1x96x128xf32> to vector<96x128xf32>
    %cst_57 = arith.constant dense<0.000000e+00> : vector<1x128xf32>
    %79 = tpu.matmul %76, %78, %cst_57 {dimension_numbers = #tpu.dot_dimension_numbers<[1], [0], [0], [1], [0, 0, 1, 1], [], []>, precision = #tpu.contract_precision<fp32>} : vector<1x96xf32>, vector<96x128xf32>, vector<1x128xf32> -> vector<1x128xf32>
    %80 = arith.addf %75, %79 : vector<1x128xf32>
    %81 = vector.extract_strided_slice %59 {offsets = [4, 0], sizes = [1, 96], strides = [1, 1]} : vector<6x96xf32> to vector<1x96xf32>
    %c4 = arith.constant 4 : index
    %c0_58 = arith.constant 0 : index
    %c0_59 = arith.constant 0 : index
    %82 = vector.load %arg10[%c4, %c0_58, %c0_59] : memref<6x96x128xf32, #tpu.memory_space<vmem>>, vector<1x96x128xf32>
    %83 = vector.shape_cast %82 : vector<1x96x128xf32> to vector<96x128xf32>
    %cst_60 = arith.constant dense<0.000000e+00> : vector<1x128xf32>
    %84 = tpu.matmul %81, %83, %cst_60 {dimension_numbers = #tpu.dot_dimension_numbers<[1], [0], [0], [1], [0, 0, 1, 1], [], []>, precision = #tpu.contract_precision<fp32>} : vector<1x96xf32>, vector<96x128xf32>, vector<1x128xf32> -> vector<1x128xf32>
    %85 = arith.addf %80, %84 : vector<1x128xf32>
    %86 = vector.extract_strided_slice %59 {offsets = [5, 0], sizes = [1, 96], strides = [1, 1]} : vector<6x96xf32> to vector<1x96xf32>
    %c5 = arith.constant 5 : index
    %c0_61 = arith.constant 0 : index
    %c0_62 = arith.constant 0 : index
    %87 = vector.load %arg10[%c5, %c0_61, %c0_62] : memref<6x96x128xf32, #tpu.memory_space<vmem>>, vector<1x96x128xf32>
    %88 = vector.shape_cast %87 : vector<1x96x128xf32> to vector<96x128xf32>
    %cst_63 = arith.constant dense<0.000000e+00> : vector<1x128xf32>
    %89 = tpu.matmul %86, %88, %cst_63 {dimension_numbers = #tpu.dot_dimension_numbers<[1], [0], [0], [1], [0, 0, 1, 1], [], []>, precision = #tpu.contract_precision<fp32>} : vector<1x96xf32>, vector<96x128xf32>, vector<1x128xf32> -> vector<1x128xf32>
    %90 = arith.addf %85, %89 : vector<1x128xf32>
    %cst_64 = arith.constant 0.000000e+00 : f32
    %91 = vector.broadcast %cst_64 : f32 to vector<1x128xf32>
    %92 = arith.maximumf %90, %91 : vector<1x128xf32>
    %c0_65 = arith.constant 0 : index
    %c0_66 = arith.constant 0 : index
    %93 = vector.load %arg12[%c0_65, %c0_66] : memref<128x64xf32, #tpu.memory_space<vmem>>, vector<128x64xf32>
    %cst_67 = arith.constant dense<0.000000e+00> : vector<1x64xf32>
    %94 = tpu.matmul %92, %93, %cst_67 {dimension_numbers = #tpu.dot_dimension_numbers<[1], [0], [0], [1], [0, 0, 1, 1], [], []>, precision = #tpu.contract_precision<fp32>} : vector<1x128xf32>, vector<128x64xf32>, vector<1x64xf32> -> vector<1x64xf32>
    %c0_68 = arith.constant 0 : index
    %c0_69 = arith.constant 0 : index
    %95 = vector.load %arg13[%c0_68, %c0_69] : memref<1x64xf32, #tpu.memory_space<vmem>>, vector<1x64xf32>
    %96 = arith.addf %94, %95 : vector<1x64xf32>
    %cst_70 = arith.constant 0.000000e+00 : f32
    %97 = vector.broadcast %cst_70 : f32 to vector<1x64xf32>
    %98 = arith.maximumf %96, %97 : vector<1x64xf32>
    %c0_71 = arith.constant 0 : index
    %c0_72 = arith.constant 0 : index
    %99 = vector.load %arg14[%c0_71, %c0_72] : memref<64x10xf32, #tpu.memory_space<vmem>>, vector<64x10xf32>
    %cst_73 = arith.constant dense<0.000000e+00> : vector<1x10xf32>
    %100 = tpu.matmul %98, %99, %cst_73 {dimension_numbers = #tpu.dot_dimension_numbers<[1], [0], [0], [1], [0, 0, 1, 1], [], []>, precision = #tpu.contract_precision<fp32>} : vector<1x64xf32>, vector<64x10xf32>, vector<1x10xf32> -> vector<1x10xf32>
    %c0_74 = arith.constant 0 : index
    %c0_75 = arith.constant 0 : index
    %101 = vector.load %arg15[%c0_74, %c0_75] : memref<1x10xf32, #tpu.memory_space<vmem>>, vector<1x10xf32>
    %102 = arith.addf %100, %101 : vector<1x10xf32>
    %cst_76 = arith.constant dense<0xFF800000> : vector<1xf32>
    %103 = vector.multi_reduction <maximumf>, %102, %cst_76 [1] : vector<1x10xf32> to vector<1xf32>
    %104 = vector.shape_cast %103 : vector<1xf32> to vector<1x1xf32>
    %105 = vector.broadcast %104 : vector<1x1xf32> to vector<1x10xf32>
    %106 = arith.subf %102, %105 : vector<1x10xf32>
    %107 = math.exp %106 : vector<1x10xf32>
    %cst_77 = arith.constant dense<0.000000e+00> : vector<1xf32>
    %108 = vector.multi_reduction <add>, %107, %cst_77 [1] : vector<1x10xf32> to vector<1xf32>
    %109 = vector.shape_cast %108 : vector<1xf32> to vector<1x1xf32>
    %110 = math.log %109 : vector<1x1xf32>
    %111 = arith.addf %104, %110 : vector<1x1xf32>
    %112 = vector.broadcast %111 : vector<1x1xf32> to vector<1x10xf32>
    %113 = arith.subf %102, %112 : vector<1x10xf32>
    %c0_78 = arith.constant 0 : index
    %c0_79 = arith.constant 0 : index
    %c0_80 = arith.constant 0 : index
    %114 = vector.load %arg16[%c0_78, %c0_79, %c0_80] : memref<1x1x10xf32, #tpu.memory_space<vmem>>, vector<1x1x10xf32>
    %115 = vector.shape_cast %114 : vector<1x1x10xf32> to vector<1x10xf32>
    %116 = vector.shape_cast %113 : vector<1x10xf32> to vector<1x1x10xf32>
    tpu.vector_store %arg16[%c0_78, %c0_79, %c0_80], %116 {strides = array<i32>} : memref<1x1x10xf32, #tpu.memory_space<vmem>>, vector<1x1x10xf32>,
    return
  }
  func.func @transform_0(%arg0: i32) -> (i32, i32, i32) {
    %c0_i32 = arith.constant 0 : i32
    %c0_i32_0 = arith.constant 0 : i32
    %c0_i32_1 = arith.constant 0 : i32
    return %arg0, %c0_i32, %c0_i32_0 : i32, i32, i32
  }
  func.func @transform_1(%arg0: i32) -> (i32, i32, i32) {
    %c0_i32 = arith.constant 0 : i32
    %c0_i32_0 = arith.constant 0 : i32
    %c0_i32_1 = arith.constant 0 : i32
    %c0_i32_2 = arith.constant 0 : i32
    return %c0_i32, %c0_i32_0, %c0_i32_1 : i32, i32, i32
  }
  func.func @transform_2(%arg0: i32) -> (i32, i32) {
    %c0_i32 = arith.constant 0 : i32
    %c0_i32_0 = arith.constant 0 : i32
    %c0_i32_1 = arith.constant 0 : i32
    return %c0_i32, %c0_i32_0 : i32, i32
  }
  func.func @transform_3(%arg0: i32) -> (i32, i32) {
    %c0_i32 = arith.constant 0 : i32
    %c0_i32_0 = arith.constant 0 : i32
    %c0_i32_1 = arith.constant 0 : i32
    return %c0_i32, %c0_i32_0 : i32, i32
  }
  func.func @transform_4(%arg0: i32) -> (i32, i32) {
    %c0_i32 = arith.constant 0 : i32
    %c0_i32_0 = arith.constant 0 : i32
    %c0_i32_1 = arith.constant 0 : i32
    return %c0_i32, %c0_i32_0 : i32, i32
  }
  func.func @transform_5(%arg0: i32) -> (i32, i32, i32) {
    %c0_i32 = arith.constant 0 : i32
    %c0_i32_0 = arith.constant 0 : i32
    %c0_i32_1 = arith.constant 0 : i32
    %c0_i32_2 = arith.constant 0 : i32
    return %c0_i32, %c0_i32_0, %c0_i32_1 : i32, i32, i32
  }
  func.func @transform_6(%arg0: i32) -> (i32, i32) {
    %c0_i32 = arith.constant 0 : i32
    %c0_i32_0 = arith.constant 0 : i32
    %c0_i32_1 = arith.constant 0 : i32
    return %c0_i32, %c0_i32_0 : i32, i32
  }
  func.func @transform_7(%arg0: i32) -> (i32, i32) {
    %c0_i32 = arith.constant 0 : i32
    %c0_i32_0 = arith.constant 0 : i32
    %c0_i32_1 = arith.constant 0 : i32
    return %c0_i32, %c0_i32_0 : i32, i32
  }
  func.func @transform_8(%arg0: i32) -> (i32, i32) {
    %c0_i32 = arith.constant 0 : i32
    %c0_i32_0 = arith.constant 0 : i32
    %c0_i32_1 = arith.constant 0 : i32
    return %c0_i32, %c0_i32_0 : i32, i32
  }
  func.func @transform_9(%arg0: i32) -> (i32, i32, i32) {
    %c0_i32 = arith.constant 0 : i32
    %c0_i32_0 = arith.constant 0 : i32
    %c0_i32_1 = arith.constant 0 : i32
    %c0_i32_2 = arith.constant 0 : i32
    return %c0_i32, %c0_i32_0, %c0_i32_1 : i32, i32, i32
  }
  func.func @transform_10(%arg0: i32) -> (i32, i32) {
    %c0_i32 = arith.constant 0 : i32
    %c0_i32_0 = arith.constant 0 : i32
    %c0_i32_1 = arith.constant 0 : i32
    return %c0_i32, %c0_i32_0 : i32, i32
  }
  func.func @transform_11(%arg0: i32) -> (i32, i32) {
    %c0_i32 = arith.constant 0 : i32
    %c0_i32_0 = arith.constant 0 : i32
    %c0_i32_1 = arith.constant 0 : i32
    return %c0_i32, %c0_i32_0 : i32, i32
  }
  func.func @transform_12(%arg0: i32) -> (i32, i32) {
    %c0_i32 = arith.constant 0 : i32
    %c0_i32_0 = arith.constant 0 : i32
    %c0_i32_1 = arith.constant 0 : i32
    return %c0_i32, %c0_i32_0 : i32, i32
  }
  func.func @transform_13(%arg0: i32) -> (i32, i32) {
    %c0_i32 = arith.constant 0 : i32
    %c0_i32_0 = arith.constant 0 : i32
    %c0_i32_1 = arith.constant 0 : i32
    return %c0_i32, %c0_i32_0 : i32, i32
  }
  func.func @transform_14(%arg0: i32) -> (i32, i32) {
    %c0_i32 = arith.constant 0 : i32
    %c0_i32_0 = arith.constant 0 : i32
    %c0_i32_1 = arith.constant 0 : i32
    return %c0_i32, %c0_i32_0 : i32, i32
  }
  func.func @transform_15(%arg0: i32) -> (i32, i32, i32) {
    %c0_i32 = arith.constant 0 : i32
    %c0_i32_0 = arith.constant 0 : i32
    %c0_i32_1 = arith.constant 0 : i32
    return %arg0, %c0_i32, %c0_i32_0 : i32, i32, i32
  }
}

</mosaic_0001>

<llo_original>
// kernel: net_forward.1
$region0: #{net_forward.1}
  #allocation0 [shape = 'u32[]', space=smem, size = 0x4, offset = 0x4, fixed_abs, tag = 'smem constant byte address 0x4 - core index']
  #allocation1 [shape = 'u32[72,128]{1,0:T(1,128)}', space=vmem, size = 0x9000, scoped, tag = 'internal scratch']
  %s0 = inlined_call_operand.vmem [shape: f32[2,30,30], index: 0, kind: input, shape index: {}]
  %s1 = inlined_call_operand.vmem [shape: f32[3,30,168], index: 1, kind: input, shape index: {}]
  %s2 = inlined_call_operand.vmem [shape: f32[1,168], index: 2, kind: input, shape index: {}]
  %s3 = inlined_call_operand.vmem [shape: f32[14,27], index: 3, kind: input, shape index: {}]
  %s4 = inlined_call_operand.hbm [shape: f32[162,84], index: 4, kind: input, shape index: {}]
  %s5 = inlined_call_operand.hbm [shape: f32[3,84,192], index: 5, kind: input, shape index: {}]
  %s6 = inlined_call_operand.vmem [shape: f32[1,192], index: 6, kind: input, shape index: {}]
  %s7 = inlined_call_operand.vmem [shape: f32[6,11], index: 7, kind: input, shape index: {}]
  %s8 = inlined_call_operand.vmem [shape: f32[176,96], index: 8, kind: input, shape index: {}]
  %s9 = inlined_call_operand.hbm [shape: f32[6,96,128], index: 9, kind: input, shape index: {}]
  %s10 = inlined_call_operand.vmem [shape: f32[1,128], index: 10, kind: input, shape index: {}]
  %s11 = inlined_call_operand.vmem [shape: f32[128,64], index: 11, kind: input, shape index: {}]
  %s12 = inlined_call_operand.vmem [shape: f32[1,64], index: 12, kind: input, shape index: {}]
  %s13 = inlined_call_operand.vmem [shape: f32[64,10], index: 13, kind: input, shape index: {}]
  %s14 = inlined_call_operand.vmem [shape: f32[1,10], index: 14, kind: input, shape index: {}]
  %s15 = inlined_call_operand.hbm [shape: f32[2,1,10], index: 15, kind: output, shape index: {}]
  %s16 = sld [smem:[#allocation0]]
  $region105: #{net_forward.1} parent=0
    _
  %s18 = ssub.s32 1, %s16
  %s19 = scalar_select 0, %s18, %s16
  $region1: #{net_forward.1} parent=0
    #allocation2 [shape = 'u8[86016]{0}', space=vmem, size = 0x15000, scoped, tag = 'input window, operand 4, single buffered']
    #allocation3 [shape = 's32[2]{0}', space=sflag, size = 0x8, scoped, tag = 'scoped memory for net_forward.1']
    #allocation4 [shape = 's32[2]{0}', space=sflag, size = 0x8, scoped, tag = 'scoped memory for net_forward.1']
    #allocation5 [shape = 'u8[270336]{0}', space=vmem, size = 0x42000, scoped, tag = 'input window, operand 5, single buffered']
    #allocation6 [shape = 's32[1]{0}', space=sflag, size = 0x4, scoped, tag = 'scoped memory for net_forward.1']
    #allocation7 [shape = 'u8[294912]{0}', space=vmem, size = 0x48000, scoped, tag = 'input window, operand 9, single buffered']
    #allocation8 [shape = 'u8[1024]{0}', space=vmem, size = 0x400, scoped, tag = 'output window, operand 0']
    %20 = vsyncpa [#allocation3], 0
    %21 = vsyncpa [#allocation6], 0
    %22 = vsyncpa [#allocation4], 0
    %s23 = scalar_lea.sflag [#allocation4], 1
    %24 = vsyncpa %s23, 0
    loop: start=0, step=1, limit=4
    $region2: #{net_forward.1} parent=1 // loop_pre_header
      _
    $region3: #{net_forward.1} parent=1 // loop_header
      %s26 = sphi 0, %s30
      %p27 = scmp.ge.s32.totalorder %s26, 4
      %s36 = sphi 0, %s38
      %s39 = sphi 0, %s36
      %s40 = sphi 0, %s39
      %s56 = sphi 0, %s40
      %s60 = sphi 0, %s60
      %s62 = sphi 0, %s60
      %s63 = sphi 0, %s62
      %s77 = sphi 0, %s63
      %s81 = sphi 0, %s81
      %s83 = sphi 0, %s81
      %s84 = sphi 0, %s83
      %s98 = sphi 0, %s84
      %s102 = sphi 0, %s102
      %s104 = sphi 0, %s102
      %s105 = sphi 0, %s104
      %s119 = sphi 0, %s105
      %s123 = sphi 0, %s123
      %s125 = sphi 0, %s123
      %s126 = sphi 0, %s125
      %s140 = sphi 0, %s126
      %s144 = sphi 0, %s144
      %s146 = sphi 0, %s144
      %s147 = sphi 0, %s146
      %s161 = sphi 0, %s147
      %s165 = sphi 0, %s165
      %s167 = sphi 0, %s165
      %s168 = sphi 0, %s167
      %s182 = sphi 0, %s168
      %s186 = sphi 0, %s186
      %s188 = sphi 0, %s186
      %s189 = sphi 0, %s188
      %s203 = sphi 0, %s189
      %s207 = sphi 0, %s207
      %s209 = sphi 0, %s207
      %s210 = sphi 0, %s209
      %s224 = sphi 0, %s210
      %s228 = sphi 0, %s228
      %s230 = sphi 0, %s228
      %s231 = sphi 0, %s230
      %s245 = sphi 0, %s231
      %s249 = sphi 0, %s249
      %s251 = sphi 0, %s249
      %s252 = sphi 0, %s251
      %s266 = sphi 0, %s252
      %s270 = sphi 0, %s270
      %s272 = sphi 0, %s270
      %s273 = sphi 0, %s272
      %s287 = sphi 0, %s273
      %s291 = sphi 0, %s291
      %s293 = sphi 0, %s291
      %s294 = sphi 0, %s293
      %s308 = sphi 0, %s294
      %s312 = sphi 0, %s312
      %s314 = sphi 0, %s312
      %s315 = sphi 0, %s314
      %s329 = sphi 0, %s315
      %s333 = sphi 0, %s333
      %s335 = sphi 0, %s333
      %s336 = sphi 0, %s335
      %s350 = sphi 0, %s336
      %s356 = sphi 0, %s358
      %s359 = sphi 0, %s356
      %s360 = sphi 0, %s359
      %s376 = sphi 0, %s360
    $region4: #{net_forward.1} parent=1 // loop_header_branch
      %29 = sbr.rel (%p27) target = $region8
    $region5: #{net_forward.1} parent=1 // loop_body
      %s31 = ssub.s32 %s26, 1
      %s32 = ssub.s32 %s26, 2
      %s33 = sadd.s32 %s26, 1
      %s34 = ssub.s32 %s26, %s33
      %p35 = scmp.eq.s32.totalorder %s34, 0
      %s37 = sadd.s32 %s36, 1
      %s38 = scalar_select %p35, %s36, %s37
      %p41 = pneg %p35
      %p42 = scmp.eq.s32.totalorder %s26, 1
      %p43 = por %p41, %p42
      %p44 = scmp.ne.s32.totalorder %s36, %s39
      %p45 = scmp.eq.s32.totalorder %s26, 0
      %p46 = por %p44, %p45
      %p47 = scmp.ne.s32.totalorder %s36, %s39
      %p48 = scmp.eq.s32.totalorder %s31, 1
      %p49 = por %p47, %p48
      %p50 = scmp.ne.s32.totalorder %s39, %s40
      %p51 = scmp.eq.s32.totalorder %s31, 0
      %p52 = por %p50, %p51
      %p53 = scmp.ne.s32.totalorder %s39, %s40
      %p54 = scmp.eq.s32.totalorder %s32, 1
      %p55 = por %p53, %p54
      %p57 = scmp.ne.s32.totalorder %s40, %s56
      %p58 = scmp.eq.s32.totalorder %s32, 0
      %p59 = por %p57, %p58
      %s61 = sadd.s32 %s60, 1
      %p64 = scmp.eq.s32.totalorder %s26, 1
      %p65 = scmp.ne.s32.totalorder %s60, %s62
      %p66 = scmp.eq.s32.totalorder %s26, 0
      %p67 = por %p65, %p66
      %p68 = scmp.ne.s32.totalorder %s60, %s62
      %p69 = scmp.eq.s32.totalorder %s31, 1
      %p70 = por %p68, %p69
      %p71 = scmp.ne.s32.totalorder %s62, %s63
      %p72 = scmp.eq.s32.totalorder %s31, 0
      %p73 = por %p71, %p72
      %p74 = scmp.ne.s32.totalorder %s62, %s63
      %p75 = scmp.eq.s32.totalorder %s32, 1
      %p76 = por %p74, %p75
      %p78 = scmp.ne.s32.totalorder %s63, %s77
      %p79 = scmp.eq.s32.totalorder %s32, 0
      %p80 = por %p78, %p79
      %s82 = sadd.s32 %s81, 1
      %p85 = scmp.eq.s32.totalorder %s26, 1
      %p86 = scmp.ne.s32.totalorder %s81, %s83
      %p87 = scmp.eq.s32.totalorder %s26, 0
      %p88 = por %p86, %p87
      %p89 = scmp.ne.s32.totalorder %s81, %s83
      %p90 = scmp.eq.s32.totalorder %s31, 1
      %p91 = por %p89, %p90
      %p92 = scmp.ne.s32.totalorder %s83, %s84
      %p93 = scmp.eq.s32.totalorder %s31, 0
      %p94 = por %p92, %p93
      %p95 = scmp.ne.s32.totalorder %s83, %s84
      %p96 = scmp.eq.s32.totalorder %s32, 1
      %p97 = por %p95, %p96
      %p99 = scmp.ne.s32.totalorder %s84, %s98
      %p100 = scmp.eq.s32.totalorder %s32, 0
      %p101 = por %p99, %p100
      %s103 = sadd.s32 %s102, 1
      %p106 = scmp.eq.s32.totalorder %s26, 1
      %p107 = scmp.ne.s32.totalorder %s102, %s104
      %p108 = scmp.eq.s32.totalorder %s26, 0
      %p109 = por %p107, %p108
      %p110 = scmp.ne.s32.totalorder %s102, %s104
      %p111 = scmp.eq.s32.totalorder %s31, 1
      %p112 = por %p110, %p111
      %p113 = scmp.ne.s32.totalorder %s104, %s105
      %p114 = scmp.eq.s32.totalorder %s31, 0
      %p115 = por %p113, %p114
      %p116 = scmp.ne.s32.totalorder %s104, %s105
      %p117 = scmp.eq.s32.totalorder %s32, 1
      %p118 = por %p116, %p117
      %p120 = scmp.ne.s32.totalorder %s105, %s119
      %p121 = scmp.eq.s32.totalorder %s32, 0
      %p122 = por %p120, %p121
      %s124 = sadd.s32 %s123, 1
      %p127 = scmp.eq.s32.totalorder %s26, 1
      %p128 = scmp.ne.s32.totalorder %s123, %s125
      %p129 = scmp.eq.s32.totalorder %s26, 0
      %p130 = por %p128, %p129
      %p131 = scmp.ne.s32.totalorder %s123, %s125
      %p132 = scmp.eq.s32.totalorder %s31, 1
      %p133 = por %p131, %p132
      %p134 = scmp.ne.s32.totalorder %s125, %s126
      %p135 = scmp.eq.s32.totalorder %s31, 0
      %p136 = por %p134, %p135
      %p137 = scmp.ne.s32.totalorder %s125, %s126
      %p138 = scmp.eq.s32.totalorder %s32, 1
      %p139 = por %p137, %p138
      %p141 = scmp.ne.s32.totalorder %s126, %s140
      %p142 = scmp.eq.s32.totalorder %s32, 0
      %p143 = por %p141, %p142
      %s145 = sadd.s32 %s144, 1
      %p148 = scmp.eq.s32.totalorder %s26, 1
      %p149 = scmp.ne.s32.totalorder %s144, %s146
      %p150 = scmp.eq.s32.totalorder %s26, 0
      %p151 = por %p149, %p150
      %p152 = scmp.ne.s32.totalorder %s144, %s146
      %p153 = scmp.eq.s32.totalorder %s31, 1
      %p154 = por %p152, %p153
      %p155 = scmp.ne.s32.totalorder %s146, %s147
      %p156 = scmp.eq.s32.totalorder %s31, 0
      %p157 = por %p155, %p156
      %p158 = scmp.ne.s32.totalorder %s146, %s147
      %p159 = scmp.eq.s32.totalorder %s32, 1
      %p160 = por %p158, %p159
      %p162 = scmp.ne.s32.totalorder %s147, %s161
      %p163 = scmp.eq.s32.totalorder %s32, 0
      %p164 = por %p162, %p163
      %s166 = sadd.s32 %s165, 1
      %p169 = scmp.eq.s32.totalorder %s26, 1
      %p170 = scmp.ne.s32.totalorder %s165, %s167
      %p171 = scmp.eq.s32.totalorder %s26, 0
      %p172 = por %p170, %p171
      %p173 = scmp.ne.s32.totalorder %s165, %s167
      %p174 = scmp.eq.s32.totalorder %s31, 1
      %p175 = por %p173, %p174
      %p176 = scmp.ne.s32.totalorder %s167, %s168
      %p177 = scmp.eq.s32.totalorder %s31, 0
      %p178 = por %p176, %p177
      %p179 = scmp.ne.s32.totalorder %s167, %s168
      %p180 = scmp.eq.s32.totalorder %s32, 1
      %p181 = por %p179, %p180
      %p183 = scmp.ne.s32.totalorder %s168, %s182
      %p184 = scmp.eq.s32.totalorder %s32, 0
      %p185 = por %p183, %p184
      %s187 = sadd.s32 %s186, 1
      %p190 = scmp.eq.s32.totalorder %s26, 1
      %p191 = scmp.ne.s32.totalorder %s186, %s188
      %p192 = scmp.eq.s32.totalorder %s26, 0
      %p193 = por %p191, %p192
      %p194 = scmp.ne.s32.totalorder %s186, %s188
      %p195 = scmp.eq.s32.totalorder %s31, 1
      %p196 = por %p194, %p195
      %p197 = scmp.ne.s32.totalorder %s188, %s189
      %p198 = scmp.eq.s32.totalorder %s31, 0
      %p199 = por %p197, %p198
      %p200 = scmp.ne.s32.totalorder %s188, %s189
      %p201 = scmp.eq.s32.totalorder %s32, 1
      %p202 = por %p200, %p201
      %p204 = scmp.ne.s32.totalorder %s189, %s203
      %p205 = scmp.eq.s32.totalorder %s32, 0
      %p206 = por %p204, %p205
      %s208 = sadd.s32 %s207, 1
      %p211 = scmp.eq.s32.totalorder %s26, 1
      %p212 = scmp.ne.s32.totalorder %s207, %s209
      %p213 = scmp.eq.s32.totalorder %s26, 0
      %p214 = por %p212, %p213
      %p215 = scmp.ne.s32.totalorder %s207, %s209
      %p216 = scmp.eq.s32.totalorder %s31, 1
      %p217 = por %p215, %p216
      %p218 = scmp.ne.s32.totalorder %s209, %s210
      %p219 = scmp.eq.s32.totalorder %s31, 0
      %p220 = por %p218, %p219
      %p221 = scmp.ne.s32.totalorder %s209, %s210
      %p222 = scmp.eq.s32.totalorder %s32, 1
      %p223 = por %p221, %p222
      %p225 = scmp.ne.s32.totalorder %s210, %s224
      %p226 = scmp.eq.s32.totalorder %s32, 0
      %p227 = por %p225, %p226
      %s229 = sadd.s32 %s228, 1
      %p232 = scmp.eq.s32.totalorder %s26, 1
      %p233 = scmp.ne.s32.totalorder %s228, %s230
      %p234 = scmp.eq.s32.totalorder %s26, 0
      %p235 = por %p233, %p234
      %p236 = scmp.ne.s32.totalorder %s228, %s230
      %p237 = scmp.eq.s32.totalorder %s31, 1
      %p238 = por %p236, %p237
      %p239 = scmp.ne.s32.totalorder %s230, %s231
      %p240 = scmp.eq.s32.totalorder %s31, 0
      %p241 = por %p239, %p240
      %p242 = scmp.ne.s32.totalorder %s230, %s231
      %p243 = scmp.eq.s32.totalorder %s32, 1
      %p244 = por %p242, %p243
      %p246 = scmp.ne.s32.totalorder %s231, %s245
      %p247 = scmp.eq.s32.totalorder %s32, 0
      %p248 = por %p246, %p247
      %s250 = sadd.s32 %s249, 1
      %p253 = scmp.eq.s32.totalorder %s26, 1
      %p254 = scmp.ne.s32.totalorder %s249, %s251
      %p255 = scmp.eq.s32.totalorder %s26, 0
      %p256 = por %p254, %p255
      %p257 = scmp.ne.s32.totalorder %s249, %s251
      %p258 = scmp.eq.s32.totalorder %s31, 1
      %p259 = por %p257, %p258
      %p260 = scmp.ne.s32.totalorder %s251, %s252
      %p261 = scmp.eq.s32.totalorder %s31, 0
      %p262 = por %p260, %p261
      %p263 = scmp.ne.s32.totalorder %s251, %s252
      %p264 = scmp.eq.s32.totalorder %s32, 1
      %p265 = por %p263, %p264
      %p267 = scmp.ne.s32.totalorder %s252, %s266
      %p268 = scmp.eq.s32.totalorder %s32, 0
      %p269 = por %p267, %p268
      %s271 = sadd.s32 %s270, 1
      %p274 = scmp.eq.s32.totalorder %s26, 1
      %p275 = scmp.ne.s32.totalorder %s270, %s272
      %p276 = scmp.eq.s32.totalorder %s26, 0
      %p277 = por %p275, %p276
      %p278 = scmp.ne.s32.totalorder %s270, %s272
      %p279 = scmp.eq.s32.totalorder %s31, 1
      %p280 = por %p278, %p279
      %p281 = scmp.ne.s32.totalorder %s272, %s273
      %p282 = scmp.eq.s32.totalorder %s31, 0
      %p283 = por %p281, %p282
      %p284 = scmp.ne.s32.totalorder %s272, %s273
      %p285 = scmp.eq.s32.totalorder %s32, 1
      %p286 = por %p284, %p285
      %p288 = scmp.ne.s32.totalorder %s273, %s287
      %p289 = scmp.eq.s32.totalorder %s32, 0
      %p290 = por %p288, %p289
      %s292 = sadd.s32 %s291, 1
      %p295 = scmp.eq.s32.totalorder %s26, 1
      %p296 = scmp.ne.s32.totalorder %s291, %s293
      %p297 = scmp.eq.s32.totalorder %s26, 0
      %p298 = por %p296, %p297
      %p299 = scmp.ne.s32.totalorder %s291, %s293
      %p300 = scmp.eq.s32.totalorder %s31, 1
      %p301 = por %p299, %p300
      %p302 = scmp.ne.s32.totalorder %s293, %s294
      %p303 = scmp.eq.s32.totalorder %s31, 0
      %p304 = por %p302, %p303
      %p305 = scmp.ne.s32.totalorder %s293, %s294
      %p306 = scmp.eq.s32.totalorder %s32, 1
      %p307 = por %p305, %p306
      %p309 = scmp.ne.s32.totalorder %s294, %s308
      %p310 = scmp.eq.s32.totalorder %s32, 0
      %p311 = por %p309, %p310
      %s313 = sadd.s32 %s312, 1
      %p316 = scmp.eq.s32.totalorder %s26, 1
      %p317 = scmp.ne.s32.totalorder %s312, %s314
      %p318 = scmp.eq.s32.totalorder %s26, 0
      %p319 = por %p317, %p318
      %p320 = scmp.ne.s32.totalorder %s312, %s314
      %p321 = scmp.eq.s32.totalorder %s31, 1
      %p322 = por %p320, %p321
      %p323 = scmp.ne.s32.totalorder %s314, %s315
      %p324 = scmp.eq.s32.totalorder %s31, 0
      %p325 = por %p323, %p324
      %p326 = scmp.ne.s32.totalorder %s314, %s315
      %p327 = scmp.eq.s32.totalorder %s32, 1
      %p328 = por %p326, %p327
      %p330 = scmp.ne.s32.totalorder %s315, %s329
      %p331 = scmp.eq.s32.totalorder %s32, 0
      %p332 = por %p330, %p331
      %s334 = sadd.s32 %s333, 1
      %p337 = scmp.eq.s32.totalorder %s26, 1
      %p338 = scmp.ne.s32.totalorder %s333, %s335
      %p339 = scmp.eq.s32.totalorder %s26, 0
      %p340 = por %p338, %p339
      %p341 = scmp.ne.s32.totalorder %s333, %s335
      %p342 = scmp.eq.s32.totalorder %s31, 1
      %p343 = por %p341, %p342
      %p344 = scmp.ne.s32.totalorder %s335, %s336
      %p345 = scmp.eq.s32.totalorder %s31, 0
      %p346 = por %p344, %p345
      %p347 = scmp.ne.s32.totalorder %s335, %s336
      %p348 = scmp.eq.s32.totalorder %s32, 1
      %p349 = por %p347, %p348
      %p351 = scmp.ne.s32.totalorder %s336, %s350
      %p352 = scmp.eq.s32.totalorder %s32, 0
      %p353 = por %p351, %p352
      %s354 = ssub.s32 %s26, %s33
      %p355 = scmp.eq.s32.totalorder %s354, 0
      %s357 = sadd.s32 %s356, 1
      %s358 = scalar_select %p355, %s356, %s357
      %p361 = pneg %p355
      %p362 = scmp.eq.s32.totalorder %s26, 1
      %p363 = por %p361, %p362
      %p364 = scmp.ne.s32.totalorder %s356, %s359
      %p365 = scmp.eq.s32.totalorder %s26, 0
      %p366 = por %p364, %p365
      %p367 = scmp.ne.s32.totalorder %s356, %s359
      %p368 = scmp.eq.s32.totalorder %s31, 1
      %p369 = por %p367, %p368
      %p370 = scmp.ne.s32.totalorder %s359, %s360
      %p371 = scmp.eq.s32.totalorder %s31, 0
      %p372 = por %p370, %p371
      %p373 = scmp.ne.s32.totalorder %s359, %s360
      %p374 = scmp.eq.s32.totalorder %s32, 1
      %p375 = por %p373, %p374
      %p377 = scmp.ne.s32.totalorder %s360, %s376
      %p378 = scmp.eq.s32.totalorder %s32, 0
      %p379 = por %p377, %p378
      %p380 = scmp.le.s32.totalorder 1, %s26
      %p381 = scmp.lt.s32.totalorder %s26, 3
      %p382 = pnand %p380, %p381
      %p383 = pneg %p382
      // Predicated region
      $region9: #{net_forward.1} parent=5 // pred_check
        _
      $region10: #{net_forward.1} parent=5 // pred_check_branch
        %385 = sbr.rel (%p382) target = $region12
      $region11: #{net_forward.1} parent=5 // pred_region
        %s386 = ssub.s32 %s26, 1
        // Predicated region
        $region13: #{net_forward.1} parent=11 // pred_check
          %p387 = pneg %p73
        $region14: #{net_forward.1} parent=11 // pred_check_branch
          %389 = sbr.rel (%p387) target = $region16
        $region15: #{net_forward.1} parent=11 // pred_region
          _
        $region16: #{net_forward.1} parent=11 // pred_fallthru
          _
        // Predicated region
        $region17: #{net_forward.1} parent=11 // pred_check
          %p390 = pneg %p94
        $region18: #{net_forward.1} parent=11 // pred_check_branch
          %392 = sbr.rel (%p390) target = $region20
        $region19: #{net_forward.1} parent=11 // pred_region
          _
        $region20: #{net_forward.1} parent=11 // pred_fallthru
          _
        // Predicated region
        $region21: #{net_forward.1} parent=11 // pred_check
          %p393 = pneg %p115
        $region22: #{net_forward.1} parent=11 // pred_check_branch
          %395 = sbr.rel (%p393) target = $region24
        $region23: #{net_forward.1} parent=11 // pred_region
          _
        $region24: #{net_forward.1} parent=11 // pred_fallthru
          _
        // Predicated region
        $region25: #{net_forward.1} parent=11 // pred_check
          %p396 = pneg %p136
        $region26: #{net_forward.1} parent=11 // pred_check_branch
          %398 = sbr.rel (%p396) target = $region28
        $region27: #{net_forward.1} parent=11 // pred_region
          %400 = vsyncadd [#allocation3], 0
          %s401 = sshll.u32 %s4, 4
          %s402 = int_to_ptr.hbm [resolvable:$true] %s401
          %s403 = sshll.u32 [#allocation2], 4
          %s404 = int_to_ptr.vmem [resolvable:$true] %s403
          %409 = dma.hbm_to_vmem [thread:$0]  %s402, 2688, %s404, [#allocation3], 128, 128, 8
        $region28: #{net_forward.1} parent=11 // pred_fallthru
          _
        // Predicated region
        $region29: #{net_forward.1} parent=11 // pred_check
          %p410 = pneg %p157
        $region30: #{net_forward.1} parent=11 // pred_check_branch
          %412 = sbr.rel (%p410) target = $region32
        $region31: #{net_forward.1} parent=11 // pred_region
          %414 = vsyncadd [#allocation6], 0
          %s415 = sshll.u32 %s5, 4
          %s416 = int_to_ptr.hbm [resolvable:$true] %s415
          %s417 = sshll.u32 [#allocation5], 4
          %s418 = int_to_ptr.vmem [resolvable:$true] %s417
          %423 = dma.hbm_to_vmem [thread:$0]  %s416, 8448, %s418, [#allocation6], 256, 256, 16
        $region32: #{net_forward.1} parent=11 // pred_fallthru
          _
        // Predicated region
        $region33: #{net_forward.1} parent=11 // pred_check
          %p424 = pneg %p178
        $region34: #{net_forward.1} parent=11 // pred_check_branch
          %426 = sbr.rel (%p424) target = $region36
        $region35: #{net_forward.1} parent=11 // pred_region
          _
        $region36: #{net_forward.1} parent=11 // pred_fallthru
          _
        // Predicated region
        $region37: #{net_forward.1} parent=11 // pred_check
          %p427 = pneg %p199
        $region38: #{net_forward.1} parent=11 // pred_check_branch
          %429 = sbr.rel (%p427) target = $region40
        $region39: #{net_forward.1} parent=11 // pred_region
          _
        $region40: #{net_forward.1} parent=11 // pred_fallthru
          _
        // Predicated region
        $region41: #{net_forward.1} parent=11 // pred_check
          %p430 = pneg %p220
        $region42: #{net_forward.1} parent=11 // pred_check_branch
          %432 = sbr.rel (%p430) target = $region44
        $region43: #{net_forward.1} parent=11 // pred_region
          _
        $region44: #{net_forward.1} parent=11 // pred_fallthru
          _
        // Predicated region
        $region45: #{net_forward.1} parent=11 // pred_check
          %p433 = pneg %p241
        $region46: #{net_forward.1} parent=11 // pred_check_branch
          %435 = sbr.rel (%p433) target = $region48
        $region47: #{net_forward.1} parent=11 // pred_region
          %437 = vsyncadd [#allocation6], 0
          %s438 = sshll.u32 %s9, 4
          %s439 = int_to_ptr.hbm [resolvable:$true] %s438
          %s440 = sshll.u32 [#allocation7], 4
          %s441 = int_to_ptr.vmem [resolvable:$true] %s440
          %446 = dma.hbm_to_vmem [thread:$0]  %s439, 9216, %s441, [#allocation6], 128, 128, 8
        $region48: #{net_forward.1} parent=11 // pred_fallthru
          _
        // Predicated region
        $region49: #{net_forward.1} parent=11 // pred_check
          %p447 = pneg %p262
        $region50: #{net_forward.1} parent=11 // pred_check_branch
          %449 = sbr.rel (%p447) target = $region52
        $region51: #{net_forward.1} parent=11 // pred_region
          _
        $region52: #{net_forward.1} parent=11 // pred_fallthru
          _
        // Predicated region
        $region53: #{net_forward.1} parent=11 // pred_check
          %p450 = pneg %p283
        $region54: #{net_forward.1} parent=11 // pred_check_branch
          %452 = sbr.rel (%p450) target = $region56
        $region55: #{net_forward.1} parent=11 // pred_region
          _
        $region56: #{net_forward.1} parent=11 // pred_fallthru
          _
        // Predicated region
        $region57: #{net_forward.1} parent=11 // pred_check
          %p453 = pneg %p304
        $region58: #{net_forward.1} parent=11 // pred_check_branch
          %455 = sbr.rel (%p453) target = $region60
        $region59: #{net_forward.1} parent=11 // pred_region
          _
        $region60: #{net_forward.1} parent=11 // pred_fallthru
          _
        // Predicated region
        $region61: #{net_forward.1} parent=11 // pred_check
          %p456 = pneg %p325
        $region62: #{net_forward.1} parent=11 // pred_check_branch
          %458 = sbr.rel (%p456) target = $region64
        $region63: #{net_forward.1} parent=11 // pred_region
          _
        $region64: #{net_forward.1} parent=11 // pred_fallthru
          _
        // Predicated region
        $region65: #{net_forward.1} parent=11 // pred_check
          %p459 = pneg %p346
        $region66: #{net_forward.1} parent=11 // pred_check_branch
          %461 = sbr.rel (%p459) target = $region68
        $region67: #{net_forward.1} parent=11 // pred_region
          _
        $region68: #{net_forward.1} parent=11 // pred_fallthru
          _
      $region12: #{net_forward.1} parent=5 // pred_fallthru
        _
      %p462 = scmp.lt.s32.totalorder %s26, 2
      // Predicated region
      $region69: #{net_forward.1} parent=5 // pred_check
        %p463 = pneg %p462
      $region70: #{net_forward.1} parent=5 // pred_check_branch
        %465 = sbr.rel (%p463) target = $region72
      $region71: #{net_forward.1} parent=5 // pred_region
        // Predicated region
        $region73: #{net_forward.1} parent=71 // pred_check
          %p466 = pneg %p46
        $region74: #{net_forward.1} parent=71 // pred_check_branch
          %468 = sbr.rel (%p466) target = $region76
        $region75: #{net_forward.1} parent=71 // pred_region
          %p469 = scmp.lt.s32.totalorder %s26, 1
          %s470 = scalar_select %p469, %s26, 1
          %s471 = smul.addr %s470, 4
          %s472 = smul.addr %s471, 8
          %s473 = scalar_lea.vmem %s0, %s472
        $region76: #{net_forward.1} parent=71 // pred_fallthru
          _
      $region72: #{net_forward.1} parent=5 // pred_fallthru
        _
      %p474 = scmp.le.s32.totalorder 1, %s26
      %p475 = scmp.lt.s32.totalorder %s26, 3
      %p476 = pnand %p474, %p475
      %p477 = pneg %p476
      // Predicated region
      $region77: #{net_forward.1} parent=5 // pred_check
        _
      $region78: #{net_forward.1} parent=5 // pred_check_branch
        %479 = sbr.rel (%p476) target = $region80
      $region79: #{net_forward.1} parent=5 // pred_region
        %s480 = ssub.s32 %s26, 1
        // Predicated region
        $region81: #{net_forward.1} parent=79 // pred_check
          %p481 = pneg %p136
        $region82: #{net_forward.1} parent=79 // pred_check_branch
          %483 = sbr.rel (%p481) target = $region84
        $region83: #{net_forward.1} parent=79 // pred_region
          %485 = dma.done [#allocation3], 2688
        $region84: #{net_forward.1} parent=79 // pred_fallthru
          _
        // Predicated region
        $region85: #{net_forward.1} parent=79 // pred_check
          %p486 = pneg %p157
        $region86: #{net_forward.1} parent=79 // pred_check_branch
          %488 = sbr.rel (%p486) target = $region88
        $region87: #{net_forward.1} parent=79 // pred_region
          %490 = dma.done [#allocation6], 8448
        $region88: #{net_forward.1} parent=79 // pred_fallthru
          _
        // Predicated region
        $region89: #{net_forward.1} parent=79 // pred_check
          %p491 = pneg %p241
        $region90: #{net_forward.1} parent=79 // pred_check_branch
          %493 = sbr.rel (%p491) target = $region92
        $region91: #{net_forward.1} parent=79 // pred_region
          %495 = dma.done [#allocation6], 9216
        $region92: #{net_forward.1} parent=79 // pred_fallthru
          _
        %p496 = scmp.lt.s32.totalorder %s31, 1
        %s497 = scalar_select %p496, %s31, 1
        %s498 = smul.addr %s497, 4
        %s499 = smul.addr %s498, 8
        %s500 = scalar_lea.vmem %s0, %s499
        %p501 = pneg %p52
        %p502 = pneg %p49
        %p503 = pneg %p73
        %p504 = pneg %p70
        %p505 = pneg %p94
        %p506 = pneg %p91
        %p507 = pneg %p115
        %p508 = pneg %p112
        %p509 = pneg %p136
        %p510 = pneg %p133
        %p511 = pneg %p157
        %p512 = pneg %p154
        %p513 = pneg %p178
        %p514 = pneg %p175
        %p515 = pneg %p199
        %p516 = pneg %p196
        %p517 = pneg %p220
        %p518 = pneg %p217
        %p519 = pneg %p241
        %p520 = pneg %p238
        %p521 = pneg %p262
        %p522 = pneg %p259
        %p523 = pneg %p283
        %p524 = pneg %p280
        %p525 = pneg %p304
        %p526 = pneg %p301
        %p527 = pneg %p325
        %p528 = pneg %p322
        %p529 = pneg %p346
        %p530 = pneg %p343
        %p531 = pneg %p372
        %p532 = pneg %p369
        %s533 = sand.u32 %s359, 1
        %s534 = scalar_lea.sflag [#allocation4], %s533
        %s535 = sand.u32 %s359, 1
        %s536 = scalar_lea.vmem [#allocation8], %s535
        %p537 = scmp.lt.s32.totalorder %s31, 1
        %s538 = scalar_select %p537, %s31, 1
        %s539 = smul.addr %s538, 4
        %s540 = smul.addr %s539, 8
        %s541 = scalar_lea.vmem %s0, %s540
        %v542 = vld [vmem:[%s541] sm:$0xff]
        %v543 = vld [vmem:[%s541 + $0x8] sm:$0xff]
        %v544 = vld [vmem:[%s541 + $0x10] sm:$0xff]
        %v545 = vld [vmem:[%s541 + $0x18] sm:$0x3f]
        %v546 = vld [vmem:[%s1] sm:$0xff]
        %v547 = vld [vmem:[%s1 + $0x8] sm:$0xff]
        %v548 = vld [vmem:[%s1 + $0x10] sm:$0xff]
        %v549 = vld [vmem:[%s1 + $0x18] sm:$0xff]
        %v550 = vld [vmem:[%s1 + $0x20] sm:$0xff]
        %v551 = vld [vmem:[%s1 + $0x28] sm:$0xff]
        %v552 = vld [vmem:[%s1 + $0x30] sm:$0x3f]
        %v553 = vld [vmem:[%s1 + $0x38] sm:$0x3f]
        %s554 = scalar_lea.vmem %s1, 64
        %v555 = vld [vmem:[%s554] sm:$0xff]
        %v556 = vld [vmem:[%s554 + $0x8] sm:$0xff]
        %v557 = vld [vmem:[%s554 + $0x10] sm:$0xff]
        %v558 = vld [vmem:[%s554 + $0x18] sm:$0xff]
        %v559 = vld [vmem:[%s554 + $0x20] sm:$0xff]
        %v560 = vld [vmem:[%s554 + $0x28] sm:$0xff]
        %v561 = vld [vmem:[%s554 + $0x30] sm:$0x3f]
        %v562 = vld [vmem:[%s554 + $0x38] sm:$0x3f]
        %vm567 = vcmask 1046528
        %v568 = vrot.slane %v542, 1
        %v569 = vrot.slane %v543, 1
        %v570 = vsel %vm567, %v568, %v569
        %v571 = vrot.slane %v544, 1
        %v572 = vsel %vm567, %v569, %v571
        %v573 = vrot.slane %v545, 1
        %v574 = vsel %vm567, %v571, %v573
        %vm575 = vcmask 244736
        %v576 = vsel %vm575, %v570, 0
        %v578 = vsel %vm575, %v572, 0
        %v580 = vsel %vm575, %v574, 0
        %v582 = vsel %vm575, %v573, 0
        %vm584 = vcmask 1045504
        %v586 = vsel %vm584, %v561, 0
        %v589 = vsel %vm584, %v562, 0
        %591 = vmatpush.msra.mxu0 0.0
        %592 = vmatpush.msra.mxu0 0.0
        %593 = vmatpush.msra.mxu0 0.0
        %594 = vmatpush.msra.mxu0 0.0
        %595 = vmatpush.msra.mxu0 0.0
        %596 = vmatpush.msra.mxu0 0.0
        %597 = vmatpush.msra.mxu0 0.0
        %598 = vmatpush.msra.mxu0 0.0
        %599 = vmatpush.msra.mxu0 0.0
        %600 = vmatpush.msra.mxu0 0.0
        %601 = vmatpush.msra.mxu0 0.0
        %602 = vmatpush.msra.mxu0 0.0
        %v603 = vand.u32 %v586, 4294901760
        %604 = vmatpush.msra.mxu0 %v603
        %v605 = vand.u32 %v559, 4294901760
        %606 = vmatpush.msra.mxu0 %v605
        %v607 = vand.u32 %v557, 4294901760
        %608 = vmatpush.msra.mxu0 %v607
        %v609 = vand.u32 %v555, 4294901760
        %610 = vmatpush.msra.mxu0 %v609
        %v611 = vand.u32 %v576, 4294901760
        %v612 = vsub.f32 %v576, %v611
        %v613 = vand.u32 %v612, 4294901760
        %v614 = vsub.f32 %v612, %v613
        %v615 = vand.u32 %v614, 4294901760
        %616 = vmatmul.f32.gmra.mxu0 %v615
        %v617 = vpop.f32.mrf.mxu0
        %v618 = vadd.f32 0.0, %v617
        %v619 = vand.u32 %v578, 4294901760
        %v620 = vsub.f32 %v578, %v619
        %v621 = vand.u32 %v620, 4294901760
        %v622 = vsub.f32 %v620, %v621
        %v623 = vand.u32 %v622, 4294901760
        %624 = vmatmul.f32.gmra.mxu0 %v623
        %v625 = vpop.f32.mrf.mxu0
        %v626 = vadd.f32 0.0, %v625
        %v627 = vand.u32 %v580, 4294901760
        %v628 = vsub.f32 %v580, %v627
        %v629 = vand.u32 %v628, 4294901760
        %v630 = vsub.f32 %v628, %v629
        %v631 = vand.u32 %v630, 4294901760
        %632 = vmatmul.f32.gmra.mxu0 %v631
        %v633 = vpop.f32.mrf.mxu0
        %v634 = vadd.f32 0.0, %v633
        %v635 = vand.u32 %v582, 4294901760
        %v636 = vsub.f32 %v582, %v635
        %v637 = vand.u32 %v636, 4294901760
        %v638 = vsub.f32 %v636, %v637
        %v639 = vand.u32 %v638, 4294901760
        %640 = vmatmul.f32.gmra.mxu0 %v639
        %v641 = vpop.f32.mrf.mxu0
        %v642 = vadd.f32 0.0, %v641
        %643 = vdwg.mxu0
        %644 = vmatpush.msra.mxu0 0.0
        %645 = vmatpush.msra.mxu0 0.0
        %646 = vmatpush.msra.mxu0 0.0
        %647 = vmatpush.msra.mxu0 0.0
        %648 = vmatpush.msra.mxu0 0.0
        %649 = vmatpush.msra.mxu0 0.0
        %650 = vmatpush.msra.mxu0 0.0
        %651 = vmatpush.msra.mxu0 0.0
        %652 = vmatpush.msra.mxu0 0.0
        %653 = vmatpush.msra.mxu0 0.0
        %654 = vmatpush.msra.mxu0 0.0
        %655 = vmatpush.msra.mxu0 0.0
        %v656 = vand.u32 %v586, 4294901760
        %v657 = vsub.f32 %v586, %v656
        %v658 = vand.u32 %v657, 4294901760
        %v659 = vsub.f32 %v657, %v658
        %v660 = vand.u32 %v659, 4294901760
        %661 = vmatpush.msra.mxu0 %v660
        %v662 = vand.u32 %v559, 4294901760
        %v663 = vsub.f32 %v559, %v662
        %v664 = vand.u32 %v663, 4294901760
        %v665 = vsub.f32 %v663, %v664
        %v666 = vand.u32 %v665, 4294901760
        %667 = vmatpush.msra.mxu0 %v666
        %v668 = vand.u32 %v557, 4294901760
        %v669 = vsub.f32 %v557, %v668
        %v670 = vand.u32 %v669, 4294901760
        %v671 = vsub.f32 %v669, %v670
        %v672 = vand.u32 %v671, 4294901760
        %673 = vmatpush.msra.mxu0 %v672
        %v674 = vand.u32 %v555, 4294901760
        %v675 = vsub.f32 %v555, %v674
        %v676 = vand.u32 %v675, 4294901760
        %v677 = vsub.f32 %v675, %v676
        %v678 = vand.u32 %v677, 4294901760
        %679 = vmatpush.msra.mxu0 %v678
        %v680 = vand.u32 %v576, 4294901760
        %681 = vmatmul.f32.gmra.mxu0 %v680
        %v682 = vpop.f32.mrf.mxu0
        %v683 = vadd.f32 %v618, %v682
        %v684 = vand.u32 %v578, 4294901760
        %685 = vmatmul.f32.gmra.mxu0 %v684
        %v686 = vpop.f32.mrf.mxu0
        %v687 = vadd.f32 %v626, %v686
        %v688 = vand.u32 %v580, 4294901760
        %689 = vmatmul.f32.gmra.mxu0 %v688
        %v690 = vpop.f32.mrf.mxu0
        %v691 = vadd.f32 %v634, %v690
        %v692 = vand.u32 %v582, 4294901760
        %693 = vmatmul.f32.gmra.mxu0 %v692
        %v694 = vpop.f32.mrf.mxu0
        %v695 = vadd.f32 %v642, %v694
        %696 = vdwg.mxu0
        %697 = vmatpush.msra.mxu0 0.0
        %698 = vmatpush.msra.mxu0 0.0
        %699 = vmatpush.msra.mxu0 0.0
        %700 = vmatpush.msra.mxu0 0.0
        %701 = vmatpush.msra.mxu0 0.0
        %702 = vmatpush.msra.mxu0 0.0
        %703 = vmatpush.msra.mxu0 0.0
        %704 = vmatpush.msra.mxu0 0.0
        %705 = vmatpush.msra.mxu0 0.0
        %706 = vmatpush.msra.mxu0 0.0
        %707 = vmatpush.msra.mxu0 0.0
        %708 = vmatpush.msra.mxu0 0.0
        %v709 = vand.u32 %v586, 4294901760
        %v710 = vsub.f32 %v586, %v709
        %711 = vmatpush.msra.mxu0 %v710
        %v712 = vand.u32 %v559, 4294901760
        %v713 = vsub.f32 %v559, %v712
        %714 = vmatpush.msra.mxu0 %v713
        %v715 = vand.u32 %v557, 4294901760
        %v716 = vsub.f32 %v557, %v715
        %717 = vmatpush.msra.mxu0 %v716
        %v718 = vand.u32 %v555, 4294901760
        %v719 = vsub.f32 %v555, %v718
        %720 = vmatpush.msra.mxu0 %v719
        %v721 = vand.u32 %v576, 4294901760
        %v722 = vsub.f32 %v576, %v721
        %723 = vmatmul.f32.gmra.mxu0 %v722
        %v724 = vpop.f32.mrf.mxu0
        %v725 = vadd.f32 %v683, %v724
        %v726 = vand.u32 %v578, 4294901760
        %v727 = vsub.f32 %v578, %v726
        %728 = vmatmul.f32.gmra.mxu0 %v727
        %v729 = vpop.f32.mrf.mxu0
        %v730 = vadd.f32 %v687, %v729
        %v731 = vand.u32 %v580, 4294901760
        %v732 = vsub.f32 %v580, %v731
        %733 = vmatmul.f32.gmra.mxu0 %v732
        %v734 = vpop.f32.mrf.mxu0
        %v735 = vadd.f32 %v691, %v734
        %v736 = vand.u32 %v582, 4294901760
        %v737 = vsub.f32 %v582, %v736
        %738 = vmatmul.f32.gmra.mxu0 %v737
        %v739 = vpop.f32.mrf.mxu0
        %v740 = vadd.f32 %v695, %v739
        %741 = vdwg.mxu0
        %742 = vmatpush.msra.mxu0 0.0
        %743 = vmatpush.msra.mxu0 0.0
        %744 = vmatpush.msra.mxu0 0.0
        %745 = vmatpush.msra.mxu0 0.0
        %746 = vmatpush.msra.mxu0 0.0
        %747 = vmatpush.msra.mxu0 0.0
        %748 = vmatpush.msra.mxu0 0.0
        %749 = vmatpush.msra.mxu0 0.0
        %750 = vmatpush.msra.mxu0 0.0
        %751 = vmatpush.msra.mxu0 0.0
        %752 = vmatpush.msra.mxu0 0.0
        %753 = vmatpush.msra.mxu0 0.0
        %v754 = vand.u32 %v586, 4294901760
        %755 = vmatpush.msra.mxu0 %v754
        %v756 = vand.u32 %v559, 4294901760
        %757 = vmatpush.msra.mxu0 %v756
        %v758 = vand.u32 %v557, 4294901760
        %759 = vmatpush.msra.mxu0 %v758
        %v760 = vand.u32 %v555, 4294901760
        %761 = vmatpush.msra.mxu0 %v760
        %v762 = vand.u32 %v576, 4294901760
        %v763 = vsub.f32 %v576, %v762
        %v764 = vand.u32 %v763, 4294901760
        %765 = vmatmul.f32.gmra.mxu0 %v764
        %v766 = vpop.f32.mrf.mxu0
        %v767 = vadd.f32 %v725, %v766
        %v768 = vand.u32 %v578, 4294901760
        %v769 = vsub.f32 %v578, %v768
        %v770 = vand.u32 %v769, 4294901760
        %771 = vmatmul.f32.gmra.mxu0 %v770
        %v772 = vpop.f32.mrf.mxu0
        %v773 = vadd.f32 %v730, %v772
        %v774 = vand.u32 %v580, 4294901760
        %v775 = vsub.f32 %v580, %v774
        %v776 = vand.u32 %v775, 4294901760
        %777 = vmatmul.f32.gmra.mxu0 %v776
        %v778 = vpop.f32.mrf.mxu0
        %v779 = vadd.f32 %v735, %v778
        %v780 = vand.u32 %v582, 4294901760
        %v781 = vsub.f32 %v582, %v780
        %v782 = vand.u32 %v781, 4294901760
        %783 = vmatmul.f32.gmra.mxu0 %v782
        %v784 = vpop.f32.mrf.mxu0
        %v785 = vadd.f32 %v740, %v784
        %786 = vdwg.mxu0
        %787 = vmatpush.msra.mxu0 0.0
        %788 = vmatpush.msra.mxu0 0.0
        %789 = vmatpush.msra.mxu0 0.0
        %790 = vmatpush.msra.mxu0 0.0
        %791 = vmatpush.msra.mxu0 0.0
        %792 = vmatpush.msra.mxu0 0.0
        %793 = vmatpush.msra.mxu0 0.0
        %794 = vmatpush.msra.mxu0 0.0
        %795 = vmatpush.msra.mxu0 0.0
        %796 = vmatpush.msra.mxu0 0.0
        %797 = vmatpush.msra.mxu0 0.0
        %798 = vmatpush.msra.mxu0 0.0
        %v799 = vand.u32 %v586, 4294901760
        %v800 = vsub.f32 %v586, %v799
        %v801 = vand.u32 %v800, 4294901760
        %802 = vmatpush.msra.mxu0 %v801
        %v803 = vand.u32 %v559, 4294901760
        %v804 = vsub.f32 %v559, %v803
        %v805 = vand.u32 %v804, 4294901760
        %806 = vmatpush.msra.mxu0 %v805
        %v807 = vand.u32 %v557, 4294901760
        %v808 = vsub.f32 %v557, %v807
        %v809 = vand.u32 %v808, 4294901760
        %810 = vmatpush.msra.mxu0 %v809
        %v811 = vand.u32 %v555, 4294901760
        %v812 = vsub.f32 %v555, %v811
        %v813 = vand.u32 %v812, 4294901760
        %814 = vmatpush.msra.mxu0 %v813
        %v815 = vand.u32 %v576, 4294901760
        %816 = vmatmul.f32.gmra.mxu0 %v815
        %v817 = vpop.f32.mrf.mxu0
        %v818 = vadd.f32 %v767, %v817
        %v819 = vand.u32 %v578, 4294901760
        %820 = vmatmul.f32.gmra.mxu0 %v819
        %v821 = vpop.f32.mrf.mxu0
        %v822 = vadd.f32 %v773, %v821
        %v823 = vand.u32 %v580, 4294901760
        %824 = vmatmul.f32.gmra.mxu0 %v823
        %v825 = vpop.f32.mrf.mxu0
        %v826 = vadd.f32 %v779, %v825
        %v827 = vand.u32 %v582, 4294901760
        %828 = vmatmul.f32.gmra.mxu0 %v827
        %v829 = vpop.f32.mrf.mxu0
        %v830 = vadd.f32 %v785, %v829
        %831 = vdwg.mxu0
        %832 = vmatpush.msra.mxu0 0.0
        %833 = vmatpush.msra.mxu0 0.0
        %834 = vmatpush.msra.mxu0 0.0
        %835 = vmatpush.msra.mxu0 0.0
        %836 = vmatpush.msra.mxu0 0.0
        %837 = vmatpush.msra.mxu0 0.0
        %838 = vmatpush.msra.mxu0 0.0
        %839 = vmatpush.msra.mxu0 0.0
        %840 = vmatpush.msra.mxu0 0.0
        %841 = vmatpush.msra.mxu0 0.0
        %842 = vmatpush.msra.mxu0 0.0
        %843 = vmatpush.msra.mxu0 0.0
        %v844 = vand.u32 %v586, 4294901760
        %845 = vmatpush.msra.mxu0 %v844
        %v846 = vand.u32 %v559, 4294901760
        %847 = vmatpush.msra.mxu0 %v846
        %v848 = vand.u32 %v557, 4294901760
        %849 = vmatpush.msra.mxu0 %v848
        %v850 = vand.u32 %v555, 4294901760
        %851 = vmatpush.msra.mxu0 %v850
        %v852 = vand.u32 %v576, 4294901760
        %853 = vmatmul.f32.gmra.mxu0 %v852
        %v854 = vpop.f32.mrf.mxu0
        %v855 = vadd.f32 %v818, %v854
        %v856 = vand.u32 %v578, 4294901760
        %857 = vmatmul.f32.gmra.mxu0 %v856
        %v858 = vpop.f32.mrf.mxu0
        %v859 = vadd.f32 %v822, %v858
        %v860 = vand.u32 %v580, 4294901760
        %861 = vmatmul.f32.gmra.mxu0 %v860
        %v862 = vpop.f32.mrf.mxu0
        %v863 = vadd.f32 %v826, %v862
        %v864 = vand.u32 %v582, 4294901760
        %865 = vmatmul.f32.gmra.mxu0 %v864
        %v866 = vpop.f32.mrf.mxu0
        %v867 = vadd.f32 %v830, %v866
        %868 = vdwg.mxu0
        %869 = vmatpush.msra.mxu0 0.0
        %870 = vmatpush.msra.mxu0 0.0
        %871 = vmatpush.msra.mxu0 0.0
        %872 = vmatpush.msra.mxu0 0.0
        %873 = vmatpush.msra.mxu0 0.0
        %874 = vmatpush.msra.mxu0 0.0
        %875 = vmatpush.msra.mxu0 0.0
        %876 = vmatpush.msra.mxu0 0.0
        %877 = vmatpush.msra.mxu0 0.0
        %878 = vmatpush.msra.mxu0 0.0
        %879 = vmatpush.msra.mxu0 0.0
        %880 = vmatpush.msra.mxu0 0.0
        %v881 = vand.u32 %v589, 4294901760
        %882 = vmatpush.msra.mxu0 %v881
        %v883 = vand.u32 %v560, 4294901760
        %884 = vmatpush.msra.mxu0 %v883
        %v885 = vand.u32 %v558, 4294901760
        %886 = vmatpush.msra.mxu0 %v885
        %v887 = vand.u32 %v556, 4294901760
        %888 = vmatpush.msra.mxu0 %v887
        %v889 = vand.u32 %v576, 4294901760
        %v890 = vsub.f32 %v576, %v889
        %v891 = vand.u32 %v890, 4294901760
        %v892 = vsub.f32 %v890, %v891
        %v893 = vand.u32 %v892, 4294901760
        %894 = vmatmul.f32.gmra.mxu0 %v893
        %v895 = vpop.f32.mrf.mxu0
        %v896 = vadd.f32 0.0, %v895
        %v897 = vand.u32 %v578, 4294901760
        %v898 = vsub.f32 %v578, %v897
        %v899 = vand.u32 %v898, 4294901760
        %v900 = vsub.f32 %v898, %v899
        %v901 = vand.u32 %v900, 4294901760
        %902 = vmatmul.f32.gmra.mxu0 %v901
        %v903 = vpop.f32.mrf.mxu0
        %v904 = vadd.f32 0.0, %v903
        %v905 = vand.u32 %v580, 4294901760
        %v906 = vsub.f32 %v580, %v905
        %v907 = vand.u32 %v906, 4294901760
        %v908 = vsub.f32 %v906, %v907
        %v909 = vand.u32 %v908, 4294901760
        %910 = vmatmul.f32.gmra.mxu0 %v909
        %v911 = vpop.f32.mrf.mxu0
        %v912 = vadd.f32 0.0, %v911
        %v913 = vand.u32 %v582, 4294901760
        %v914 = vsub.f32 %v582, %v913
        %v915 = vand.u32 %v914, 4294901760
        %v916 = vsub.f32 %v914, %v915
        %v917 = vand.u32 %v916, 4294901760
        %918 = vmatmul.f32.gmra.mxu0 %v917
        %v919 = vpop.f32.mrf.mxu0
        %v920 = vadd.f32 0.0, %v919
        %921 = vdwg.mxu0
        %922 = vmatpush.msra.mxu0 0.0
        %923 = vmatpush.msra.mxu0 0.0
        %924 = vmatpush.msra.mxu0 0.0
        %925 = vmatpush.msra.mxu0 0.0
        %926 = vmatpush.msra.mxu0 0.0
        %927 = vmatpush.msra.mxu0 0.0
        %928 = vmatpush.msra.mxu0 0.0
        %929 = vmatpush.msra.mxu0 0.0
        %930 = vmatpush.msra.mxu0 0.0
        %931 = vmatpush.msra.mxu0 0.0
        %932 = vmatpush.msra.mxu0 0.0
        %933 = vmatpush.msra.mxu0 0.0
        %v934 = vand.u32 %v589, 4294901760
        %v935 = vsub.f32 %v589, %v934
        %v936 = vand.u32 %v935, 4294901760
        %v937 = vsub.f32 %v935, %v936
        %v938 = vand.u32 %v937, 4294901760
        %939 = vmatpush.msra.mxu0 %v938
        %v940 = vand.u32 %v560, 4294901760
        %v941 = vsub.f32 %v560, %v940
        %v942 = vand.u32 %v941, 4294901760
        %v943 = vsub.f32 %v941, %v942
        %v944 = vand.u32 %v943, 4294901760
        %945 = vmatpush.msra.mxu0 %v944
        %v946 = vand.u32 %v558, 4294901760
        %v947 = vsub.f32 %v558, %v946
        %v948 = vand.u32 %v947, 4294901760
        %v949 = vsub.f32 %v947, %v948
        %v950 = vand.u32 %v949, 4294901760
        %951 = vmatpush.msra.mxu0 %v950
        %v952 = vand.u32 %v556, 4294901760
        %v953 = vsub.f32 %v556, %v952
        %v954 = vand.u32 %v953, 4294901760
        %v955 = vsub.f32 %v953, %v954
        %v956 = vand.u32 %v955, 4294901760
        %957 = vmatpush.msra.mxu0 %v956
        %v958 = vand.u32 %v576, 4294901760
        %959 = vmatmul.f32.gmra.mxu0 %v958
        %v960 = vpop.f32.mrf.mxu0
        %v961 = vadd.f32 %v896, %v960
        %v962 = vand.u32 %v578, 4294901760
        %963 = vmatmul.f32.gmra.mxu0 %v962
        %v964 = vpop.f32.mrf.mxu0
        %v965 = vadd.f32 %v904, %v964
        %v966 = vand.u32 %v580, 4294901760
        %967 = vmatmul.f32.gmra.mxu0 %v966
        %v968 = vpop.f32.mrf.mxu0
        %v969 = vadd.f32 %v912, %v968
        %v970 = vand.u32 %v582, 4294901760
        %971 = vmatmul.f32.gmra.mxu0 %v970
        %v972 = vpop.f32.mrf.mxu0
        %v973 = vadd.f32 %v920, %v972
        %974 = vdwg.mxu0
        %975 = vmatpush.msra.mxu0 0.0
        %976 = vmatpush.msra.mxu0 0.0
        %977 = vmatpush.msra.mxu0 0.0
        %978 = vmatpush.msra.mxu0 0.0
        %979 = vmatpush.msra.mxu0 0.0
        %980 = vmatpush.msra.mxu0 0.0
        %981 = vmatpush.msra.mxu0 0.0
        %982 = vmatpush.msra.mxu0 0.0
        %983 = vmatpush.msra.mxu0 0.0
        %984 = vmatpush.msra.mxu0 0.0
        %985 = vmatpush.msra.mxu0 0.0
        %986 = vmatpush.msra.mxu0 0.0
        %v987 = vand.u32 %v589, 4294901760
        %v988 = vsub.f32 %v589, %v987
        %989 = vmatpush.msra.mxu0 %v988
        %v990 = vand.u32 %v560, 4294901760
        %v991 = vsub.f32 %v560, %v990
        %992 = vmatpush.msra.mxu0 %v991
        %v993 = vand.u32 %v558, 4294901760
        %v994 = vsub.f32 %v558, %v993
        %995 = vmatpush.msra.mxu0 %v994
        %v996 = vand.u32 %v556, 4294901760
        %v997 = vsub.f32 %v556, %v996
        %998 = vmatpush.msra.mxu0 %v997
        %v999 = vand.u32 %v576, 4294901760
        %v1000 = vsub.f32 %v576, %v999
        %1001 = vmatmul.f32.gmra.mxu0 %v1000
        %v1002 = vpop.f32.mrf.mxu0
        %v1003 = vadd.f32 %v961, %v1002
        %v1004 = vand.u32 %v578, 4294901760
        %v1005 = vsub.f32 %v578, %v1004
        %1006 = vmatmul.f32.gmra.mxu0 %v1005
        %v1007 = vpop.f32.mrf.mxu0
        %v1008 = vadd.f32 %v965, %v1007
        %v1009 = vand.u32 %v580, 4294901760
        %v1010 = vsub.f32 %v580, %v1009
        %1011 = vmatmul.f32.gmra.mxu0 %v1010
        %v1012 = vpop.f32.mrf.mxu0
        %v1013 = vadd.f32 %v969, %v1012
        %v1014 = vand.u32 %v582, 4294901760
        %v1015 = vsub.f32 %v582, %v1014
        %1016 = vmatmul.f32.gmra.mxu0 %v1015
        %v1017 = vpop.f32.mrf.mxu0
        %v1018 = vadd.f32 %v973, %v1017
        %1019 = vdwg.mxu0
        %1020 = vmatpush.msra.mxu0 0.0
        %1021 = vmatpush.msra.mxu0 0.0
        %1022 = vmatpush.msra.mxu0 0.0
        %1023 = vmatpush.msra.mxu0 0.0
        %1024 = vmatpush.msra.mxu0 0.0
        %1025 = vmatpush.msra.mxu0 0.0
        %1026 = vmatpush.msra.mxu0 0.0
        %1027 = vmatpush.msra.mxu0 0.0
        %1028 = vmatpush.msra.mxu0 0.0
        %1029 = vmatpush.msra.mxu0 0.0
        %1030 = vmatpush.msra.mxu0 0.0
        %1031 = vmatpush.msra.mxu0 0.0
        %v1032 = vand.u32 %v589, 4294901760
        %1033 = vmatpush.msra.mxu0 %v1032
        %v1034 = vand.u32 %v560, 4294901760
        %1035 = vmatpush.msra.mxu0 %v1034
        %v1036 = vand.u32 %v558, 4294901760
        %1037 = vmatpush.msra.mxu0 %v1036
        %v1038 = vand.u32 %v556, 4294901760
        %1039 = vmatpush.msra.mxu0 %v1038
        %v1040 = vand.u32 %v576, 4294901760
        %v1041 = vsub.f32 %v576, %v1040
        %v1042 = vand.u32 %v1041, 4294901760
        %1043 = vmatmul.f32.gmra.mxu0 %v1042
        %v1044 = vpop.f32.mrf.mxu0
        %v1045 = vadd.f32 %v1003, %v1044
        %v1046 = vand.u32 %v578, 4294901760
        %v1047 = vsub.f32 %v578, %v1046
        %v1048 = vand.u32 %v1047, 4294901760
        %1049 = vmatmul.f32.gmra.mxu0 %v1048
        %v1050 = vpop.f32.mrf.mxu0
        %v1051 = vadd.f32 %v1008, %v1050
        %v1052 = vand.u32 %v580, 4294901760
        %v1053 = vsub.f32 %v580, %v1052
        %v1054 = vand.u32 %v1053, 4294901760
        %1055 = vmatmul.f32.gmra.mxu0 %v1054
        %v1056 = vpop.f32.mrf.mxu0
        %v1057 = vadd.f32 %v1013, %v1056
        %v1058 = vand.u32 %v582, 4294901760
        %v1059 = vsub.f32 %v582, %v1058
        %v1060 = vand.u32 %v1059, 4294901760
        %1061 = vmatmul.f32.gmra.mxu0 %v1060
        %v1062 = vpop.f32.mrf.mxu0
        %v1063 = vadd.f32 %v1018, %v1062
        %1064 = vdwg.mxu0
        %1065 = vmatpush.msra.mxu0 0.0
        %1066 = vmatpush.msra.mxu0 0.0
        %1067 = vmatpush.msra.mxu0 0.0
        %1068 = vmatpush.msra.mxu0 0.0
        %1069 = vmatpush.msra.mxu0 0.0
        %1070 = vmatpush.msra.mxu0 0.0
        %1071 = vmatpush.msra.mxu0 0.0
        %1072 = vmatpush.msra.mxu0 0.0
        %1073 = vmatpush.msra.mxu0 0.0
        %1074 = vmatpush.msra.mxu0 0.0
        %1075 = vmatpush.msra.mxu0 0.0
        %1076 = vmatpush.msra.mxu0 0.0
        %v1077 = vand.u32 %v589, 4294901760
        %v1078 = vsub.f32 %v589, %v1077
        %v1079 = vand.u32 %v1078, 4294901760
        %1080 = vmatpush.msra.mxu0 %v1079
        %v1081 = vand.u32 %v560, 4294901760
        %v1082 = vsub.f32 %v560, %v1081
        %v1083 = vand.u32 %v1082, 4294901760
        %1084 = vmatpush.msra.mxu0 %v1083
        %v1085 = vand.u32 %v558, 4294901760
        %v1086 = vsub.f32 %v558, %v1085
        %v1087 = vand.u32 %v1086, 4294901760
        %1088 = vmatpush.msra.mxu0 %v1087
        %v1089 = vand.u32 %v556, 4294901760
        %v1090 = vsub.f32 %v556, %v1089
        %v1091 = vand.u32 %v1090, 4294901760
        %1092 = vmatpush.msra.mxu0 %v1091
        %v1093 = vand.u32 %v576, 4294901760
        %1094 = vmatmul.f32.gmra.mxu0 %v1093
        %v1095 = vpop.f32.mrf.mxu0
        %v1096 = vadd.f32 %v1045, %v1095
        %v1097 = vand.u32 %v578, 4294901760
        %1098 = vmatmul.f32.gmra.mxu0 %v1097
        %v1099 = vpop.f32.mrf.mxu0
        %v1100 = vadd.f32 %v1051, %v1099
        %v1101 = vand.u32 %v580, 4294901760
        %1102 = vmatmul.f32.gmra.mxu0 %v1101
        %v1103 = vpop.f32.mrf.mxu0
        %v1104 = vadd.f32 %v1057, %v1103
        %v1105 = vand.u32 %v582, 4294901760
        %1106 = vmatmul.f32.gmra.mxu0 %v1105
        %v1107 = vpop.f32.mrf.mxu0
        %v1108 = vadd.f32 %v1063, %v1107
        %1109 = vdwg.mxu0
        %1110 = vmatpush.msra.mxu0 0.0
        %1111 = vmatpush.msra.mxu0 0.0
        %1112 = vmatpush.msra.mxu0 0.0
        %1113 = vmatpush.msra.mxu0 0.0
        %1114 = vmatpush.msra.mxu0 0.0
        %1115 = vmatpush.msra.mxu0 0.0
        %1116 = vmatpush.msra.mxu0 0.0
        %1117 = vmatpush.msra.mxu0 0.0
        %1118 = vmatpush.msra.mxu0 0.0
        %1119 = vmatpush.msra.mxu0 0.0
        %1120 = vmatpush.msra.mxu0 0.0
        %1121 = vmatpush.msra.mxu0 0.0
        %v1122 = vand.u32 %v589, 4294901760
        %1123 = vmatpush.msra.mxu0 %v1122
        %v1124 = vand.u32 %v560, 4294901760
        %1125 = vmatpush.msra.mxu0 %v1124
        %v1126 = vand.u32 %v558, 4294901760
        %1127 = vmatpush.msra.mxu0 %v1126
        %v1128 = vand.u32 %v556, 4294901760
        %1129 = vmatpush.msra.mxu0 %v1128
        %v1130 = vand.u32 %v576, 4294901760
        %1131 = vmatmul.f32.gmra.mxu0 %v1130
        %v1132 = vpop.f32.mrf.mxu0
        %v1133 = vadd.f32 %v1096, %v1132
        %v1134 = vand.u32 %v578, 4294901760
        %1135 = vmatmul.f32.gmra.mxu0 %v1134
        %v1136 = vpop.f32.mrf.mxu0
        %v1137 = vadd.f32 %v1100, %v1136
        %v1138 = vand.u32 %v580, 4294901760
        %1139 = vmatmul.f32.gmra.mxu0 %v1138
        %v1140 = vpop.f32.mrf.mxu0
        %v1141 = vadd.f32 %v1104, %v1140
        %v1142 = vand.u32 %v582, 4294901760
        %1143 = vmatmul.f32.gmra.mxu0 %v1142
        %v1144 = vpop.f32.mrf.mxu0
        %v1145 = vadd.f32 %v1108, %v1144
        %1146 = vdwg.mxu0
        %v1147 = vsel %vm575, %v542, 0
        %v1149 = vsel %vm575, %v543, 0
        %v1151 = vsel %vm575, %v544, 0
        %v1153 = vsel %vm575, %v545, 0
        %v1156 = vsel %vm584, %v552, 0
        %v1159 = vsel %vm584, %v553, 0
        %1161 = vmatpush.msra.mxu0 0.0
        %1162 = vmatpush.msra.mxu0 0.0
        %1163 = vmatpush.msra.mxu0 0.0
        %1164 = vmatpush.msra.mxu0 0.0
        %1165 = vmatpush.msra.mxu0 0.0
        %1166 = vmatpush.msra.mxu0 0.0
        %1167 = vmatpush.msra.mxu0 0.0
        %1168 = vmatpush.msra.mxu0 0.0
        %1169 = vmatpush.msra.mxu0 0.0
        %1170 = vmatpush.msra.mxu0 0.0
        %1171 = vmatpush.msra.mxu0 0.0
        %1172 = vmatpush.msra.mxu0 0.0
        %v1173 = vand.u32 %v1156, 4294901760
        %1174 = vmatpush.msra.mxu0 %v1173
        %v1175 = vand.u32 %v550, 4294901760
        %1176 = vmatpush.msra.mxu0 %v1175
        %v1177 = vand.u32 %v548, 4294901760
        %1178 = vmatpush.msra.mxu0 %v1177
        %v1179 = vand.u32 %v546, 4294901760
        %1180 = vmatpush.msra.mxu0 %v1179
        %v1181 = vand.u32 %v1147, 4294901760
        %v1182 = vsub.f32 %v1147, %v1181
        %v1183 = vand.u32 %v1182, 4294901760
        %v1184 = vsub.f32 %v1182, %v1183
        %v1185 = vand.u32 %v1184, 4294901760
        %1186 = vmatmul.f32.gmra.mxu0 %v1185
        %v1187 = vpop.f32.mrf.mxu0
        %v1188 = vadd.f32 %v855, %v1187
        %v1189 = vand.u32 %v1149, 4294901760
        %v1190 = vsub.f32 %v1149, %v1189
        %v1191 = vand.u32 %v1190, 4294901760
        %v1192 = vsub.f32 %v1190, %v1191
        %v1193 = vand.u32 %v1192, 4294901760
        %1194 = vmatmul.f32.gmra.mxu0 %v1193
        %v1195 = vpop.f32.mrf.mxu0
        %v1196 = vadd.f32 %v859, %v1195
        %v1197 = vand.u32 %v1151, 4294901760
        %v1198 = vsub.f32 %v1151, %v1197
        %v1199 = vand.u32 %v1198, 4294901760
        %v1200 = vsub.f32 %v1198, %v1199
        %v1201 = vand.u32 %v1200, 4294901760
        %1202 = vmatmul.f32.gmra.mxu0 %v1201
        %v1203 = vpop.f32.mrf.mxu0
        %v1204 = vadd.f32 %v863, %v1203
        %v1205 = vand.u32 %v1153, 4294901760
        %v1206 = vsub.f32 %v1153, %v1205
        %v1207 = vand.u32 %v1206, 4294901760
        %v1208 = vsub.f32 %v1206, %v1207
        %v1209 = vand.u32 %v1208, 4294901760
        %1210 = vmatmul.f32.gmra.mxu0 %v1209
        %v1211 = vpop.f32.mrf.mxu0
        %v1212 = vadd.f32 %v867, %v1211
        %1213 = vdwg.mxu0
        %1214 = vmatpush.msra.mxu0 0.0
        %1215 = vmatpush.msra.mxu0 0.0
        %1216 = vmatpush.msra.mxu0 0.0
        %1217 = vmatpush.msra.mxu0 0.0
        %1218 = vmatpush.msra.mxu0 0.0
        %1219 = vmatpush.msra.mxu0 0.0
        %1220 = vmatpush.msra.mxu0 0.0
        %1221 = vmatpush.msra.mxu0 0.0
        %1222 = vmatpush.msra.mxu0 0.0
        %1223 = vmatpush.msra.mxu0 0.0
        %1224 = vmatpush.msra.mxu0 0.0
        %1225 = vmatpush.msra.mxu0 0.0
        %v1226 = vand.u32 %v1156, 4294901760
        %v1227 = vsub.f32 %v1156, %v1226
        %v1228 = vand.u32 %v1227, 4294901760
        %v1229 = vsub.f32 %v1227, %v1228
        %v1230 = vand.u32 %v1229, 4294901760
        %1231 = vmatpush.msra.mxu0 %v1230
        %v1232 = vand.u32 %v550, 4294901760
        %v1233 = vsub.f32 %v550, %v1232
        %v1234 = vand.u32 %v1233, 4294901760
        %v1235 = vsub.f32 %v1233, %v1234
        %v1236 = vand.u32 %v1235, 4294901760
        %1237 = vmatpush.msra.mxu0 %v1236
        %v1238 = vand.u32 %v548, 4294901760
        %v1239 = vsub.f32 %v548, %v1238
        %v1240 = vand.u32 %v1239, 4294901760
        %v1241 = vsub.f32 %v1239, %v1240
        %v1242 = vand.u32 %v1241, 4294901760
        %1243 = vmatpush.msra.mxu0 %v1242
        %v1244 = vand.u32 %v546, 4294901760
        %v1245 = vsub.f32 %v546, %v1244
        %v1246 = vand.u32 %v1245, 4294901760
        %v1247 = vsub.f32 %v1245, %v1246
        %v1248 = vand.u32 %v1247, 4294901760
        %1249 = vmatpush.msra.mxu0 %v1248
        %v1250 = vand.u32 %v1147, 4294901760
        %1251 = vmatmul.f32.gmra.mxu0 %v1250
        %v1252 = vpop.f32.mrf.mxu0
        %v1253 = vadd.f32 %v1188, %v1252
        %v1254 = vand.u32 %v1149, 4294901760
        %1255 = vmatmul.f32.gmra.mxu0 %v1254
        %v1256 = vpop.f32.mrf.mxu0
        %v1257 = vadd.f32 %v1196, %v1256
        %v1258 = vand.u32 %v1151, 4294901760
        %1259 = vmatmul.f32.gmra.mxu0 %v1258
        %v1260 = vpop.f32.mrf.mxu0
        %v1261 = vadd.f32 %v1204, %v1260
        %v1262 = vand.u32 %v1153, 4294901760
        %1263 = vmatmul.f32.gmra.mxu0 %v1262
        %v1264 = vpop.f32.mrf.mxu0
        %v1265 = vadd.f32 %v1212, %v1264
        %1266 = vdwg.mxu0
        %1267 = vmatpush.msra.mxu0 0.0
        %1268 = vmatpush.msra.mxu0 0.0
        %1269 = vmatpush.msra.mxu0 0.0
        %1270 = vmatpush.msra.mxu0 0.0
        %1271 = vmatpush.msra.mxu0 0.0
        %1272 = vmatpush.msra.mxu0 0.0
        %1273 = vmatpush.msra.mxu0 0.0
        %1274 = vmatpush.msra.mxu0 0.0
        %1275 = vmatpush.msra.mxu0 0.0
        %1276 = vmatpush.msra.mxu0 0.0
        %1277 = vmatpush.msra.mxu0 0.0
        %1278 = vmatpush.msra.mxu0 0.0
        %v1279 = vand.u32 %v1156, 4294901760
        %v1280 = vsub.f32 %v1156, %v1279
        %1281 = vmatpush.msra.mxu0 %v1280
        %v1282 = vand.u32 %v550, 4294901760
        %v1283 = vsub.f32 %v550, %v1282
        %1284 = vmatpush.msra.mxu0 %v1283
        %v1285 = vand.u32 %v548, 4294901760
        %v1286 = vsub.f32 %v548, %v1285
        %1287 = vmatpush.msra.mxu0 %v1286
        %v1288 = vand.u32 %v546, 4294901760
        %v1289 = vsub.f32 %v546, %v1288
        %1290 = vmatpush.msra.mxu0 %v1289
        %v1291 = vand.u32 %v1147, 4294901760
        %v1292 = vsub.f32 %v1147, %v1291
        %1293 = vmatmul.f32.gmra.mxu0 %v1292
        %v1294 = vpop.f32.mrf.mxu0
        %v1295 = vadd.f32 %v1253, %v1294
        %v1296 = vand.u32 %v1149, 4294901760
        %v1297 = vsub.f32 %v1149, %v1296
        %1298 = vmatmul.f32.gmra.mxu0 %v1297
        %v1299 = vpop.f32.mrf.mxu0
        %v1300 = vadd.f32 %v1257, %v1299
        %v1301 = vand.u32 %v1151, 4294901760
        %v1302 = vsub.f32 %v1151, %v1301
        %1303 = vmatmul.f32.gmra.mxu0 %v1302
        %v1304 = vpop.f32.mrf.mxu0
        %v1305 = vadd.f32 %v1261, %v1304
        %v1306 = vand.u32 %v1153, 4294901760
        %v1307 = vsub.f32 %v1153, %v1306
        %1308 = vmatmul.f32.gmra.mxu0 %v1307
        %v1309 = vpop.f32.mrf.mxu0
        %v1310 = vadd.f32 %v1265, %v1309
        %1311 = vdwg.mxu0
        %1312 = vmatpush.msra.mxu0 0.0
        %1313 = vmatpush.msra.mxu0 0.0
        %1314 = vmatpush.msra.mxu0 0.0
        %1315 = vmatpush.msra.mxu0 0.0
        %1316 = vmatpush.msra.mxu0 0.0
        %1317 = vmatpush.msra.mxu0 0.0
        %1318 = vmatpush.msra.mxu0 0.0
        %1319 = vmatpush.msra.mxu0 0.0
        %1320 = vmatpush.msra.mxu0 0.0
        %1321 = vmatpush.msra.mxu0 0.0
        %1322 = vmatpush.msra.mxu0 0.0
        %1323 = vmatpush.msra.mxu0 0.0
        %v1324 = vand.u32 %v1156, 4294901760
        %1325 = vmatpush.msra.mxu0 %v1324
        %v1326 = vand.u32 %v550, 4294901760
        %1327 = vmatpush.msra.mxu0 %v1326
        %v1328 = vand.u32 %v548, 4294901760
        %1329 = vmatpush.msra.mxu0 %v1328
        %v1330 = vand.u32 %v546, 4294901760
        %1331 = vmatpush.msra.mxu0 %v1330
        %v1332 = vand.u32 %v1147, 4294901760
        %v1333 = vsub.f32 %v1147, %v1332
        %v1334 = vand.u32 %v1333, 4294901760
        %1335 = vmatmul.f32.gmra.mxu0 %v1334
        %v1336 = vpop.f32.mrf.mxu0
        %v1337 = vadd.f32 %v1295, %v1336
        %v1338 = vand.u32 %v1149, 4294901760
        %v1339 = vsub.f32 %v1149, %v1338
        %v1340 = vand.u32 %v1339, 4294901760
        %1341 = vmatmul.f32.gmra.mxu0 %v1340
        %v1342 = vpop.f32.mrf.mxu0
        %v1343 = vadd.f32 %v1300, %v1342
        %v1344 = vand.u32 %v1151, 4294901760
        %v1345 = vsub.f32 %v1151, %v1344
        %v1346 = vand.u32 %v1345, 4294901760
        %1347 = vmatmul.f32.gmra.mxu0 %v1346
        %v1348 = vpop.f32.mrf.mxu0
        %v1349 = vadd.f32 %v1305, %v1348
        %v1350 = vand.u32 %v1153, 4294901760
        %v1351 = vsub.f32 %v1153, %v1350
        %v1352 = vand.u32 %v1351, 4294901760
        %1353 = vmatmul.f32.gmra.mxu0 %v1352
        %v1354 = vpop.f32.mrf.mxu0
        %v1355 = vadd.f32 %v1310, %v1354
        %1356 = vdwg.mxu0
        %1357 = vmatpush.msra.mxu0 0.0
        %1358 = vmatpush.msra.mxu0 0.0
        %1359 = vmatpush.msra.mxu0 0.0
        %1360 = vmatpush.msra.mxu0 0.0
        %1361 = vmatpush.msra.mxu0 0.0
        %1362 = vmatpush.msra.mxu0 0.0
        %1363 = vmatpush.msra.mxu0 0.0
        %1364 = vmatpush.msra.mxu0 0.0
        %1365 = vmatpush.msra.mxu0 0.0
        %1366 = vmatpush.msra.mxu0 0.0
        %1367 = vmatpush.msra.mxu0 0.0
        %1368 = vmatpush.msra.mxu0 0.0
        %v1369 = vand.u32 %v1156, 4294901760
        %v1370 = vsub.f32 %v1156, %v1369
        %v1371 = vand.u32 %v1370, 4294901760
        %1372 = vmatpush.msra.mxu0 %v1371
        %v1373 = vand.u32 %v550, 4294901760
        %v1374 = vsub.f32 %v550, %v1373
        %v1375 = vand.u32 %v1374, 4294901760
        %1376 = vmatpush.msra.mxu0 %v1375
        %v1377 = vand.u32 %v548, 4294901760
        %v1378 = vsub.f32 %v548, %v1377
        %v1379 = vand.u32 %v1378, 4294901760
        %1380 = vmatpush.msra.mxu0 %v1379
        %v1381 = vand.u32 %v546, 4294901760
        %v1382 = vsub.f32 %v546, %v1381
        %v1383 = vand.u32 %v1382, 4294901760
        %1384 = vmatpush.msra.mxu0 %v1383
        %v1385 = vand.u32 %v1147, 4294901760
        %1386 = vmatmul.f32.gmra.mxu0 %v1385
        %v1387 = vpop.f32.mrf.mxu0
        %v1388 = vadd.f32 %v1337, %v1387
        %v1389 = vand.u32 %v1149, 4294901760
        %1390 = vmatmul.f32.gmra.mxu0 %v1389
        %v1391 = vpop.f32.mrf.mxu0
        %v1392 = vadd.f32 %v1343, %v1391
        %v1393 = vand.u32 %v1151, 4294901760
        %1394 = vmatmul.f32.gmra.mxu0 %v1393
        %v1395 = vpop.f32.mrf.mxu0
        %v1396 = vadd.f32 %v1349, %v1395
        %v1397 = vand.u32 %v1153, 4294901760
        %1398 = vmatmul.f32.gmra.mxu0 %v1397
        %v1399 = vpop.f32.mrf.mxu0
        %v1400 = vadd.f32 %v1355, %v1399
        %1401 = vdwg.mxu0
        %1402 = vmatpush.msra.mxu0 0.0
        %1403 = vmatpush.msra.mxu0 0.0
        %1404 = vmatpush.msra.mxu0 0.0
        %1405 = vmatpush.msra.mxu0 0.0
        %1406 = vmatpush.msra.mxu0 0.0
        %1407 = vmatpush.msra.mxu0 0.0
        %1408 = vmatpush.msra.mxu0 0.0
        %1409 = vmatpush.msra.mxu0 0.0
        %1410 = vmatpush.msra.mxu0 0.0
        %1411 = vmatpush.msra.mxu0 0.0
        %1412 = vmatpush.msra.mxu0 0.0
        %1413 = vmatpush.msra.mxu0 0.0
        %v1414 = vand.u32 %v1156, 4294901760
        %1415 = vmatpush.msra.mxu0 %v1414
        %v1416 = vand.u32 %v550, 4294901760
        %1417 = vmatpush.msra.mxu0 %v1416
        %v1418 = vand.u32 %v548, 4294901760
        %1419 = vmatpush.msra.mxu0 %v1418
        %v1420 = vand.u32 %v546, 4294901760
        %1421 = vmatpush.msra.mxu0 %v1420
        %v1422 = vand.u32 %v1147, 4294901760
        %1423 = vmatmul.f32.gmra.mxu0 %v1422
        %v1424 = vpop.f32.mrf.mxu0
        %v1425 = vadd.f32 %v1388, %v1424
        %v1426 = vand.u32 %v1149, 4294901760
        %1427 = vmatmul.f32.gmra.mxu0 %v1426
        %v1428 = vpop.f32.mrf.mxu0
        %v1429 = vadd.f32 %v1392, %v1428
        %v1430 = vand.u32 %v1151, 4294901760
        %1431 = vmatmul.f32.gmra.mxu0 %v1430
        %v1432 = vpop.f32.mrf.mxu0
        %v1433 = vadd.f32 %v1396, %v1432
        %v1434 = vand.u32 %v1153, 4294901760
        %1435 = vmatmul.f32.gmra.mxu0 %v1434
        %v1436 = vpop.f32.mrf.mxu0
        %v1437 = vadd.f32 %v1400, %v1436
        %1438 = vdwg.mxu0
        %1439 = vmatpush.msra.mxu0 0.0
        %1440 = vmatpush.msra.mxu0 0.0
        %1441 = vmatpush.msra.mxu0 0.0
        %1442 = vmatpush.msra.mxu0 0.0
        %1443 = vmatpush.msra.mxu0 0.0
        %1444 = vmatpush.msra.mxu0 0.0
        %1445 = vmatpush.msra.mxu0 0.0
        %1446 = vmatpush.msra.mxu0 0.0
        %1447 = vmatpush.msra.mxu0 0.0
        %1448 = vmatpush.msra.mxu0 0.0
        %1449 = vmatpush.msra.mxu0 0.0
        %1450 = vmatpush.msra.mxu0 0.0
        %v1451 = vand.u32 %v1159, 4294901760
        %1452 = vmatpush.msra.mxu0 %v1451
        %v1453 = vand.u32 %v551, 4294901760
        %1454 = vmatpush.msra.mxu0 %v1453
        %v1455 = vand.u32 %v549, 4294901760
        %1456 = vmatpush.msra.mxu0 %v1455
        %v1457 = vand.u32 %v547, 4294901760
        %1458 = vmatpush.msra.mxu0 %v1457
        %v1459 = vand.u32 %v1147, 4294901760
        %v1460 = vsub.f32 %v1147, %v1459
        %v1461 = vand.u32 %v1460, 4294901760
        %v1462 = vsub.f32 %v1460, %v1461
        %v1463 = vand.u32 %v1462, 4294901760
        %1464 = vmatmul.f32.gmra.mxu0 %v1463
        %v1465 = vpop.f32.mrf.mxu0
        %v1466 = vadd.f32 %v1133, %v1465
        %v1467 = vand.u32 %v1149, 4294901760
        %v1468 = vsub.f32 %v1149, %v1467
        %v1469 = vand.u32 %v1468, 4294901760
        %v1470 = vsub.f32 %v1468, %v1469
        %v1471 = vand.u32 %v1470, 4294901760
        %1472 = vmatmul.f32.gmra.mxu0 %v1471
        %v1473 = vpop.f32.mrf.mxu0
        %v1474 = vadd.f32 %v1137, %v1473
        %v1475 = vand.u32 %v1151, 4294901760
        %v1476 = vsub.f32 %v1151, %v1475
        %v1477 = vand.u32 %v1476, 4294901760
        %v1478 = vsub.f32 %v1476, %v1477
        %v1479 = vand.u32 %v1478, 4294901760
        %1480 = vmatmul.f32.gmra.mxu0 %v1479
        %v1481 = vpop.f32.mrf.mxu0
        %v1482 = vadd.f32 %v1141, %v1481
        %v1483 = vand.u32 %v1153, 4294901760
        %v1484 = vsub.f32 %v1153, %v1483
        %v1485 = vand.u32 %v1484, 4294901760
        %v1486 = vsub.f32 %v1484, %v1485
        %v1487 = vand.u32 %v1486, 4294901760
        %1488 = vmatmul.f32.gmra.mxu0 %v1487
        %v1489 = vpop.f32.mrf.mxu0
        %v1490 = vadd.f32 %v1145, %v1489
        %1491 = vdwg.mxu0
        %1492 = vmatpush.msra.mxu0 0.0
        %1493 = vmatpush.msra.mxu0 0.0
        %1494 = vmatpush.msra.mxu0 0.0
        %1495 = vmatpush.msra.mxu0 0.0
        %1496 = vmatpush.msra.mxu0 0.0
        %1497 = vmatpush.msra.mxu0 0.0
        %1498 = vmatpush.msra.mxu0 0.0
        %1499 = vmatpush.msra.mxu0 0.0
        %1500 = vmatpush.msra.mxu0 0.0
        %1501 = vmatpush.msra.mxu0 0.0
        %1502 = vmatpush.msra.mxu0 0.0
        %1503 = vmatpush.msra.mxu0 0.0
        %v1504 = vand.u32 %v1159, 4294901760
        %v1505 = vsub.f32 %v1159, %v1504
        %v1506 = vand.u32 %v1505, 4294901760
        %v1507 = vsub.f32 %v1505, %v1506
        %v1508 = vand.u32 %v1507, 4294901760
        %1509 = vmatpush.msra.mxu0 %v1508
        %v1510 = vand.u32 %v551, 4294901760
        %v1511 = vsub.f32 %v551, %v1510
        %v1512 = vand.u32 %v1511, 4294901760
        %v1513 = vsub.f32 %v1511, %v1512
        %v1514 = vand.u32 %v1513, 4294901760
        %1515 = vmatpush.msra.mxu0 %v1514
        %v1516 = vand.u32 %v549, 4294901760
        %v1517 = vsub.f32 %v549, %v1516
        %v1518 = vand.u32 %v1517, 4294901760
        %v1519 = vsub.f32 %v1517, %v1518
        %v1520 = vand.u32 %v1519, 4294901760
        %1521 = vmatpush.msra.mxu0 %v1520
        %v1522 = vand.u32 %v547, 4294901760
        %v1523 = vsub.f32 %v547, %v1522
        %v1524 = vand.u32 %v1523, 4294901760
        %v1525 = vsub.f32 %v1523, %v1524
        %v1526 = vand.u32 %v1525, 4294901760
        %1527 = vmatpush.msra.mxu0 %v1526
        %v1528 = vand.u32 %v1147, 4294901760
        %1529 = vmatmul.f32.gmra.mxu0 %v1528
        %v1530 = vpop.f32.mrf.mxu0
        %v1531 = vadd.f32 %v1466, %v1530
        %v1532 = vand.u32 %v1149, 4294901760
        %1533 = vmatmul.f32.gmra.mxu0 %v1532
        %v1534 = vpop.f32.mrf.mxu0
        %v1535 = vadd.f32 %v1474, %v1534
        %v1536 = vand.u32 %v1151, 4294901760
        %1537 = vmatmul.f32.gmra.mxu0 %v1536
        %v1538 = vpop.f32.mrf.mxu0
        %v1539 = vadd.f32 %v1482, %v1538
        %v1540 = vand.u32 %v1153, 4294901760
        %1541 = vmatmul.f32.gmra.mxu0 %v1540
        %v1542 = vpop.f32.mrf.mxu0
        %v1543 = vadd.f32 %v1490, %v1542
        %1544 = vdwg.mxu0
        %1545 = vmatpush.msra.mxu0 0.0
        %1546 = vmatpush.msra.mxu0 0.0
        %1547 = vmatpush.msra.mxu0 0.0
        %1548 = vmatpush.msra.mxu0 0.0
        %1549 = vmatpush.msra.mxu0 0.0
        %1550 = vmatpush.msra.mxu0 0.0
        %1551 = vmatpush.msra.mxu0 0.0
        %1552 = vmatpush.msra.mxu0 0.0
        %1553 = vmatpush.msra.mxu0 0.0
        %1554 = vmatpush.msra.mxu0 0.0
        %1555 = vmatpush.msra.mxu0 0.0
        %1556 = vmatpush.msra.mxu0 0.0
        %v1557 = vand.u32 %v1159, 4294901760
        %v1558 = vsub.f32 %v1159, %v1557
        %1559 = vmatpush.msra.mxu0 %v1558
        %v1560 = vand.u32 %v551, 4294901760
        %v1561 = vsub.f32 %v551, %v1560
        %1562 = vmatpush.msra.mxu0 %v1561
        %v1563 = vand.u32 %v549, 4294901760
        %v1564 = vsub.f32 %v549, %v1563
        %1565 = vmatpush.msra.mxu0 %v1564
        %v1566 = vand.u32 %v547, 4294901760
        %v1567 = vsub.f32 %v547, %v1566
        %1568 = vmatpush.msra.mxu0 %v1567
        %v1569 = vand.u32 %v1147, 4294901760
        %v1570 = vsub.f32 %v1147, %v1569
        %1571 = vmatmul.f32.gmra.mxu0 %v1570
        %v1572 = vpop.f32.mrf.mxu0
        %v1573 = vadd.f32 %v1531, %v1572
        %v1574 = vand.u32 %v1149, 4294901760
        %v1575 = vsub.f32 %v1149, %v1574
        %1576 = vmatmul.f32.gmra.mxu0 %v1575
        %v1577 = vpop.f32.mrf.mxu0
        %v1578 = vadd.f32 %v1535, %v1577
        %v1579 = vand.u32 %v1151, 4294901760
        %v1580 = vsub.f32 %v1151, %v1579
        %1581 = vmatmul.f32.gmra.mxu0 %v1580
        %v1582 = vpop.f32.mrf.mxu0
        %v1583 = vadd.f32 %v1539, %v1582
        %v1584 = vand.u32 %v1153, 4294901760
        %v1585 = vsub.f32 %v1153, %v1584
        %1586 = vmatmul.f32.gmra.mxu0 %v1585
        %v1587 = vpop.f32.mrf.mxu0
        %v1588 = vadd.f32 %v1543, %v1587
        %1589 = vdwg.mxu0
        %1590 = vmatpush.msra.mxu0 0.0
        %1591 = vmatpush.msra.mxu0 0.0
        %1592 = vmatpush.msra.mxu0 0.0
        %1593 = vmatpush.msra.mxu0 0.0
        %1594 = vmatpush.msra.mxu0 0.0
        %1595 = vmatpush.msra.mxu0 0.0
        %1596 = vmatpush.msra.mxu0 0.0
        %1597 = vmatpush.msra.mxu0 0.0
        %1598 = vmatpush.msra.mxu0 0.0
        %1599 = vmatpush.msra.mxu0 0.0
        %1600 = vmatpush.msra.mxu0 0.0
        %1601 = vmatpush.msra.mxu0 0.0
        %v1602 = vand.u32 %v1159, 4294901760
        %1603 = vmatpush.msra.mxu0 %v1602
        %v1604 = vand.u32 %v551, 4294901760
        %1605 = vmatpush.msra.mxu0 %v1604
        %v1606 = vand.u32 %v549, 4294901760
        %1607 = vmatpush.msra.mxu0 %v1606
        %v1608 = vand.u32 %v547, 4294901760
        %1609 = vmatpush.msra.mxu0 %v1608
        %v1610 = vand.u32 %v1147, 4294901760
        %v1611 = vsub.f32 %v1147, %v1610
        %v1612 = vand.u32 %v1611, 4294901760
        %1613 = vmatmul.f32.gmra.mxu0 %v1612
        %v1614 = vpop.f32.mrf.mxu0
        %v1615 = vadd.f32 %v1573, %v1614
        %v1616 = vand.u32 %v1149, 4294901760
        %v1617 = vsub.f32 %v1149, %v1616
        %v1618 = vand.u32 %v1617, 4294901760
        %1619 = vmatmul.f32.gmra.mxu0 %v1618
        %v1620 = vpop.f32.mrf.mxu0
        %v1621 = vadd.f32 %v1578, %v1620
        %v1622 = vand.u32 %v1151, 4294901760
        %v1623 = vsub.f32 %v1151, %v1622
        %v1624 = vand.u32 %v1623, 4294901760
        %1625 = vmatmul.f32.gmra.mxu0 %v1624
        %v1626 = vpop.f32.mrf.mxu0
        %v1627 = vadd.f32 %v1583, %v1626
        %v1628 = vand.u32 %v1153, 4294901760
        %v1629 = vsub.f32 %v1153, %v1628
        %v1630 = vand.u32 %v1629, 4294901760
        %1631 = vmatmul.f32.gmra.mxu0 %v1630
        %v1632 = vpop.f32.mrf.mxu0
        %v1633 = vadd.f32 %v1588, %v1632
        %1634 = vdwg.mxu0
        %1635 = vmatpush.msra.mxu0 0.0
        %1636 = vmatpush.msra.mxu0 0.0
        %1637 = vmatpush.msra.mxu0 0.0
        %1638 = vmatpush.msra.mxu0 0.0
        %1639 = vmatpush.msra.mxu0 0.0
        %1640 = vmatpush.msra.mxu0 0.0
        %1641 = vmatpush.msra.mxu0 0.0
        %1642 = vmatpush.msra.mxu0 0.0
        %1643 = vmatpush.msra.mxu0 0.0
        %1644 = vmatpush.msra.mxu0 0.0
        %1645 = vmatpush.msra.mxu0 0.0
        %1646 = vmatpush.msra.mxu0 0.0
        %v1647 = vand.u32 %v1159, 4294901760
        %v1648 = vsub.f32 %v1159, %v1647
        %v1649 = vand.u32 %v1648, 4294901760
        %1650 = vmatpush.msra.mxu0 %v1649
        %v1651 = vand.u32 %v551, 4294901760
        %v1652 = vsub.f32 %v551, %v1651
        %v1653 = vand.u32 %v1652, 4294901760
        %1654 = vmatpush.msra.mxu0 %v1653
        %v1655 = vand.u32 %v549, 4294901760
        %v1656 = vsub.f32 %v549, %v1655
        %v1657 = vand.u32 %v1656, 4294901760
        %1658 = vmatpush.msra.mxu0 %v1657
        %v1659 = vand.u32 %v547, 4294901760
        %v1660 = vsub.f32 %v547, %v1659
        %v1661 = vand.u32 %v1660, 4294901760
        %1662 = vmatpush.msra.mxu0 %v1661
        %v1663 = vand.u32 %v1147, 4294901760
        %1664 = vmatmul.f32.gmra.mxu0 %v1663
        %v1665 = vpop.f32.mrf.mxu0
        %v1666 = vadd.f32 %v1615, %v1665
        %v1667 = vand.u32 %v1149, 4294901760
        %1668 = vmatmul.f32.gmra.mxu0 %v1667
        %v1669 = vpop.f32.mrf.mxu0
        %v1670 = vadd.f32 %v1621, %v1669
        %v1671 = vand.u32 %v1151, 4294901760
        %1672 = vmatmul.f32.gmra.mxu0 %v1671
        %v1673 = vpop.f32.mrf.mxu0
        %v1674 = vadd.f32 %v1627, %v1673
        %v1675 = vand.u32 %v1153, 4294901760
        %1676 = vmatmul.f32.gmra.mxu0 %v1675
        %v1677 = vpop.f32.mrf.mxu0
        %v1678 = vadd.f32 %v1633, %v1677
        %1679 = vdwg.mxu0
        %1680 = vmatpush.msra.mxu0 0.0
        %1681 = vmatpush.msra.mxu0 0.0
        %1682 = vmatpush.msra.mxu0 0.0
        %1683 = vmatpush.msra.mxu0 0.0
        %1684 = vmatpush.msra.mxu0 0.0
        %1685 = vmatpush.msra.mxu0 0.0
        %1686 = vmatpush.msra.mxu0 0.0
        %1687 = vmatpush.msra.mxu0 0.0
        %1688 = vmatpush.msra.mxu0 0.0
        %1689 = vmatpush.msra.mxu0 0.0
        %1690 = vmatpush.msra.mxu0 0.0
        %1691 = vmatpush.msra.mxu0 0.0
        %v1692 = vand.u32 %v1159, 4294901760
        %1693 = vmatpush.msra.mxu0 %v1692
        %v1694 = vand.u32 %v551, 4294901760
        %1695 = vmatpush.msra.mxu0 %v1694
        %v1696 = vand.u32 %v549, 4294901760
        %1697 = vmatpush.msra.mxu0 %v1696
        %v1698 = vand.u32 %v547, 4294901760
        %1699 = vmatpush.msra.mxu0 %v1698
        %v1700 = vand.u32 %v1147, 4294901760
        %1701 = vmatmul.f32.gmra.mxu0 %v1700
        %v1702 = vpop.f32.mrf.mxu0
        %v1703 = vadd.f32 %v1666, %v1702
        %v1704 = vand.u32 %v1149, 4294901760
        %1705 = vmatmul.f32.gmra.mxu0 %v1704
        %v1706 = vpop.f32.mrf.mxu0
        %v1707 = vadd.f32 %v1670, %v1706
        %v1708 = vand.u32 %v1151, 4294901760
        %1709 = vmatmul.f32.gmra.mxu0 %v1708
        %v1710 = vpop.f32.mrf.mxu0
        %v1711 = vadd.f32 %v1674, %v1710
        %v1712 = vand.u32 %v1153, 4294901760
        %1713 = vmatmul.f32.gmra.mxu0 %v1712
        %v1714 = vpop.f32.mrf.mxu0
        %v1715 = vadd.f32 %v1678, %v1714
        %1716 = vdwg.mxu0
        %s1717 = scalar_lea.vmem %s1, 128
        %v1718 = vld [vmem:[%s1717] sm:$0xff]
        %v1719 = vld [vmem:[%s1717 + $0x8] sm:$0xff]
        %v1720 = vld [vmem:[%s1717 + $0x10] sm:$0xff]
        %v1721 = vld [vmem:[%s1717 + $0x18] sm:$0xff]
        %v1722 = vld [vmem:[%s1717 + $0x20] sm:$0xff]
        %v1723 = vld [vmem:[%s1717 + $0x28] sm:$0xff]
        %v1724 = vld [vmem:[%s1717 + $0x30] sm:$0x3f]
        %v1725 = vld [vmem:[%s1717 + $0x38] sm:$0x3f]
        %v1726 = vrot.slane %v542, 2
        %v1727 = vrot.slane %v543, 2
        %v1728 = vsel %vm584, %v1726, %v1727
        %v1729 = vrot.slane %v544, 2
        %v1730 = vsel %vm584, %v1727, %v1729
        %v1731 = vrot.slane %v545, 2
        %v1732 = vsel %vm584, %v1729, %v1731
        %v1733 = vsel %vm575, %v1728, 0
        %v1735 = vsel %vm575, %v1730, 0
        %v1737 = vsel %vm575, %v1732, 0
        %v1739 = vsel %vm575, %v1731, 0
        %v1742 = vsel %vm584, %v1724, 0
        %v1745 = vsel %vm584, %v1725, 0
        %1747 = vmatpush.msra.mxu0 0.0
        %1748 = vmatpush.msra.mxu0 0.0
        %1749 = vmatpush.msra.mxu0 0.0
        %1750 = vmatpush.msra.mxu0 0.0
        %1751 = vmatpush.msra.mxu0 0.0
        %1752 = vmatpush.msra.mxu0 0.0
        %1753 = vmatpush.msra.mxu0 0.0
        %1754 = vmatpush.msra.mxu0 0.0
        %1755 = vmatpush.msra.mxu0 0.0
        %1756 = vmatpush.msra.mxu0 0.0
        %1757 = vmatpush.msra.mxu0 0.0
        %1758 = vmatpush.msra.mxu0 0.0
        %v1759 = vand.u32 %v1742, 4294901760
        %1760 = vmatpush.msra.mxu0 %v1759
        %v1761 = vand.u32 %v1722, 4294901760
        %1762 = vmatpush.msra.mxu0 %v1761
        %v1763 = vand.u32 %v1720, 4294901760
        %1764 = vmatpush.msra.mxu0 %v1763
        %v1765 = vand.u32 %v1718, 4294901760
        %1766 = vmatpush.msra.mxu0 %v1765
        %v1767 = vand.u32 %v1733, 4294901760
        %v1768 = vsub.f32 %v1733, %v1767
        %v1769 = vand.u32 %v1768, 4294901760
        %v1770 = vsub.f32 %v1768, %v1769
        %v1771 = vand.u32 %v1770, 4294901760
        %1772 = vmatmul.f32.gmra.mxu0 %v1771
        %v1773 = vpop.f32.mrf.mxu0
        %v1774 = vadd.f32 0.0, %v1773
        %v1775 = vand.u32 %v1735, 4294901760
        %v1776 = vsub.f32 %v1735, %v1775
        %v1777 = vand.u32 %v1776, 4294901760
        %v1778 = vsub.f32 %v1776, %v1777
        %v1779 = vand.u32 %v1778, 4294901760
        %1780 = vmatmul.f32.gmra.mxu0 %v1779
        %v1781 = vpop.f32.mrf.mxu0
        %v1782 = vadd.f32 0.0, %v1781
        %v1783 = vand.u32 %v1737, 4294901760
        %v1784 = vsub.f32 %v1737, %v1783
        %v1785 = vand.u32 %v1784, 4294901760
        %v1786 = vsub.f32 %v1784, %v1785
        %v1787 = vand.u32 %v1786, 4294901760
        %1788 = vmatmul.f32.gmra.mxu0 %v1787
        %v1789 = vpop.f32.mrf.mxu0
        %v1790 = vadd.f32 0.0, %v1789
        %v1791 = vand.u32 %v1739, 4294901760
        %v1792 = vsub.f32 %v1739, %v1791
        %v1793 = vand.u32 %v1792, 4294901760
        %v1794 = vsub.f32 %v1792, %v1793
        %v1795 = vand.u32 %v1794, 4294901760
        %1796 = vmatmul.f32.gmra.mxu0 %v1795
        %v1797 = vpop.f32.mrf.mxu0
        %v1798 = vadd.f32 0.0, %v1797
        %1799 = vdwg.mxu0
        %1800 = vmatpush.msra.mxu0 0.0
        %1801 = vmatpush.msra.mxu0 0.0
        %1802 = vmatpush.msra.mxu0 0.0
        %1803 = vmatpush.msra.mxu0 0.0
        %1804 = vmatpush.msra.mxu0 0.0
        %1805 = vmatpush.msra.mxu0 0.0
        %1806 = vmatpush.msra.mxu0 0.0
        %1807 = vmatpush.msra.mxu0 0.0
        %1808 = vmatpush.msra.mxu0 0.0
        %1809 = vmatpush.msra.mxu0 0.0
        %1810 = vmatpush.msra.mxu0 0.0
        %1811 = vmatpush.msra.mxu0 0.0
        %v1812 = vand.u32 %v1742, 4294901760
        %v1813 = vsub.f32 %v1742, %v1812
        %v1814 = vand.u32 %v1813, 4294901760
        %v1815 = vsub.f32 %v1813, %v1814
        %v1816 = vand.u32 %v1815, 4294901760
        %1817 = vmatpush.msra.mxu0 %v1816
        %v1818 = vand.u32 %v1722, 4294901760
        %v1819 = vsub.f32 %v1722, %v1818
        %v1820 = vand.u32 %v1819, 4294901760
        %v1821 = vsub.f32 %v1819, %v1820
        %v1822 = vand.u32 %v1821, 4294901760
        %1823 = vmatpush.msra.mxu0 %v1822
        %v1824 = vand.u32 %v1720, 4294901760
        %v1825 = vsub.f32 %v1720, %v1824
        %v1826 = vand.u32 %v1825, 4294901760
        %v1827 = vsub.f32 %v1825, %v1826
        %v1828 = vand.u32 %v1827, 4294901760
        %1829 = vmatpush.msra.mxu0 %v1828
        %v1830 = vand.u32 %v1718, 4294901760
        %v1831 = vsub.f32 %v1718, %v1830
        %v1832 = vand.u32 %v1831, 4294901760
        %v1833 = vsub.f32 %v1831, %v1832
        %v1834 = vand.u32 %v1833, 4294901760
        %1835 = vmatpush.msra.mxu0 %v1834
        %v1836 = vand.u32 %v1733, 4294901760
        %1837 = vmatmul.f32.gmra.mxu0 %v1836
        %v1838 = vpop.f32.mrf.mxu0
        %v1839 = vadd.f32 %v1774, %v1838
        %v1840 = vand.u32 %v1735, 4294901760
        %1841 = vmatmul.f32.gmra.mxu0 %v1840
        %v1842 = vpop.f32.mrf.mxu0
        %v1843 = vadd.f32 %v1782, %v1842
        %v1844 = vand.u32 %v1737, 4294901760
        %1845 = vmatmul.f32.gmra.mxu0 %v1844
        %v1846 = vpop.f32.mrf.mxu0
        %v1847 = vadd.f32 %v1790, %v1846
        %v1848 = vand.u32 %v1739, 4294901760
        %1849 = vmatmul.f32.gmra.mxu0 %v1848
        %v1850 = vpop.f32.mrf.mxu0
        %v1851 = vadd.f32 %v1798, %v1850
        %1852 = vdwg.mxu0
        %1853 = vmatpush.msra.mxu0 0.0
        %1854 = vmatpush.msra.mxu0 0.0
        %1855 = vmatpush.msra.mxu0 0.0
        %1856 = vmatpush.msra.mxu0 0.0
        %1857 = vmatpush.msra.mxu0 0.0
        %1858 = vmatpush.msra.mxu0 0.0
        %1859 = vmatpush.msra.mxu0 0.0
        %1860 = vmatpush.msra.mxu0 0.0
        %1861 = vmatpush.msra.mxu0 0.0
        %1862 = vmatpush.msra.mxu0 0.0
        %1863 = vmatpush.msra.mxu0 0.0
        %1864 = vmatpush.msra.mxu0 0.0
        %v1865 = vand.u32 %v1742, 4294901760
        %v1866 = vsub.f32 %v1742, %v1865
        %1867 = vmatpush.msra.mxu0 %v1866
        %v1868 = vand.u32 %v1722, 4294901760
        %v1869 = vsub.f32 %v1722, %v1868
        %1870 = vmatpush.msra.mxu0 %v1869
        %v1871 = vand.u32 %v1720, 4294901760
        %v1872 = vsub.f32 %v1720, %v1871
        %1873 = vmatpush.msra.mxu0 %v1872
        %v1874 = vand.u32 %v1718, 4294901760
        %v1875 = vsub.f32 %v1718, %v1874
        %1876 = vmatpush.msra.mxu0 %v1875
        %v1877 = vand.u32 %v1733, 4294901760
        %v1878 = vsub.f32 %v1733, %v1877
        %1879 = vmatmul.f32.gmra.mxu0 %v1878
        %v1880 = vpop.f32.mrf.mxu0
        %v1881 = vadd.f32 %v1839, %v1880
        %v1882 = vand.u32 %v1735, 4294901760
        %v1883 = vsub.f32 %v1735, %v1882
        %1884 = vmatmul.f32.gmra.mxu0 %v1883
        %v1885 = vpop.f32.mrf.mxu0
        %v1886 = vadd.f32 %v1843, %v1885
        %v1887 = vand.u32 %v1737, 4294901760
        %v1888 = vsub.f32 %v1737, %v1887
        %1889 = vmatmul.f32.gmra.mxu0 %v1888
        %v1890 = vpop.f32.mrf.mxu0
        %v1891 = vadd.f32 %v1847, %v1890
        %v1892 = vand.u32 %v1739, 4294901760
        %v1893 = vsub.f32 %v1739, %v1892
        %1894 = vmatmul.f32.gmra.mxu0 %v1893
        %v1895 = vpop.f32.mrf.mxu0
        %v1896 = vadd.f32 %v1851, %v1895
        %1897 = vdwg.mxu0
        %1898 = vmatpush.msra.mxu0 0.0
        %1899 = vmatpush.msra.mxu0 0.0
        %1900 = vmatpush.msra.mxu0 0.0
        %1901 = vmatpush.msra.mxu0 0.0
        %1902 = vmatpush.msra.mxu0 0.0
        %1903 = vmatpush.msra.mxu0 0.0
        %1904 = vmatpush.msra.mxu0 0.0
        %1905 = vmatpush.msra.mxu0 0.0
        %1906 = vmatpush.msra.mxu0 0.0
        %1907 = vmatpush.msra.mxu0 0.0
        %1908 = vmatpush.msra.mxu0 0.0
        %1909 = vmatpush.msra.mxu0 0.0
        %v1910 = vand.u32 %v1742, 4294901760
        %1911 = vmatpush.msra.mxu0 %v1910
        %v1912 = vand.u32 %v1722, 4294901760
        %1913 = vmatpush.msra.mxu0 %v1912
        %v1914 = vand.u32 %v1720, 4294901760
        %1915 = vmatpush.msra.mxu0 %v1914
        %v1916 = vand.u32 %v1718, 4294901760
        %1917 = vmatpush.msra.mxu0 %v1916
        %v1918 = vand.u32 %v1733, 4294901760
        %v1919 = vsub.f32 %v1733, %v1918
        %v1920 = vand.u32 %v1919, 4294901760
        %1921 = vmatmul.f32.gmra.mxu0 %v1920
        %v1922 = vpop.f32.mrf.mxu0
        %v1923 = vadd.f32 %v1881, %v1922
        %v1924 = vand.u32 %v1735, 4294901760
        %v1925 = vsub.f32 %v1735, %v1924
        %v1926 = vand.u32 %v1925, 4294901760
        %1927 = vmatmul.f32.gmra.mxu0 %v1926
        %v1928 = vpop.f32.mrf.mxu0
        %v1929 = vadd.f32 %v1886, %v1928
        %v1930 = vand.u32 %v1737, 4294901760
        %v1931 = vsub.f32 %v1737, %v1930
        %v1932 = vand.u32 %v1931, 4294901760
        %1933 = vmatmul.f32.gmra.mxu0 %v1932
        %v1934 = vpop.f32.mrf.mxu0
        %v1935 = vadd.f32 %v1891, %v1934
        %v1936 = vand.u32 %v1739, 4294901760
        %v1937 = vsub.f32 %v1739, %v1936
        %v1938 = vand.u32 %v1937, 4294901760
        %1939 = vmatmul.f32.gmra.mxu0 %v1938
        %v1940 = vpop.f32.mrf.mxu0
        %v1941 = vadd.f32 %v1896, %v1940
        %1942 = vdwg.mxu0
        %1943 = vmatpush.msra.mxu0 0.0
        %1944 = vmatpush.msra.mxu0 0.0
        %1945 = vmatpush.msra.mxu0 0.0
        %1946 = vmatpush.msra.mxu0 0.0
        %1947 = vmatpush.msra.mxu0 0.0
        %1948 = vmatpush.msra.mxu0 0.0
        %1949 = vmatpush.msra.mxu0 0.0
        %1950 = vmatpush.msra.mxu0 0.0
        %1951 = vmatpush.msra.mxu0 0.0
        %1952 = vmatpush.msra.mxu0 0.0
        %1953 = vmatpush.msra.mxu0 0.0
        %1954 = vmatpush.msra.mxu0 0.0
        %v1955 = vand.u32 %v1742, 4294901760
        %v1956 = vsub.f32 %v1742, %v1955
        %v1957 = vand.u32 %v1956, 4294901760
        %1958 = vmatpush.msra.mxu0 %v1957
        %v1959 = vand.u32 %v1722, 4294901760
        %v1960 = vsub.f32 %v1722, %v1959
        %v1961 = vand.u32 %v1960, 4294901760
        %1962 = vmatpush.msra.mxu0 %v1961
        %v1963 = vand.u32 %v1720, 4294901760
        %v1964 = vsub.f32 %v1720, %v1963
        %v1965 = vand.u32 %v1964, 4294901760
        %1966 = vmatpush.msra.mxu0 %v1965
        %v1967 = vand.u32 %v1718, 4294901760
        %v1968 = vsub.f32 %v1718, %v1967
        %v1969 = vand.u32 %v1968, 4294901760
        %1970 = vmatpush.msra.mxu0 %v1969
        %v1971 = vand.u32 %v1733, 4294901760
        %1972 = vmatmul.f32.gmra.mxu0 %v1971
        %v1973 = vpop.f32.mrf.mxu0
        %v1974 = vadd.f32 %v1923, %v1973
        %v1975 = vand.u32 %v1735, 4294901760
        %1976 = vmatmul.f32.gmra.mxu0 %v1975
        %v1977 = vpop.f32.mrf.mxu0
        %v1978 = vadd.f32 %v1929, %v1977
        %v1979 = vand.u32 %v1737, 4294901760
        %1980 = vmatmul.f32.gmra.mxu0 %v1979
        %v1981 = vpop.f32.mrf.mxu0
        %v1982 = vadd.f32 %v1935, %v1981
        %v1983 = vand.u32 %v1739, 4294901760
        %1984 = vmatmul.f32.gmra.mxu0 %v1983
        %v1985 = vpop.f32.mrf.mxu0
        %v1986 = vadd.f32 %v1941, %v1985
        %1987 = vdwg.mxu0
        %1988 = vmatpush.msra.mxu0 0.0
        %1989 = vmatpush.msra.mxu0 0.0
        %1990 = vmatpush.msra.mxu0 0.0
        %1991 = vmatpush.msra.mxu0 0.0
        %1992 = vmatpush.msra.mxu0 0.0
        %1993 = vmatpush.msra.mxu0 0.0
        %1994 = vmatpush.msra.mxu0 0.0
        %1995 = vmatpush.msra.mxu0 0.0
        %1996 = vmatpush.msra.mxu0 0.0
        %1997 = vmatpush.msra.mxu0 0.0
        %1998 = vmatpush.msra.mxu0 0.0
        %1999 = vmatpush.msra.mxu0 0.0
        %v2000 = vand.u32 %v1742, 4294901760
        %2001 = vmatpush.msra.mxu0 %v2000
        %v2002 = vand.u32 %v1722, 4294901760
        %2003 = vmatpush.msra.mxu0 %v2002
        %v2004 = vand.u32 %v1720, 4294901760
        %2005 = vmatpush.msra.mxu0 %v2004
        %v2006 = vand.u32 %v1718, 4294901760
        %2007 = vmatpush.msra.mxu0 %v2006
        %v2008 = vand.u32 %v1733, 4294901760
        %2009 = vmatmul.f32.gmra.mxu0 %v2008
        %v2010 = vpop.f32.mrf.mxu0
        %v2011 = vadd.f32 %v1974, %v2010
        %v2012 = vand.u32 %v1735, 4294901760
        %2013 = vmatmul.f32.gmra.mxu0 %v2012
        %v2014 = vpop.f32.mrf.mxu0
        %v2015 = vadd.f32 %v1978, %v2014
        %v2016 = vand.u32 %v1737, 4294901760
        %2017 = vmatmul.f32.gmra.mxu0 %v2016
        %v2018 = vpop.f32.mrf.mxu0
        %v2019 = vadd.f32 %v1982, %v2018
        %v2020 = vand.u32 %v1739, 4294901760
        %2021 = vmatmul.f32.gmra.mxu0 %v2020
        %v2022 = vpop.f32.mrf.mxu0
        %v2023 = vadd.f32 %v1986, %v2022
        %2024 = vdwg.mxu0
        %2025 = vmatpush.msra.mxu0 0.0
        %2026 = vmatpush.msra.mxu0 0.0
        %2027 = vmatpush.msra.mxu0 0.0
        %2028 = vmatpush.msra.mxu0 0.0
        %2029 = vmatpush.msra.mxu0 0.0
        %2030 = vmatpush.msra.mxu0 0.0
        %2031 = vmatpush.msra.mxu0 0.0
        %2032 = vmatpush.msra.mxu0 0.0
        %2033 = vmatpush.msra.mxu0 0.0
        %2034 = vmatpush.msra.mxu0 0.0
        %2035 = vmatpush.msra.mxu0 0.0
        %2036 = vmatpush.msra.mxu0 0.0
        %v2037 = vand.u32 %v1745, 4294901760
        %2038 = vmatpush.msra.mxu0 %v2037
        %v2039 = vand.u32 %v1723, 4294901760
        %2040 = vmatpush.msra.mxu0 %v2039
        %v2041 = vand.u32 %v1721, 4294901760
        %2042 = vmatpush.msra.mxu0 %v2041
        %v2043 = vand.u32 %v1719, 4294901760
        %2044 = vmatpush.msra.mxu0 %v2043
        %v2045 = vand.u32 %v1733, 4294901760
        %v2046 = vsub.f32 %v1733, %v2045
        %v2047 = vand.u32 %v2046, 4294901760
        %v2048 = vsub.f32 %v2046, %v2047
        %v2049 = vand.u32 %v2048, 4294901760
        %2050 = vmatmul.f32.gmra.mxu0 %v2049
        %v2051 = vpop.f32.mrf.mxu0
        %v2052 = vadd.f32 0.0, %v2051
        %v2053 = vand.u32 %v1735, 4294901760
        %v2054 = vsub.f32 %v1735, %v2053
        %v2055 = vand.u32 %v2054, 4294901760
        %v2056 = vsub.f32 %v2054, %v2055
        %v2057 = vand.u32 %v2056, 4294901760
        %2058 = vmatmul.f32.gmra.mxu0 %v2057
        %v2059 = vpop.f32.mrf.mxu0
        %v2060 = vadd.f32 0.0, %v2059
        %v2061 = vand.u32 %v1737, 4294901760
        %v2062 = vsub.f32 %v1737, %v2061
        %v2063 = vand.u32 %v2062, 4294901760
        %v2064 = vsub.f32 %v2062, %v2063
        %v2065 = vand.u32 %v2064, 4294901760
        %2066 = vmatmul.f32.gmra.mxu0 %v2065
        %v2067 = vpop.f32.mrf.mxu0
        %v2068 = vadd.f32 0.0, %v2067
        %v2069 = vand.u32 %v1739, 4294901760
        %v2070 = vsub.f32 %v1739, %v2069
        %v2071 = vand.u32 %v2070, 4294901760
        %v2072 = vsub.f32 %v2070, %v2071
        %v2073 = vand.u32 %v2072, 4294901760
        %2074 = vmatmul.f32.gmra.mxu0 %v2073
        %v2075 = vpop.f32.mrf.mxu0
        %v2076 = vadd.f32 0.0, %v2075
        %2077 = vdwg.mxu0
        %2078 = vmatpush.msra.mxu0 0.0
        %2079 = vmatpush.msra.mxu0 0.0
        %2080 = vmatpush.msra.mxu0 0.0
        %2081 = vmatpush.msra.mxu0 0.0
        %2082 = vmatpush.msra.mxu0 0.0
        %2083 = vmatpush.msra.mxu0 0.0
        %2084 = vmatpush.msra.mxu0 0.0
        %2085 = vmatpush.msra.mxu0 0.0
        %2086 = vmatpush.msra.mxu0 0.0
        %2087 = vmatpush.msra.mxu0 0.0
        %2088 = vmatpush.msra.mxu0 0.0
        %2089 = vmatpush.msra.mxu0 0.0
        %v2090 = vand.u32 %v1745, 4294901760
        %v2091 = vsub.f32 %v1745, %v2090
        %v2092 = vand.u32 %v2091, 4294901760
        %v2093 = vsub.f32 %v2091, %v2092
        %v2094 = vand.u32 %v2093, 4294901760
        %2095 = vmatpush.msra.mxu0 %v2094
        %v2096 = vand.u32 %v1723, 4294901760
        %v2097 = vsub.f32 %v1723, %v2096
        %v2098 = vand.u32 %v2097, 4294901760
        %v2099 = vsub.f32 %v2097, %v2098
        %v2100 = vand.u32 %v2099, 4294901760
        %2101 = vmatpush.msra.mxu0 %v2100
        %v2102 = vand.u32 %v1721, 4294901760
        %v2103 = vsub.f32 %v1721, %v2102
        %v2104 = vand.u32 %v2103, 4294901760
        %v2105 = vsub.f32 %v2103, %v2104
        %v2106 = vand.u32 %v2105, 4294901760
        %2107 = vmatpush.msra.mxu0 %v2106
        %v2108 = vand.u32 %v1719, 4294901760
        %v2109 = vsub.f32 %v1719, %v2108
        %v2110 = vand.u32 %v2109, 4294901760
        %v2111 = vsub.f32 %v2109, %v2110
        %v2112 = vand.u32 %v2111, 4294901760
        %2113 = vmatpush.msra.mxu0 %v2112
        %v2114 = vand.u32 %v1733, 4294901760
        %2115 = vmatmul.f32.gmra.mxu0 %v2114
        %v2116 = vpop.f32.mrf.mxu0
        %v2117 = vadd.f32 %v2052, %v2116
        %v2118 = vand.u32 %v1735, 4294901760
        %2119 = vmatmul.f32.gmra.mxu0 %v2118
        %v2120 = vpop.f32.mrf.mxu0
        %v2121 = vadd.f32 %v2060, %v2120
        %v2122 = vand.u32 %v1737, 4294901760
        %2123 = vmatmul.f32.gmra.mxu0 %v2122
        %v2124 = vpop.f32.mrf.mxu0
        %v2125 = vadd.f32 %v2068, %v2124
        %v2126 = vand.u32 %v1739, 4294901760
        %2127 = vmatmul.f32.gmra.mxu0 %v2126
        %v2128 = vpop.f32.mrf.mxu0
        %v2129 = vadd.f32 %v2076, %v2128
        %2130 = vdwg.mxu0
        %2131 = vmatpush.msra.mxu0 0.0
        %2132 = vmatpush.msra.mxu0 0.0
        %2133 = vmatpush.msra.mxu0 0.0
        %2134 = vmatpush.msra.mxu0 0.0
        %2135 = vmatpush.msra.mxu0 0.0
        %2136 = vmatpush.msra.mxu0 0.0
        %2137 = vmatpush.msra.mxu0 0.0
        %2138 = vmatpush.msra.mxu0 0.0
        %2139 = vmatpush.msra.mxu0 0.0
        %2140 = vmatpush.msra.mxu0 0.0
        %2141 = vmatpush.msra.mxu0 0.0
        %2142 = vmatpush.msra.mxu0 0.0
        %v2143 = vand.u32 %v1745, 4294901760
        %v2144 = vsub.f32 %v1745, %v2143
        %2145 = vmatpush.msra.mxu0 %v2144
        %v2146 = vand.u32 %v1723, 4294901760
        %v2147 = vsub.f32 %v1723, %v2146
        %2148 = vmatpush.msra.mxu0 %v2147
        %v2149 = vand.u32 %v1721, 4294901760
        %v2150 = vsub.f32 %v1721, %v2149
        %2151 = vmatpush.msra.mxu0 %v2150
        %v2152 = vand.u32 %v1719, 4294901760
        %v2153 = vsub.f32 %v1719, %v2152
        %2154 = vmatpush.msra.mxu0 %v2153
        %v2155 = vand.u32 %v1733, 4294901760
        %v2156 = vsub.f32 %v1733, %v2155
        %2157 = vmatmul.f32.gmra.mxu0 %v2156
        %v2158 = vpop.f32.mrf.mxu0
        %v2159 = vadd.f32 %v2117, %v2158
        %v2160 = vand.u32 %v1735, 4294901760
        %v2161 = vsub.f32 %v1735, %v2160
        %2162 = vmatmul.f32.gmra.mxu0 %v2161
        %v2163 = vpop.f32.mrf.mxu0
        %v2164 = vadd.f32 %v2121, %v2163
        %v2165 = vand.u32 %v1737, 4294901760
        %v2166 = vsub.f32 %v1737, %v2165
        %2167 = vmatmul.f32.gmra.mxu0 %v2166
        %v2168 = vpop.f32.mrf.mxu0
        %v2169 = vadd.f32 %v2125, %v2168
        %v2170 = vand.u32 %v1739, 4294901760
        %v2171 = vsub.f32 %v1739, %v2170
        %2172 = vmatmul.f32.gmra.mxu0 %v2171
        %v2173 = vpop.f32.mrf.mxu0
        %v2174 = vadd.f32 %v2129, %v2173
        %2175 = vdwg.mxu0
        %2176 = vmatpush.msra.mxu0 0.0
        %2177 = vmatpush.msra.mxu0 0.0
        %2178 = vmatpush.msra.mxu0 0.0
        %2179 = vmatpush.msra.mxu0 0.0
        %2180 = vmatpush.msra.mxu0 0.0
        %2181 = vmatpush.msra.mxu0 0.0
        %2182 = vmatpush.msra.mxu0 0.0
        %2183 = vmatpush.msra.mxu0 0.0
        %2184 = vmatpush.msra.mxu0 0.0
        %2185 = vmatpush.msra.mxu0 0.0
        %2186 = vmatpush.msra.mxu0 0.0
        %2187 = vmatpush.msra.mxu0 0.0
        %v2188 = vand.u32 %v1745, 4294901760
        %2189 = vmatpush.msra.mxu0 %v2188
        %v2190 = vand.u32 %v1723, 4294901760
        %2191 = vmatpush.msra.mxu0 %v2190
        %v2192 = vand.u32 %v1721, 4294901760
        %2193 = vmatpush.msra.mxu0 %v2192
        %v2194 = vand.u32 %v1719, 4294901760
        %2195 = vmatpush.msra.mxu0 %v2194
        %v2196 = vand.u32 %v1733, 4294901760
        %v2197 = vsub.f32 %v1733, %v2196
        %v2198 = vand.u32 %v2197, 4294901760
        %2199 = vmatmul.f32.gmra.mxu0 %v2198
        %v2200 = vpop.f32.mrf.mxu0
        %v2201 = vadd.f32 %v2159, %v2200
        %v2202 = vand.u32 %v1735, 4294901760
        %v2203 = vsub.f32 %v1735, %v2202
        %v2204 = vand.u32 %v2203, 4294901760
        %2205 = vmatmul.f32.gmra.mxu0 %v2204
        %v2206 = vpop.f32.mrf.mxu0
        %v2207 = vadd.f32 %v2164, %v2206
        %v2208 = vand.u32 %v1737, 4294901760
        %v2209 = vsub.f32 %v1737, %v2208
        %v2210 = vand.u32 %v2209, 4294901760
        %2211 = vmatmul.f32.gmra.mxu0 %v2210
        %v2212 = vpop.f32.mrf.mxu0
        %v2213 = vadd.f32 %v2169, %v2212
        %v2214 = vand.u32 %v1739, 4294901760
        %v2215 = vsub.f32 %v1739, %v2214
        %v2216 = vand.u32 %v2215, 4294901760
        %2217 = vmatmul.f32.gmra.mxu0 %v2216
        %v2218 = vpop.f32.mrf.mxu0
        %v2219 = vadd.f32 %v2174, %v2218
        %2220 = vdwg.mxu0
        %2221 = vmatpush.msra.mxu0 0.0
        %2222 = vmatpush.msra.mxu0 0.0
        %2223 = vmatpush.msra.mxu0 0.0
        %2224 = vmatpush.msra.mxu0 0.0
        %2225 = vmatpush.msra.mxu0 0.0
        %2226 = vmatpush.msra.mxu0 0.0
        %2227 = vmatpush.msra.mxu0 0.0
        %2228 = vmatpush.msra.mxu0 0.0
        %2229 = vmatpush.msra.mxu0 0.0
        %2230 = vmatpush.msra.mxu0 0.0
        %2231 = vmatpush.msra.mxu0 0.0
        %2232 = vmatpush.msra.mxu0 0.0
        %v2233 = vand.u32 %v1745, 4294901760
        %v2234 = vsub.f32 %v1745, %v2233
        %v2235 = vand.u32 %v2234, 4294901760
        %2236 = vmatpush.msra.mxu0 %v2235
        %v2237 = vand.u32 %v1723, 4294901760
        %v2238 = vsub.f32 %v1723, %v2237
        %v2239 = vand.u32 %v2238, 4294901760
        %2240 = vmatpush.msra.mxu0 %v2239
        %v2241 = vand.u32 %v1721, 4294901760
        %v2242 = vsub.f32 %v1721, %v2241
        %v2243 = vand.u32 %v2242, 4294901760
        %2244 = vmatpush.msra.mxu0 %v2243
        %v2245 = vand.u32 %v1719, 4294901760
        %v2246 = vsub.f32 %v1719, %v2245
        %v2247 = vand.u32 %v2246, 4294901760
        %2248 = vmatpush.msra.mxu0 %v2247
        %v2249 = vand.u32 %v1733, 4294901760
        %2250 = vmatmul.f32.gmra.mxu0 %v2249
        %v2251 = vpop.f32.mrf.mxu0
        %v2252 = vadd.f32 %v2201, %v2251
        %v2253 = vand.u32 %v1735, 4294901760
        %2254 = vmatmul.f32.gmra.mxu0 %v2253
        %v2255 = vpop.f32.mrf.mxu0
        %v2256 = vadd.f32 %v2207, %v2255
        %v2257 = vand.u32 %v1737, 4294901760
        %2258 = vmatmul.f32.gmra.mxu0 %v2257
        %v2259 = vpop.f32.mrf.mxu0
        %v2260 = vadd.f32 %v2213, %v2259
        %v2261 = vand.u32 %v1739, 4294901760
        %2262 = vmatmul.f32.gmra.mxu0 %v2261
        %v2263 = vpop.f32.mrf.mxu0
        %v2264 = vadd.f32 %v2219, %v2263
        %2265 = vdwg.mxu0
        %2266 = vmatpush.msra.mxu0 0.0
        %2267 = vmatpush.msra.mxu0 0.0
        %2268 = vmatpush.msra.mxu0 0.0
        %2269 = vmatpush.msra.mxu0 0.0
        %2270 = vmatpush.msra.mxu0 0.0
        %2271 = vmatpush.msra.mxu0 0.0
        %2272 = vmatpush.msra.mxu0 0.0
        %2273 = vmatpush.msra.mxu0 0.0
        %2274 = vmatpush.msra.mxu0 0.0
        %2275 = vmatpush.msra.mxu0 0.0
        %2276 = vmatpush.msra.mxu0 0.0
        %2277 = vmatpush.msra.mxu0 0.0
        %v2278 = vand.u32 %v1745, 4294901760
        %2279 = vmatpush.msra.mxu0 %v2278
        %v2280 = vand.u32 %v1723, 4294901760
        %2281 = vmatpush.msra.mxu0 %v2280
        %v2282 = vand.u32 %v1721, 4294901760
        %2283 = vmatpush.msra.mxu0 %v2282
        %v2284 = vand.u32 %v1719, 4294901760
        %2285 = vmatpush.msra.mxu0 %v2284
        %v2286 = vand.u32 %v1733, 4294901760
        %2287 = vmatmul.f32.gmra.mxu0 %v2286
        %v2288 = vpop.f32.mrf.mxu0
        %v2289 = vadd.f32 %v2252, %v2288
        %v2290 = vand.u32 %v1735, 4294901760
        %2291 = vmatmul.f32.gmra.mxu0 %v2290
        %v2292 = vpop.f32.mrf.mxu0
        %v2293 = vadd.f32 %v2256, %v2292
        %v2294 = vand.u32 %v1737, 4294901760
        %2295 = vmatmul.f32.gmra.mxu0 %v2294
        %v2296 = vpop.f32.mrf.mxu0
        %v2297 = vadd.f32 %v2260, %v2296
        %v2298 = vand.u32 %v1739, 4294901760
        %2299 = vmatmul.f32.gmra.mxu0 %v2298
        %v2300 = vpop.f32.mrf.mxu0
        %v2301 = vadd.f32 %v2264, %v2300
        %2302 = vdwg.mxu0
        %v2303 = vadd.f32 %v1425, %v2011
        %v2304 = vadd.f32 %v1703, %v2289
        %v2305 = vadd.f32 %v1429, %v2015
        %v2306 = vadd.f32 %v1707, %v2293
        %v2307 = vadd.f32 %v1433, %v2019
        %v2308 = vadd.f32 %v1711, %v2297
        %v2309 = vadd.f32 %v1437, %v2023
        %v2310 = vadd.f32 %v1715, %v2301
        %v2311 = vld [vmem:[%s2] sm:$0x3]
        %v2313 = vperm.slane %v2311, 0
        %v2314 = vperm.slane %v2311, 1
        %v2317 = vadd.f32 %v2303, %v2313
        %v2318 = vadd.f32 %v2304, %v2314
        %v2319 = vadd.f32 %v2305, %v2313
        %v2320 = vadd.f32 %v2306, %v2314
        %v2321 = vadd.f32 %v2307, %v2313
        %v2322 = vadd.f32 %v2308, %v2314
        %v2323 = vadd.f32 %v2309, %v2313
        %v2324 = vadd.f32 %v2310, %v2314
        %v2325 = vmax.f32 %v2317, 0.0
        %v2326 = vmax.f32 %v2318, 0.0
        %v2327 = vmax.f32 %v2319, 0.0
        %v2328 = vmax.f32 %v2320, 0.0
        %v2329 = vmax.f32 %v2321, 0.0
        %v2330 = vmax.f32 %v2322, 0.0
        %v2331 = vmax.f32 %v2323, 0.0
        %v2332 = vmax.f32 %v2324, 0.0
        %v2341 = vrot.slane %v2325, 1
        %v2342 = vrot.slane %v2327, 1
        %v2343 = vsel %vm567, %v2341, %v2342
        %v2344 = vrot.slane %v2326, 1
        %v2345 = vrot.slane %v2328, 1
        %v2346 = vsel %vm567, %v2344, %v2345
        %v2347 = vrot.slane %v2329, 1
        %v2348 = vsel %vm567, %v2342, %v2347
        %v2349 = vrot.slane %v2330, 1
        %v2350 = vsel %vm567, %v2345, %v2349
        %v2351 = vrot.slane %v2331, 1
        %v2352 = vsel %vm567, %v2347, %v2351
        %v2353 = vrot.slane %v2332, 1
        %v2354 = vsel %vm567, %v2349, %v2353
        %v2363 = vmax.f32 %v2325, %v2343
        %v2364 = vmax.f32 %v2326, %v2346
        %v2365 = vmax.f32 %v2327, %v2348
        %v2366 = vmax.f32 %v2328, %v2350
        %v2367 = vmax.f32 %v2329, %v2352
        %v2368 = vmax.f32 %v2330, %v2354
        %v2369 = vmax.f32 %v2331, %v2351
        %v2370 = vmax.f32 %v2332, %v2353
        %v2371 = vld [vmem:[%s3] sm:$0xff]
        %v2372 = vld [vmem:[%s3 + $0x8] sm:$0x3f]
        %vm2373 = vcmask 220160
        %v2375 = vsel %vm2373, %v2371, 0
        %v2378 = vsel %vm2373, %v2372, 0
        %vm2380 = vcmask 1042432
        %v2382 = vsel %vm2380, %v2369, 0
        %v2385 = vsel %vm2380, %v2370, 0
        %2387 = vmatpush.msra.mxu0 0.0
        %2388 = vmatpush.msra.mxu0 0.0
        %2389 = vmatpush.msra.mxu0 0.0
        %2390 = vmatpush.msra.mxu0 0.0
        %2391 = vmatpush.msra.mxu0 0.0
        %2392 = vmatpush.msra.mxu0 0.0
        %2393 = vmatpush.msra.mxu0 0.0
        %2394 = vmatpush.msra.mxu0 0.0
        %2395 = vmatpush.msra.mxu0 0.0
        %2396 = vmatpush.msra.mxu0 0.0
        %2397 = vmatpush.msra.mxu0 0.0
        %2398 = vmatpush.msra.mxu0 0.0
        %v2399 = vand.u32 %v2382, 4294901760
        %2400 = vmatpush.msra.mxu0 %v2399
        %v2401 = vand.u32 %v2367, 4294901760
        %2402 = vmatpush.msra.mxu0 %v2401
        %v2403 = vand.u32 %v2365, 4294901760
        %2404 = vmatpush.msra.mxu0 %v2403
        %v2405 = vand.u32 %v2363, 4294901760
        %2406 = vmatpush.msra.mxu0 %v2405
        %v2407 = vand.u32 %v2375, 4294901760
        %v2408 = vsub.f32 %v2375, %v2407
        %v2409 = vand.u32 %v2408, 4294901760
        %v2410 = vsub.f32 %v2408, %v2409
        %v2411 = vand.u32 %v2410, 4294901760
        %2412 = vmatmul.f32.gmra.mxu0 %v2411
        %v2413 = vpop.f32.mrf.mxu0
        %v2414 = vadd.f32 0.0, %v2413
        %v2415 = vand.u32 %v2378, 4294901760
        %v2416 = vsub.f32 %v2378, %v2415
        %v2417 = vand.u32 %v2416, 4294901760
        %v2418 = vsub.f32 %v2416, %v2417
        %v2419 = vand.u32 %v2418, 4294901760
        %2420 = vmatmul.f32.gmra.mxu0 %v2419
        %v2421 = vpop.f32.mrf.mxu0
        %v2422 = vadd.f32 0.0, %v2421
        %2423 = vdwg.mxu0
        %2424 = vmatpush.msra.mxu0 0.0
        %2425 = vmatpush.msra.mxu0 0.0
        %2426 = vmatpush.msra.mxu0 0.0
        %2427 = vmatpush.msra.mxu0 0.0
        %2428 = vmatpush.msra.mxu0 0.0
        %2429 = vmatpush.msra.mxu0 0.0
        %2430 = vmatpush.msra.mxu0 0.0
        %2431 = vmatpush.msra.mxu0 0.0
        %2432 = vmatpush.msra.mxu0 0.0
        %2433 = vmatpush.msra.mxu0 0.0
        %2434 = vmatpush.msra.mxu0 0.0
        %2435 = vmatpush.msra.mxu0 0.0
        %v2436 = vand.u32 %v2382, 4294901760
        %v2437 = vsub.f32 %v2382, %v2436
        %v2438 = vand.u32 %v2437, 4294901760
        %v2439 = vsub.f32 %v2437, %v2438
        %v2440 = vand.u32 %v2439, 4294901760
        %2441 = vmatpush.msra.mxu0 %v2440
        %v2442 = vand.u32 %v2367, 4294901760
        %v2443 = vsub.f32 %v2367, %v2442
        %v2444 = vand.u32 %v2443, 4294901760
        %v2445 = vsub.f32 %v2443, %v2444
        %v2446 = vand.u32 %v2445, 4294901760
        %2447 = vmatpush.msra.mxu0 %v2446
        %v2448 = vand.u32 %v2365, 4294901760
        %v2449 = vsub.f32 %v2365, %v2448
        %v2450 = vand.u32 %v2449, 4294901760
        %v2451 = vsub.f32 %v2449, %v2450
        %v2452 = vand.u32 %v2451, 4294901760
        %2453 = vmatpush.msra.mxu0 %v2452
        %v2454 = vand.u32 %v2363, 4294901760
        %v2455 = vsub.f32 %v2363, %v2454
        %v2456 = vand.u32 %v2455, 4294901760
        %v2457 = vsub.f32 %v2455, %v2456
        %v2458 = vand.u32 %v2457, 4294901760
        %2459 = vmatpush.msra.mxu0 %v2458
        %v2460 = vand.u32 %v2375, 4294901760
        %2461 = vmatmul.f32.gmra.mxu0 %v2460
        %v2462 = vpop.f32.mrf.mxu0
        %v2463 = vadd.f32 %v2414, %v2462
        %v2464 = vand.u32 %v2378, 4294901760
        %2465 = vmatmul.f32.gmra.mxu0 %v2464
        %v2466 = vpop.f32.mrf.mxu0
        %v2467 = vadd.f32 %v2422, %v2466
        %2468 = vdwg.mxu0
        %2469 = vmatpush.msra.mxu0 0.0
        %2470 = vmatpush.msra.mxu0 0.0
        %2471 = vmatpush.msra.mxu0 0.0
        %2472 = vmatpush.msra.mxu0 0.0
        %2473 = vmatpush.msra.mxu0 0.0
        %2474 = vmatpush.msra.mxu0 0.0
        %2475 = vmatpush.msra.mxu0 0.0
        %2476 = vmatpush.msra.mxu0 0.0
        %2477 = vmatpush.msra.mxu0 0.0
        %2478 = vmatpush.msra.mxu0 0.0
        %2479 = vmatpush.msra.mxu0 0.0
        %2480 = vmatpush.msra.mxu0 0.0
        %v2481 = vand.u32 %v2382, 4294901760
        %v2482 = vsub.f32 %v2382, %v2481
        %2483 = vmatpush.msra.mxu0 %v2482
        %v2484 = vand.u32 %v2367, 4294901760
        %v2485 = vsub.f32 %v2367, %v2484
        %2486 = vmatpush.msra.mxu0 %v2485
        %v2487 = vand.u32 %v2365, 4294901760
        %v2488 = vsub.f32 %v2365, %v2487
        %2489 = vmatpush.msra.mxu0 %v2488
        %v2490 = vand.u32 %v2363, 4294901760
        %v2491 = vsub.f32 %v2363, %v2490
        %2492 = vmatpush.msra.mxu0 %v2491
        %v2493 = vand.u32 %v2375, 4294901760
        %v2494 = vsub.f32 %v2375, %v2493
        %2495 = vmatmul.f32.gmra.mxu0 %v2494
        %v2496 = vpop.f32.mrf.mxu0
        %v2497 = vadd.f32 %v2463, %v2496
        %v2498 = vand.u32 %v2378, 4294901760
        %v2499 = vsub.f32 %v2378, %v2498
        %2500 = vmatmul.f32.gmra.mxu0 %v2499
        %v2501 = vpop.f32.mrf.mxu0
        %v2502 = vadd.f32 %v2467, %v2501
        %2503 = vdwg.mxu0
        %2504 = vmatpush.msra.mxu0 0.0
        %2505 = vmatpush.msra.mxu0 0.0
        %2506 = vmatpush.msra.mxu0 0.0
        %2507 = vmatpush.msra.mxu0 0.0
        %2508 = vmatpush.msra.mxu0 0.0
        %2509 = vmatpush.msra.mxu0 0.0
        %2510 = vmatpush.msra.mxu0 0.0
        %2511 = vmatpush.msra.mxu0 0.0
        %2512 = vmatpush.msra.mxu0 0.0
        %2513 = vmatpush.msra.mxu0 0.0
        %2514 = vmatpush.msra.mxu0 0.0
        %2515 = vmatpush.msra.mxu0 0.0
        %v2516 = vand.u32 %v2382, 4294901760
        %2517 = vmatpush.msra.mxu0 %v2516
        %v2518 = vand.u32 %v2367, 4294901760
        %2519 = vmatpush.msra.mxu0 %v2518
        %v2520 = vand.u32 %v2365, 4294901760
        %2521 = vmatpush.msra.mxu0 %v2520
        %v2522 = vand.u32 %v2363, 4294901760
        %2523 = vmatpush.msra.mxu0 %v2522
        %v2524 = vand.u32 %v2375, 4294901760
        %v2525 = vsub.f32 %v2375, %v2524
        %v2526 = vand.u32 %v2525, 4294901760
        %2527 = vmatmul.f32.gmra.mxu0 %v2526
        %v2528 = vpop.f32.mrf.mxu0
        %v2529 = vadd.f32 %v2497, %v2528
        %v2530 = vand.u32 %v2378, 4294901760
        %v2531 = vsub.f32 %v2378, %v2530
        %v2532 = vand.u32 %v2531, 4294901760
        %2533 = vmatmul.f32.gmra.mxu0 %v2532
        %v2534 = vpop.f32.mrf.mxu0
        %v2535 = vadd.f32 %v2502, %v2534
        %2536 = vdwg.mxu0
        %2537 = vmatpush.msra.mxu0 0.0
        %2538 = vmatpush.msra.mxu0 0.0
        %2539 = vmatpush.msra.mxu0 0.0
        %2540 = vmatpush.msra.mxu0 0.0
        %2541 = vmatpush.msra.mxu0 0.0
        %2542 = vmatpush.msra.mxu0 0.0
        %2543 = vmatpush.msra.mxu0 0.0
        %2544 = vmatpush.msra.mxu0 0.0
        %2545 = vmatpush.msra.mxu0 0.0
        %2546 = vmatpush.msra.mxu0 0.0
        %2547 = vmatpush.msra.mxu0 0.0
        %2548 = vmatpush.msra.mxu0 0.0
        %v2549 = vand.u32 %v2382, 4294901760
        %v2550 = vsub.f32 %v2382, %v2549
        %v2551 = vand.u32 %v2550, 4294901760
        %2552 = vmatpush.msra.mxu0 %v2551
        %v2553 = vand.u32 %v2367, 4294901760
        %v2554 = vsub.f32 %v2367, %v2553
        %v2555 = vand.u32 %v2554, 4294901760
        %2556 = vmatpush.msra.mxu0 %v2555
        %v2557 = vand.u32 %v2365, 4294901760
        %v2558 = vsub.f32 %v2365, %v2557
        %v2559 = vand.u32 %v2558, 4294901760
        %2560 = vmatpush.msra.mxu0 %v2559
        %v2561 = vand.u32 %v2363, 4294901760
        %v2562 = vsub.f32 %v2363, %v2561
        %v2563 = vand.u32 %v2562, 4294901760
        %2564 = vmatpush.msra.mxu0 %v2563
        %v2565 = vand.u32 %v2375, 4294901760
        %2566 = vmatmul.f32.gmra.mxu0 %v2565
        %v2567 = vpop.f32.mrf.mxu0
        %v2568 = vadd.f32 %v2529, %v2567
        %v2569 = vand.u32 %v2378, 4294901760
        %2570 = vmatmul.f32.gmra.mxu0 %v2569
        %v2571 = vpop.f32.mrf.mxu0
        %v2572 = vadd.f32 %v2535, %v2571
        %2573 = vdwg.mxu0
        %2574 = vmatpush.msra.mxu0 0.0
        %2575 = vmatpush.msra.mxu0 0.0
        %2576 = vmatpush.msra.mxu0 0.0
        %2577 = vmatpush.msra.mxu0 0.0
        %2578 = vmatpush.msra.mxu0 0.0
        %2579 = vmatpush.msra.mxu0 0.0
        %2580 = vmatpush.msra.mxu0 0.0
        %2581 = vmatpush.msra.mxu0 0.0
        %2582 = vmatpush.msra.mxu0 0.0
        %2583 = vmatpush.msra.mxu0 0.0
        %2584 = vmatpush.msra.mxu0 0.0
        %2585 = vmatpush.msra.mxu0 0.0
        %v2586 = vand.u32 %v2382, 4294901760
        %2587 = vmatpush.msra.mxu0 %v2586
        %v2588 = vand.u32 %v2367, 4294901760
        %2589 = vmatpush.msra.mxu0 %v2588
        %v2590 = vand.u32 %v2365, 4294901760
        %2591 = vmatpush.msra.mxu0 %v2590
        %v2592 = vand.u32 %v2363, 4294901760
        %2593 = vmatpush.msra.mxu0 %v2592
        %v2594 = vand.u32 %v2375, 4294901760
        %2595 = vmatmul.f32.gmra.mxu0 %v2594
        %v2596 = vpop.f32.mrf.mxu0
        %v2597 = vadd.f32 %v2568, %v2596
        %v2598 = vand.u32 %v2378, 4294901760
        %2599 = vmatmul.f32.gmra.mxu0 %v2598
        %v2600 = vpop.f32.mrf.mxu0
        %v2601 = vadd.f32 %v2572, %v2600
        %2602 = vdwg.mxu0
        %2603 = vmatpush.msra.mxu0 0.0
        %2604 = vmatpush.msra.mxu0 0.0
        %2605 = vmatpush.msra.mxu0 0.0
        %2606 = vmatpush.msra.mxu0 0.0
        %2607 = vmatpush.msra.mxu0 0.0
        %2608 = vmatpush.msra.mxu0 0.0
        %2609 = vmatpush.msra.mxu0 0.0
        %2610 = vmatpush.msra.mxu0 0.0
        %2611 = vmatpush.msra.mxu0 0.0
        %2612 = vmatpush.msra.mxu0 0.0
        %2613 = vmatpush.msra.mxu0 0.0
        %2614 = vmatpush.msra.mxu0 0.0
        %v2615 = vand.u32 %v2385, 4294901760
        %2616 = vmatpush.msra.mxu0 %v2615
        %v2617 = vand.u32 %v2368, 4294901760
        %2618 = vmatpush.msra.mxu0 %v2617
        %v2619 = vand.u32 %v2366, 4294901760
        %2620 = vmatpush.msra.mxu0 %v2619
        %v2621 = vand.u32 %v2364, 4294901760
        %2622 = vmatpush.msra.mxu0 %v2621
        %v2623 = vand.u32 %v2375, 4294901760
        %v2624 = vsub.f32 %v2375, %v2623
        %v2625 = vand.u32 %v2624, 4294901760
        %v2626 = vsub.f32 %v2624, %v2625
        %v2627 = vand.u32 %v2626, 4294901760
        %2628 = vmatmul.f32.gmra.mxu0 %v2627
        %v2629 = vpop.f32.mrf.mxu0
        %v2630 = vadd.f32 0.0, %v2629
        %v2631 = vand.u32 %v2378, 4294901760
        %v2632 = vsub.f32 %v2378, %v2631
        %v2633 = vand.u32 %v2632, 4294901760
        %v2634 = vsub.f32 %v2632, %v2633
        %v2635 = vand.u32 %v2634, 4294901760
        %2636 = vmatmul.f32.gmra.mxu0 %v2635
        %v2637 = vpop.f32.mrf.mxu0
        %v2638 = vadd.f32 0.0, %v2637
        %2639 = vdwg.mxu0
        %2640 = vmatpush.msra.mxu0 0.0
        %2641 = vmatpush.msra.mxu0 0.0
        %2642 = vmatpush.msra.mxu0 0.0
        %2643 = vmatpush.msra.mxu0 0.0
        %2644 = vmatpush.msra.mxu0 0.0
        %2645 = vmatpush.msra.mxu0 0.0
        %2646 = vmatpush.msra.mxu0 0.0
        %2647 = vmatpush.msra.mxu0 0.0
        %2648 = vmatpush.msra.mxu0 0.0
        %2649 = vmatpush.msra.mxu0 0.0
        %2650 = vmatpush.msra.mxu0 0.0
        %2651 = vmatpush.msra.mxu0 0.0
        %v2652 = vand.u32 %v2385, 4294901760
        %v2653 = vsub.f32 %v2385, %v2652
        %v2654 = vand.u32 %v2653, 4294901760
        %v2655 = vsub.f32 %v2653, %v2654
        %v2656 = vand.u32 %v2655, 4294901760
        %2657 = vmatpush.msra.mxu0 %v2656
        %v2658 = vand.u32 %v2368, 4294901760
        %v2659 = vsub.f32 %v2368, %v2658
        %v2660 = vand.u32 %v2659, 4294901760
        %v2661 = vsub.f32 %v2659, %v2660
        %v2662 = vand.u32 %v2661, 4294901760
        %2663 = vmatpush.msra.mxu0 %v2662
        %v2664 = vand.u32 %v2366, 4294901760
        %v2665 = vsub.f32 %v2366, %v2664
        %v2666 = vand.u32 %v2665, 4294901760
        %v2667 = vsub.f32 %v2665, %v2666
        %v2668 = vand.u32 %v2667, 4294901760
        %2669 = vmatpush.msra.mxu0 %v2668
        %v2670 = vand.u32 %v2364, 4294901760
        %v2671 = vsub.f32 %v2364, %v2670
        %v2672 = vand.u32 %v2671, 4294901760
        %v2673 = vsub.f32 %v2671, %v2672
        %v2674 = vand.u32 %v2673, 4294901760
        %2675 = vmatpush.msra.mxu0 %v2674
        %v2676 = vand.u32 %v2375, 4294901760
        %2677 = vmatmul.f32.gmra.mxu0 %v2676
        %v2678 = vpop.f32.mrf.mxu0
        %v2679 = vadd.f32 %v2630, %v2678
        %v2680 = vand.u32 %v2378, 4294901760
        %2681 = vmatmul.f32.gmra.mxu0 %v2680
        %v2682 = vpop.f32.mrf.mxu0
        %v2683 = vadd.f32 %v2638, %v2682
        %2684 = vdwg.mxu0
        %2685 = vmatpush.msra.mxu0 0.0
        %2686 = vmatpush.msra.mxu0 0.0
        %2687 = vmatpush.msra.mxu0 0.0
        %2688 = vmatpush.msra.mxu0 0.0
        %2689 = vmatpush.msra.mxu0 0.0
        %2690 = vmatpush.msra.mxu0 0.0
        %2691 = vmatpush.msra.mxu0 0.0
        %2692 = vmatpush.msra.mxu0 0.0
        %2693 = vmatpush.msra.mxu0 0.0
        %2694 = vmatpush.msra.mxu0 0.0
        %2695 = vmatpush.msra.mxu0 0.0
        %2696 = vmatpush.msra.mxu0 0.0
        %v2697 = vand.u32 %v2385, 4294901760
        %v2698 = vsub.f32 %v2385, %v2697
        %2699 = vmatpush.msra.mxu0 %v2698
        %v2700 = vand.u32 %v2368, 4294901760
        %v2701 = vsub.f32 %v2368, %v2700
        %2702 = vmatpush.msra.mxu0 %v2701
        %v2703 = vand.u32 %v2366, 4294901760
        %v2704 = vsub.f32 %v2366, %v2703
        %2705 = vmatpush.msra.mxu0 %v2704
        %v2706 = vand.u32 %v2364, 4294901760
        %v2707 = vsub.f32 %v2364, %v2706
        %2708 = vmatpush.msra.mxu0 %v2707
        %v2709 = vand.u32 %v2375, 4294901760
        %v2710 = vsub.f32 %v2375, %v2709
        %2711 = vmatmul.f32.gmra.mxu0 %v2710
        %v2712 = vpop.f32.mrf.mxu0
        %v2713 = vadd.f32 %v2679, %v2712
        %v2714 = vand.u32 %v2378, 4294901760
        %v2715 = vsub.f32 %v2378, %v2714
        %2716 = vmatmul.f32.gmra.mxu0 %v2715
        %v2717 = vpop.f32.mrf.mxu0
        %v2718 = vadd.f32 %v2683, %v2717
        %2719 = vdwg.mxu0
        %2720 = vmatpush.msra.mxu0 0.0
        %2721 = vmatpush.msra.mxu0 0.0
        %2722 = vmatpush.msra.mxu0 0.0
        %2723 = vmatpush.msra.mxu0 0.0
        %2724 = vmatpush.msra.mxu0 0.0
        %2725 = vmatpush.msra.mxu0 0.0
        %2726 = vmatpush.msra.mxu0 0.0
        %2727 = vmatpush.msra.mxu0 0.0
        %2728 = vmatpush.msra.mxu0 0.0
        %2729 = vmatpush.msra.mxu0 0.0
        %2730 = vmatpush.msra.mxu0 0.0
        %2731 = vmatpush.msra.mxu0 0.0
        %v2732 = vand.u32 %v2385, 4294901760
        %2733 = vmatpush.msra.mxu0 %v2732
        %v2734 = vand.u32 %v2368, 4294901760
        %2735 = vmatpush.msra.mxu0 %v2734
        %v2736 = vand.u32 %v2366, 4294901760
        %2737 = vmatpush.msra.mxu0 %v2736
        %v2738 = vand.u32 %v2364, 4294901760
        %2739 = vmatpush.msra.mxu0 %v2738
        %v2740 = vand.u32 %v2375, 4294901760
        %v2741 = vsub.f32 %v2375, %v2740
        %v2742 = vand.u32 %v2741, 4294901760
        %2743 = vmatmul.f32.gmra.mxu0 %v2742
        %v2744 = vpop.f32.mrf.mxu0
        %v2745 = vadd.f32 %v2713, %v2744
        %v2746 = vand.u32 %v2378, 4294901760
        %v2747 = vsub.f32 %v2378, %v2746
        %v2748 = vand.u32 %v2747, 4294901760
        %2749 = vmatmul.f32.gmra.mxu0 %v2748
        %v2750 = vpop.f32.mrf.mxu0
        %v2751 = vadd.f32 %v2718, %v2750
        %2752 = vdwg.mxu0
        %2753 = vmatpush.msra.mxu0 0.0
        %2754 = vmatpush.msra.mxu0 0.0
        %2755 = vmatpush.msra.mxu0 0.0
        %2756 = vmatpush.msra.mxu0 0.0
        %2757 = vmatpush.msra.mxu0 0.0
        %2758 = vmatpush.msra.mxu0 0.0
        %2759 = vmatpush.msra.mxu0 0.0
        %2760 = vmatpush.msra.mxu0 0.0
        %2761 = vmatpush.msra.mxu0 0.0
        %2762 = vmatpush.msra.mxu0 0.0
        %2763 = vmatpush.msra.mxu0 0.0
        %2764 = vmatpush.msra.mxu0 0.0
        %v2765 = vand.u32 %v2385, 4294901760
        %v2766 = vsub.f32 %v2385, %v2765
        %v2767 = vand.u32 %v2766, 4294901760
        %2768 = vmatpush.msra.mxu0 %v2767
        %v2769 = vand.u32 %v2368, 4294901760
        %v2770 = vsub.f32 %v2368, %v2769
        %v2771 = vand.u32 %v2770, 4294901760
        %2772 = vmatpush.msra.mxu0 %v2771
        %v2773 = vand.u32 %v2366, 4294901760
        %v2774 = vsub.f32 %v2366, %v2773
        %v2775 = vand.u32 %v2774, 4294901760
        %2776 = vmatpush.msra.mxu0 %v2775
        %v2777 = vand.u32 %v2364, 4294901760
        %v2778 = vsub.f32 %v2364, %v2777
        %v2779 = vand.u32 %v2778, 4294901760
        %2780 = vmatpush.msra.mxu0 %v2779
        %v2781 = vand.u32 %v2375, 4294901760
        %2782 = vmatmul.f32.gmra.mxu0 %v2781
        %v2783 = vpop.f32.mrf.mxu0
        %v2784 = vadd.f32 %v2745, %v2783
        %v2785 = vand.u32 %v2378, 4294901760
        %2786 = vmatmul.f32.gmra.mxu0 %v2785
        %v2787 = vpop.f32.mrf.mxu0
        %v2788 = vadd.f32 %v2751, %v2787
        %2789 = vdwg.mxu0
        %2790 = vmatpush.msra.mxu0 0.0
        %2791 = vmatpush.msra.mxu0 0.0
        %2792 = vmatpush.msra.mxu0 0.0
        %2793 = vmatpush.msra.mxu0 0.0
        %2794 = vmatpush.msra.mxu0 0.0
        %2795 = vmatpush.msra.mxu0 0.0
        %2796 = vmatpush.msra.mxu0 0.0
        %2797 = vmatpush.msra.mxu0 0.0
        %2798 = vmatpush.msra.mxu0 0.0
        %2799 = vmatpush.msra.mxu0 0.0
        %2800 = vmatpush.msra.mxu0 0.0
        %2801 = vmatpush.msra.mxu0 0.0
        %v2802 = vand.u32 %v2385, 4294901760
        %2803 = vmatpush.msra.mxu0 %v2802
        %v2804 = vand.u32 %v2368, 4294901760
        %2805 = vmatpush.msra.mxu0 %v2804
        %v2806 = vand.u32 %v2366, 4294901760
        %2807 = vmatpush.msra.mxu0 %v2806
        %v2808 = vand.u32 %v2364, 4294901760
        %2809 = vmatpush.msra.mxu0 %v2808
        %v2810 = vand.u32 %v2375, 4294901760
        %2811 = vmatmul.f32.gmra.mxu0 %v2810
        %v2812 = vpop.f32.mrf.mxu0
        %v2813 = vadd.f32 %v2784, %v2812
        %v2814 = vand.u32 %v2378, 4294901760
        %2815 = vmatmul.f32.gmra.mxu0 %v2814
        %v2816 = vpop.f32.mrf.mxu0
        %v2817 = vadd.f32 %v2788, %v2816
        %2818 = vdwg.mxu0
        %2823 = vrot.lane.b32.xlu0 %v2597, 122
        %v2824 = vpop.permute.xlu0 %2823
        %2825 = vrot.lane.b32.xlu0 %v2813, 122
        %v2826 = vpop.permute.xlu0 %2825
        %2827 = vrot.lane.b32.xlu0 %v2601, 122
        %v2828 = vpop.permute.xlu0 %2827
        %2829 = vrot.lane.b32.xlu0 %v2817, 122
        %v2830 = vpop.permute.xlu0 %2829
        %vm2831 = vcmask 998400
        %v2832 = vsel %vm2831, %v2824, %v2826
        %v2833 = vsel %vm2831, %v2828, %v2830
        %v2838 = vmax.f32 %v2597, %v2832
        %v2839 = vmax.f32 %v2813, %v2826
        %v2840 = vmax.f32 %v2601, %v2833
        %v2841 = vmax.f32 %v2817, %v2830
        %v2842 = vld [vmem:[#allocation2] sm:$0xff]
        %v2843 = vld [vmem:[#allocation2 + $0x8] sm:$0xff]
        %v2844 = vld [vmem:[#allocation2 + $0x10] sm:$0xff]
        %v2845 = vld [vmem:[#allocation2 + $0x18] sm:$0xff]
        %v2846 = vld [vmem:[#allocation2 + $0x20] sm:$0xff]
        %v2847 = vld [vmem:[#allocation2 + $0x28] sm:$0xff]
        %v2848 = vld [vmem:[#allocation2 + $0x30] sm:$0xff]
        %v2849 = vld [vmem:[#allocation2 + $0x38] sm:$0xff]
        %v2850 = vld [vmem:[#allocation2 + $0x40] sm:$0xff]
        %v2851 = vld [vmem:[#allocation2 + $0x48] sm:$0xff]
        %v2852 = vld [vmem:[#allocation2 + $0x50] sm:$0xff]
        %v2853 = vld [vmem:[#allocation2 + $0x58] sm:$0xff]
        %v2854 = vld [vmem:[#allocation2 + $0x60] sm:$0xff]
        %v2855 = vld [vmem:[#allocation2 + $0x68] sm:$0xff]
        %v2856 = vld [vmem:[#allocation2 + $0x70] sm:$0xff]
        %v2857 = vld [vmem:[#allocation2 + $0x78] sm:$0xff]
        %v2858 = vld [vmem:[#allocation2 + $0x80] sm:$0xff]
        %v2859 = vld [vmem:[#allocation2 + $0x88] sm:$0xff]
        %v2860 = vld [vmem:[#allocation2 + $0x90] sm:$0xff]
        %v2861 = vld [vmem:[#allocation2 + $0x98] sm:$0xff]
        %v2862 = vld [vmem:[#allocation2 + $0xa0] sm:$0x3]
        %vm2863 = vcmask 277504
        %v2865 = vsel %vm2863, %v2839, 0
        %v2868 = vsel %vm2863, %v2841, 0
        %vm2870 = vcmask 1041408
        %v2872 = vsel %vm2870, %v2862, 0
        %v2874 = vand.u32 %v2857, 4294901760
        %2875 = vmatpush.msra.mxu0 %v2874
        %v2876 = vand.u32 %v2856, 4294901760
        %2877 = vmatpush.msra.mxu0 %v2876
        %v2878 = vand.u32 %v2855, 4294901760
        %2879 = vmatpush.msra.mxu0 %v2878
        %v2880 = vand.u32 %v2854, 4294901760
        %2881 = vmatpush.msra.mxu0 %v2880
        %v2882 = vand.u32 %v2853, 4294901760
        %2883 = vmatpush.msra.mxu0 %v2882
        %v2884 = vand.u32 %v2852, 4294901760
        %2885 = vmatpush.msra.mxu0 %v2884
        %v2886 = vand.u32 %v2851, 4294901760
        %2887 = vmatpush.msra.mxu0 %v2886
        %v2888 = vand.u32 %v2850, 4294901760
        %2889 = vmatpush.msra.mxu0 %v2888
        %v2890 = vand.u32 %v2849, 4294901760
        %2891 = vmatpush.msra.mxu0 %v2890
        %v2892 = vand.u32 %v2848, 4294901760
        %2893 = vmatpush.msra.mxu0 %v2892
        %v2894 = vand.u32 %v2847, 4294901760
        %2895 = vmatpush.msra.mxu0 %v2894
        %v2896 = vand.u32 %v2846, 4294901760
        %2897 = vmatpush.msra.mxu0 %v2896
        %v2898 = vand.u32 %v2845, 4294901760
        %2899 = vmatpush.msra.mxu0 %v2898
        %v2900 = vand.u32 %v2844, 4294901760
        %2901 = vmatpush.msra.mxu0 %v2900
        %v2902 = vand.u32 %v2843, 4294901760
        %2903 = vmatpush.msra.mxu0 %v2902
        %v2904 = vand.u32 %v2842, 4294901760
        %2905 = vmatpush.msra.mxu0 %v2904
        %v2906 = vand.u32 %v2838, 4294901760
        %v2907 = vsub.f32 %v2838, %v2906
        %v2908 = vand.u32 %v2907, 4294901760
        %v2909 = vsub.f32 %v2907, %v2908
        %v2910 = vand.u32 %v2909, 4294901760
        %2911 = vmatmul.f32.gmra.mxu0 %v2910
        %v2912 = vpop.f32.mrf.mxu0
        %v2913 = vadd.f32 0.0, %v2912
        %v2914 = vand.u32 %v2840, 4294901760
        %v2915 = vsub.f32 %v2840, %v2914
        %v2916 = vand.u32 %v2915, 4294901760
        %v2917 = vsub.f32 %v2915, %v2916
        %v2918 = vand.u32 %v2917, 4294901760
        %2919 = vmatmul.f32.gmra.mxu0 %v2918
        %v2920 = vpop.f32.mrf.mxu0
        %v2921 = vadd.f32 0.0, %v2920
        %2922 = vdwg.mxu0
        %v2923 = vand.u32 %v2857, 4294901760
        %v2924 = vsub.f32 %v2857, %v2923
        %v2925 = vand.u32 %v2924, 4294901760
        %v2926 = vsub.f32 %v2924, %v2925
        %v2927 = vand.u32 %v2926, 4294901760
        %2928 = vmatpush.msra.mxu0 %v2927
        %v2929 = vand.u32 %v2856, 4294901760
        %v2930 = vsub.f32 %v2856, %v2929
        %v2931 = vand.u32 %v2930, 4294901760
        %v2932 = vsub.f32 %v2930, %v2931
        %v2933 = vand.u32 %v2932, 4294901760
        %2934 = vmatpush.msra.mxu0 %v2933
        %v2935 = vand.u32 %v2855, 4294901760
        %v2936 = vsub.f32 %v2855, %v2935
        %v2937 = vand.u32 %v2936, 4294901760
        %v2938 = vsub.f32 %v2936, %v2937
        %v2939 = vand.u32 %v2938, 4294901760
        %2940 = vmatpush.msra.mxu0 %v2939
        %v2941 = vand.u32 %v2854, 4294901760
        %v2942 = vsub.f32 %v2854, %v2941
        %v2943 = vand.u32 %v2942, 4294901760
        %v2944 = vsub.f32 %v2942, %v2943
        %v2945 = vand.u32 %v2944, 4294901760
        %2946 = vmatpush.msra.mxu0 %v2945
        %v2947 = vand.u32 %v2853, 4294901760
        %v2948 = vsub.f32 %v2853, %v2947
        %v2949 = vand.u32 %v2948, 4294901760
        %v2950 = vsub.f32 %v2948, %v2949
        %v2951 = vand.u32 %v2950, 4294901760
        %2952 = vmatpush.msra.mxu0 %v2951
        %v2953 = vand.u32 %v2852, 4294901760
        %v2954 = vsub.f32 %v2852, %v2953
        %v2955 = vand.u32 %v2954, 4294901760
        %v2956 = vsub.f32 %v2954, %v2955
        %v2957 = vand.u32 %v2956, 4294901760
        %2958 = vmatpush.msra.mxu0 %v2957
        %v2959 = vand.u32 %v2851, 4294901760
        %v2960 = vsub.f32 %v2851, %v2959
        %v2961 = vand.u32 %v2960, 4294901760
        %v2962 = vsub.f32 %v2960, %v2961
        %v2963 = vand.u32 %v2962, 4294901760
        %2964 = vmatpush.msra.mxu0 %v2963
        %v2965 = vand.u32 %v2850, 4294901760
        %v2966 = vsub.f32 %v2850, %v2965
        %v2967 = vand.u32 %v2966, 4294901760
        %v2968 = vsub.f32 %v2966, %v2967
        %v2969 = vand.u32 %v2968, 4294901760
        %2970 = vmatpush.msra.mxu0 %v2969
        %v2971 = vand.u32 %v2849, 4294901760
        %v2972 = vsub.f32 %v2849, %v2971
        %v2973 = vand.u32 %v2972, 4294901760
        %v2974 = vsub.f32 %v2972, %v2973
        %v2975 = vand.u32 %v2974, 4294901760
        %2976 = vmatpush.msra.mxu0 %v2975
        %v2977 = vand.u32 %v2848, 4294901760
        %v2978 = vsub.f32 %v2848, %v2977
        %v2979 = vand.u32 %v2978, 4294901760
        %v2980 = vsub.f32 %v2978, %v2979
        %v2981 = vand.u32 %v2980, 4294901760
        %2982 = vmatpush.msra.mxu0 %v2981
        %v2983 = vand.u32 %v2847, 4294901760
        %v2984 = vsub.f32 %v2847, %v2983
        %v2985 = vand.u32 %v2984, 4294901760
        %v2986 = vsub.f32 %v2984, %v2985
        %v2987 = vand.u32 %v2986, 4294901760
        %2988 = vmatpush.msra.mxu0 %v2987
        %v2989 = vand.u32 %v2846, 4294901760
        %v2990 = vsub.f32 %v2846, %v2989
        %v2991 = vand.u32 %v2990, 4294901760
        %v2992 = vsub.f32 %v2990, %v2991
        %v2993 = vand.u32 %v2992, 4294901760
        %2994 = vmatpush.msra.mxu0 %v2993
        %v2995 = vand.u32 %v2845, 4294901760
        %v2996 = vsub.f32 %v2845, %v2995
        %v2997 = vand.u32 %v2996, 4294901760
        %v2998 = vsub.f32 %v2996, %v2997
        %v2999 = vand.u32 %v2998, 4294901760
        %3000 = vmatpush.msra.mxu0 %v2999
        %v3001 = vand.u32 %v2844, 4294901760
        %v3002 = vsub.f32 %v2844, %v3001
        %v3003 = vand.u32 %v3002, 4294901760
        %v3004 = vsub.f32 %v3002, %v3003
        %v3005 = vand.u32 %v3004, 4294901760
        %3006 = vmatpush.msra.mxu0 %v3005
        %v3007 = vand.u32 %v2843, 4294901760
        %v3008 = vsub.f32 %v2843, %v3007
        %v3009 = vand.u32 %v3008, 4294901760
        %v3010 = vsub.f32 %v3008, %v3009
        %v3011 = vand.u32 %v3010, 4294901760
        %3012 = vmatpush.msra.mxu0 %v3011
        %v3013 = vand.u32 %v2842, 4294901760
        %v3014 = vsub.f32 %v2842, %v3013
        %v3015 = vand.u32 %v3014, 4294901760
        %v3016 = vsub.f32 %v3014, %v3015
        %v3017 = vand.u32 %v3016, 4294901760
        %3018 = vmatpush.msra.mxu0 %v3017
        %v3019 = vand.u32 %v2838, 4294901760
        %3020 = vmatmul.f32.gmra.mxu0 %v3019
        %v3021 = vpop.f32.mrf.mxu0
        %v3022 = vadd.f32 %v2913, %v3021
        %v3023 = vand.u32 %v2840, 4294901760
        %3024 = vmatmul.f32.gmra.mxu0 %v3023
        %v3025 = vpop.f32.mrf.mxu0
        %v3026 = vadd.f32 %v2921, %v3025
        %3027 = vdwg.mxu0
        %v3028 = vand.u32 %v2857, 4294901760
        %v3029 = vsub.f32 %v2857, %v3028
        %3030 = vmatpush.msra.mxu0 %v3029
        %v3031 = vand.u32 %v2856, 4294901760
        %v3032 = vsub.f32 %v2856, %v3031
        %3033 = vmatpush.msra.mxu0 %v3032
        %v3034 = vand.u32 %v2855, 4294901760
        %v3035 = vsub.f32 %v2855, %v3034
        %3036 = vmatpush.msra.mxu0 %v3035
        %v3037 = vand.u32 %v2854, 4294901760
        %v3038 = vsub.f32 %v2854, %v3037
        %3039 = vmatpush.msra.mxu0 %v3038
        %v3040 = vand.u32 %v2853, 4294901760
        %v3041 = vsub.f32 %v2853, %v3040
        %3042 = vmatpush.msra.mxu0 %v3041
        %v3043 = vand.u32 %v2852, 4294901760
        %v3044 = vsub.f32 %v2852, %v3043
        %3045 = vmatpush.msra.mxu0 %v3044
        %v3046 = vand.u32 %v2851, 4294901760
        %v3047 = vsub.f32 %v2851, %v3046
        %3048 = vmatpush.msra.mxu0 %v3047
        %v3049 = vand.u32 %v2850, 4294901760
        %v3050 = vsub.f32 %v2850, %v3049
        %3051 = vmatpush.msra.mxu0 %v3050
        %v3052 = vand.u32 %v2849, 4294901760
        %v3053 = vsub.f32 %v2849, %v3052
        %3054 = vmatpush.msra.mxu0 %v3053
        %v3055 = vand.u32 %v2848, 4294901760
        %v3056 = vsub.f32 %v2848, %v3055
        %3057 = vmatpush.msra.mxu0 %v3056
        %v3058 = vand.u32 %v2847, 4294901760
        %v3059 = vsub.f32 %v2847, %v3058
        %3060 = vmatpush.msra.mxu0 %v3059
        %v3061 = vand.u32 %v2846, 4294901760
        %v3062 = vsub.f32 %v2846, %v3061
        %3063 = vmatpush.msra.mxu0 %v3062
        %v3064 = vand.u32 %v2845, 4294901760
        %v3065 = vsub.f32 %v2845, %v3064
        %3066 = vmatpush.msra.mxu0 %v3065
        %v3067 = vand.u32 %v2844, 4294901760
        %v3068 = vsub.f32 %v2844, %v3067
        %3069 = vmatpush.msra.mxu0 %v3068
        %v3070 = vand.u32 %v2843, 4294901760
        %v3071 = vsub.f32 %v2843, %v3070
        %3072 = vmatpush.msra.mxu0 %v3071
        %v3073 = vand.u32 %v2842, 4294901760
        %v3074 = vsub.f32 %v2842, %v3073
        %3075 = vmatpush.msra.mxu0 %v3074
        %v3076 = vand.u32 %v2838, 4294901760
        %v3077 = vsub.f32 %v2838, %v3076
        %3078 = vmatmul.f32.gmra.mxu0 %v3077
        %v3079 = vpop.f32.mrf.mxu0
        %v3080 = vadd.f32 %v3022, %v3079
        %v3081 = vand.u32 %v2840, 4294901760
        %v3082 = vsub.f32 %v2840, %v3081
        %3083 = vmatmul.f32.gmra.mxu0 %v3082
        %v3084 = vpop.f32.mrf.mxu0
        %v3085 = vadd.f32 %v3026, %v3084
        %3086 = vdwg.mxu0
        %v3087 = vand.u32 %v2857, 4294901760
        %3088 = vmatpush.msra.mxu0 %v3087
        %v3089 = vand.u32 %v2856, 4294901760
        %3090 = vmatpush.msra.mxu0 %v3089
        %v3091 = vand.u32 %v2855, 4294901760
        %3092 = vmatpush.msra.mxu0 %v3091
        %v3093 = vand.u32 %v2854, 4294901760
        %3094 = vmatpush.msra.mxu0 %v3093
        %v3095 = vand.u32 %v2853, 4294901760
        %3096 = vmatpush.msra.mxu0 %v3095
        %v3097 = vand.u32 %v2852, 4294901760
        %3098 = vmatpush.msra.mxu0 %v3097
        %v3099 = vand.u32 %v2851, 4294901760
        %3100 = vmatpush.msra.mxu0 %v3099
        %v3101 = vand.u32 %v2850, 4294901760
        %3102 = vmatpush.msra.mxu0 %v3101
        %v3103 = vand.u32 %v2849, 4294901760
        %3104 = vmatpush.msra.mxu0 %v3103
        %v3105 = vand.u32 %v2848, 4294901760
        %3106 = vmatpush.msra.mxu0 %v3105
        %v3107 = vand.u32 %v2847, 4294901760
        %3108 = vmatpush.msra.mxu0 %v3107
        %v3109 = vand.u32 %v2846, 4294901760
        %3110 = vmatpush.msra.mxu0 %v3109
        %v3111 = vand.u32 %v2845, 4294901760
        %3112 = vmatpush.msra.mxu0 %v3111
        %v3113 = vand.u32 %v2844, 4294901760
        %3114 = vmatpush.msra.mxu0 %v3113
        %v3115 = vand.u32 %v2843, 4294901760
        %3116 = vmatpush.msra.mxu0 %v3115
        %v3117 = vand.u32 %v2842, 4294901760
        %3118 = vmatpush.msra.mxu0 %v3117
        %v3119 = vand.u32 %v2838, 4294901760
        %v3120 = vsub.f32 %v2838, %v3119
        %v3121 = vand.u32 %v3120, 4294901760
        %3122 = vmatmul.f32.gmra.mxu0 %v3121
        %v3123 = vpop.f32.mrf.mxu0
        %v3124 = vadd.f32 %v3080, %v3123
        %v3125 = vand.u32 %v2840, 4294901760
        %v3126 = vsub.f32 %v2840, %v3125
        %v3127 = vand.u32 %v3126, 4294901760
        %3128 = vmatmul.f32.gmra.mxu0 %v3127
        %v3129 = vpop.f32.mrf.mxu0
        %v3130 = vadd.f32 %v3085, %v3129
        %3131 = vdwg.mxu0
        %v3132 = vand.u32 %v2857, 4294901760
        %v3133 = vsub.f32 %v2857, %v3132
        %v3134 = vand.u32 %v3133, 4294901760
        %3135 = vmatpush.msra.mxu0 %v3134
        %v3136 = vand.u32 %v2856, 4294901760
        %v3137 = vsub.f32 %v2856, %v3136
        %v3138 = vand.u32 %v3137, 4294901760
        %3139 = vmatpush.msra.mxu0 %v3138
        %v3140 = vand.u32 %v2855, 4294901760
        %v3141 = vsub.f32 %v2855, %v3140
        %v3142 = vand.u32 %v3141, 4294901760
        %3143 = vmatpush.msra.mxu0 %v3142
        %v3144 = vand.u32 %v2854, 4294901760
        %v3145 = vsub.f32 %v2854, %v3144
        %v3146 = vand.u32 %v3145, 4294901760
        %3147 = vmatpush.msra.mxu0 %v3146
        %v3148 = vand.u32 %v2853, 4294901760
        %v3149 = vsub.f32 %v2853, %v3148
        %v3150 = vand.u32 %v3149, 4294901760
        %3151 = vmatpush.msra.mxu0 %v3150
        %v3152 = vand.u32 %v2852, 4294901760
        %v3153 = vsub.f32 %v2852, %v3152
        %v3154 = vand.u32 %v3153, 4294901760
        %3155 = vmatpush.msra.mxu0 %v3154
        %v3156 = vand.u32 %v2851, 4294901760
        %v3157 = vsub.f32 %v2851, %v3156
        %v3158 = vand.u32 %v3157, 4294901760
        %3159 = vmatpush.msra.mxu0 %v3158
        %v3160 = vand.u32 %v2850, 4294901760
        %v3161 = vsub.f32 %v2850, %v3160
        %v3162 = vand.u32 %v3161, 4294901760
        %3163 = vmatpush.msra.mxu0 %v3162
        %v3164 = vand.u32 %v2849, 4294901760
        %v3165 = vsub.f32 %v2849, %v3164
        %v3166 = vand.u32 %v3165, 4294901760
        %3167 = vmatpush.msra.mxu0 %v3166
        %v3168 = vand.u32 %v2848, 4294901760
        %v3169 = vsub.f32 %v2848, %v3168
        %v3170 = vand.u32 %v3169, 4294901760
        %3171 = vmatpush.msra.mxu0 %v3170
        %v3172 = vand.u32 %v2847, 4294901760
        %v3173 = vsub.f32 %v2847, %v3172
        %v3174 = vand.u32 %v3173, 4294901760
        %3175 = vmatpush.msra.mxu0 %v3174
        %v3176 = vand.u32 %v2846, 4294901760
        %v3177 = vsub.f32 %v2846, %v3176
        %v3178 = vand.u32 %v3177, 4294901760
        %3179 = vmatpush.msra.mxu0 %v3178
        %v3180 = vand.u32 %v2845, 4294901760
        %v3181 = vsub.f32 %v2845, %v3180
        %v3182 = vand.u32 %v3181, 4294901760
        %3183 = vmatpush.msra.mxu0 %v3182
        %v3184 = vand.u32 %v2844, 4294901760
        %v3185 = vsub.f32 %v2844, %v3184
        %v3186 = vand.u32 %v3185, 4294901760
        %3187 = vmatpush.msra.mxu0 %v3186
        %v3188 = vand.u32 %v2843, 4294901760
        %v3189 = vsub.f32 %v2843, %v3188
        %v3190 = vand.u32 %v3189, 4294901760
        %3191 = vmatpush.msra.mxu0 %v3190
        %v3192 = vand.u32 %v2842, 4294901760
        %v3193 = vsub.f32 %v2842, %v3192
        %v3194 = vand.u32 %v3193, 4294901760
        %3195 = vmatpush.msra.mxu0 %v3194
        %v3196 = vand.u32 %v2838, 4294901760
        %3197 = vmatmul.f32.gmra.mxu0 %v3196
        %v3198 = vpop.f32.mrf.mxu0
        %v3199 = vadd.f32 %v3124, %v3198
        %v3200 = vand.u32 %v2840, 4294901760
        %3201 = vmatmul.f32.gmra.mxu0 %v3200
        %v3202 = vpop.f32.mrf.mxu0
        %v3203 = vadd.f32 %v3130, %v3202
        %3204 = vdwg.mxu0
        %v3205 = vand.u32 %v2857, 4294901760
        %3206 = vmatpush.msra.mxu0 %v3205
        %v3207 = vand.u32 %v2856, 4294901760
        %3208 = vmatpush.msra.mxu0 %v3207
        %v3209 = vand.u32 %v2855, 4294901760
        %3210 = vmatpush.msra.mxu0 %v3209
        %v3211 = vand.u32 %v2854, 4294901760
        %3212 = vmatpush.msra.mxu0 %v3211
        %v3213 = vand.u32 %v2853, 4294901760
        %3214 = vmatpush.msra.mxu0 %v3213
        %v3215 = vand.u32 %v2852, 4294901760
        %3216 = vmatpush.msra.mxu0 %v3215
        %v3217 = vand.u32 %v2851, 4294901760
        %3218 = vmatpush.msra.mxu0 %v3217
        %v3219 = vand.u32 %v2850, 4294901760
        %3220 = vmatpush.msra.mxu0 %v3219
        %v3221 = vand.u32 %v2849, 4294901760
        %3222 = vmatpush.msra.mxu0 %v3221
        %v3223 = vand.u32 %v2848, 4294901760
        %3224 = vmatpush.msra.mxu0 %v3223
        %v3225 = vand.u32 %v2847, 4294901760
        %3226 = vmatpush.msra.mxu0 %v3225
        %v3227 = vand.u32 %v2846, 4294901760
        %3228 = vmatpush.msra.mxu0 %v3227
        %v3229 = vand.u32 %v2845, 4294901760
        %3230 = vmatpush.msra.mxu0 %v3229
        %v3231 = vand.u32 %v2844, 4294901760
        %3232 = vmatpush.msra.mxu0 %v3231
        %v3233 = vand.u32 %v2843, 4294901760
        %3234 = vmatpush.msra.mxu0 %v3233
        %v3235 = vand.u32 %v2842, 4294901760
        %3236 = vmatpush.msra.mxu0 %v3235
        %v3237 = vand.u32 %v2838, 4294901760
        %3238 = vmatmul.f32.gmra.mxu0 %v3237
        %v3239 = vpop.f32.mrf.mxu0
        %v3240 = vadd.f32 %v3199, %v3239
        %v3241 = vand.u32 %v2840, 4294901760
        %3242 = vmatmul.f32.gmra.mxu0 %v3241
        %v3243 = vpop.f32.mrf.mxu0
        %v3244 = vadd.f32 %v3203, %v3243
        %3245 = vdwg.mxu0
        %3246 = vmatpush.msra.mxu0 0.0
        %3247 = vmatpush.msra.mxu0 0.0
        %3248 = vmatpush.msra.mxu0 0.0
        %3249 = vmatpush.msra.mxu0 0.0
        %3250 = vmatpush.msra.mxu0 0.0
        %3251 = vmatpush.msra.mxu0 0.0
        %3252 = vmatpush.msra.mxu0 0.0
        %3253 = vmatpush.msra.mxu0 0.0
        %3254 = vmatpush.msra.mxu0 0.0
        %3255 = vmatpush.msra.mxu0 0.0
        %3256 = vmatpush.msra.mxu0 0.0
        %v3257 = vand.u32 %v2872, 4294901760
        %3258 = vmatpush.msra.mxu0 %v3257
        %v3259 = vand.u32 %v2861, 4294901760
        %3260 = vmatpush.msra.mxu0 %v3259
        %v3261 = vand.u32 %v2860, 4294901760
        %3262 = vmatpush.msra.mxu0 %v3261
        %v3263 = vand.u32 %v2859, 4294901760
        %3264 = vmatpush.msra.mxu0 %v3263
        %v3265 = vand.u32 %v2858, 4294901760
        %3266 = vmatpush.msra.mxu0 %v3265
        %v3267 = vand.u32 %v2865, 4294901760
        %v3268 = vsub.f32 %v2865, %v3267
        %v3269 = vand.u32 %v3268, 4294901760
        %v3270 = vsub.f32 %v3268, %v3269
        %v3271 = vand.u32 %v3270, 4294901760
        %3272 = vmatmul.f32.gmra.mxu0 %v3271
        %v3273 = vpop.f32.mrf.mxu0
        %v3274 = vadd.f32 %v3240, %v3273
        %v3275 = vand.u32 %v2868, 4294901760
        %v3276 = vsub.f32 %v2868, %v3275
        %v3277 = vand.u32 %v3276, 4294901760
        %v3278 = vsub.f32 %v3276, %v3277
        %v3279 = vand.u32 %v3278, 4294901760
        %3280 = vmatmul.f32.gmra.mxu0 %v3279
        %v3281 = vpop.f32.mrf.mxu0
        %v3282 = vadd.f32 %v3244, %v3281
        %3283 = vdwg.mxu0
        %3284 = vmatpush.msra.mxu0 0.0
        %3285 = vmatpush.msra.mxu0 0.0
        %3286 = vmatpush.msra.mxu0 0.0
        %3287 = vmatpush.msra.mxu0 0.0
        %3288 = vmatpush.msra.mxu0 0.0
        %3289 = vmatpush.msra.mxu0 0.0
        %3290 = vmatpush.msra.mxu0 0.0
        %3291 = vmatpush.msra.mxu0 0.0
        %3292 = vmatpush.msra.mxu0 0.0
        %3293 = vmatpush.msra.mxu0 0.0
        %3294 = vmatpush.msra.mxu0 0.0
        %v3295 = vand.u32 %v2872, 4294901760
        %v3296 = vsub.f32 %v2872, %v3295
        %v3297 = vand.u32 %v3296, 4294901760
        %v3298 = vsub.f32 %v3296, %v3297
        %v3299 = vand.u32 %v3298, 4294901760
        %3300 = vmatpush.msra.mxu0 %v3299
        %v3301 = vand.u32 %v2861, 4294901760
        %v3302 = vsub.f32 %v2861, %v3301
        %v3303 = vand.u32 %v3302, 4294901760
        %v3304 = vsub.f32 %v3302, %v3303
        %v3305 = vand.u32 %v3304, 4294901760
        %3306 = vmatpush.msra.mxu0 %v3305
        %v3307 = vand.u32 %v2860, 4294901760
        %v3308 = vsub.f32 %v2860, %v3307
        %v3309 = vand.u32 %v3308, 4294901760
        %v3310 = vsub.f32 %v3308, %v3309
        %v3311 = vand.u32 %v3310, 4294901760
        %3312 = vmatpush.msra.mxu0 %v3311
        %v3313 = vand.u32 %v2859, 4294901760
        %v3314 = vsub.f32 %v2859, %v3313
        %v3315 = vand.u32 %v3314, 4294901760
        %v3316 = vsub.f32 %v3314, %v3315
        %v3317 = vand.u32 %v3316, 4294901760
        %3318 = vmatpush.msra.mxu0 %v3317
        %v3319 = vand.u32 %v2858, 4294901760
        %v3320 = vsub.f32 %v2858, %v3319
        %v3321 = vand.u32 %v3320, 4294901760
        %v3322 = vsub.f32 %v3320, %v3321
        %v3323 = vand.u32 %v3322, 4294901760
        %3324 = vmatpush.msra.mxu0 %v3323
        %v3325 = vand.u32 %v2865, 4294901760
        %3326 = vmatmul.f32.gmra.mxu0 %v3325
        %v3327 = vpop.f32.mrf.mxu0
        %v3328 = vadd.f32 %v3274, %v3327
        %v3329 = vand.u32 %v2868, 4294901760
        %3330 = vmatmul.f32.gmra.mxu0 %v3329
        %v3331 = vpop.f32.mrf.mxu0
        %v3332 = vadd.f32 %v3282, %v3331
        %3333 = vdwg.mxu0
        %3334 = vmatpush.msra.mxu0 0.0
        %3335 = vmatpush.msra.mxu0 0.0
        %3336 = vmatpush.msra.mxu0 0.0
        %3337 = vmatpush.msra.mxu0 0.0
        %3338 = vmatpush.msra.mxu0 0.0
        %3339 = vmatpush.msra.mxu0 0.0
        %3340 = vmatpush.msra.mxu0 0.0
        %3341 = vmatpush.msra.mxu0 0.0
        %3342 = vmatpush.msra.mxu0 0.0
        %3343 = vmatpush.msra.mxu0 0.0
        %3344 = vmatpush.msra.mxu0 0.0
        %v3345 = vand.u32 %v2872, 4294901760
        %v3346 = vsub.f32 %v2872, %v3345
        %3347 = vmatpush.msra.mxu0 %v3346
        %v3348 = vand.u32 %v2861, 4294901760
        %v3349 = vsub.f32 %v2861, %v3348
        %3350 = vmatpush.msra.mxu0 %v3349
        %v3351 = vand.u32 %v2860, 4294901760
        %v3352 = vsub.f32 %v2860, %v3351
        %3353 = vmatpush.msra.mxu0 %v3352
        %v3354 = vand.u32 %v2859, 4294901760
        %v3355 = vsub.f32 %v2859, %v3354
        %3356 = vmatpush.msra.mxu0 %v3355
        %v3357 = vand.u32 %v2858, 4294901760
        %v3358 = vsub.f32 %v2858, %v3357
        %3359 = vmatpush.msra.mxu0 %v3358
        %v3360 = vand.u32 %v2865, 4294901760
        %v3361 = vsub.f32 %v2865, %v3360
        %3362 = vmatmul.f32.gmra.mxu0 %v3361
        %v3363 = vpop.f32.mrf.mxu0
        %v3364 = vadd.f32 %v3328, %v3363
        %v3365 = vand.u32 %v2868, 4294901760
        %v3366 = vsub.f32 %v2868, %v3365
        %3367 = vmatmul.f32.gmra.mxu0 %v3366
        %v3368 = vpop.f32.mrf.mxu0
        %v3369 = vadd.f32 %v3332, %v3368
        %3370 = vdwg.mxu0
        %3371 = vmatpush.msra.mxu0 0.0
        %3372 = vmatpush.msra.mxu0 0.0
        %3373 = vmatpush.msra.mxu0 0.0
        %3374 = vmatpush.msra.mxu0 0.0
        %3375 = vmatpush.msra.mxu0 0.0
        %3376 = vmatpush.msra.mxu0 0.0
        %3377 = vmatpush.msra.mxu0 0.0
        %3378 = vmatpush.msra.mxu0 0.0
        %3379 = vmatpush.msra.mxu0 0.0
        %3380 = vmatpush.msra.mxu0 0.0
        %3381 = vmatpush.msra.mxu0 0.0
        %v3382 = vand.u32 %v2872, 4294901760
        %3383 = vmatpush.msra.mxu0 %v3382
        %v3384 = vand.u32 %v2861, 4294901760
        %3385 = vmatpush.msra.mxu0 %v3384
        %v3386 = vand.u32 %v2860, 4294901760
        %3387 = vmatpush.msra.mxu0 %v3386
        %v3388 = vand.u32 %v2859, 4294901760
        %3389 = vmatpush.msra.mxu0 %v3388
        %v3390 = vand.u32 %v2858, 4294901760
        %3391 = vmatpush.msra.mxu0 %v3390
        %v3392 = vand.u32 %v2865, 4294901760
        %v3393 = vsub.f32 %v2865, %v3392
        %v3394 = vand.u32 %v3393, 4294901760
        %3395 = vmatmul.f32.gmra.mxu0 %v3394
        %v3396 = vpop.f32.mrf.mxu0
        %v3397 = vadd.f32 %v3364, %v3396
        %v3398 = vand.u32 %v2868, 4294901760
        %v3399 = vsub.f32 %v2868, %v3398
        %v3400 = vand.u32 %v3399, 4294901760
        %3401 = vmatmul.f32.gmra.mxu0 %v3400
        %v3402 = vpop.f32.mrf.mxu0
        %v3403 = vadd.f32 %v3369, %v3402
        %3404 = vdwg.mxu0
        %3405 = vmatpush.msra.mxu0 0.0
        %3406 = vmatpush.msra.mxu0 0.0
        %3407 = vmatpush.msra.mxu0 0.0
        %3408 = vmatpush.msra.mxu0 0.0
        %3409 = vmatpush.msra.mxu0 0.0
        %3410 = vmatpush.msra.mxu0 0.0
        %3411 = vmatpush.msra.mxu0 0.0
        %3412 = vmatpush.msra.mxu0 0.0
        %3413 = vmatpush.msra.mxu0 0.0
        %3414 = vmatpush.msra.mxu0 0.0
        %3415 = vmatpush.msra.mxu0 0.0
        %v3416 = vand.u32 %v2872, 4294901760
        %v3417 = vsub.f32 %v2872, %v3416
        %v3418 = vand.u32 %v3417, 4294901760
        %3419 = vmatpush.msra.mxu0 %v3418
        %v3420 = vand.u32 %v2861, 4294901760
        %v3421 = vsub.f32 %v2861, %v3420
        %v3422 = vand.u32 %v3421, 4294901760
        %3423 = vmatpush.msra.mxu0 %v3422
        %v3424 = vand.u32 %v2860, 4294901760
        %v3425 = vsub.f32 %v2860, %v3424
        %v3426 = vand.u32 %v3425, 4294901760
        %3427 = vmatpush.msra.mxu0 %v3426
        %v3428 = vand.u32 %v2859, 4294901760
        %v3429 = vsub.f32 %v2859, %v3428
        %v3430 = vand.u32 %v3429, 4294901760
        %3431 = vmatpush.msra.mxu0 %v3430
        %v3432 = vand.u32 %v2858, 4294901760
        %v3433 = vsub.f32 %v2858, %v3432
        %v3434 = vand.u32 %v3433, 4294901760
        %3435 = vmatpush.msra.mxu0 %v3434
        %v3436 = vand.u32 %v2865, 4294901760
        %3437 = vmatmul.f32.gmra.mxu0 %v3436
        %v3438 = vpop.f32.mrf.mxu0
        %v3439 = vadd.f32 %v3397, %v3438
        %v3440 = vand.u32 %v2868, 4294901760
        %3441 = vmatmul.f32.gmra.mxu0 %v3440
        %v3442 = vpop.f32.mrf.mxu0
        %v3443 = vadd.f32 %v3403, %v3442
        %3444 = vdwg.mxu0
        %3445 = vmatpush.msra.mxu0 0.0
        %3446 = vmatpush.msra.mxu0 0.0
        %3447 = vmatpush.msra.mxu0 0.0
        %3448 = vmatpush.msra.mxu0 0.0
        %3449 = vmatpush.msra.mxu0 0.0
        %3450 = vmatpush.msra.mxu0 0.0
        %3451 = vmatpush.msra.mxu0 0.0
        %3452 = vmatpush.msra.mxu0 0.0
        %3453 = vmatpush.msra.mxu0 0.0
        %3454 = vmatpush.msra.mxu0 0.0
        %3455 = vmatpush.msra.mxu0 0.0
        %v3456 = vand.u32 %v2872, 4294901760
        %3457 = vmatpush.msra.mxu0 %v3456
        %v3458 = vand.u32 %v2861, 4294901760
        %3459 = vmatpush.msra.mxu0 %v3458
        %v3460 = vand.u32 %v2860, 4294901760
        %3461 = vmatpush.msra.mxu0 %v3460
        %v3462 = vand.u32 %v2859, 4294901760
        %3463 = vmatpush.msra.mxu0 %v3462
        %v3464 = vand.u32 %v2858, 4294901760
        %3465 = vmatpush.msra.mxu0 %v3464
        %v3466 = vand.u32 %v2865, 4294901760
        %3467 = vmatmul.f32.gmra.mxu0 %v3466
        %v3468 = vpop.f32.mrf.mxu0
        %v3469 = vadd.f32 %v3439, %v3468
        %v3470 = vand.u32 %v2868, 4294901760
        %3471 = vmatmul.f32.gmra.mxu0 %v3470
        %v3472 = vpop.f32.mrf.mxu0
        %v3473 = vadd.f32 %v3443, %v3472
        %3474 = vdwg.mxu0
        %v3475 = vld [vmem:[#allocation5] sm:$0xff]
        %v3476 = vld [vmem:[#allocation5 + $0x8] sm:$0xff]
        %v3477 = vld [vmem:[#allocation5 + $0x10] sm:$0xff]
        %v3478 = vld [vmem:[#allocation5 + $0x18] sm:$0xff]
        %v3479 = vld [vmem:[#allocation5 + $0x20] sm:$0xff]
        %v3480 = vld [vmem:[#allocation5 + $0x28] sm:$0xff]
        %v3481 = vld [vmem:[#allocation5 + $0x30] sm:$0xff]
        %v3482 = vld [vmem:[#allocation5 + $0x38] sm:$0xff]
        %v3483 = vld [vmem:[#allocation5 + $0x40] sm:$0xff]
        %v3484 = vld [vmem:[#allocation5 + $0x48] sm:$0xff]
        %v3485 = vld [vmem:[#allocation5 + $0x50] sm:$0xff]
        %v3486 = vld [vmem:[#allocation5 + $0x58] sm:$0xff]
        %v3487 = vld [vmem:[#allocation5 + $0x60] sm:$0xff]
        %v3488 = vld [vmem:[#allocation5 + $0x68] sm:$0xff]
        %v3489 = vld [vmem:[#allocation5 + $0x70] sm:$0xff]
        %v3490 = vld [vmem:[#allocation5 + $0x78] sm:$0xff]
        %v3491 = vld [vmem:[#allocation5 + $0x80] sm:$0xff]
        %v3492 = vld [vmem:[#allocation5 + $0x88] sm:$0xff]
        %v3493 = vld [vmem:[#allocation5 + $0x90] sm:$0xff]
        %v3494 = vld [vmem:[#allocation5 + $0x98] sm:$0xff]
        %v3495 = vld [vmem:[#allocation5 + $0xa0] sm:$0xf]
        %v3496 = vld [vmem:[#allocation5 + $0xa8] sm:$0xf]
        %s3497 = scalar_lea.vmem [#allocation5], 176
        %v3498 = vld [vmem:[%s3497] sm:$0xff]
        %v3499 = vld [vmem:[%s3497 + $0x8] sm:$0xff]
        %v3500 = vld [vmem:[%s3497 + $0x10] sm:$0xff]
        %v3501 = vld [vmem:[%s3497 + $0x18] sm:$0xff]
        %v3502 = vld [vmem:[%s3497 + $0x20] sm:$0xff]
        %v3503 = vld [vmem:[%s3497 + $0x28] sm:$0xff]
        %v3504 = vld [vmem:[%s3497 + $0x30] sm:$0xff]
        %v3505 = vld [vmem:[%s3497 + $0x38] sm:$0xff]
        %v3506 = vld [vmem:[%s3497 + $0x40] sm:$0xff]
        %v3507 = vld [vmem:[%s3497 + $0x48] sm:$0xff]
        %v3508 = vld [vmem:[%s3497 + $0x50] sm:$0xff]
        %v3509 = vld [vmem:[%s3497 + $0x58] sm:$0xff]
        %v3510 = vld [vmem:[%s3497 + $0x60] sm:$0xff]
        %v3511 = vld [vmem:[%s3497 + $0x68] sm:$0xff]
        %v3512 = vld [vmem:[%s3497 + $0x70] sm:$0xff]
        %v3513 = vld [vmem:[%s3497 + $0x78] sm:$0xff]
        %v3514 = vld [vmem:[%s3497 + $0x80] sm:$0xff]
        %v3515 = vld [vmem:[%s3497 + $0x88] sm:$0xff]
        %v3516 = vld [vmem:[%s3497 + $0x90] sm:$0xff]
        %v3517 = vld [vmem:[%s3497 + $0x98] sm:$0xff]
        %v3518 = vld [vmem:[%s3497 + $0xa0] sm:$0xf]
        %v3519 = vld [vmem:[%s3497 + $0xa8] sm:$0xf]
        %v3522 = vrot.slane %v3469, 1
        %v3523 = vrot.slane %v3473, 1
        %v3524 = vsel %vm567, %v3522, %v3523
        %vm3525 = vcmask 687104
        %v3526 = vsel %vm3525, %v3524, 0
        %v3528 = vsel %vm3525, %v3523, 0
        %vm3530 = vcmask 1043456
        %v3532 = vsel %vm3530, %v3518, 0
        %v3535 = vsel %vm3530, %v3519, 0
        %3537 = vmatpush.msra.mxu0 0.0
        %3538 = vmatpush.msra.mxu0 0.0
        %3539 = vmatpush.msra.mxu0 0.0
        %3540 = vmatpush.msra.mxu0 0.0
        %3541 = vmatpush.msra.mxu0 0.0
        %v3542 = vand.u32 %v3532, 4294901760
        %3543 = vmatpush.msra.mxu0 %v3542
        %v3544 = vand.u32 %v3516, 4294901760
        %3545 = vmatpush.msra.mxu0 %v3544
        %v3546 = vand.u32 %v3514, 4294901760
        %3547 = vmatpush.msra.mxu0 %v3546
        %v3548 = vand.u32 %v3512, 4294901760
        %3549 = vmatpush.msra.mxu0 %v3548
        %v3550 = vand.u32 %v3510, 4294901760
        %3551 = vmatpush.msra.mxu0 %v3550
        %v3552 = vand.u32 %v3508, 4294901760
        %3553 = vmatpush.msra.mxu0 %v3552
        %v3554 = vand.u32 %v3506, 4294901760
        %3555 = vmatpush.msra.mxu0 %v3554
        %v3556 = vand.u32 %v3504, 4294901760
        %3557 = vmatpush.msra.mxu0 %v3556
        %v3558 = vand.u32 %v3502, 4294901760
        %3559 = vmatpush.msra.mxu0 %v3558
        %v3560 = vand.u32 %v3500, 4294901760
        %3561 = vmatpush.msra.mxu0 %v3560
        %v3562 = vand.u32 %v3498, 4294901760
        %3563 = vmatpush.msra.mxu0 %v3562
        %v3564 = vand.u32 %v3526, 4294901760
        %v3565 = vsub.f32 %v3526, %v3564
        %v3566 = vand.u32 %v3565, 4294901760
        %v3567 = vsub.f32 %v3565, %v3566
        %v3568 = vand.u32 %v3567, 4294901760
        %3569 = vmatmul.f32.gmra.mxu0 %v3568
        %v3570 = vpop.f32.mrf.mxu0
        %v3571 = vadd.f32 0.0, %v3570
        %v3572 = vand.u32 %v3528, 4294901760
        %v3573 = vsub.f32 %v3528, %v3572
        %v3574 = vand.u32 %v3573, 4294901760
        %v3575 = vsub.f32 %v3573, %v3574
        %v3576 = vand.u32 %v3575, 4294901760
        %3577 = vmatmul.f32.gmra.mxu0 %v3576
        %v3578 = vpop.f32.mrf.mxu0
        %v3579 = vadd.f32 0.0, %v3578
        %3580 = vdwg.mxu0
        %3581 = vmatpush.msra.mxu0 0.0
        %3582 = vmatpush.msra.mxu0 0.0
        %3583 = vmatpush.msra.mxu0 0.0
        %3584 = vmatpush.msra.mxu0 0.0
        %3585 = vmatpush.msra.mxu0 0.0
        %v3586 = vand.u32 %v3532, 4294901760
        %v3587 = vsub.f32 %v3532, %v3586
        %v3588 = vand.u32 %v3587, 4294901760
        %v3589 = vsub.f32 %v3587, %v3588
        %v3590 = vand.u32 %v3589, 4294901760
        %3591 = vmatpush.msra.mxu0 %v3590
        %v3592 = vand.u32 %v3516, 4294901760
        %v3593 = vsub.f32 %v3516, %v3592
        %v3594 = vand.u32 %v3593, 4294901760
        %v3595 = vsub.f32 %v3593, %v3594
        %v3596 = vand.u32 %v3595, 4294901760
        %3597 = vmatpush.msra.mxu0 %v3596
        %v3598 = vand.u32 %v3514, 4294901760
        %v3599 = vsub.f32 %v3514, %v3598
        %v3600 = vand.u32 %v3599, 4294901760
        %v3601 = vsub.f32 %v3599, %v3600
        %v3602 = vand.u32 %v3601, 4294901760
        %3603 = vmatpush.msra.mxu0 %v3602
        %v3604 = vand.u32 %v3512, 4294901760
        %v3605 = vsub.f32 %v3512, %v3604
        %v3606 = vand.u32 %v3605, 4294901760
        %v3607 = vsub.f32 %v3605, %v3606
        %v3608 = vand.u32 %v3607, 4294901760
        %3609 = vmatpush.msra.mxu0 %v3608
        %v3610 = vand.u32 %v3510, 4294901760
        %v3611 = vsub.f32 %v3510, %v3610
        %v3612 = vand.u32 %v3611, 4294901760
        %v3613 = vsub.f32 %v3611, %v3612
        %v3614 = vand.u32 %v3613, 4294901760
        %3615 = vmatpush.msra.mxu0 %v3614
        %v3616 = vand.u32 %v3508, 4294901760
        %v3617 = vsub.f32 %v3508, %v3616
        %v3618 = vand.u32 %v3617, 4294901760
        %v3619 = vsub.f32 %v3617, %v3618
        %v3620 = vand.u32 %v3619, 4294901760
        %3621 = vmatpush.msra.mxu0 %v3620
        %v3622 = vand.u32 %v3506, 4294901760
        %v3623 = vsub.f32 %v3506, %v3622
        %v3624 = vand.u32 %v3623, 4294901760
        %v3625 = vsub.f32 %v3623, %v3624
        %v3626 = vand.u32 %v3625, 4294901760
        %3627 = vmatpush.msra.mxu0 %v3626
        %v3628 = vand.u32 %v3504, 4294901760
        %v3629 = vsub.f32 %v3504, %v3628
        %v3630 = vand.u32 %v3629, 4294901760
        %v3631 = vsub.f32 %v3629, %v3630
        %v3632 = vand.u32 %v3631, 4294901760
        %3633 = vmatpush.msra.mxu0 %v3632
        %v3634 = vand.u32 %v3502, 4294901760
        %v3635 = vsub.f32 %v3502, %v3634
        %v3636 = vand.u32 %v3635, 4294901760
        %v3637 = vsub.f32 %v3635, %v3636
        %v3638 = vand.u32 %v3637, 4294901760
        %3639 = vmatpush.msra.mxu0 %v3638
        %v3640 = vand.u32 %v3500, 4294901760
        %v3641 = vsub.f32 %v3500, %v3640
        %v3642 = vand.u32 %v3641, 4294901760
        %v3643 = vsub.f32 %v3641, %v3642
        %v3644 = vand.u32 %v3643, 4294901760
        %3645 = vmatpush.msra.mxu0 %v3644
        %v3646 = vand.u32 %v3498, 4294901760
        %v3647 = vsub.f32 %v3498, %v3646
        %v3648 = vand.u32 %v3647, 4294901760
        %v3649 = vsub.f32 %v3647, %v3648
        %v3650 = vand.u32 %v3649, 4294901760
        %3651 = vmatpush.msra.mxu0 %v3650
        %v3652 = vand.u32 %v3526, 4294901760
        %3653 = vmatmul.f32.gmra.mxu0 %v3652
        %v3654 = vpop.f32.mrf.mxu0
        %v3655 = vadd.f32 %v3571, %v3654
        %v3656 = vand.u32 %v3528, 4294901760
        %3657 = vmatmul.f32.gmra.mxu0 %v3656
        %v3658 = vpop.f32.mrf.mxu0
        %v3659 = vadd.f32 %v3579, %v3658
        %3660 = vdwg.mxu0
        %3661 = vmatpush.msra.mxu0 0.0
        %3662 = vmatpush.msra.mxu0 0.0
        %3663 = vmatpush.msra.mxu0 0.0
        %3664 = vmatpush.msra.mxu0 0.0
        %3665 = vmatpush.msra.mxu0 0.0
        %v3666 = vand.u32 %v3532, 4294901760
        %v3667 = vsub.f32 %v3532, %v3666
        %3668 = vmatpush.msra.mxu0 %v3667
        %v3669 = vand.u32 %v3516, 4294901760
        %v3670 = vsub.f32 %v3516, %v3669
        %3671 = vmatpush.msra.mxu0 %v3670
        %v3672 = vand.u32 %v3514, 4294901760
        %v3673 = vsub.f32 %v3514, %v3672
        %3674 = vmatpush.msra.mxu0 %v3673
        %v3675 = vand.u32 %v3512, 4294901760
        %v3676 = vsub.f32 %v3512, %v3675
        %3677 = vmatpush.msra.mxu0 %v3676
        %v3678 = vand.u32 %v3510, 4294901760
        %v3679 = vsub.f32 %v3510, %v3678
        %3680 = vmatpush.msra.mxu0 %v3679
        %v3681 = vand.u32 %v3508, 4294901760
        %v3682 = vsub.f32 %v3508, %v3681
        %3683 = vmatpush.msra.mxu0 %v3682
        %v3684 = vand.u32 %v3506, 4294901760
        %v3685 = vsub.f32 %v3506, %v3684
        %3686 = vmatpush.msra.mxu0 %v3685
        %v3687 = vand.u32 %v3504, 4294901760
        %v3688 = vsub.f32 %v3504, %v3687
        %3689 = vmatpush.msra.mxu0 %v3688
        %v3690 = vand.u32 %v3502, 4294901760
        %v3691 = vsub.f32 %v3502, %v3690
        %3692 = vmatpush.msra.mxu0 %v3691
        %v3693 = vand.u32 %v3500, 4294901760
        %v3694 = vsub.f32 %v3500, %v3693
        %3695 = vmatpush.msra.mxu0 %v3694
        %v3696 = vand.u32 %v3498, 4294901760
        %v3697 = vsub.f32 %v3498, %v3696
        %3698 = vmatpush.msra.mxu0 %v3697
        %v3699 = vand.u32 %v3526, 4294901760
        %v3700 = vsub.f32 %v3526, %v3699
        %3701 = vmatmul.f32.gmra.mxu0 %v3700
        %v3702 = vpop.f32.mrf.mxu0
        %v3703 = vadd.f32 %v3655, %v3702
        %v3704 = vand.u32 %v3528, 4294901760
        %v3705 = vsub.f32 %v3528, %v3704
        %3706 = vmatmul.f32.gmra.mxu0 %v3705
        %v3707 = vpop.f32.mrf.mxu0
        %v3708 = vadd.f32 %v3659, %v3707
        %3709 = vdwg.mxu0
        %3710 = vmatpush.msra.mxu0 0.0
        %3711 = vmatpush.msra.mxu0 0.0
        %3712 = vmatpush.msra.mxu0 0.0
        %3713 = vmatpush.msra.mxu0 0.0
        %3714 = vmatpush.msra.mxu0 0.0
        %v3715 = vand.u32 %v3532, 4294901760
        %3716 = vmatpush.msra.mxu0 %v3715
        %v3717 = vand.u32 %v3516, 4294901760
        %3718 = vmatpush.msra.mxu0 %v3717
        %v3719 = vand.u32 %v3514, 4294901760
        %3720 = vmatpush.msra.mxu0 %v3719
        %v3721 = vand.u32 %v3512, 4294901760
        %3722 = vmatpush.msra.mxu0 %v3721
        %v3723 = vand.u32 %v3510, 4294901760
        %3724 = vmatpush.msra.mxu0 %v3723
        %v3725 = vand.u32 %v3508, 4294901760
        %3726 = vmatpush.msra.mxu0 %v3725
        %v3727 = vand.u32 %v3506, 4294901760
        %3728 = vmatpush.msra.mxu0 %v3727
        %v3729 = vand.u32 %v3504, 4294901760
        %3730 = vmatpush.msra.mxu0 %v3729
        %v3731 = vand.u32 %v3502, 4294901760
        %3732 = vmatpush.msra.mxu0 %v3731
        %v3733 = vand.u32 %v3500, 4294901760
        %3734 = vmatpush.msra.mxu0 %v3733
        %v3735 = vand.u32 %v3498, 4294901760
        %3736 = vmatpush.msra.mxu0 %v3735
        %v3737 = vand.u32 %v3526, 4294901760
        %v3738 = vsub.f32 %v3526, %v3737
        %v3739 = vand.u32 %v3738, 4294901760
        %3740 = vmatmul.f32.gmra.mxu0 %v3739
        %v3741 = vpop.f32.mrf.mxu0
        %v3742 = vadd.f32 %v3703, %v3741
        %v3743 = vand.u32 %v3528, 4294901760
        %v3744 = vsub.f32 %v3528, %v3743
        %v3745 = vand.u32 %v3744, 4294901760
        %3746 = vmatmul.f32.gmra.mxu0 %v3745
        %v3747 = vpop.f32.mrf.mxu0
        %v3748 = vadd.f32 %v3708, %v3747
        %3749 = vdwg.mxu0
        %3750 = vmatpush.msra.mxu0 0.0
        %3751 = vmatpush.msra.mxu0 0.0
        %3752 = vmatpush.msra.mxu0 0.0
        %3753 = vmatpush.msra.mxu0 0.0
        %3754 = vmatpush.msra.mxu0 0.0
        %v3755 = vand.u32 %v3532, 4294901760
        %v3756 = vsub.f32 %v3532, %v3755
        %v3757 = vand.u32 %v3756, 4294901760
        %3758 = vmatpush.msra.mxu0 %v3757
        %v3759 = vand.u32 %v3516, 4294901760
        %v3760 = vsub.f32 %v3516, %v3759
        %v3761 = vand.u32 %v3760, 4294901760
        %3762 = vmatpush.msra.mxu0 %v3761
        %v3763 = vand.u32 %v3514, 4294901760
        %v3764 = vsub.f32 %v3514, %v3763
        %v3765 = vand.u32 %v3764, 4294901760
        %3766 = vmatpush.msra.mxu0 %v3765
        %v3767 = vand.u32 %v3512, 4294901760
        %v3768 = vsub.f32 %v3512, %v3767
        %v3769 = vand.u32 %v3768, 4294901760
        %3770 = vmatpush.msra.mxu0 %v3769
        %v3771 = vand.u32 %v3510, 4294901760
        %v3772 = vsub.f32 %v3510, %v3771
        %v3773 = vand.u32 %v3772, 4294901760
        %3774 = vmatpush.msra.mxu0 %v3773
        %v3775 = vand.u32 %v3508, 4294901760
        %v3776 = vsub.f32 %v3508, %v3775
        %v3777 = vand.u32 %v3776, 4294901760
        %3778 = vmatpush.msra.mxu0 %v3777
        %v3779 = vand.u32 %v3506, 4294901760
        %v3780 = vsub.f32 %v3506, %v3779
        %v3781 = vand.u32 %v3780, 4294901760
        %3782 = vmatpush.msra.mxu0 %v3781
        %v3783 = vand.u32 %v3504, 4294901760
        %v3784 = vsub.f32 %v3504, %v3783
        %v3785 = vand.u32 %v3784, 4294901760
        %3786 = vmatpush.msra.mxu0 %v3785
        %v3787 = vand.u32 %v3502, 4294901760
        %v3788 = vsub.f32 %v3502, %v3787
        %v3789 = vand.u32 %v3788, 4294901760
        %3790 = vmatpush.msra.mxu0 %v3789
        %v3791 = vand.u32 %v3500, 4294901760
        %v3792 = vsub.f32 %v3500, %v3791
        %v3793 = vand.u32 %v3792, 4294901760
        %3794 = vmatpush.msra.mxu0 %v3793
        %v3795 = vand.u32 %v3498, 4294901760
        %v3796 = vsub.f32 %v3498, %v3795
        %v3797 = vand.u32 %v3796, 4294901760
        %3798 = vmatpush.msra.mxu0 %v3797
        %v3799 = vand.u32 %v3526, 4294901760
        %3800 = vmatmul.f32.gmra.mxu0 %v3799
        %v3801 = vpop.f32.mrf.mxu0
        %v3802 = vadd.f32 %v3742, %v3801
        %v3803 = vand.u32 %v3528, 4294901760
        %3804 = vmatmul.f32.gmra.mxu0 %v3803
        %v3805 = vpop.f32.mrf.mxu0
        %v3806 = vadd.f32 %v3748, %v3805
        %3807 = vdwg.mxu0
        %3808 = vmatpush.msra.mxu0 0.0
        %3809 = vmatpush.msra.mxu0 0.0
        %3810 = vmatpush.msra.mxu0 0.0
        %3811 = vmatpush.msra.mxu0 0.0
        %3812 = vmatpush.msra.mxu0 0.0
        %v3813 = vand.u32 %v3532, 4294901760
        %3814 = vmatpush.msra.mxu0 %v3813
        %v3815 = vand.u32 %v3516, 4294901760
        %3816 = vmatpush.msra.mxu0 %v3815
        %v3817 = vand.u32 %v3514, 4294901760
        %3818 = vmatpush.msra.mxu0 %v3817
        %v3819 = vand.u32 %v3512, 4294901760
        %3820 = vmatpush.msra.mxu0 %v3819
        %v3821 = vand.u32 %v3510, 4294901760
        %3822 = vmatpush.msra.mxu0 %v3821
        %v3823 = vand.u32 %v3508, 4294901760
        %3824 = vmatpush.msra.mxu0 %v3823
        %v3825 = vand.u32 %v3506, 4294901760
        %3826 = vmatpush.msra.mxu0 %v3825
        %v3827 = vand.u32 %v3504, 4294901760
        %3828 = vmatpush.msra.mxu0 %v3827
        %v3829 = vand.u32 %v3502, 4294901760
        %3830 = vmatpush.msra.mxu0 %v3829
        %v3831 = vand.u32 %v3500, 4294901760
        %3832 = vmatpush.msra.mxu0 %v3831
        %v3833 = vand.u32 %v3498, 4294901760
        %3834 = vmatpush.msra.mxu0 %v3833
        %v3835 = vand.u32 %v3526, 4294901760
        %3836 = vmatmul.f32.gmra.mxu0 %v3835
        %v3837 = vpop.f32.mrf.mxu0
        %v3838 = vadd.f32 %v3802, %v3837
        %v3839 = vand.u32 %v3528, 4294901760
        %3840 = vmatmul.f32.gmra.mxu0 %v3839
        %v3841 = vpop.f32.mrf.mxu0
        %v3842 = vadd.f32 %v3806, %v3841
        %3843 = vdwg.mxu0
        %3844 = vmatpush.msra.mxu0 0.0
        %3845 = vmatpush.msra.mxu0 0.0
        %3846 = vmatpush.msra.mxu0 0.0
        %3847 = vmatpush.msra.mxu0 0.0
        %3848 = vmatpush.msra.mxu0 0.0
        %v3849 = vand.u32 %v3535, 4294901760
        %3850 = vmatpush.msra.mxu0 %v3849
        %v3851 = vand.u32 %v3517, 4294901760
        %3852 = vmatpush.msra.mxu0 %v3851
        %v3853 = vand.u32 %v3515, 4294901760
        %3854 = vmatpush.msra.mxu0 %v3853
        %v3855 = vand.u32 %v3513, 4294901760
        %3856 = vmatpush.msra.mxu0 %v3855
        %v3857 = vand.u32 %v3511, 4294901760
        %3858 = vmatpush.msra.mxu0 %v3857
        %v3859 = vand.u32 %v3509, 4294901760
        %3860 = vmatpush.msra.mxu0 %v3859
        %v3861 = vand.u32 %v3507, 4294901760
        %3862 = vmatpush.msra.mxu0 %v3861
        %v3863 = vand.u32 %v3505, 4294901760
        %3864 = vmatpush.msra.mxu0 %v3863
        %v3865 = vand.u32 %v3503, 4294901760
        %3866 = vmatpush.msra.mxu0 %v3865
        %v3867 = vand.u32 %v3501, 4294901760
        %3868 = vmatpush.msra.mxu0 %v3867
        %v3869 = vand.u32 %v3499, 4294901760
        %3870 = vmatpush.msra.mxu0 %v3869
        %v3871 = vand.u32 %v3526, 4294901760
        %v3872 = vsub.f32 %v3526, %v3871
        %v3873 = vand.u32 %v3872, 4294901760
        %v3874 = vsub.f32 %v3872, %v3873
        %v3875 = vand.u32 %v3874, 4294901760
        %3876 = vmatmul.f32.gmra.mxu0 %v3875
        %v3877 = vpop.f32.mrf.mxu0
        %v3878 = vadd.f32 0.0, %v3877
        %v3879 = vand.u32 %v3528, 4294901760
        %v3880 = vsub.f32 %v3528, %v3879
        %v3881 = vand.u32 %v3880, 4294901760
        %v3882 = vsub.f32 %v3880, %v3881
        %v3883 = vand.u32 %v3882, 4294901760
        %3884 = vmatmul.f32.gmra.mxu0 %v3883
        %v3885 = vpop.f32.mrf.mxu0
        %v3886 = vadd.f32 0.0, %v3885
        %3887 = vdwg.mxu0
        %3888 = vmatpush.msra.mxu0 0.0
        %3889 = vmatpush.msra.mxu0 0.0
        %3890 = vmatpush.msra.mxu0 0.0
        %3891 = vmatpush.msra.mxu0 0.0
        %3892 = vmatpush.msra.mxu0 0.0
        %v3893 = vand.u32 %v3535, 4294901760
        %v3894 = vsub.f32 %v3535, %v3893
        %v3895 = vand.u32 %v3894, 4294901760
        %v3896 = vsub.f32 %v3894, %v3895
        %v3897 = vand.u32 %v3896, 4294901760
        %3898 = vmatpush.msra.mxu0 %v3897
        %v3899 = vand.u32 %v3517, 4294901760
        %v3900 = vsub.f32 %v3517, %v3899
        %v3901 = vand.u32 %v3900, 4294901760
        %v3902 = vsub.f32 %v3900, %v3901
        %v3903 = vand.u32 %v3902, 4294901760
        %3904 = vmatpush.msra.mxu0 %v3903
        %v3905 = vand.u32 %v3515, 4294901760
        %v3906 = vsub.f32 %v3515, %v3905
        %v3907 = vand.u32 %v3906, 4294901760
        %v3908 = vsub.f32 %v3906, %v3907
        %v3909 = vand.u32 %v3908, 4294901760
        %3910 = vmatpush.msra.mxu0 %v3909
        %v3911 = vand.u32 %v3513, 4294901760
        %v3912 = vsub.f32 %v3513, %v3911
        %v3913 = vand.u32 %v3912, 4294901760
        %v3914 = vsub.f32 %v3912, %v3913
        %v3915 = vand.u32 %v3914, 4294901760
        %3916 = vmatpush.msra.mxu0 %v3915
        %v3917 = vand.u32 %v3511, 4294901760
        %v3918 = vsub.f32 %v3511, %v3917
        %v3919 = vand.u32 %v3918, 4294901760
        %v3920 = vsub.f32 %v3918, %v3919
        %v3921 = vand.u32 %v3920, 4294901760
        %3922 = vmatpush.msra.mxu0 %v3921
        %v3923 = vand.u32 %v3509, 4294901760
        %v3924 = vsub.f32 %v3509, %v3923
        %v3925 = vand.u32 %v3924, 4294901760
        %v3926 = vsub.f32 %v3924, %v3925
        %v3927 = vand.u32 %v3926, 4294901760
        %3928 = vmatpush.msra.mxu0 %v3927
        %v3929 = vand.u32 %v3507, 4294901760
        %v3930 = vsub.f32 %v3507, %v3929
        %v3931 = vand.u32 %v3930, 4294901760
        %v3932 = vsub.f32 %v3930, %v3931
        %v3933 = vand.u32 %v3932, 4294901760
        %3934 = vmatpush.msra.mxu0 %v3933
        %v3935 = vand.u32 %v3505, 4294901760
        %v3936 = vsub.f32 %v3505, %v3935
        %v3937 = vand.u32 %v3936, 4294901760
        %v3938 = vsub.f32 %v3936, %v3937
        %v3939 = vand.u32 %v3938, 4294901760
        %3940 = vmatpush.msra.mxu0 %v3939
        %v3941 = vand.u32 %v3503, 4294901760
        %v3942 = vsub.f32 %v3503, %v3941
        %v3943 = vand.u32 %v3942, 4294901760
        %v3944 = vsub.f32 %v3942, %v3943
        %v3945 = vand.u32 %v3944, 4294901760
        %3946 = vmatpush.msra.mxu0 %v3945
        %v3947 = vand.u32 %v3501, 4294901760
        %v3948 = vsub.f32 %v3501, %v3947
        %v3949 = vand.u32 %v3948, 4294901760
        %v3950 = vsub.f32 %v3948, %v3949
        %v3951 = vand.u32 %v3950, 4294901760
        %3952 = vmatpush.msra.mxu0 %v3951
        %v3953 = vand.u32 %v3499, 4294901760
        %v3954 = vsub.f32 %v3499, %v3953
        %v3955 = vand.u32 %v3954, 4294901760
        %v3956 = vsub.f32 %v3954, %v3955
        %v3957 = vand.u32 %v3956, 4294901760
        %3958 = vmatpush.msra.mxu0 %v3957
        %v3959 = vand.u32 %v3526, 4294901760
        %3960 = vmatmul.f32.gmra.mxu0 %v3959
        %v3961 = vpop.f32.mrf.mxu0
        %v3962 = vadd.f32 %v3878, %v3961
        %v3963 = vand.u32 %v3528, 4294901760
        %3964 = vmatmul.f32.gmra.mxu0 %v3963
        %v3965 = vpop.f32.mrf.mxu0
        %v3966 = vadd.f32 %v3886, %v3965
        %3967 = vdwg.mxu0
        %3968 = vmatpush.msra.mxu0 0.0
        %3969 = vmatpush.msra.mxu0 0.0
        %3970 = vmatpush.msra.mxu0 0.0
        %3971 = vmatpush.msra.mxu0 0.0
        %3972 = vmatpush.msra.mxu0 0.0
        %v3973 = vand.u32 %v3535, 4294901760
        %v3974 = vsub.f32 %v3535, %v3973
        %3975 = vmatpush.msra.mxu0 %v3974
        %v3976 = vand.u32 %v3517, 4294901760
        %v3977 = vsub.f32 %v3517, %v3976
        %3978 = vmatpush.msra.mxu0 %v3977
        %v3979 = vand.u32 %v3515, 4294901760
        %v3980 = vsub.f32 %v3515, %v3979
        %3981 = vmatpush.msra.mxu0 %v3980
        %v3982 = vand.u32 %v3513, 4294901760
        %v3983 = vsub.f32 %v3513, %v3982
        %3984 = vmatpush.msra.mxu0 %v3983
        %v3985 = vand.u32 %v3511, 4294901760
        %v3986 = vsub.f32 %v3511, %v3985
        %3987 = vmatpush.msra.mxu0 %v3986
        %v3988 = vand.u32 %v3509, 4294901760
        %v3989 = vsub.f32 %v3509, %v3988
        %3990 = vmatpush.msra.mxu0 %v3989
        %v3991 = vand.u32 %v3507, 4294901760
        %v3992 = vsub.f32 %v3507, %v3991
        %3993 = vmatpush.msra.mxu0 %v3992
        %v3994 = vand.u32 %v3505, 4294901760
        %v3995 = vsub.f32 %v3505, %v3994
        %3996 = vmatpush.msra.mxu0 %v3995
        %v3997 = vand.u32 %v3503, 4294901760
        %v3998 = vsub.f32 %v3503, %v3997
        %3999 = vmatpush.msra.mxu0 %v3998
        %v4000 = vand.u32 %v3501, 4294901760
        %v4001 = vsub.f32 %v3501, %v4000
        %4002 = vmatpush.msra.mxu0 %v4001
        %v4003 = vand.u32 %v3499, 4294901760
        %v4004 = vsub.f32 %v3499, %v4003
        %4005 = vmatpush.msra.mxu0 %v4004
        %v4006 = vand.u32 %v3526, 4294901760
        %v4007 = vsub.f32 %v3526, %v4006
        %4008 = vmatmul.f32.gmra.mxu0 %v4007
        %v4009 = vpop.f32.mrf.mxu0
        %v4010 = vadd.f32 %v3962, %v4009
        %v4011 = vand.u32 %v3528, 4294901760
        %v4012 = vsub.f32 %v3528, %v4011
        %4013 = vmatmul.f32.gmra.mxu0 %v4012
        %v4014 = vpop.f32.mrf.mxu0
        %v4015 = vadd.f32 %v3966, %v4014
        %4016 = vdwg.mxu0
        %4017 = vmatpush.msra.mxu0 0.0
        %4018 = vmatpush.msra.mxu0 0.0
        %4019 = vmatpush.msra.mxu0 0.0
        %4020 = vmatpush.msra.mxu0 0.0
        %4021 = vmatpush.msra.mxu0 0.0
        %v4022 = vand.u32 %v3535, 4294901760
        %4023 = vmatpush.msra.mxu0 %v4022
        %v4024 = vand.u32 %v3517, 4294901760
        %4025 = vmatpush.msra.mxu0 %v4024
        %v4026 = vand.u32 %v3515, 4294901760
        %4027 = vmatpush.msra.mxu0 %v4026
        %v4028 = vand.u32 %v3513, 4294901760
        %4029 = vmatpush.msra.mxu0 %v4028
        %v4030 = vand.u32 %v3511, 4294901760
        %4031 = vmatpush.msra.mxu0 %v4030
        %v4032 = vand.u32 %v3509, 4294901760
        %4033 = vmatpush.msra.mxu0 %v4032
        %v4034 = vand.u32 %v3507, 4294901760
        %4035 = vmatpush.msra.mxu0 %v4034
        %v4036 = vand.u32 %v3505, 4294901760
        %4037 = vmatpush.msra.mxu0 %v4036
        %v4038 = vand.u32 %v3503, 4294901760
        %4039 = vmatpush.msra.mxu0 %v4038
        %v4040 = vand.u32 %v3501, 4294901760
        %4041 = vmatpush.msra.mxu0 %v4040
        %v4042 = vand.u32 %v3499, 4294901760
        %4043 = vmatpush.msra.mxu0 %v4042
        %v4044 = vand.u32 %v3526, 4294901760
        %v4045 = vsub.f32 %v3526, %v4044
        %v4046 = vand.u32 %v4045, 4294901760
        %4047 = vmatmul.f32.gmra.mxu0 %v4046
        %v4048 = vpop.f32.mrf.mxu0
        %v4049 = vadd.f32 %v4010, %v4048
        %v4050 = vand.u32 %v3528, 4294901760
        %v4051 = vsub.f32 %v3528, %v4050
        %v4052 = vand.u32 %v4051, 4294901760
        %4053 = vmatmul.f32.gmra.mxu0 %v4052
        %v4054 = vpop.f32.mrf.mxu0
        %v4055 = vadd.f32 %v4015, %v4054
        %4056 = vdwg.mxu0
        %4057 = vmatpush.msra.mxu0 0.0
        %4058 = vmatpush.msra.mxu0 0.0
        %4059 = vmatpush.msra.mxu0 0.0
        %4060 = vmatpush.msra.mxu0 0.0
        %4061 = vmatpush.msra.mxu0 0.0
        %v4062 = vand.u32 %v3535, 4294901760
        %v4063 = vsub.f32 %v3535, %v4062
        %v4064 = vand.u32 %v4063, 4294901760
        %4065 = vmatpush.msra.mxu0 %v4064
        %v4066 = vand.u32 %v3517, 4294901760
        %v4067 = vsub.f32 %v3517, %v4066
        %v4068 = vand.u32 %v4067, 4294901760
        %4069 = vmatpush.msra.mxu0 %v4068
        %v4070 = vand.u32 %v3515, 4294901760
        %v4071 = vsub.f32 %v3515, %v4070
        %v4072 = vand.u32 %v4071, 4294901760
        %4073 = vmatpush.msra.mxu0 %v4072
        %v4074 = vand.u32 %v3513, 4294901760
        %v4075 = vsub.f32 %v3513, %v4074
        %v4076 = vand.u32 %v4075, 4294901760
        %4077 = vmatpush.msra.mxu0 %v4076
        %v4078 = vand.u32 %v3511, 4294901760
        %v4079 = vsub.f32 %v3511, %v4078
        %v4080 = vand.u32 %v4079, 4294901760
        %4081 = vmatpush.msra.mxu0 %v4080
        %v4082 = vand.u32 %v3509, 4294901760
        %v4083 = vsub.f32 %v3509, %v4082
        %v4084 = vand.u32 %v4083, 4294901760
        %4085 = vmatpush.msra.mxu0 %v4084
        %v4086 = vand.u32 %v3507, 4294901760
        %v4087 = vsub.f32 %v3507, %v4086
        %v4088 = vand.u32 %v4087, 4294901760
        %4089 = vmatpush.msra.mxu0 %v4088
        %v4090 = vand.u32 %v3505, 4294901760
        %v4091 = vsub.f32 %v3505, %v4090
        %v4092 = vand.u32 %v4091, 4294901760
        %4093 = vmatpush.msra.mxu0 %v4092
        %v4094 = vand.u32 %v3503, 4294901760
        %v4095 = vsub.f32 %v3503, %v4094
        %v4096 = vand.u32 %v4095, 4294901760
        %4097 = vmatpush.msra.mxu0 %v4096
        %v4098 = vand.u32 %v3501, 4294901760
        %v4099 = vsub.f32 %v3501, %v4098
        %v4100 = vand.u32 %v4099, 4294901760
        %4101 = vmatpush.msra.mxu0 %v4100
        %v4102 = vand.u32 %v3499, 4294901760
        %v4103 = vsub.f32 %v3499, %v4102
        %v4104 = vand.u32 %v4103, 4294901760
        %4105 = vmatpush.msra.mxu0 %v4104
        %v4106 = vand.u32 %v3526, 4294901760
        %4107 = vmatmul.f32.gmra.mxu0 %v4106
        %v4108 = vpop.f32.mrf.mxu0
        %v4109 = vadd.f32 %v4049, %v4108
        %v4110 = vand.u32 %v3528, 4294901760
        %4111 = vmatmul.f32.gmra.mxu0 %v4110
        %v4112 = vpop.f32.mrf.mxu0
        %v4113 = vadd.f32 %v4055, %v4112
        %4114 = vdwg.mxu0
        %4115 = vmatpush.msra.mxu0 0.0
        %4116 = vmatpush.msra.mxu0 0.0
        %4117 = vmatpush.msra.mxu0 0.0
        %4118 = vmatpush.msra.mxu0 0.0
        %4119 = vmatpush.msra.mxu0 0.0
        %v4120 = vand.u32 %v3535, 4294901760
        %4121 = vmatpush.msra.mxu0 %v4120
        %v4122 = vand.u32 %v3517, 4294901760
        %4123 = vmatpush.msra.mxu0 %v4122
        %v4124 = vand.u32 %v3515, 4294901760
        %4125 = vmatpush.msra.mxu0 %v4124
        %v4126 = vand.u32 %v3513, 4294901760
        %4127 = vmatpush.msra.mxu0 %v4126
        %v4128 = vand.u32 %v3511, 4294901760
        %4129 = vmatpush.msra.mxu0 %v4128
        %v4130 = vand.u32 %v3509, 4294901760
        %4131 = vmatpush.msra.mxu0 %v4130
        %v4132 = vand.u32 %v3507, 4294901760
        %4133 = vmatpush.msra.mxu0 %v4132
        %v4134 = vand.u32 %v3505, 4294901760
        %4135 = vmatpush.msra.mxu0 %v4134
        %v4136 = vand.u32 %v3503, 4294901760
        %4137 = vmatpush.msra.mxu0 %v4136
        %v4138 = vand.u32 %v3501, 4294901760
        %4139 = vmatpush.msra.mxu0 %v4138
        %v4140 = vand.u32 %v3499, 4294901760
        %4141 = vmatpush.msra.mxu0 %v4140
        %v4142 = vand.u32 %v3526, 4294901760
        %4143 = vmatmul.f32.gmra.mxu0 %v4142
        %v4144 = vpop.f32.mrf.mxu0
        %v4145 = vadd.f32 %v4109, %v4144
        %v4146 = vand.u32 %v3528, 4294901760
        %4147 = vmatmul.f32.gmra.mxu0 %v4146
        %v4148 = vpop.f32.mrf.mxu0
        %v4149 = vadd.f32 %v4113, %v4148
        %4150 = vdwg.mxu0
        %v4151 = vsel %vm3525, %v3469, 0
        %v4153 = vsel %vm3525, %v3473, 0
        %v4156 = vsel %vm3530, %v3495, 0
        %v4159 = vsel %vm3530, %v3496, 0
        %4161 = vmatpush.msra.mxu0 0.0
        %4162 = vmatpush.msra.mxu0 0.0
        %4163 = vmatpush.msra.mxu0 0.0
        %4164 = vmatpush.msra.mxu0 0.0
        %4165 = vmatpush.msra.mxu0 0.0
        %v4166 = vand.u32 %v4156, 4294901760
        %4167 = vmatpush.msra.mxu0 %v4166
        %v4168 = vand.u32 %v3493, 4294901760
        %4169 = vmatpush.msra.mxu0 %v4168
        %v4170 = vand.u32 %v3491, 4294901760
        %4171 = vmatpush.msra.mxu0 %v4170
        %v4172 = vand.u32 %v3489, 4294901760
        %4173 = vmatpush.msra.mxu0 %v4172
        %v4174 = vand.u32 %v3487, 4294901760
        %4175 = vmatpush.msra.mxu0 %v4174
        %v4176 = vand.u32 %v3485, 4294901760
        %4177 = vmatpush.msra.mxu0 %v4176
        %v4178 = vand.u32 %v3483, 4294901760
        %4179 = vmatpush.msra.mxu0 %v4178
        %v4180 = vand.u32 %v3481, 4294901760
        %4181 = vmatpush.msra.mxu0 %v4180
        %v4182 = vand.u32 %v3479, 4294901760
        %4183 = vmatpush.msra.mxu0 %v4182
        %v4184 = vand.u32 %v3477, 4294901760
        %4185 = vmatpush.msra.mxu0 %v4184
        %v4186 = vand.u32 %v3475, 4294901760
        %4187 = vmatpush.msra.mxu0 %v4186
        %v4188 = vand.u32 %v4151, 4294901760
        %v4189 = vsub.f32 %v4151, %v4188
        %v4190 = vand.u32 %v4189, 4294901760
        %v4191 = vsub.f32 %v4189, %v4190
        %v4192 = vand.u32 %v4191, 4294901760
        %4193 = vmatmul.f32.gmra.mxu0 %v4192
        %v4194 = vpop.f32.mrf.mxu0
        %v4195 = vadd.f32 %v3838, %v4194
        %v4196 = vand.u32 %v4153, 4294901760
        %v4197 = vsub.f32 %v4153, %v4196
        %v4198 = vand.u32 %v4197, 4294901760
        %v4199 = vsub.f32 %v4197, %v4198
        %v4200 = vand.u32 %v4199, 4294901760
        %4201 = vmatmul.f32.gmra.mxu0 %v4200
        %v4202 = vpop.f32.mrf.mxu0
        %v4203 = vadd.f32 %v3842, %v4202
        %4204 = vdwg.mxu0
        %4205 = vmatpush.msra.mxu0 0.0
        %4206 = vmatpush.msra.mxu0 0.0
        %4207 = vmatpush.msra.mxu0 0.0
        %4208 = vmatpush.msra.mxu0 0.0
        %4209 = vmatpush.msra.mxu0 0.0
        %v4210 = vand.u32 %v4156, 4294901760
        %v4211 = vsub.f32 %v4156, %v4210
        %v4212 = vand.u32 %v4211, 4294901760
        %v4213 = vsub.f32 %v4211, %v4212
        %v4214 = vand.u32 %v4213, 4294901760
        %4215 = vmatpush.msra.mxu0 %v4214
        %v4216 = vand.u32 %v3493, 4294901760
        %v4217 = vsub.f32 %v3493, %v4216
        %v4218 = vand.u32 %v4217, 4294901760
        %v4219 = vsub.f32 %v4217, %v4218
        %v4220 = vand.u32 %v4219, 4294901760
        %4221 = vmatpush.msra.mxu0 %v4220
        %v4222 = vand.u32 %v3491, 4294901760
        %v4223 = vsub.f32 %v3491, %v4222
        %v4224 = vand.u32 %v4223, 4294901760
        %v4225 = vsub.f32 %v4223, %v4224
        %v4226 = vand.u32 %v4225, 4294901760
        %4227 = vmatpush.msra.mxu0 %v4226
        %v4228 = vand.u32 %v3489, 4294901760
        %v4229 = vsub.f32 %v3489, %v4228
        %v4230 = vand.u32 %v4229, 4294901760
        %v4231 = vsub.f32 %v4229, %v4230
        %v4232 = vand.u32 %v4231, 4294901760
        %4233 = vmatpush.msra.mxu0 %v4232
        %v4234 = vand.u32 %v3487, 4294901760
        %v4235 = vsub.f32 %v3487, %v4234
        %v4236 = vand.u32 %v4235, 4294901760
        %v4237 = vsub.f32 %v4235, %v4236
        %v4238 = vand.u32 %v4237, 4294901760
        %4239 = vmatpush.msra.mxu0 %v4238
        %v4240 = vand.u32 %v3485, 4294901760
        %v4241 = vsub.f32 %v3485, %v4240
        %v4242 = vand.u32 %v4241, 4294901760
        %v4243 = vsub.f32 %v4241, %v4242
        %v4244 = vand.u32 %v4243, 4294901760
        %4245 = vmatpush.msra.mxu0 %v4244
        %v4246 = vand.u32 %v3483, 4294901760
        %v4247 = vsub.f32 %v3483, %v4246
        %v4248 = vand.u32 %v4247, 4294901760
        %v4249 = vsub.f32 %v4247, %v4248
        %v4250 = vand.u32 %v4249, 4294901760
        %4251 = vmatpush.msra.mxu0 %v4250
        %v4252 = vand.u32 %v3481, 4294901760
        %v4253 = vsub.f32 %v3481, %v4252
        %v4254 = vand.u32 %v4253, 4294901760
        %v4255 = vsub.f32 %v4253, %v4254
        %v4256 = vand.u32 %v4255, 4294901760
        %4257 = vmatpush.msra.mxu0 %v4256
        %v4258 = vand.u32 %v3479, 4294901760
        %v4259 = vsub.f32 %v3479, %v4258
        %v4260 = vand.u32 %v4259, 4294901760
        %v4261 = vsub.f32 %v4259, %v4260
        %v4262 = vand.u32 %v4261, 4294901760
        %4263 = vmatpush.msra.mxu0 %v4262
        %v4264 = vand.u32 %v3477, 4294901760
        %v4265 = vsub.f32 %v3477, %v4264
        %v4266 = vand.u32 %v4265, 4294901760
        %v4267 = vsub.f32 %v4265, %v4266
        %v4268 = vand.u32 %v4267, 4294901760
        %4269 = vmatpush.msra.mxu0 %v4268
        %v4270 = vand.u32 %v3475, 4294901760
        %v4271 = vsub.f32 %v3475, %v4270
        %v4272 = vand.u32 %v4271, 4294901760
        %v4273 = vsub.f32 %v4271, %v4272
        %v4274 = vand.u32 %v4273, 4294901760
        %4275 = vmatpush.msra.mxu0 %v4274
        %v4276 = vand.u32 %v4151, 4294901760
        %4277 = vmatmul.f32.gmra.mxu0 %v4276
        %v4278 = vpop.f32.mrf.mxu0
        %v4279 = vadd.f32 %v4195, %v4278
        %v4280 = vand.u32 %v4153, 4294901760
        %4281 = vmatmul.f32.gmra.mxu0 %v4280
        %v4282 = vpop.f32.mrf.mxu0
        %v4283 = vadd.f32 %v4203, %v4282
        %4284 = vdwg.mxu0
        %4285 = vmatpush.msra.mxu0 0.0
        %4286 = vmatpush.msra.mxu0 0.0
        %4287 = vmatpush.msra.mxu0 0.0
        %4288 = vmatpush.msra.mxu0 0.0
        %4289 = vmatpush.msra.mxu0 0.0
        %v4290 = vand.u32 %v4156, 4294901760
        %v4291 = vsub.f32 %v4156, %v4290
        %4292 = vmatpush.msra.mxu0 %v4291
        %v4293 = vand.u32 %v3493, 4294901760
        %v4294 = vsub.f32 %v3493, %v4293
        %4295 = vmatpush.msra.mxu0 %v4294
        %v4296 = vand.u32 %v3491, 4294901760
        %v4297 = vsub.f32 %v3491, %v4296
        %4298 = vmatpush.msra.mxu0 %v4297
        %v4299 = vand.u32 %v3489, 4294901760
        %v4300 = vsub.f32 %v3489, %v4299
        %4301 = vmatpush.msra.mxu0 %v4300
        %v4302 = vand.u32 %v3487, 4294901760
        %v4303 = vsub.f32 %v3487, %v4302
        %4304 = vmatpush.msra.mxu0 %v4303
        %v4305 = vand.u32 %v3485, 4294901760
        %v4306 = vsub.f32 %v3485, %v4305
        %4307 = vmatpush.msra.mxu0 %v4306
        %v4308 = vand.u32 %v3483, 4294901760
        %v4309 = vsub.f32 %v3483, %v4308
        %4310 = vmatpush.msra.mxu0 %v4309
        %v4311 = vand.u32 %v3481, 4294901760
        %v4312 = vsub.f32 %v3481, %v4311
        %4313 = vmatpush.msra.mxu0 %v4312
        %v4314 = vand.u32 %v3479, 4294901760
        %v4315 = vsub.f32 %v3479, %v4314
        %4316 = vmatpush.msra.mxu0 %v4315
        %v4317 = vand.u32 %v3477, 4294901760
        %v4318 = vsub.f32 %v3477, %v4317
        %4319 = vmatpush.msra.mxu0 %v4318
        %v4320 = vand.u32 %v3475, 4294901760
        %v4321 = vsub.f32 %v3475, %v4320
        %4322 = vmatpush.msra.mxu0 %v4321
        %v4323 = vand.u32 %v4151, 4294901760
        %v4324 = vsub.f32 %v4151, %v4323
        %4325 = vmatmul.f32.gmra.mxu0 %v4324
        %v4326 = vpop.f32.mrf.mxu0
        %v4327 = vadd.f32 %v4279, %v4326
        %v4328 = vand.u32 %v4153, 4294901760
        %v4329 = vsub.f32 %v4153, %v4328
        %4330 = vmatmul.f32.gmra.mxu0 %v4329
        %v4331 = vpop.f32.mrf.mxu0
        %v4332 = vadd.f32 %v4283, %v4331
        %4333 = vdwg.mxu0
        %4334 = vmatpush.msra.mxu0 0.0
        %4335 = vmatpush.msra.mxu0 0.0
        %4336 = vmatpush.msra.mxu0 0.0
        %4337 = vmatpush.msra.mxu0 0.0
        %4338 = vmatpush.msra.mxu0 0.0
        %v4339 = vand.u32 %v4156, 4294901760
        %4340 = vmatpush.msra.mxu0 %v4339
        %v4341 = vand.u32 %v3493, 4294901760
        %4342 = vmatpush.msra.mxu0 %v4341
        %v4343 = vand.u32 %v3491, 4294901760
        %4344 = vmatpush.msra.mxu0 %v4343
        %v4345 = vand.u32 %v3489, 4294901760
        %4346 = vmatpush.msra.mxu0 %v4345
        %v4347 = vand.u32 %v3487, 4294901760
        %4348 = vmatpush.msra.mxu0 %v4347
        %v4349 = vand.u32 %v3485, 4294901760
        %4350 = vmatpush.msra.mxu0 %v4349
        %v4351 = vand.u32 %v3483, 4294901760
        %4352 = vmatpush.msra.mxu0 %v4351
        %v4353 = vand.u32 %v3481, 4294901760
        %4354 = vmatpush.msra.mxu0 %v4353
        %v4355 = vand.u32 %v3479, 4294901760
        %4356 = vmatpush.msra.mxu0 %v4355
        %v4357 = vand.u32 %v3477, 4294901760
        %4358 = vmatpush.msra.mxu0 %v4357
        %v4359 = vand.u32 %v3475, 4294901760
        %4360 = vmatpush.msra.mxu0 %v4359
        %v4361 = vand.u32 %v4151, 4294901760
        %v4362 = vsub.f32 %v4151, %v4361
        %v4363 = vand.u32 %v4362, 4294901760
        %4364 = vmatmul.f32.gmra.mxu0 %v4363
        %v4365 = vpop.f32.mrf.mxu0
        %v4366 = vadd.f32 %v4327, %v4365
        %v4367 = vand.u32 %v4153, 4294901760
        %v4368 = vsub.f32 %v4153, %v4367
        %v4369 = vand.u32 %v4368, 4294901760
        %4370 = vmatmul.f32.gmra.mxu0 %v4369
        %v4371 = vpop.f32.mrf.mxu0
        %v4372 = vadd.f32 %v4332, %v4371
        %4373 = vdwg.mxu0
        %4374 = vmatpush.msra.mxu0 0.0
        %4375 = vmatpush.msra.mxu0 0.0
        %4376 = vmatpush.msra.mxu0 0.0
        %4377 = vmatpush.msra.mxu0 0.0
        %4378 = vmatpush.msra.mxu0 0.0
        %v4379 = vand.u32 %v4156, 4294901760
        %v4380 = vsub.f32 %v4156, %v4379
        %v4381 = vand.u32 %v4380, 4294901760
        %4382 = vmatpush.msra.mxu0 %v4381
        %v4383 = vand.u32 %v3493, 4294901760
        %v4384 = vsub.f32 %v3493, %v4383
        %v4385 = vand.u32 %v4384, 4294901760
        %4386 = vmatpush.msra.mxu0 %v4385
        %v4387 = vand.u32 %v3491, 4294901760
        %v4388 = vsub.f32 %v3491, %v4387
        %v4389 = vand.u32 %v4388, 4294901760
        %4390 = vmatpush.msra.mxu0 %v4389
        %v4391 = vand.u32 %v3489, 4294901760
        %v4392 = vsub.f32 %v3489, %v4391
        %v4393 = vand.u32 %v4392, 4294901760
        %4394 = vmatpush.msra.mxu0 %v4393
        %v4395 = vand.u32 %v3487, 4294901760
        %v4396 = vsub.f32 %v3487, %v4395
        %v4397 = vand.u32 %v4396, 4294901760
        %4398 = vmatpush.msra.mxu0 %v4397
        %v4399 = vand.u32 %v3485, 4294901760
        %v4400 = vsub.f32 %v3485, %v4399
        %v4401 = vand.u32 %v4400, 4294901760
        %4402 = vmatpush.msra.mxu0 %v4401
        %v4403 = vand.u32 %v3483, 4294901760
        %v4404 = vsub.f32 %v3483, %v4403
        %v4405 = vand.u32 %v4404, 4294901760
        %4406 = vmatpush.msra.mxu0 %v4405
        %v4407 = vand.u32 %v3481, 4294901760
        %v4408 = vsub.f32 %v3481, %v4407
        %v4409 = vand.u32 %v4408, 4294901760
        %4410 = vmatpush.msra.mxu0 %v4409
        %v4411 = vand.u32 %v3479, 4294901760
        %v4412 = vsub.f32 %v3479, %v4411
        %v4413 = vand.u32 %v4412, 4294901760
        %4414 = vmatpush.msra.mxu0 %v4413
        %v4415 = vand.u32 %v3477, 4294901760
        %v4416 = vsub.f32 %v3477, %v4415
        %v4417 = vand.u32 %v4416, 4294901760
        %4418 = vmatpush.msra.mxu0 %v4417
        %v4419 = vand.u32 %v3475, 4294901760
        %v4420 = vsub.f32 %v3475, %v4419
        %v4421 = vand.u32 %v4420, 4294901760
        %4422 = vmatpush.msra.mxu0 %v4421
        %v4423 = vand.u32 %v4151, 4294901760
        %4424 = vmatmul.f32.gmra.mxu0 %v4423
        %v4425 = vpop.f32.mrf.mxu0
        %v4426 = vadd.f32 %v4366, %v4425
        %v4427 = vand.u32 %v4153, 4294901760
        %4428 = vmatmul.f32.gmra.mxu0 %v4427
        %v4429 = vpop.f32.mrf.mxu0
        %v4430 = vadd.f32 %v4372, %v4429
        %4431 = vdwg.mxu0
        %4432 = vmatpush.msra.mxu0 0.0
        %4433 = vmatpush.msra.mxu0 0.0
        %4434 = vmatpush.msra.mxu0 0.0
        %4435 = vmatpush.msra.mxu0 0.0
        %4436 = vmatpush.msra.mxu0 0.0
        %v4437 = vand.u32 %v4156, 4294901760
        %4438 = vmatpush.msra.mxu0 %v4437
        %v4439 = vand.u32 %v3493, 4294901760
        %4440 = vmatpush.msra.mxu0 %v4439
        %v4441 = vand.u32 %v3491, 4294901760
        %4442 = vmatpush.msra.mxu0 %v4441
        %v4443 = vand.u32 %v3489, 4294901760
        %4444 = vmatpush.msra.mxu0 %v4443
        %v4445 = vand.u32 %v3487, 4294901760
        %4446 = vmatpush.msra.mxu0 %v4445
        %v4447 = vand.u32 %v3485, 4294901760
        %4448 = vmatpush.msra.mxu0 %v4447
        %v4449 = vand.u32 %v3483, 4294901760
        %4450 = vmatpush.msra.mxu0 %v4449
        %v4451 = vand.u32 %v3481, 4294901760
        %4452 = vmatpush.msra.mxu0 %v4451
        %v4453 = vand.u32 %v3479, 4294901760
        %4454 = vmatpush.msra.mxu0 %v4453
        %v4455 = vand.u32 %v3477, 4294901760
        %4456 = vmatpush.msra.mxu0 %v4455
        %v4457 = vand.u32 %v3475, 4294901760
        %4458 = vmatpush.msra.mxu0 %v4457
        %v4459 = vand.u32 %v4151, 4294901760
        %4460 = vmatmul.f32.gmra.mxu0 %v4459
        %v4461 = vpop.f32.mrf.mxu0
        %v4462 = vadd.f32 %v4426, %v4461
        %v4463 = vand.u32 %v4153, 4294901760
        %4464 = vmatmul.f32.gmra.mxu0 %v4463
        %v4465 = vpop.f32.mrf.mxu0
        %v4466 = vadd.f32 %v4430, %v4465
        %4467 = vdwg.mxu0
        %4468 = vmatpush.msra.mxu0 0.0
        %4469 = vmatpush.msra.mxu0 0.0
        %4470 = vmatpush.msra.mxu0 0.0
        %4471 = vmatpush.msra.mxu0 0.0
        %4472 = vmatpush.msra.mxu0 0.0
        %v4473 = vand.u32 %v4159, 4294901760
        %4474 = vmatpush.msra.mxu0 %v4473
        %v4475 = vand.u32 %v3494, 4294901760
        %4476 = vmatpush.msra.mxu0 %v4475
        %v4477 = vand.u32 %v3492, 4294901760
        %4478 = vmatpush.msra.mxu0 %v4477
        %v4479 = vand.u32 %v3490, 4294901760
        %4480 = vmatpush.msra.mxu0 %v4479
        %v4481 = vand.u32 %v3488, 4294901760
        %4482 = vmatpush.msra.mxu0 %v4481
        %v4483 = vand.u32 %v3486, 4294901760
        %4484 = vmatpush.msra.mxu0 %v4483
        %v4485 = vand.u32 %v3484, 4294901760
        %4486 = vmatpush.msra.mxu0 %v4485
        %v4487 = vand.u32 %v3482, 4294901760
        %4488 = vmatpush.msra.mxu0 %v4487
        %v4489 = vand.u32 %v3480, 4294901760
        %4490 = vmatpush.msra.mxu0 %v4489
        %v4491 = vand.u32 %v3478, 4294901760
        %4492 = vmatpush.msra.mxu0 %v4491
        %v4493 = vand.u32 %v3476, 4294901760
        %4494 = vmatpush.msra.mxu0 %v4493
        %v4495 = vand.u32 %v4151, 4294901760
        %v4496 = vsub.f32 %v4151, %v4495
        %v4497 = vand.u32 %v4496, 4294901760
        %v4498 = vsub.f32 %v4496, %v4497
        %v4499 = vand.u32 %v4498, 4294901760
        %4500 = vmatmul.f32.gmra.mxu0 %v4499
        %v4501 = vpop.f32.mrf.mxu0
        %v4502 = vadd.f32 %v4145, %v4501
        %v4503 = vand.u32 %v4153, 4294901760
        %v4504 = vsub.f32 %v4153, %v4503
        %v4505 = vand.u32 %v4504, 4294901760
        %v4506 = vsub.f32 %v4504, %v4505
        %v4507 = vand.u32 %v4506, 4294901760
        %4508 = vmatmul.f32.gmra.mxu0 %v4507
        %v4509 = vpop.f32.mrf.mxu0
        %v4510 = vadd.f32 %v4149, %v4509
        %4511 = vdwg.mxu0
        %4512 = vmatpush.msra.mxu0 0.0
        %4513 = vmatpush.msra.mxu0 0.0
        %4514 = vmatpush.msra.mxu0 0.0
        %4515 = vmatpush.msra.mxu0 0.0
        %4516 = vmatpush.msra.mxu0 0.0
        %v4517 = vand.u32 %v4159, 4294901760
        %v4518 = vsub.f32 %v4159, %v4517
        %v4519 = vand.u32 %v4518, 4294901760
        %v4520 = vsub.f32 %v4518, %v4519
        %v4521 = vand.u32 %v4520, 4294901760
        %4522 = vmatpush.msra.mxu0 %v4521
        %v4523 = vand.u32 %v3494, 4294901760
        %v4524 = vsub.f32 %v3494, %v4523
        %v4525 = vand.u32 %v4524, 4294901760
        %v4526 = vsub.f32 %v4524, %v4525
        %v4527 = vand.u32 %v4526, 4294901760
        %4528 = vmatpush.msra.mxu0 %v4527
        %v4529 = vand.u32 %v3492, 4294901760
        %v4530 = vsub.f32 %v3492, %v4529
        %v4531 = vand.u32 %v4530, 4294901760
        %v4532 = vsub.f32 %v4530, %v4531
        %v4533 = vand.u32 %v4532, 4294901760
        %4534 = vmatpush.msra.mxu0 %v4533
        %v4535 = vand.u32 %v3490, 4294901760
        %v4536 = vsub.f32 %v3490, %v4535
        %v4537 = vand.u32 %v4536, 4294901760
        %v4538 = vsub.f32 %v4536, %v4537
        %v4539 = vand.u32 %v4538, 4294901760
        %4540 = vmatpush.msra.mxu0 %v4539
        %v4541 = vand.u32 %v3488, 4294901760
        %v4542 = vsub.f32 %v3488, %v4541
        %v4543 = vand.u32 %v4542, 4294901760
        %v4544 = vsub.f32 %v4542, %v4543
        %v4545 = vand.u32 %v4544, 4294901760
        %4546 = vmatpush.msra.mxu0 %v4545
        %v4547 = vand.u32 %v3486, 4294901760
        %v4548 = vsub.f32 %v3486, %v4547
        %v4549 = vand.u32 %v4548, 4294901760
        %v4550 = vsub.f32 %v4548, %v4549
        %v4551 = vand.u32 %v4550, 4294901760
        %4552 = vmatpush.msra.mxu0 %v4551
        %v4553 = vand.u32 %v3484, 4294901760
        %v4554 = vsub.f32 %v3484, %v4553
        %v4555 = vand.u32 %v4554, 4294901760
        %v4556 = vsub.f32 %v4554, %v4555
        %v4557 = vand.u32 %v4556, 4294901760
        %4558 = vmatpush.msra.mxu0 %v4557
        %v4559 = vand.u32 %v3482, 4294901760
        %v4560 = vsub.f32 %v3482, %v4559
        %v4561 = vand.u32 %v4560, 4294901760
        %v4562 = vsub.f32 %v4560, %v4561
        %v4563 = vand.u32 %v4562, 4294901760
        %4564 = vmatpush.msra.mxu0 %v4563
        %v4565 = vand.u32 %v3480, 4294901760
        %v4566 = vsub.f32 %v3480, %v4565
        %v4567 = vand.u32 %v4566, 4294901760
        %v4568 = vsub.f32 %v4566, %v4567
        %v4569 = vand.u32 %v4568, 4294901760
        %4570 = vmatpush.msra.mxu0 %v4569
        %v4571 = vand.u32 %v3478, 4294901760
        %v4572 = vsub.f32 %v3478, %v4571
        %v4573 = vand.u32 %v4572, 4294901760
        %v4574 = vsub.f32 %v4572, %v4573
        %v4575 = vand.u32 %v4574, 4294901760
        %4576 = vmatpush.msra.mxu0 %v4575
        %v4577 = vand.u32 %v3476, 4294901760
        %v4578 = vsub.f32 %v3476, %v4577
        %v4579 = vand.u32 %v4578, 4294901760
        %v4580 = vsub.f32 %v4578, %v4579
        %v4581 = vand.u32 %v4580, 4294901760
        %4582 = vmatpush.msra.mxu0 %v4581
        %v4583 = vand.u32 %v4151, 4294901760
        %4584 = vmatmul.f32.gmra.mxu0 %v4583
        %v4585 = vpop.f32.mrf.mxu0
        %v4586 = vadd.f32 %v4502, %v4585
        %v4587 = vand.u32 %v4153, 4294901760
        %4588 = vmatmul.f32.gmra.mxu0 %v4587
        %v4589 = vpop.f32.mrf.mxu0
        %v4590 = vadd.f32 %v4510, %v4589
        %4591 = vdwg.mxu0
        %4592 = vmatpush.msra.mxu0 0.0
        %4593 = vmatpush.msra.mxu0 0.0
        %4594 = vmatpush.msra.mxu0 0.0
        %4595 = vmatpush.msra.mxu0 0.0
        %4596 = vmatpush.msra.mxu0 0.0
        %v4597 = vand.u32 %v4159, 4294901760
        %v4598 = vsub.f32 %v4159, %v4597
        %4599 = vmatpush.msra.mxu0 %v4598
        %v4600 = vand.u32 %v3494, 4294901760
        %v4601 = vsub.f32 %v3494, %v4600
        %4602 = vmatpush.msra.mxu0 %v4601
        %v4603 = vand.u32 %v3492, 4294901760
        %v4604 = vsub.f32 %v3492, %v4603
        %4605 = vmatpush.msra.mxu0 %v4604
        %v4606 = vand.u32 %v3490, 4294901760
        %v4607 = vsub.f32 %v3490, %v4606
        %4608 = vmatpush.msra.mxu0 %v4607
        %v4609 = vand.u32 %v3488, 4294901760
        %v4610 = vsub.f32 %v3488, %v4609
        %4611 = vmatpush.msra.mxu0 %v4610
        %v4612 = vand.u32 %v3486, 4294901760
        %v4613 = vsub.f32 %v3486, %v4612
        %4614 = vmatpush.msra.mxu0 %v4613
        %v4615 = vand.u32 %v3484, 4294901760
        %v4616 = vsub.f32 %v3484, %v4615
        %4617 = vmatpush.msra.mxu0 %v4616
        %v4618 = vand.u32 %v3482, 4294901760
        %v4619 = vsub.f32 %v3482, %v4618
        %4620 = vmatpush.msra.mxu0 %v4619
        %v4621 = vand.u32 %v3480, 4294901760
        %v4622 = vsub.f32 %v3480, %v4621
        %4623 = vmatpush.msra.mxu0 %v4622
        %v4624 = vand.u32 %v3478, 4294901760
        %v4625 = vsub.f32 %v3478, %v4624
        %4626 = vmatpush.msra.mxu0 %v4625
        %v4627 = vand.u32 %v3476, 4294901760
        %v4628 = vsub.f32 %v3476, %v4627
        %4629 = vmatpush.msra.mxu0 %v4628
        %v4630 = vand.u32 %v4151, 4294901760
        %v4631 = vsub.f32 %v4151, %v4630
        %4632 = vmatmul.f32.gmra.mxu0 %v4631
        %v4633 = vpop.f32.mrf.mxu0
        %v4634 = vadd.f32 %v4586, %v4633
        %v4635 = vand.u32 %v4153, 4294901760
        %v4636 = vsub.f32 %v4153, %v4635
        %4637 = vmatmul.f32.gmra.mxu0 %v4636
        %v4638 = vpop.f32.mrf.mxu0
        %v4639 = vadd.f32 %v4590, %v4638
        %4640 = vdwg.mxu0
        %4641 = vmatpush.msra.mxu0 0.0
        %4642 = vmatpush.msra.mxu0 0.0
        %4643 = vmatpush.msra.mxu0 0.0
        %4644 = vmatpush.msra.mxu0 0.0
        %4645 = vmatpush.msra.mxu0 0.0
        %v4646 = vand.u32 %v4159, 4294901760
        %4647 = vmatpush.msra.mxu0 %v4646
        %v4648 = vand.u32 %v3494, 4294901760
        %4649 = vmatpush.msra.mxu0 %v4648
        %v4650 = vand.u32 %v3492, 4294901760
        %4651 = vmatpush.msra.mxu0 %v4650
        %v4652 = vand.u32 %v3490, 4294901760
        %4653 = vmatpush.msra.mxu0 %v4652
        %v4654 = vand.u32 %v3488, 4294901760
        %4655 = vmatpush.msra.mxu0 %v4654
        %v4656 = vand.u32 %v3486, 4294901760
        %4657 = vmatpush.msra.mxu0 %v4656
        %v4658 = vand.u32 %v3484, 4294901760
        %4659 = vmatpush.msra.mxu0 %v4658
        %v4660 = vand.u32 %v3482, 4294901760
        %4661 = vmatpush.msra.mxu0 %v4660
        %v4662 = vand.u32 %v3480, 4294901760
        %4663 = vmatpush.msra.mxu0 %v4662
        %v4664 = vand.u32 %v3478, 4294901760
        %4665 = vmatpush.msra.mxu0 %v4664
        %v4666 = vand.u32 %v3476, 4294901760
        %4667 = vmatpush.msra.mxu0 %v4666
        %v4668 = vand.u32 %v4151, 4294901760
        %v4669 = vsub.f32 %v4151, %v4668
        %v4670 = vand.u32 %v4669, 4294901760
        %4671 = vmatmul.f32.gmra.mxu0 %v4670
        %v4672 = vpop.f32.mrf.mxu0
        %v4673 = vadd.f32 %v4634, %v4672
        %v4674 = vand.u32 %v4153, 4294901760
        %v4675 = vsub.f32 %v4153, %v4674
        %v4676 = vand.u32 %v4675, 4294901760
        %4677 = vmatmul.f32.gmra.mxu0 %v4676
        %v4678 = vpop.f32.mrf.mxu0
        %v4679 = vadd.f32 %v4639, %v4678
        %4680 = vdwg.mxu0
        %4681 = vmatpush.msra.mxu0 0.0
        %4682 = vmatpush.msra.mxu0 0.0
        %4683 = vmatpush.msra.mxu0 0.0
        %4684 = vmatpush.msra.mxu0 0.0
        %4685 = vmatpush.msra.mxu0 0.0
        %v4686 = vand.u32 %v4159, 4294901760
        %v4687 = vsub.f32 %v4159, %v4686
        %v4688 = vand.u32 %v4687, 4294901760
        %4689 = vmatpush.msra.mxu0 %v4688
        %v4690 = vand.u32 %v3494, 4294901760
        %v4691 = vsub.f32 %v3494, %v4690
        %v4692 = vand.u32 %v4691, 4294901760
        %4693 = vmatpush.msra.mxu0 %v4692
        %v4694 = vand.u32 %v3492, 4294901760
        %v4695 = vsub.f32 %v3492, %v4694
        %v4696 = vand.u32 %v4695, 4294901760
        %4697 = vmatpush.msra.mxu0 %v4696
        %v4698 = vand.u32 %v3490, 4294901760
        %v4699 = vsub.f32 %v3490, %v4698
        %v4700 = vand.u32 %v4699, 4294901760
        %4701 = vmatpush.msra.mxu0 %v4700
        %v4702 = vand.u32 %v3488, 4294901760
        %v4703 = vsub.f32 %v3488, %v4702
        %v4704 = vand.u32 %v4703, 4294901760
        %4705 = vmatpush.msra.mxu0 %v4704
        %v4706 = vand.u32 %v3486, 4294901760
        %v4707 = vsub.f32 %v3486, %v4706
        %v4708 = vand.u32 %v4707, 4294901760
        %4709 = vmatpush.msra.mxu0 %v4708
        %v4710 = vand.u32 %v3484, 4294901760
        %v4711 = vsub.f32 %v3484, %v4710
        %v4712 = vand.u32 %v4711, 4294901760
        %4713 = vmatpush.msra.mxu0 %v4712
        %v4714 = vand.u32 %v3482, 4294901760
        %v4715 = vsub.f32 %v3482, %v4714
        %v4716 = vand.u32 %v4715, 4294901760
        %4717 = vmatpush.msra.mxu0 %v4716
        %v4718 = vand.u32 %v3480, 4294901760
        %v4719 = vsub.f32 %v3480, %v4718
        %v4720 = vand.u32 %v4719, 4294901760
        %4721 = vmatpush.msra.mxu0 %v4720
        %v4722 = vand.u32 %v3478, 4294901760
        %v4723 = vsub.f32 %v3478, %v4722
        %v4724 = vand.u32 %v4723, 4294901760
        %4725 = vmatpush.msra.mxu0 %v4724
        %v4726 = vand.u32 %v3476, 4294901760
        %v4727 = vsub.f32 %v3476, %v4726
        %v4728 = vand.u32 %v4727, 4294901760
        %4729 = vmatpush.msra.mxu0 %v4728
        %v4730 = vand.u32 %v4151, 4294901760
        %4731 = vmatmul.f32.gmra.mxu0 %v4730
        %v4732 = vpop.f32.mrf.mxu0
        %v4733 = vadd.f32 %v4673, %v4732
        %v4734 = vand.u32 %v4153, 4294901760
        %4735 = vmatmul.f32.gmra.mxu0 %v4734
        %v4736 = vpop.f32.mrf.mxu0
        %v4737 = vadd.f32 %v4679, %v4736
        %4738 = vdwg.mxu0
        %4739 = vmatpush.msra.mxu0 0.0
        %4740 = vmatpush.msra.mxu0 0.0
        %4741 = vmatpush.msra.mxu0 0.0
        %4742 = vmatpush.msra.mxu0 0.0
        %4743 = vmatpush.msra.mxu0 0.0
        %v4744 = vand.u32 %v4159, 4294901760
        %4745 = vmatpush.msra.mxu0 %v4744
        %v4746 = vand.u32 %v3494, 4294901760
        %4747 = vmatpush.msra.mxu0 %v4746
        %v4748 = vand.u32 %v3492, 4294901760
        %4749 = vmatpush.msra.mxu0 %v4748
        %v4750 = vand.u32 %v3490, 4294901760
        %4751 = vmatpush.msra.mxu0 %v4750
        %v4752 = vand.u32 %v3488, 4294901760
        %4753 = vmatpush.msra.mxu0 %v4752
        %v4754 = vand.u32 %v3486, 4294901760
        %4755 = vmatpush.msra.mxu0 %v4754
        %v4756 = vand.u32 %v3484, 4294901760
        %4757 = vmatpush.msra.mxu0 %v4756
        %v4758 = vand.u32 %v3482, 4294901760
        %4759 = vmatpush.msra.mxu0 %v4758
        %v4760 = vand.u32 %v3480, 4294901760
        %4761 = vmatpush.msra.mxu0 %v4760
        %v4762 = vand.u32 %v3478, 4294901760
        %4763 = vmatpush.msra.mxu0 %v4762
        %v4764 = vand.u32 %v3476, 4294901760
        %4765 = vmatpush.msra.mxu0 %v4764
        %v4766 = vand.u32 %v4151, 4294901760
        %4767 = vmatmul.f32.gmra.mxu0 %v4766
        %v4768 = vpop.f32.mrf.mxu0
        %v4769 = vadd.f32 %v4733, %v4768
        %v4770 = vand.u32 %v4153, 4294901760
        %4771 = vmatmul.f32.gmra.mxu0 %v4770
        %v4772 = vpop.f32.mrf.mxu0
        %v4773 = vadd.f32 %v4737, %v4772
        %4774 = vdwg.mxu0
        %s4775 = scalar_lea.vmem [#allocation5], 352
        %v4776 = vld [vmem:[%s4775] sm:$0xff]
        %v4777 = vld [vmem:[%s4775 + $0x8] sm:$0xff]
        %v4778 = vld [vmem:[%s4775 + $0x10] sm:$0xff]
        %v4779 = vld [vmem:[%s4775 + $0x18] sm:$0xff]
        %v4780 = vld [vmem:[%s4775 + $0x20] sm:$0xff]
        %v4781 = vld [vmem:[%s4775 + $0x28] sm:$0xff]
        %v4782 = vld [vmem:[%s4775 + $0x30] sm:$0xff]
        %v4783 = vld [vmem:[%s4775 + $0x38] sm:$0xff]
        %v4784 = vld [vmem:[%s4775 + $0x40] sm:$0xff]
        %v4785 = vld [vmem:[%s4775 + $0x48] sm:$0xff]
        %v4786 = vld [vmem:[%s4775 + $0x50] sm:$0xff]
        %v4787 = vld [vmem:[%s4775 + $0x58] sm:$0xff]
        %v4788 = vld [vmem:[%s4775 + $0x60] sm:$0xff]
        %v4789 = vld [vmem:[%s4775 + $0x68] sm:$0xff]
        %v4790 = vld [vmem:[%s4775 + $0x70] sm:$0xff]
        %v4791 = vld [vmem:[%s4775 + $0x78] sm:$0xff]
        %v4792 = vld [vmem:[%s4775 + $0x80] sm:$0xff]
        %v4793 = vld [vmem:[%s4775 + $0x88] sm:$0xff]
        %v4794 = vld [vmem:[%s4775 + $0x90] sm:$0xff]
        %v4795 = vld [vmem:[%s4775 + $0x98] sm:$0xff]
        %v4796 = vld [vmem:[%s4775 + $0xa0] sm:$0xf]
        %v4797 = vld [vmem:[%s4775 + $0xa8] sm:$0xf]
        %v4798 = vrot.slane %v3469, 2
        %v4799 = vrot.slane %v3473, 2
        %v4800 = vsel %vm584, %v4798, %v4799
        %v4801 = vsel %vm3525, %v4800, 0
        %v4803 = vsel %vm3525, %v4799, 0
        %v4806 = vsel %vm3530, %v4796, 0
        %v4809 = vsel %vm3530, %v4797, 0
        %4811 = vmatpush.msra.mxu0 0.0
        %4812 = vmatpush.msra.mxu0 0.0
        %4813 = vmatpush.msra.mxu0 0.0
        %4814 = vmatpush.msra.mxu0 0.0
        %4815 = vmatpush.msra.mxu0 0.0
        %v4816 = vand.u32 %v4806, 4294901760
        %4817 = vmatpush.msra.mxu0 %v4816
        %v4818 = vand.u32 %v4794, 4294901760
        %4819 = vmatpush.msra.mxu0 %v4818
        %v4820 = vand.u32 %v4792, 4294901760
        %4821 = vmatpush.msra.mxu0 %v4820
        %v4822 = vand.u32 %v4790, 4294901760
        %4823 = vmatpush.msra.mxu0 %v4822
        %v4824 = vand.u32 %v4788, 4294901760
        %4825 = vmatpush.msra.mxu0 %v4824
        %v4826 = vand.u32 %v4786, 4294901760
        %4827 = vmatpush.msra.mxu0 %v4826
        %v4828 = vand.u32 %v4784, 4294901760
        %4829 = vmatpush.msra.mxu0 %v4828
        %v4830 = vand.u32 %v4782, 4294901760
        %4831 = vmatpush.msra.mxu0 %v4830
        %v4832 = vand.u32 %v4780, 4294901760
        %4833 = vmatpush.msra.mxu0 %v4832
        %v4834 = vand.u32 %v4778, 4294901760
        %4835 = vmatpush.msra.mxu0 %v4834
        %v4836 = vand.u32 %v4776, 4294901760
        %4837 = vmatpush.msra.mxu0 %v4836
        %v4838 = vand.u32 %v4801, 4294901760
        %v4839 = vsub.f32 %v4801, %v4838
        %v4840 = vand.u32 %v4839, 4294901760
        %v4841 = vsub.f32 %v4839, %v4840
        %v4842 = vand.u32 %v4841, 4294901760
        %4843 = vmatmul.f32.gmra.mxu0 %v4842
        %v4844 = vpop.f32.mrf.mxu0
        %v4845 = vadd.f32 0.0, %v4844
        %v4846 = vand.u32 %v4803, 4294901760
        %v4847 = vsub.f32 %v4803, %v4846
        %v4848 = vand.u32 %v4847, 4294901760
        %v4849 = vsub.f32 %v4847, %v4848
        %v4850 = vand.u32 %v4849, 4294901760
        %4851 = vmatmul.f32.gmra.mxu0 %v4850
        %v4852 = vpop.f32.mrf.mxu0
        %v4853 = vadd.f32 0.0, %v4852
        %4854 = vdwg.mxu0
        %4855 = vmatpush.msra.mxu0 0.0
        %4856 = vmatpush.msra.mxu0 0.0
        %4857 = vmatpush.msra.mxu0 0.0
        %4858 = vmatpush.msra.mxu0 0.0
        %4859 = vmatpush.msra.mxu0 0.0
        %v4860 = vand.u32 %v4806, 4294901760
        %v4861 = vsub.f32 %v4806, %v4860
        %v4862 = vand.u32 %v4861, 4294901760
        %v4863 = vsub.f32 %v4861, %v4862
        %v4864 = vand.u32 %v4863, 4294901760
        %4865 = vmatpush.msra.mxu0 %v4864
        %v4866 = vand.u32 %v4794, 4294901760
        %v4867 = vsub.f32 %v4794, %v4866
        %v4868 = vand.u32 %v4867, 4294901760
        %v4869 = vsub.f32 %v4867, %v4868
        %v4870 = vand.u32 %v4869, 4294901760
        %4871 = vmatpush.msra.mxu0 %v4870
        %v4872 = vand.u32 %v4792, 4294901760
        %v4873 = vsub.f32 %v4792, %v4872
        %v4874 = vand.u32 %v4873, 4294901760
        %v4875 = vsub.f32 %v4873, %v4874
        %v4876 = vand.u32 %v4875, 4294901760
        %4877 = vmatpush.msra.mxu0 %v4876
        %v4878 = vand.u32 %v4790, 4294901760
        %v4879 = vsub.f32 %v4790, %v4878
        %v4880 = vand.u32 %v4879, 4294901760
        %v4881 = vsub.f32 %v4879, %v4880
        %v4882 = vand.u32 %v4881, 4294901760
        %4883 = vmatpush.msra.mxu0 %v4882
        %v4884 = vand.u32 %v4788, 4294901760
        %v4885 = vsub.f32 %v4788, %v4884
        %v4886 = vand.u32 %v4885, 4294901760
        %v4887 = vsub.f32 %v4885, %v4886
        %v4888 = vand.u32 %v4887, 4294901760
        %4889 = vmatpush.msra.mxu0 %v4888
        %v4890 = vand.u32 %v4786, 4294901760
        %v4891 = vsub.f32 %v4786, %v4890
        %v4892 = vand.u32 %v4891, 4294901760
        %v4893 = vsub.f32 %v4891, %v4892
        %v4894 = vand.u32 %v4893, 4294901760
        %4895 = vmatpush.msra.mxu0 %v4894
        %v4896 = vand.u32 %v4784, 4294901760
        %v4897 = vsub.f32 %v4784, %v4896
        %v4898 = vand.u32 %v4897, 4294901760
        %v4899 = vsub.f32 %v4897, %v4898
        %v4900 = vand.u32 %v4899, 4294901760
        %4901 = vmatpush.msra.mxu0 %v4900
        %v4902 = vand.u32 %v4782, 4294901760
        %v4903 = vsub.f32 %v4782, %v4902
        %v4904 = vand.u32 %v4903, 4294901760
        %v4905 = vsub.f32 %v4903, %v4904
        %v4906 = vand.u32 %v4905, 4294901760
        %4907 = vmatpush.msra.mxu0 %v4906
        %v4908 = vand.u32 %v4780, 4294901760
        %v4909 = vsub.f32 %v4780, %v4908
        %v4910 = vand.u32 %v4909, 4294901760
        %v4911 = vsub.f32 %v4909, %v4910
        %v4912 = vand.u32 %v4911, 4294901760
        %4913 = vmatpush.msra.mxu0 %v4912
        %v4914 = vand.u32 %v4778, 4294901760
        %v4915 = vsub.f32 %v4778, %v4914
        %v4916 = vand.u32 %v4915, 4294901760
        %v4917 = vsub.f32 %v4915, %v4916
        %v4918 = vand.u32 %v4917, 4294901760
        %4919 = vmatpush.msra.mxu0 %v4918
        %v4920 = vand.u32 %v4776, 4294901760
        %v4921 = vsub.f32 %v4776, %v4920
        %v4922 = vand.u32 %v4921, 4294901760
        %v4923 = vsub.f32 %v4921, %v4922
        %v4924 = vand.u32 %v4923, 4294901760
        %4925 = vmatpush.msra.mxu0 %v4924
        %v4926 = vand.u32 %v4801, 4294901760
        %4927 = vmatmul.f32.gmra.mxu0 %v4926
        %v4928 = vpop.f32.mrf.mxu0
        %v4929 = vadd.f32 %v4845, %v4928
        %v4930 = vand.u32 %v4803, 4294901760
        %4931 = vmatmul.f32.gmra.mxu0 %v4930
        %v4932 = vpop.f32.mrf.mxu0
        %v4933 = vadd.f32 %v4853, %v4932
        %4934 = vdwg.mxu0
        %4935 = vmatpush.msra.mxu0 0.0
        %4936 = vmatpush.msra.mxu0 0.0
        %4937 = vmatpush.msra.mxu0 0.0
        %4938 = vmatpush.msra.mxu0 0.0
        %4939 = vmatpush.msra.mxu0 0.0
        %v4940 = vand.u32 %v4806, 4294901760
        %v4941 = vsub.f32 %v4806, %v4940
        %4942 = vmatpush.msra.mxu0 %v4941
        %v4943 = vand.u32 %v4794, 4294901760
        %v4944 = vsub.f32 %v4794, %v4943
        %4945 = vmatpush.msra.mxu0 %v4944
        %v4946 = vand.u32 %v4792, 4294901760
        %v4947 = vsub.f32 %v4792, %v4946
        %4948 = vmatpush.msra.mxu0 %v4947
        %v4949 = vand.u32 %v4790, 4294901760
        %v4950 = vsub.f32 %v4790, %v4949
        %4951 = vmatpush.msra.mxu0 %v4950
        %v4952 = vand.u32 %v4788, 4294901760
        %v4953 = vsub.f32 %v4788, %v4952
        %4954 = vmatpush.msra.mxu0 %v4953
        %v4955 = vand.u32 %v4786, 4294901760
        %v4956 = vsub.f32 %v4786, %v4955
        %4957 = vmatpush.msra.mxu0 %v4956
        %v4958 = vand.u32 %v4784, 4294901760
        %v4959 = vsub.f32 %v4784, %v4958
        %4960 = vmatpush.msra.mxu0 %v4959
        %v4961 = vand.u32 %v4782, 4294901760
        %v4962 = vsub.f32 %v4782, %v4961
        %4963 = vmatpush.msra.mxu0 %v4962
        %v4964 = vand.u32 %v4780, 4294901760
        %v4965 = vsub.f32 %v4780, %v4964
        %4966 = vmatpush.msra.mxu0 %v4965
        %v4967 = vand.u32 %v4778, 4294901760
        %v4968 = vsub.f32 %v4778, %v4967
        %4969 = vmatpush.msra.mxu0 %v4968
        %v4970 = vand.u32 %v4776, 4294901760
        %v4971 = vsub.f32 %v4776, %v4970
        %4972 = vmatpush.msra.mxu0 %v4971
        %v4973 = vand.u32 %v4801, 4294901760
        %v4974 = vsub.f32 %v4801, %v4973
        %4975 = vmatmul.f32.gmra.mxu0 %v4974
        %v4976 = vpop.f32.mrf.mxu0
        %v4977 = vadd.f32 %v4929, %v4976
        %v4978 = vand.u32 %v4803, 4294901760
        %v4979 = vsub.f32 %v4803, %v4978
        %4980 = vmatmul.f32.gmra.mxu0 %v4979
        %v4981 = vpop.f32.mrf.mxu0
        %v4982 = vadd.f32 %v4933, %v4981
        %4983 = vdwg.mxu0
        %4984 = vmatpush.msra.mxu0 0.0
        %4985 = vmatpush.msra.mxu0 0.0
        %4986 = vmatpush.msra.mxu0 0.0
        %4987 = vmatpush.msra.mxu0 0.0
        %4988 = vmatpush.msra.mxu0 0.0
        %v4989 = vand.u32 %v4806, 4294901760
        %4990 = vmatpush.msra.mxu0 %v4989
        %v4991 = vand.u32 %v4794, 4294901760
        %4992 = vmatpush.msra.mxu0 %v4991
        %v4993 = vand.u32 %v4792, 4294901760
        %4994 = vmatpush.msra.mxu0 %v4993
        %v4995 = vand.u32 %v4790, 4294901760
        %4996 = vmatpush.msra.mxu0 %v4995
        %v4997 = vand.u32 %v4788, 4294901760
        %4998 = vmatpush.msra.mxu0 %v4997
        %v4999 = vand.u32 %v4786, 4294901760
        %5000 = vmatpush.msra.mxu0 %v4999
        %v5001 = vand.u32 %v4784, 4294901760
        %5002 = vmatpush.msra.mxu0 %v5001
        %v5003 = vand.u32 %v4782, 4294901760
        %5004 = vmatpush.msra.mxu0 %v5003
        %v5005 = vand.u32 %v4780, 4294901760
        %5006 = vmatpush.msra.mxu0 %v5005
        %v5007 = vand.u32 %v4778, 4294901760
        %5008 = vmatpush.msra.mxu0 %v5007
        %v5009 = vand.u32 %v4776, 4294901760
        %5010 = vmatpush.msra.mxu0 %v5009
        %v5011 = vand.u32 %v4801, 4294901760
        %v5012 = vsub.f32 %v4801, %v5011
        %v5013 = vand.u32 %v5012, 4294901760
        %5014 = vmatmul.f32.gmra.mxu0 %v5013
        %v5015 = vpop.f32.mrf.mxu0
        %v5016 = vadd.f32 %v4977, %v5015
        %v5017 = vand.u32 %v4803, 4294901760
        %v5018 = vsub.f32 %v4803, %v5017
        %v5019 = vand.u32 %v5018, 4294901760
        %5020 = vmatmul.f32.gmra.mxu0 %v5019
        %v5021 = vpop.f32.mrf.mxu0
        %v5022 = vadd.f32 %v4982, %v5021
        %5023 = vdwg.mxu0
        %5024 = vmatpush.msra.mxu0 0.0
        %5025 = vmatpush.msra.mxu0 0.0
        %5026 = vmatpush.msra.mxu0 0.0
        %5027 = vmatpush.msra.mxu0 0.0
        %5028 = vmatpush.msra.mxu0 0.0
        %v5029 = vand.u32 %v4806, 4294901760
        %v5030 = vsub.f32 %v4806, %v5029
        %v5031 = vand.u32 %v5030, 4294901760
        %5032 = vmatpush.msra.mxu0 %v5031
        %v5033 = vand.u32 %v4794, 4294901760
        %v5034 = vsub.f32 %v4794, %v5033
        %v5035 = vand.u32 %v5034, 4294901760
        %5036 = vmatpush.msra.mxu0 %v5035
        %v5037 = vand.u32 %v4792, 4294901760
        %v5038 = vsub.f32 %v4792, %v5037
        %v5039 = vand.u32 %v5038, 4294901760
        %5040 = vmatpush.msra.mxu0 %v5039
        %v5041 = vand.u32 %v4790, 4294901760
        %v5042 = vsub.f32 %v4790, %v5041
        %v5043 = vand.u32 %v5042, 4294901760
        %5044 = vmatpush.msra.mxu0 %v5043
        %v5045 = vand.u32 %v4788, 4294901760
        %v5046 = vsub.f32 %v4788, %v5045
        %v5047 = vand.u32 %v5046, 4294901760
        %5048 = vmatpush.msra.mxu0 %v5047
        %v5049 = vand.u32 %v4786, 4294901760
        %v5050 = vsub.f32 %v4786, %v5049
        %v5051 = vand.u32 %v5050, 4294901760
        %5052 = vmatpush.msra.mxu0 %v5051
        %v5053 = vand.u32 %v4784, 4294901760
        %v5054 = vsub.f32 %v4784, %v5053
        %v5055 = vand.u32 %v5054, 4294901760
        %5056 = vmatpush.msra.mxu0 %v5055
        %v5057 = vand.u32 %v4782, 4294901760
        %v5058 = vsub.f32 %v4782, %v5057
        %v5059 = vand.u32 %v5058, 4294901760
        %5060 = vmatpush.msra.mxu0 %v5059
        %v5061 = vand.u32 %v4780, 4294901760
        %v5062 = vsub.f32 %v4780, %v5061
        %v5063 = vand.u32 %v5062, 4294901760
        %5064 = vmatpush.msra.mxu0 %v5063
        %v5065 = vand.u32 %v4778, 4294901760
        %v5066 = vsub.f32 %v4778, %v5065
        %v5067 = vand.u32 %v5066, 4294901760
        %5068 = vmatpush.msra.mxu0 %v5067
        %v5069 = vand.u32 %v4776, 4294901760
        %v5070 = vsub.f32 %v4776, %v5069
        %v5071 = vand.u32 %v5070, 4294901760
        %5072 = vmatpush.msra.mxu0 %v5071
        %v5073 = vand.u32 %v4801, 4294901760
        %5074 = vmatmul.f32.gmra.mxu0 %v5073
        %v5075 = vpop.f32.mrf.mxu0
        %v5076 = vadd.f32 %v5016, %v5075
        %v5077 = vand.u32 %v4803, 4294901760
        %5078 = vmatmul.f32.gmra.mxu0 %v5077
        %v5079 = vpop.f32.mrf.mxu0
        %v5080 = vadd.f32 %v5022, %v5079
        %5081 = vdwg.mxu0
        %5082 = vmatpush.msra.mxu0 0.0
        %5083 = vmatpush.msra.mxu0 0.0
        %5084 = vmatpush.msra.mxu0 0.0
        %5085 = vmatpush.msra.mxu0 0.0
        %5086 = vmatpush.msra.mxu0 0.0
        %v5087 = vand.u32 %v4806, 4294901760
        %5088 = vmatpush.msra.mxu0 %v5087
        %v5089 = vand.u32 %v4794, 4294901760
        %5090 = vmatpush.msra.mxu0 %v5089
        %v5091 = vand.u32 %v4792, 4294901760
        %5092 = vmatpush.msra.mxu0 %v5091
        %v5093 = vand.u32 %v4790, 4294901760
        %5094 = vmatpush.msra.mxu0 %v5093
        %v5095 = vand.u32 %v4788, 4294901760
        %5096 = vmatpush.msra.mxu0 %v5095
        %v5097 = vand.u32 %v4786, 4294901760
        %5098 = vmatpush.msra.mxu0 %v5097
        %v5099 = vand.u32 %v4784, 4294901760
        %5100 = vmatpush.msra.mxu0 %v5099
        %v5101 = vand.u32 %v4782, 4294901760
        %5102 = vmatpush.msra.mxu0 %v5101
        %v5103 = vand.u32 %v4780, 4294901760
        %5104 = vmatpush.msra.mxu0 %v5103
        %v5105 = vand.u32 %v4778, 4294901760
        %5106 = vmatpush.msra.mxu0 %v5105
        %v5107 = vand.u32 %v4776, 4294901760
        %5108 = vmatpush.msra.mxu0 %v5107
        %v5109 = vand.u32 %v4801, 4294901760
        %5110 = vmatmul.f32.gmra.mxu0 %v5109
        %v5111 = vpop.f32.mrf.mxu0
        %v5112 = vadd.f32 %v5076, %v5111
        %v5113 = vand.u32 %v4803, 4294901760
        %5114 = vmatmul.f32.gmra.mxu0 %v5113
        %v5115 = vpop.f32.mrf.mxu0
        %v5116 = vadd.f32 %v5080, %v5115
        %5117 = vdwg.mxu0
        %5118 = vmatpush.msra.mxu0 0.0
        %5119 = vmatpush.msra.mxu0 0.0
        %5120 = vmatpush.msra.mxu0 0.0
        %5121 = vmatpush.msra.mxu0 0.0
        %5122 = vmatpush.msra.mxu0 0.0
        %v5123 = vand.u32 %v4809, 4294901760
        %5124 = vmatpush.msra.mxu0 %v5123
        %v5125 = vand.u32 %v4795, 4294901760
        %5126 = vmatpush.msra.mxu0 %v5125
        %v5127 = vand.u32 %v4793, 4294901760
        %5128 = vmatpush.msra.mxu0 %v5127
        %v5129 = vand.u32 %v4791, 4294901760
        %5130 = vmatpush.msra.mxu0 %v5129
        %v5131 = vand.u32 %v4789, 4294901760
        %5132 = vmatpush.msra.mxu0 %v5131
        %v5133 = vand.u32 %v4787, 4294901760
        %5134 = vmatpush.msra.mxu0 %v5133
        %v5135 = vand.u32 %v4785, 4294901760
        %5136 = vmatpush.msra.mxu0 %v5135
        %v5137 = vand.u32 %v4783, 4294901760
        %5138 = vmatpush.msra.mxu0 %v5137
        %v5139 = vand.u32 %v4781, 4294901760
        %5140 = vmatpush.msra.mxu0 %v5139
        %v5141 = vand.u32 %v4779, 4294901760
        %5142 = vmatpush.msra.mxu0 %v5141
        %v5143 = vand.u32 %v4777, 4294901760
        %5144 = vmatpush.msra.mxu0 %v5143
        %v5145 = vand.u32 %v4801, 4294901760
        %v5146 = vsub.f32 %v4801, %v5145
        %v5147 = vand.u32 %v5146, 4294901760
        %v5148 = vsub.f32 %v5146, %v5147
        %v5149 = vand.u32 %v5148, 4294901760
        %5150 = vmatmul.f32.gmra.mxu0 %v5149
        %v5151 = vpop.f32.mrf.mxu0
        %v5152 = vadd.f32 0.0, %v5151
        %v5153 = vand.u32 %v4803, 4294901760
        %v5154 = vsub.f32 %v4803, %v5153
        %v5155 = vand.u32 %v5154, 4294901760
        %v5156 = vsub.f32 %v5154, %v5155
        %v5157 = vand.u32 %v5156, 4294901760
        %5158 = vmatmul.f32.gmra.mxu0 %v5157
        %v5159 = vpop.f32.mrf.mxu0
        %v5160 = vadd.f32 0.0, %v5159
        %5161 = vdwg.mxu0
        %5162 = vmatpush.msra.mxu0 0.0
        %5163 = vmatpush.msra.mxu0 0.0
        %5164 = vmatpush.msra.mxu0 0.0
        %5165 = vmatpush.msra.mxu0 0.0
        %5166 = vmatpush.msra.mxu0 0.0
        %v5167 = vand.u32 %v4809, 4294901760
        %v5168 = vsub.f32 %v4809, %v5167
        %v5169 = vand.u32 %v5168, 4294901760
        %v5170 = vsub.f32 %v5168, %v5169
        %v5171 = vand.u32 %v5170, 4294901760
        %5172 = vmatpush.msra.mxu0 %v5171
        %v5173 = vand.u32 %v4795, 4294901760
        %v5174 = vsub.f32 %v4795, %v5173
        %v5175 = vand.u32 %v5174, 4294901760
        %v5176 = vsub.f32 %v5174, %v5175
        %v5177 = vand.u32 %v5176, 4294901760
        %5178 = vmatpush.msra.mxu0 %v5177
        %v5179 = vand.u32 %v4793, 4294901760
        %v5180 = vsub.f32 %v4793, %v5179
        %v5181 = vand.u32 %v5180, 4294901760
        %v5182 = vsub.f32 %v5180, %v5181
        %v5183 = vand.u32 %v5182, 4294901760
        %5184 = vmatpush.msra.mxu0 %v5183
        %v5185 = vand.u32 %v4791, 4294901760
        %v5186 = vsub.f32 %v4791, %v5185
        %v5187 = vand.u32 %v5186, 4294901760
        %v5188 = vsub.f32 %v5186, %v5187
        %v5189 = vand.u32 %v5188, 4294901760
        %5190 = vmatpush.msra.mxu0 %v5189
        %v5191 = vand.u32 %v4789, 4294901760
        %v5192 = vsub.f32 %v4789, %v5191
        %v5193 = vand.u32 %v5192, 4294901760
        %v5194 = vsub.f32 %v5192, %v5193
        %v5195 = vand.u32 %v5194, 4294901760
        %5196 = vmatpush.msra.mxu0 %v5195
        %v5197 = vand.u32 %v4787, 4294901760
        %v5198 = vsub.f32 %v4787, %v5197
        %v5199 = vand.u32 %v5198, 4294901760
        %v5200 = vsub.f32 %v5198, %v5199
        %v5201 = vand.u32 %v5200, 4294901760
        %5202 = vmatpush.msra.mxu0 %v5201
        %v5203 = vand.u32 %v4785, 4294901760
        %v5204 = vsub.f32 %v4785, %v5203
        %v5205 = vand.u32 %v5204, 4294901760
        %v5206 = vsub.f32 %v5204, %v5205
        %v5207 = vand.u32 %v5206, 4294901760
        %5208 = vmatpush.msra.mxu0 %v5207
        %v5209 = vand.u32 %v4783, 4294901760
        %v5210 = vsub.f32 %v4783, %v5209
        %v5211 = vand.u32 %v5210, 4294901760
        %v5212 = vsub.f32 %v5210, %v5211
        %v5213 = vand.u32 %v5212, 4294901760
        %5214 = vmatpush.msra.mxu0 %v5213
        %v5215 = vand.u32 %v4781, 4294901760
        %v5216 = vsub.f32 %v4781, %v5215
        %v5217 = vand.u32 %v5216, 4294901760
        %v5218 = vsub.f32 %v5216, %v5217
        %v5219 = vand.u32 %v5218, 4294901760
        %5220 = vmatpush.msra.mxu0 %v5219
        %v5221 = vand.u32 %v4779, 4294901760
        %v5222 = vsub.f32 %v4779, %v5221
        %v5223 = vand.u32 %v5222, 4294901760
        %v5224 = vsub.f32 %v5222, %v5223
        %v5225 = vand.u32 %v5224, 4294901760
        %5226 = vmatpush.msra.mxu0 %v5225
        %v5227 = vand.u32 %v4777, 4294901760
        %v5228 = vsub.f32 %v4777, %v5227
        %v5229 = vand.u32 %v5228, 4294901760
        %v5230 = vsub.f32 %v5228, %v5229
        %v5231 = vand.u32 %v5230, 4294901760
        %5232 = vmatpush.msra.mxu0 %v5231
        %v5233 = vand.u32 %v4801, 4294901760
        %5234 = vmatmul.f32.gmra.mxu0 %v5233
        %v5235 = vpop.f32.mrf.mxu0
        %v5236 = vadd.f32 %v5152, %v5235
        %v5237 = vand.u32 %v4803, 4294901760
        %5238 = vmatmul.f32.gmra.mxu0 %v5237
        %v5239 = vpop.f32.mrf.mxu0
        %v5240 = vadd.f32 %v5160, %v5239
        %5241 = vdwg.mxu0
        %5242 = vmatpush.msra.mxu0 0.0
        %5243 = vmatpush.msra.mxu0 0.0
        %5244 = vmatpush.msra.mxu0 0.0
        %5245 = vmatpush.msra.mxu0 0.0
        %5246 = vmatpush.msra.mxu0 0.0
        %v5247 = vand.u32 %v4809, 4294901760
        %v5248 = vsub.f32 %v4809, %v5247
        %5249 = vmatpush.msra.mxu0 %v5248
        %v5250 = vand.u32 %v4795, 4294901760
        %v5251 = vsub.f32 %v4795, %v5250
        %5252 = vmatpush.msra.mxu0 %v5251
        %v5253 = vand.u32 %v4793, 4294901760
        %v5254 = vsub.f32 %v4793, %v5253
        %5255 = vmatpush.msra.mxu0 %v5254
        %v5256 = vand.u32 %v4791, 4294901760
        %v5257 = vsub.f32 %v4791, %v5256
        %5258 = vmatpush.msra.mxu0 %v5257
        %v5259 = vand.u32 %v4789, 4294901760
        %v5260 = vsub.f32 %v4789, %v5259
        %5261 = vmatpush.msra.mxu0 %v5260
        %v5262 = vand.u32 %v4787, 4294901760
        %v5263 = vsub.f32 %v4787, %v5262
        %5264 = vmatpush.msra.mxu0 %v5263
        %v5265 = vand.u32 %v4785, 4294901760
        %v5266 = vsub.f32 %v4785, %v5265
        %5267 = vmatpush.msra.mxu0 %v5266
        %v5268 = vand.u32 %v4783, 4294901760
        %v5269 = vsub.f32 %v4783, %v5268
        %5270 = vmatpush.msra.mxu0 %v5269
        %v5271 = vand.u32 %v4781, 4294901760
        %v5272 = vsub.f32 %v4781, %v5271
        %5273 = vmatpush.msra.mxu0 %v5272
        %v5274 = vand.u32 %v4779, 4294901760
        %v5275 = vsub.f32 %v4779, %v5274
        %5276 = vmatpush.msra.mxu0 %v5275
        %v5277 = vand.u32 %v4777, 4294901760
        %v5278 = vsub.f32 %v4777, %v5277
        %5279 = vmatpush.msra.mxu0 %v5278
        %v5280 = vand.u32 %v4801, 4294901760
        %v5281 = vsub.f32 %v4801, %v5280
        %5282 = vmatmul.f32.gmra.mxu0 %v5281
        %v5283 = vpop.f32.mrf.mxu0
        %v5284 = vadd.f32 %v5236, %v5283
        %v5285 = vand.u32 %v4803, 4294901760
        %v5286 = vsub.f32 %v4803, %v5285
        %5287 = vmatmul.f32.gmra.mxu0 %v5286
        %v5288 = vpop.f32.mrf.mxu0
        %v5289 = vadd.f32 %v5240, %v5288
        %5290 = vdwg.mxu0
        %5291 = vmatpush.msra.mxu0 0.0
        %5292 = vmatpush.msra.mxu0 0.0
        %5293 = vmatpush.msra.mxu0 0.0
        %5294 = vmatpush.msra.mxu0 0.0
        %5295 = vmatpush.msra.mxu0 0.0
        %v5296 = vand.u32 %v4809, 4294901760
        %5297 = vmatpush.msra.mxu0 %v5296
        %v5298 = vand.u32 %v4795, 4294901760
        %5299 = vmatpush.msra.mxu0 %v5298
        %v5300 = vand.u32 %v4793, 4294901760
        %5301 = vmatpush.msra.mxu0 %v5300
        %v5302 = vand.u32 %v4791, 4294901760
        %5303 = vmatpush.msra.mxu0 %v5302
        %v5304 = vand.u32 %v4789, 4294901760
        %5305 = vmatpush.msra.mxu0 %v5304
        %v5306 = vand.u32 %v4787, 4294901760
        %5307 = vmatpush.msra.mxu0 %v5306
        %v5308 = vand.u32 %v4785, 4294901760
        %5309 = vmatpush.msra.mxu0 %v5308
        %v5310 = vand.u32 %v4783, 4294901760
        %5311 = vmatpush.msra.mxu0 %v5310
        %v5312 = vand.u32 %v4781, 4294901760
        %5313 = vmatpush.msra.mxu0 %v5312
        %v5314 = vand.u32 %v4779, 4294901760
        %5315 = vmatpush.msra.mxu0 %v5314
        %v5316 = vand.u32 %v4777, 4294901760
        %5317 = vmatpush.msra.mxu0 %v5316
        %v5318 = vand.u32 %v4801, 4294901760
        %v5319 = vsub.f32 %v4801, %v5318
        %v5320 = vand.u32 %v5319, 4294901760
        %5321 = vmatmul.f32.gmra.mxu0 %v5320
        %v5322 = vpop.f32.mrf.mxu0
        %v5323 = vadd.f32 %v5284, %v5322
        %v5324 = vand.u32 %v4803, 4294901760
        %v5325 = vsub.f32 %v4803, %v5324
        %v5326 = vand.u32 %v5325, 4294901760
        %5327 = vmatmul.f32.gmra.mxu0 %v5326
        %v5328 = vpop.f32.mrf.mxu0
        %v5329 = vadd.f32 %v5289, %v5328
        %5330 = vdwg.mxu0
        %5331 = vmatpush.msra.mxu0 0.0
        %5332 = vmatpush.msra.mxu0 0.0
        %5333 = vmatpush.msra.mxu0 0.0
        %5334 = vmatpush.msra.mxu0 0.0
        %5335 = vmatpush.msra.mxu0 0.0
        %v5336 = vand.u32 %v4809, 4294901760
        %v5337 = vsub.f32 %v4809, %v5336
        %v5338 = vand.u32 %v5337, 4294901760
        %5339 = vmatpush.msra.mxu0 %v5338
        %v5340 = vand.u32 %v4795, 4294901760
        %v5341 = vsub.f32 %v4795, %v5340
        %v5342 = vand.u32 %v5341, 4294901760
        %5343 = vmatpush.msra.mxu0 %v5342
        %v5344 = vand.u32 %v4793, 4294901760
        %v5345 = vsub.f32 %v4793, %v5344
        %v5346 = vand.u32 %v5345, 4294901760
        %5347 = vmatpush.msra.mxu0 %v5346
        %v5348 = vand.u32 %v4791, 4294901760
        %v5349 = vsub.f32 %v4791, %v5348
        %v5350 = vand.u32 %v5349, 4294901760
        %5351 = vmatpush.msra.mxu0 %v5350
        %v5352 = vand.u32 %v4789, 4294901760
        %v5353 = vsub.f32 %v4789, %v5352
        %v5354 = vand.u32 %v5353, 4294901760
        %5355 = vmatpush.msra.mxu0 %v5354
        %v5356 = vand.u32 %v4787, 4294901760
        %v5357 = vsub.f32 %v4787, %v5356
        %v5358 = vand.u32 %v5357, 4294901760
        %5359 = vmatpush.msra.mxu0 %v5358
        %v5360 = vand.u32 %v4785, 4294901760
        %v5361 = vsub.f32 %v4785, %v5360
        %v5362 = vand.u32 %v5361, 4294901760
        %5363 = vmatpush.msra.mxu0 %v5362
        %v5364 = vand.u32 %v4783, 4294901760
        %v5365 = vsub.f32 %v4783, %v5364
        %v5366 = vand.u32 %v5365, 4294901760
        %5367 = vmatpush.msra.mxu0 %v5366
        %v5368 = vand.u32 %v4781, 4294901760
        %v5369 = vsub.f32 %v4781, %v5368
        %v5370 = vand.u32 %v5369, 4294901760
        %5371 = vmatpush.msra.mxu0 %v5370
        %v5372 = vand.u32 %v4779, 4294901760
        %v5373 = vsub.f32 %v4779, %v5372
        %v5374 = vand.u32 %v5373, 4294901760
        %5375 = vmatpush.msra.mxu0 %v5374
        %v5376 = vand.u32 %v4777, 4294901760
        %v5377 = vsub.f32 %v4777, %v5376
        %v5378 = vand.u32 %v5377, 4294901760
        %5379 = vmatpush.msra.mxu0 %v5378
        %v5380 = vand.u32 %v4801, 4294901760
        %5381 = vmatmul.f32.gmra.mxu0 %v5380
        %v5382 = vpop.f32.mrf.mxu0
        %v5383 = vadd.f32 %v5323, %v5382
        %v5384 = vand.u32 %v4803, 4294901760
        %5385 = vmatmul.f32.gmra.mxu0 %v5384
        %v5386 = vpop.f32.mrf.mxu0
        %v5387 = vadd.f32 %v5329, %v5386
        %5388 = vdwg.mxu0
        %5389 = vmatpush.msra.mxu0 0.0
        %5390 = vmatpush.msra.mxu0 0.0
        %5391 = vmatpush.msra.mxu0 0.0
        %5392 = vmatpush.msra.mxu0 0.0
        %5393 = vmatpush.msra.mxu0 0.0
        %v5394 = vand.u32 %v4809, 4294901760
        %5395 = vmatpush.msra.mxu0 %v5394
        %v5396 = vand.u32 %v4795, 4294901760
        %5397 = vmatpush.msra.mxu0 %v5396
        %v5398 = vand.u32 %v4793, 4294901760
        %5399 = vmatpush.msra.mxu0 %v5398
        %v5400 = vand.u32 %v4791, 4294901760
        %5401 = vmatpush.msra.mxu0 %v5400
        %v5402 = vand.u32 %v4789, 4294901760
        %5403 = vmatpush.msra.mxu0 %v5402
        %v5404 = vand.u32 %v4787, 4294901760
        %5405 = vmatpush.msra.mxu0 %v5404
        %v5406 = vand.u32 %v4785, 4294901760
        %5407 = vmatpush.msra.mxu0 %v5406
        %v5408 = vand.u32 %v4783, 4294901760
        %5409 = vmatpush.msra.mxu0 %v5408
        %v5410 = vand.u32 %v4781, 4294901760
        %5411 = vmatpush.msra.mxu0 %v5410
        %v5412 = vand.u32 %v4779, 4294901760
        %5413 = vmatpush.msra.mxu0 %v5412
        %v5414 = vand.u32 %v4777, 4294901760
        %5415 = vmatpush.msra.mxu0 %v5414
        %v5416 = vand.u32 %v4801, 4294901760
        %5417 = vmatmul.f32.gmra.mxu0 %v5416
        %v5418 = vpop.f32.mrf.mxu0
        %v5419 = vadd.f32 %v5383, %v5418
        %v5420 = vand.u32 %v4803, 4294901760
        %5421 = vmatmul.f32.gmra.mxu0 %v5420
        %v5422 = vpop.f32.mrf.mxu0
        %v5423 = vadd.f32 %v5387, %v5422
        %5424 = vdwg.mxu0
        %v5425 = vadd.f32 %v4462, %v5112
        %v5426 = vadd.f32 %v4769, %v5419
        %v5427 = vadd.f32 %v4466, %v5116
        %v5428 = vadd.f32 %v4773, %v5423
        %v5429 = vld [vmem:[%s6] sm:$0x3]
        %v5431 = vperm.slane %v5429, 0
        %v5432 = vperm.slane %v5429, 1
        %v5435 = vadd.f32 %v5425, %v5431
        %v5436 = vadd.f32 %v5426, %v5432
        %v5437 = vadd.f32 %v5427, %v5431
        %v5438 = vadd.f32 %v5428, %v5432
        %v5439 = vmax.f32 %v5435, 0.0
        %v5440 = vmax.f32 %v5436, 0.0
        %v5441 = vmax.f32 %v5437, 0.0
        %v5442 = vmax.f32 %v5438, 0.0
        %v5447 = vrot.slane %v5439, 1
        %v5448 = vrot.slane %v5441, 1
        %v5449 = vsel %vm567, %v5447, %v5448
        %v5450 = vrot.slane %v5440, 1
        %v5451 = vrot.slane %v5442, 1
        %v5452 = vsel %vm567, %v5450, %v5451
        %v5457 = vmax.f32 %v5439, %v5449
        %v5458 = vmax.f32 %v5440, %v5452
        %v5459 = vmax.f32 %v5441, %v5448
        %v5460 = vmax.f32 %v5442, %v5451
        %v5461 = vld [vmem:[%s7] sm:$0x3f]
        %vm5462 = vcmask 89088
        %v5464 = vsel %vm5462, %v5461, 0
        %v5467 = vsel %vm2380, %v5459, 0
        %v5470 = vsel %vm2380, %v5460, 0
        %5472 = vmatpush.msra.mxu0 0.0
        %5473 = vmatpush.msra.mxu0 0.0
        %5474 = vmatpush.msra.mxu0 0.0
        %5475 = vmatpush.msra.mxu0 0.0
        %5476 = vmatpush.msra.mxu0 0.0
        %5477 = vmatpush.msra.mxu0 0.0
        %5478 = vmatpush.msra.mxu0 0.0
        %5479 = vmatpush.msra.mxu0 0.0
        %5480 = vmatpush.msra.mxu0 0.0
        %5481 = vmatpush.msra.mxu0 0.0
        %5482 = vmatpush.msra.mxu0 0.0
        %5483 = vmatpush.msra.mxu0 0.0
        %5484 = vmatpush.msra.mxu0 0.0
        %5485 = vmatpush.msra.mxu0 0.0
        %v5486 = vand.u32 %v5467, 4294901760
        %5487 = vmatpush.msra.mxu0 %v5486
        %v5488 = vand.u32 %v5457, 4294901760
        %5489 = vmatpush.msra.mxu0 %v5488
        %v5490 = vand.u32 %v5464, 4294901760
        %v5491 = vsub.f32 %v5464, %v5490
        %v5492 = vand.u32 %v5491, 4294901760
        %v5493 = vsub.f32 %v5491, %v5492
        %v5494 = vand.u32 %v5493, 4294901760
        %5495 = vmatmul.f32.gmra.mxu0 %v5494
        %v5496 = vpop.f32.mrf.mxu0
        %v5497 = vadd.f32 0.0, %v5496
        %5498 = vdwg.mxu0
        %5499 = vmatpush.msra.mxu0 0.0
        %5500 = vmatpush.msra.mxu0 0.0
        %5501 = vmatpush.msra.mxu0 0.0
        %5502 = vmatpush.msra.mxu0 0.0
        %5503 = vmatpush.msra.mxu0 0.0
        %5504 = vmatpush.msra.mxu0 0.0
        %5505 = vmatpush.msra.mxu0 0.0
        %5506 = vmatpush.msra.mxu0 0.0
        %5507 = vmatpush.msra.mxu0 0.0
        %5508 = vmatpush.msra.mxu0 0.0
        %5509 = vmatpush.msra.mxu0 0.0
        %5510 = vmatpush.msra.mxu0 0.0
        %5511 = vmatpush.msra.mxu0 0.0
        %5512 = vmatpush.msra.mxu0 0.0
        %v5513 = vand.u32 %v5467, 4294901760
        %v5514 = vsub.f32 %v5467, %v5513
        %v5515 = vand.u32 %v5514, 4294901760
        %v5516 = vsub.f32 %v5514, %v5515
        %v5517 = vand.u32 %v5516, 4294901760
        %5518 = vmatpush.msra.mxu0 %v5517
        %v5519 = vand.u32 %v5457, 4294901760
        %v5520 = vsub.f32 %v5457, %v5519
        %v5521 = vand.u32 %v5520, 4294901760
        %v5522 = vsub.f32 %v5520, %v5521
        %v5523 = vand.u32 %v5522, 4294901760
        %5524 = vmatpush.msra.mxu0 %v5523
        %v5525 = vand.u32 %v5464, 4294901760
        %5526 = vmatmul.f32.gmra.mxu0 %v5525
        %v5527 = vpop.f32.mrf.mxu0
        %v5528 = vadd.f32 %v5497, %v5527
        %5529 = vdwg.mxu0
        %5530 = vmatpush.msra.mxu0 0.0
        %5531 = vmatpush.msra.mxu0 0.0
        %5532 = vmatpush.msra.mxu0 0.0
        %5533 = vmatpush.msra.mxu0 0.0
        %5534 = vmatpush.msra.mxu0 0.0
        %5535 = vmatpush.msra.mxu0 0.0
        %5536 = vmatpush.msra.mxu0 0.0
        %5537 = vmatpush.msra.mxu0 0.0
        %5538 = vmatpush.msra.mxu0 0.0
        %5539 = vmatpush.msra.mxu0 0.0
        %5540 = vmatpush.msra.mxu0 0.0
        %5541 = vmatpush.msra.mxu0 0.0
        %5542 = vmatpush.msra.mxu0 0.0
        %5543 = vmatpush.msra.mxu0 0.0
        %v5544 = vand.u32 %v5467, 4294901760
        %v5545 = vsub.f32 %v5467, %v5544
        %5546 = vmatpush.msra.mxu0 %v5545
        %v5547 = vand.u32 %v5457, 4294901760
        %v5548 = vsub.f32 %v5457, %v5547
        %5549 = vmatpush.msra.mxu0 %v5548
        %v5550 = vand.u32 %v5464, 4294901760
        %v5551 = vsub.f32 %v5464, %v5550
        %5552 = vmatmul.f32.gmra.mxu0 %v5551
        %v5553 = vpop.f32.mrf.mxu0
        %v5554 = vadd.f32 %v5528, %v5553
        %5555 = vdwg.mxu0
        %5556 = vmatpush.msra.mxu0 0.0
        %5557 = vmatpush.msra.mxu0 0.0
        %5558 = vmatpush.msra.mxu0 0.0
        %5559 = vmatpush.msra.mxu0 0.0
        %5560 = vmatpush.msra.mxu0 0.0
        %5561 = vmatpush.msra.mxu0 0.0
        %5562 = vmatpush.msra.mxu0 0.0
        %5563 = vmatpush.msra.mxu0 0.0
        %5564 = vmatpush.msra.mxu0 0.0
        %5565 = vmatpush.msra.mxu0 0.0
        %5566 = vmatpush.msra.mxu0 0.0
        %5567 = vmatpush.msra.mxu0 0.0
        %5568 = vmatpush.msra.mxu0 0.0
        %5569 = vmatpush.msra.mxu0 0.0
        %v5570 = vand.u32 %v5467, 4294901760
        %5571 = vmatpush.msra.mxu0 %v5570
        %v5572 = vand.u32 %v5457, 4294901760
        %5573 = vmatpush.msra.mxu0 %v5572
        %v5574 = vand.u32 %v5464, 4294901760
        %v5575 = vsub.f32 %v5464, %v5574
        %v5576 = vand.u32 %v5575, 4294901760
        %5577 = vmatmul.f32.gmra.mxu0 %v5576
        %v5578 = vpop.f32.mrf.mxu0
        %v5579 = vadd.f32 %v5554, %v5578
        %5580 = vdwg.mxu0
        %5581 = vmatpush.msra.mxu0 0.0
        %5582 = vmatpush.msra.mxu0 0.0
        %5583 = vmatpush.msra.mxu0 0.0
        %5584 = vmatpush.msra.mxu0 0.0
        %5585 = vmatpush.msra.mxu0 0.0
        %5586 = vmatpush.msra.mxu0 0.0
        %5587 = vmatpush.msra.mxu0 0.0
        %5588 = vmatpush.msra.mxu0 0.0
        %5589 = vmatpush.msra.mxu0 0.0
        %5590 = vmatpush.msra.mxu0 0.0
        %5591 = vmatpush.msra.mxu0 0.0
        %5592 = vmatpush.msra.mxu0 0.0
        %5593 = vmatpush.msra.mxu0 0.0
        %5594 = vmatpush.msra.mxu0 0.0
        %v5595 = vand.u32 %v5467, 4294901760
        %v5596 = vsub.f32 %v5467, %v5595
        %v5597 = vand.u32 %v5596, 4294901760
        %5598 = vmatpush.msra.mxu0 %v5597
        %v5599 = vand.u32 %v5457, 4294901760
        %v5600 = vsub.f32 %v5457, %v5599
        %v5601 = vand.u32 %v5600, 4294901760
        %5602 = vmatpush.msra.mxu0 %v5601
        %v5603 = vand.u32 %v5464, 4294901760
        %5604 = vmatmul.f32.gmra.mxu0 %v5603
        %v5605 = vpop.f32.mrf.mxu0
        %v5606 = vadd.f32 %v5579, %v5605
        %5607 = vdwg.mxu0
        %5608 = vmatpush.msra.mxu0 0.0
        %5609 = vmatpush.msra.mxu0 0.0
        %5610 = vmatpush.msra.mxu0 0.0
        %5611 = vmatpush.msra.mxu0 0.0
        %5612 = vmatpush.msra.mxu0 0.0
        %5613 = vmatpush.msra.mxu0 0.0
        %5614 = vmatpush.msra.mxu0 0.0
        %5615 = vmatpush.msra.mxu0 0.0
        %5616 = vmatpush.msra.mxu0 0.0
        %5617 = vmatpush.msra.mxu0 0.0
        %5618 = vmatpush.msra.mxu0 0.0
        %5619 = vmatpush.msra.mxu0 0.0
        %5620 = vmatpush.msra.mxu0 0.0
        %5621 = vmatpush.msra.mxu0 0.0
        %v5622 = vand.u32 %v5467, 4294901760
        %5623 = vmatpush.msra.mxu0 %v5622
        %v5624 = vand.u32 %v5457, 4294901760
        %5625 = vmatpush.msra.mxu0 %v5624
        %v5626 = vand.u32 %v5464, 4294901760
        %5627 = vmatmul.f32.gmra.mxu0 %v5626
        %v5628 = vpop.f32.mrf.mxu0
        %v5629 = vadd.f32 %v5606, %v5628
        %5630 = vdwg.mxu0
        %5631 = vmatpush.msra.mxu0 0.0
        %5632 = vmatpush.msra.mxu0 0.0
        %5633 = vmatpush.msra.mxu0 0.0
        %5634 = vmatpush.msra.mxu0 0.0
        %5635 = vmatpush.msra.mxu0 0.0
        %5636 = vmatpush.msra.mxu0 0.0
        %5637 = vmatpush.msra.mxu0 0.0
        %5638 = vmatpush.msra.mxu0 0.0
        %5639 = vmatpush.msra.mxu0 0.0
        %5640 = vmatpush.msra.mxu0 0.0
        %5641 = vmatpush.msra.mxu0 0.0
        %5642 = vmatpush.msra.mxu0 0.0
        %5643 = vmatpush.msra.mxu0 0.0
        %5644 = vmatpush.msra.mxu0 0.0
        %v5645 = vand.u32 %v5470, 4294901760
        %5646 = vmatpush.msra.mxu0 %v5645
        %v5647 = vand.u32 %v5458, 4294901760
        %5648 = vmatpush.msra.mxu0 %v5647
        %v5649 = vand.u32 %v5464, 4294901760
        %v5650 = vsub.f32 %v5464, %v5649
        %v5651 = vand.u32 %v5650, 4294901760
        %v5652 = vsub.f32 %v5650, %v5651
        %v5653 = vand.u32 %v5652, 4294901760
        %5654 = vmatmul.f32.gmra.mxu0 %v5653
        %v5655 = vpop.f32.mrf.mxu0
        %v5656 = vadd.f32 0.0, %v5655
        %5657 = vdwg.mxu0
        %5658 = vmatpush.msra.mxu0 0.0
        %5659 = vmatpush.msra.mxu0 0.0
        %5660 = vmatpush.msra.mxu0 0.0
        %5661 = vmatpush.msra.mxu0 0.0
        %5662 = vmatpush.msra.mxu0 0.0
        %5663 = vmatpush.msra.mxu0 0.0
        %5664 = vmatpush.msra.mxu0 0.0
        %5665 = vmatpush.msra.mxu0 0.0
        %5666 = vmatpush.msra.mxu0 0.0
        %5667 = vmatpush.msra.mxu0 0.0
        %5668 = vmatpush.msra.mxu0 0.0
        %5669 = vmatpush.msra.mxu0 0.0
        %5670 = vmatpush.msra.mxu0 0.0
        %5671 = vmatpush.msra.mxu0 0.0
        %v5672 = vand.u32 %v5470, 4294901760
        %v5673 = vsub.f32 %v5470, %v5672
        %v5674 = vand.u32 %v5673, 4294901760
        %v5675 = vsub.f32 %v5673, %v5674
        %v5676 = vand.u32 %v5675, 4294901760
        %5677 = vmatpush.msra.mxu0 %v5676
        %v5678 = vand.u32 %v5458, 4294901760
        %v5679 = vsub.f32 %v5458, %v5678
        %v5680 = vand.u32 %v5679, 4294901760
        %v5681 = vsub.f32 %v5679, %v5680
        %v5682 = vand.u32 %v5681, 4294901760
        %5683 = vmatpush.msra.mxu0 %v5682
        %v5684 = vand.u32 %v5464, 4294901760
        %5685 = vmatmul.f32.gmra.mxu0 %v5684
        %v5686 = vpop.f32.mrf.mxu0
        %v5687 = vadd.f32 %v5656, %v5686
        %5688 = vdwg.mxu0
        %5689 = vmatpush.msra.mxu0 0.0
        %5690 = vmatpush.msra.mxu0 0.0
        %5691 = vmatpush.msra.mxu0 0.0
        %5692 = vmatpush.msra.mxu0 0.0
        %5693 = vmatpush.msra.mxu0 0.0
        %5694 = vmatpush.msra.mxu0 0.0
        %5695 = vmatpush.msra.mxu0 0.0
        %5696 = vmatpush.msra.mxu0 0.0
        %5697 = vmatpush.msra.mxu0 0.0
        %5698 = vmatpush.msra.mxu0 0.0
        %5699 = vmatpush.msra.mxu0 0.0
        %5700 = vmatpush.msra.mxu0 0.0
        %5701 = vmatpush.msra.mxu0 0.0
        %5702 = vmatpush.msra.mxu0 0.0
        %v5703 = vand.u32 %v5470, 4294901760
        %v5704 = vsub.f32 %v5470, %v5703
        %5705 = vmatpush.msra.mxu0 %v5704
        %v5706 = vand.u32 %v5458, 4294901760
        %v5707 = vsub.f32 %v5458, %v5706
        %5708 = vmatpush.msra.mxu0 %v5707
        %v5709 = vand.u32 %v5464, 4294901760
        %v5710 = vsub.f32 %v5464, %v5709
        %5711 = vmatmul.f32.gmra.mxu0 %v5710
        %v5712 = vpop.f32.mrf.mxu0
        %v5713 = vadd.f32 %v5687, %v5712
        %5714 = vdwg.mxu0
        %5715 = vmatpush.msra.mxu0 0.0
        %5716 = vmatpush.msra.mxu0 0.0
        %5717 = vmatpush.msra.mxu0 0.0
        %5718 = vmatpush.msra.mxu0 0.0
        %5719 = vmatpush.msra.mxu0 0.0
        %5720 = vmatpush.msra.mxu0 0.0
        %5721 = vmatpush.msra.mxu0 0.0
        %5722 = vmatpush.msra.mxu0 0.0
        %5723 = vmatpush.msra.mxu0 0.0
        %5724 = vmatpush.msra.mxu0 0.0
        %5725 = vmatpush.msra.mxu0 0.0
        %5726 = vmatpush.msra.mxu0 0.0
        %5727 = vmatpush.msra.mxu0 0.0
        %5728 = vmatpush.msra.mxu0 0.0
        %v5729 = vand.u32 %v5470, 4294901760
        %5730 = vmatpush.msra.mxu0 %v5729
        %v5731 = vand.u32 %v5458, 4294901760
        %5732 = vmatpush.msra.mxu0 %v5731
        %v5733 = vand.u32 %v5464, 4294901760
        %v5734 = vsub.f32 %v5464, %v5733
        %v5735 = vand.u32 %v5734, 4294901760
        %5736 = vmatmul.f32.gmra.mxu0 %v5735
        %v5737 = vpop.f32.mrf.mxu0
        %v5738 = vadd.f32 %v5713, %v5737
        %5739 = vdwg.mxu0
        %5740 = vmatpush.msra.mxu0 0.0
        %5741 = vmatpush.msra.mxu0 0.0
        %5742 = vmatpush.msra.mxu0 0.0
        %5743 = vmatpush.msra.mxu0 0.0
        %5744 = vmatpush.msra.mxu0 0.0
        %5745 = vmatpush.msra.mxu0 0.0
        %5746 = vmatpush.msra.mxu0 0.0
        %5747 = vmatpush.msra.mxu0 0.0
        %5748 = vmatpush.msra.mxu0 0.0
        %5749 = vmatpush.msra.mxu0 0.0
        %5750 = vmatpush.msra.mxu0 0.0
        %5751 = vmatpush.msra.mxu0 0.0
        %5752 = vmatpush.msra.mxu0 0.0
        %5753 = vmatpush.msra.mxu0 0.0
        %v5754 = vand.u32 %v5470, 4294901760
        %v5755 = vsub.f32 %v5470, %v5754
        %v5756 = vand.u32 %v5755, 4294901760
        %5757 = vmatpush.msra.mxu0 %v5756
        %v5758 = vand.u32 %v5458, 4294901760
        %v5759 = vsub.f32 %v5458, %v5758
        %v5760 = vand.u32 %v5759, 4294901760
        %5761 = vmatpush.msra.mxu0 %v5760
        %v5762 = vand.u32 %v5464, 4294901760
        %5763 = vmatmul.f32.gmra.mxu0 %v5762
        %v5764 = vpop.f32.mrf.mxu0
        %v5765 = vadd.f32 %v5738, %v5764
        %5766 = vdwg.mxu0
        %5767 = vmatpush.msra.mxu0 0.0
        %5768 = vmatpush.msra.mxu0 0.0
        %5769 = vmatpush.msra.mxu0 0.0
        %5770 = vmatpush.msra.mxu0 0.0
        %5771 = vmatpush.msra.mxu0 0.0
        %5772 = vmatpush.msra.mxu0 0.0
        %5773 = vmatpush.msra.mxu0 0.0
        %5774 = vmatpush.msra.mxu0 0.0
        %5775 = vmatpush.msra.mxu0 0.0
        %5776 = vmatpush.msra.mxu0 0.0
        %5777 = vmatpush.msra.mxu0 0.0
        %5778 = vmatpush.msra.mxu0 0.0
        %5779 = vmatpush.msra.mxu0 0.0
        %5780 = vmatpush.msra.mxu0 0.0
        %v5781 = vand.u32 %v5470, 4294901760
        %5782 = vmatpush.msra.mxu0 %v5781
        %v5783 = vand.u32 %v5458, 4294901760
        %5784 = vmatpush.msra.mxu0 %v5783
        %v5785 = vand.u32 %v5464, 4294901760
        %5786 = vmatmul.f32.gmra.mxu0 %v5785
        %v5787 = vpop.f32.mrf.mxu0
        %v5788 = vadd.f32 %v5765, %v5787
        %5789 = vdwg.mxu0
        %5792 = vrot.lane.b32.xlu0 %v5629, 112
        %v5793 = vpop.permute.xlu0 %5792
        %5794 = vrot.lane.b32.xlu0 %v5788, 112
        %v5795 = vpop.permute.xlu0 %5794
        %vm5796 = vcmask 916480
        %v5797 = vsel %vm5796, %v5793, %v5795
        %v5800 = vmax.f32 %v5629, %v5797
        %v5801 = vmax.f32 %v5788, %v5795
        %v5802 = vld [vmem:[%s8] sm:$0xff]
        %v5803 = vld [vmem:[%s8 + $0x8] sm:$0xff]
        %v5804 = vld [vmem:[%s8 + $0x10] sm:$0xff]
        %v5805 = vld [vmem:[%s8 + $0x18] sm:$0xff]
        %v5806 = vld [vmem:[%s8 + $0x20] sm:$0xff]
        %v5807 = vld [vmem:[%s8 + $0x28] sm:$0xff]
        %v5808 = vld [vmem:[%s8 + $0x30] sm:$0xff]
        %v5809 = vld [vmem:[%s8 + $0x38] sm:$0xff]
        %v5810 = vld [vmem:[%s8 + $0x40] sm:$0xff]
        %v5811 = vld [vmem:[%s8 + $0x48] sm:$0xff]
        %v5812 = vld [vmem:[%s8 + $0x50] sm:$0xff]
        %v5813 = vld [vmem:[%s8 + $0x58] sm:$0xff]
        %v5814 = vld [vmem:[%s8 + $0x60] sm:$0xff]
        %v5815 = vld [vmem:[%s8 + $0x68] sm:$0xff]
        %v5816 = vld [vmem:[%s8 + $0x70] sm:$0xff]
        %v5817 = vld [vmem:[%s8 + $0x78] sm:$0xff]
        %v5818 = vld [vmem:[%s8 + $0x80] sm:$0xff]
        %v5819 = vld [vmem:[%s8 + $0x88] sm:$0xff]
        %v5820 = vld [vmem:[%s8 + $0x90] sm:$0xff]
        %v5821 = vld [vmem:[%s8 + $0x98] sm:$0xff]
        %v5822 = vld [vmem:[%s8 + $0xa0] sm:$0xff]
        %v5823 = vld [vmem:[%s8 + $0xa8] sm:$0xff]
        %vm5824 = vcmask 392192
        %v5826 = vsel %vm5824, %v5801, 0
        %v5828 = vand.u32 %v5817, 4294901760
        %5829 = vmatpush.msra.mxu0 %v5828
        %v5830 = vand.u32 %v5816, 4294901760
        %5831 = vmatpush.msra.mxu0 %v5830
        %v5832 = vand.u32 %v5815, 4294901760
        %5833 = vmatpush.msra.mxu0 %v5832
        %v5834 = vand.u32 %v5814, 4294901760
        %5835 = vmatpush.msra.mxu0 %v5834
        %v5836 = vand.u32 %v5813, 4294901760
        %5837 = vmatpush.msra.mxu0 %v5836
        %v5838 = vand.u32 %v5812, 4294901760
        %5839 = vmatpush.msra.mxu0 %v5838
        %v5840 = vand.u32 %v5811, 4294901760
        %5841 = vmatpush.msra.mxu0 %v5840
        %v5842 = vand.u32 %v5810, 4294901760
        %5843 = vmatpush.msra.mxu0 %v5842
        %v5844 = vand.u32 %v5809, 4294901760
        %5845 = vmatpush.msra.mxu0 %v5844
        %v5846 = vand.u32 %v5808, 4294901760
        %5847 = vmatpush.msra.mxu0 %v5846
        %v5848 = vand.u32 %v5807, 4294901760
        %5849 = vmatpush.msra.mxu0 %v5848
        %v5850 = vand.u32 %v5806, 4294901760
        %5851 = vmatpush.msra.mxu0 %v5850
        %v5852 = vand.u32 %v5805, 4294901760
        %5853 = vmatpush.msra.mxu0 %v5852
        %v5854 = vand.u32 %v5804, 4294901760
        %5855 = vmatpush.msra.mxu0 %v5854
        %v5856 = vand.u32 %v5803, 4294901760
        %5857 = vmatpush.msra.mxu0 %v5856
        %v5858 = vand.u32 %v5802, 4294901760
        %5859 = vmatpush.msra.mxu0 %v5858
        %v5860 = vand.u32 %v5800, 4294901760
        %v5861 = vsub.f32 %v5800, %v5860
        %v5862 = vand.u32 %v5861, 4294901760
        %v5863 = vsub.f32 %v5861, %v5862
        %v5864 = vand.u32 %v5863, 4294901760
        %5865 = vmatmul.f32.gmra.mxu0 %v5864
        %v5866 = vpop.f32.mrf.mxu0
        %v5867 = vadd.f32 0.0, %v5866
        %5868 = vdwg.mxu0
        %v5869 = vand.u32 %v5817, 4294901760
        %v5870 = vsub.f32 %v5817, %v5869
        %v5871 = vand.u32 %v5870, 4294901760
        %v5872 = vsub.f32 %v5870, %v5871
        %v5873 = vand.u32 %v5872, 4294901760
        %5874 = vmatpush.msra.mxu0 %v5873
        %v5875 = vand.u32 %v5816, 4294901760
        %v5876 = vsub.f32 %v5816, %v5875
        %v5877 = vand.u32 %v5876, 4294901760
        %v5878 = vsub.f32 %v5876, %v5877
        %v5879 = vand.u32 %v5878, 4294901760
        %5880 = vmatpush.msra.mxu0 %v5879
        %v5881 = vand.u32 %v5815, 4294901760
        %v5882 = vsub.f32 %v5815, %v5881
        %v5883 = vand.u32 %v5882, 4294901760
        %v5884 = vsub.f32 %v5882, %v5883
        %v5885 = vand.u32 %v5884, 4294901760
        %5886 = vmatpush.msra.mxu0 %v5885
        %v5887 = vand.u32 %v5814, 4294901760
        %v5888 = vsub.f32 %v5814, %v5887
        %v5889 = vand.u32 %v5888, 4294901760
        %v5890 = vsub.f32 %v5888, %v5889
        %v5891 = vand.u32 %v5890, 4294901760
        %5892 = vmatpush.msra.mxu0 %v5891
        %v5893 = vand.u32 %v5813, 4294901760
        %v5894 = vsub.f32 %v5813, %v5893
        %v5895 = vand.u32 %v5894, 4294901760
        %v5896 = vsub.f32 %v5894, %v5895
        %v5897 = vand.u32 %v5896, 4294901760
        %5898 = vmatpush.msra.mxu0 %v5897
        %v5899 = vand.u32 %v5812, 4294901760
        %v5900 = vsub.f32 %v5812, %v5899
        %v5901 = vand.u32 %v5900, 4294901760
        %v5902 = vsub.f32 %v5900, %v5901
        %v5903 = vand.u32 %v5902, 4294901760
        %5904 = vmatpush.msra.mxu0 %v5903
        %v5905 = vand.u32 %v5811, 4294901760
        %v5906 = vsub.f32 %v5811, %v5905
        %v5907 = vand.u32 %v5906, 4294901760
        %v5908 = vsub.f32 %v5906, %v5907
        %v5909 = vand.u32 %v5908, 4294901760
        %5910 = vmatpush.msra.mxu0 %v5909
        %v5911 = vand.u32 %v5810, 4294901760
        %v5912 = vsub.f32 %v5810, %v5911
        %v5913 = vand.u32 %v5912, 4294901760
        %v5914 = vsub.f32 %v5912, %v5913
        %v5915 = vand.u32 %v5914, 4294901760
        %5916 = vmatpush.msra.mxu0 %v5915
        %v5917 = vand.u32 %v5809, 4294901760
        %v5918 = vsub.f32 %v5809, %v5917
        %v5919 = vand.u32 %v5918, 4294901760
        %v5920 = vsub.f32 %v5918, %v5919
        %v5921 = vand.u32 %v5920, 4294901760
        %5922 = vmatpush.msra.mxu0 %v5921
        %v5923 = vand.u32 %v5808, 4294901760
        %v5924 = vsub.f32 %v5808, %v5923
        %v5925 = vand.u32 %v5924, 4294901760
        %v5926 = vsub.f32 %v5924, %v5925
        %v5927 = vand.u32 %v5926, 4294901760
        %5928 = vmatpush.msra.mxu0 %v5927
        %v5929 = vand.u32 %v5807, 4294901760
        %v5930 = vsub.f32 %v5807, %v5929
        %v5931 = vand.u32 %v5930, 4294901760
        %v5932 = vsub.f32 %v5930, %v5931
        %v5933 = vand.u32 %v5932, 4294901760
        %5934 = vmatpush.msra.mxu0 %v5933
        %v5935 = vand.u32 %v5806, 4294901760
        %v5936 = vsub.f32 %v5806, %v5935
        %v5937 = vand.u32 %v5936, 4294901760
        %v5938 = vsub.f32 %v5936, %v5937
        %v5939 = vand.u32 %v5938, 4294901760
        %5940 = vmatpush.msra.mxu0 %v5939
        %v5941 = vand.u32 %v5805, 4294901760
        %v5942 = vsub.f32 %v5805, %v5941
        %v5943 = vand.u32 %v5942, 4294901760
        %v5944 = vsub.f32 %v5942, %v5943
        %v5945 = vand.u32 %v5944, 4294901760
        %5946 = vmatpush.msra.mxu0 %v5945
        %v5947 = vand.u32 %v5804, 4294901760
        %v5948 = vsub.f32 %v5804, %v5947
        %v5949 = vand.u32 %v5948, 4294901760
        %v5950 = vsub.f32 %v5948, %v5949
        %v5951 = vand.u32 %v5950, 4294901760
        %5952 = vmatpush.msra.mxu0 %v5951
        %v5953 = vand.u32 %v5803, 4294901760
        %v5954 = vsub.f32 %v5803, %v5953
        %v5955 = vand.u32 %v5954, 4294901760
        %v5956 = vsub.f32 %v5954, %v5955
        %v5957 = vand.u32 %v5956, 4294901760
        %5958 = vmatpush.msra.mxu0 %v5957
        %v5959 = vand.u32 %v5802, 4294901760
        %v5960 = vsub.f32 %v5802, %v5959
        %v5961 = vand.u32 %v5960, 4294901760
        %v5962 = vsub.f32 %v5960, %v5961
        %v5963 = vand.u32 %v5962, 4294901760
        %5964 = vmatpush.msra.mxu0 %v5963
        %v5965 = vand.u32 %v5800, 4294901760
        %5966 = vmatmul.f32.gmra.mxu0 %v5965
        %v5967 = vpop.f32.mrf.mxu0
        %v5968 = vadd.f32 %v5867, %v5967
        %5969 = vdwg.mxu0
        %v5970 = vand.u32 %v5817, 4294901760
        %v5971 = vsub.f32 %v5817, %v5970
        %5972 = vmatpush.msra.mxu0 %v5971
        %v5973 = vand.u32 %v5816, 4294901760
        %v5974 = vsub.f32 %v5816, %v5973
        %5975 = vmatpush.msra.mxu0 %v5974
        %v5976 = vand.u32 %v5815, 4294901760
        %v5977 = vsub.f32 %v5815, %v5976
        %5978 = vmatpush.msra.mxu0 %v5977
        %v5979 = vand.u32 %v5814, 4294901760
        %v5980 = vsub.f32 %v5814, %v5979
        %5981 = vmatpush.msra.mxu0 %v5980
        %v5982 = vand.u32 %v5813, 4294901760
        %v5983 = vsub.f32 %v5813, %v5982
        %5984 = vmatpush.msra.mxu0 %v5983
        %v5985 = vand.u32 %v5812, 4294901760
        %v5986 = vsub.f32 %v5812, %v5985
        %5987 = vmatpush.msra.mxu0 %v5986
        %v5988 = vand.u32 %v5811, 4294901760
        %v5989 = vsub.f32 %v5811, %v5988
        %5990 = vmatpush.msra.mxu0 %v5989
        %v5991 = vand.u32 %v5810, 4294901760
        %v5992 = vsub.f32 %v5810, %v5991
        %5993 = vmatpush.msra.mxu0 %v5992
        %v5994 = vand.u32 %v5809, 4294901760
        %v5995 = vsub.f32 %v5809, %v5994
        %5996 = vmatpush.msra.mxu0 %v5995
        %v5997 = vand.u32 %v5808, 4294901760
        %v5998 = vsub.f32 %v5808, %v5997
        %5999 = vmatpush.msra.mxu0 %v5998
        %v6000 = vand.u32 %v5807, 4294901760
        %v6001 = vsub.f32 %v5807, %v6000
        %6002 = vmatpush.msra.mxu0 %v6001
        %v6003 = vand.u32 %v5806, 4294901760
        %v6004 = vsub.f32 %v5806, %v6003
        %6005 = vmatpush.msra.mxu0 %v6004
        %v6006 = vand.u32 %v5805, 4294901760
        %v6007 = vsub.f32 %v5805, %v6006
        %6008 = vmatpush.msra.mxu0 %v6007
        %v6009 = vand.u32 %v5804, 4294901760
        %v6010 = vsub.f32 %v5804, %v6009
        %6011 = vmatpush.msra.mxu0 %v6010
        %v6012 = vand.u32 %v5803, 4294901760
        %v6013 = vsub.f32 %v5803, %v6012
        %6014 = vmatpush.msra.mxu0 %v6013
        %v6015 = vand.u32 %v5802, 4294901760
        %v6016 = vsub.f32 %v5802, %v6015
        %6017 = vmatpush.msra.mxu0 %v6016
        %v6018 = vand.u32 %v5800, 4294901760
        %v6019 = vsub.f32 %v5800, %v6018
        %6020 = vmatmul.f32.gmra.mxu0 %v6019
        %v6021 = vpop.f32.mrf.mxu0
        %v6022 = vadd.f32 %v5968, %v6021
        %6023 = vdwg.mxu0
        %v6024 = vand.u32 %v5817, 4294901760
        %6025 = vmatpush.msra.mxu0 %v6024
        %v6026 = vand.u32 %v5816, 4294901760
        %6027 = vmatpush.msra.mxu0 %v6026
        %v6028 = vand.u32 %v5815, 4294901760
        %6029 = vmatpush.msra.mxu0 %v6028
        %v6030 = vand.u32 %v5814, 4294901760
        %6031 = vmatpush.msra.mxu0 %v6030
        %v6032 = vand.u32 %v5813, 4294901760
        %6033 = vmatpush.msra.mxu0 %v6032
        %v6034 = vand.u32 %v5812, 4294901760
        %6035 = vmatpush.msra.mxu0 %v6034
        %v6036 = vand.u32 %v5811, 4294901760
        %6037 = vmatpush.msra.mxu0 %v6036
        %v6038 = vand.u32 %v5810, 4294901760
        %6039 = vmatpush.msra.mxu0 %v6038
        %v6040 = vand.u32 %v5809, 4294901760
        %6041 = vmatpush.msra.mxu0 %v6040
        %v6042 = vand.u32 %v5808, 4294901760
        %6043 = vmatpush.msra.mxu0 %v6042
        %v6044 = vand.u32 %v5807, 4294901760
        %6045 = vmatpush.msra.mxu0 %v6044
        %v6046 = vand.u32 %v5806, 4294901760
        %6047 = vmatpush.msra.mxu0 %v6046
        %v6048 = vand.u32 %v5805, 4294901760
        %6049 = vmatpush.msra.mxu0 %v6048
        %v6050 = vand.u32 %v5804, 4294901760
        %6051 = vmatpush.msra.mxu0 %v6050
        %v6052 = vand.u32 %v5803, 4294901760
        %6053 = vmatpush.msra.mxu0 %v6052
        %v6054 = vand.u32 %v5802, 4294901760
        %6055 = vmatpush.msra.mxu0 %v6054
        %v6056 = vand.u32 %v5800, 4294901760
        %v6057 = vsub.f32 %v5800, %v6056
        %v6058 = vand.u32 %v6057, 4294901760
        %6059 = vmatmul.f32.gmra.mxu0 %v6058
        %v6060 = vpop.f32.mrf.mxu0
        %v6061 = vadd.f32 %v6022, %v6060
        %6062 = vdwg.mxu0
        %v6063 = vand.u32 %v5817, 4294901760
        %v6064 = vsub.f32 %v5817, %v6063
        %v6065 = vand.u32 %v6064, 4294901760
        %6066 = vmatpush.msra.mxu0 %v6065
        %v6067 = vand.u32 %v5816, 4294901760
        %v6068 = vsub.f32 %v5816, %v6067
        %v6069 = vand.u32 %v6068, 4294901760
        %6070 = vmatpush.msra.mxu0 %v6069
        %v6071 = vand.u32 %v5815, 4294901760
        %v6072 = vsub.f32 %v5815, %v6071
        %v6073 = vand.u32 %v6072, 4294901760
        %6074 = vmatpush.msra.mxu0 %v6073
        %v6075 = vand.u32 %v5814, 4294901760
        %v6076 = vsub.f32 %v5814, %v6075
        %v6077 = vand.u32 %v6076, 4294901760
        %6078 = vmatpush.msra.mxu0 %v6077
        %v6079 = vand.u32 %v5813, 4294901760
        %v6080 = vsub.f32 %v5813, %v6079
        %v6081 = vand.u32 %v6080, 4294901760
        %6082 = vmatpush.msra.mxu0 %v6081
        %v6083 = vand.u32 %v5812, 4294901760
        %v6084 = vsub.f32 %v5812, %v6083
        %v6085 = vand.u32 %v6084, 4294901760
        %6086 = vmatpush.msra.mxu0 %v6085
        %v6087 = vand.u32 %v5811, 4294901760
        %v6088 = vsub.f32 %v5811, %v6087
        %v6089 = vand.u32 %v6088, 4294901760
        %6090 = vmatpush.msra.mxu0 %v6089
        %v6091 = vand.u32 %v5810, 4294901760
        %v6092 = vsub.f32 %v5810, %v6091
        %v6093 = vand.u32 %v6092, 4294901760
        %6094 = vmatpush.msra.mxu0 %v6093
        %v6095 = vand.u32 %v5809, 4294901760
        %v6096 = vsub.f32 %v5809, %v6095
        %v6097 = vand.u32 %v6096, 4294901760
        %6098 = vmatpush.msra.mxu0 %v6097
        %v6099 = vand.u32 %v5808, 4294901760
        %v6100 = vsub.f32 %v5808, %v6099
        %v6101 = vand.u32 %v6100, 4294901760
        %6102 = vmatpush.msra.mxu0 %v6101
        %v6103 = vand.u32 %v5807, 4294901760
        %v6104 = vsub.f32 %v5807, %v6103
        %v6105 = vand.u32 %v6104, 4294901760
        %6106 = vmatpush.msra.mxu0 %v6105
        %v6107 = vand.u32 %v5806, 4294901760
        %v6108 = vsub.f32 %v5806, %v6107
        %v6109 = vand.u32 %v6108, 4294901760
        %6110 = vmatpush.msra.mxu0 %v6109
        %v6111 = vand.u32 %v5805, 4294901760
        %v6112 = vsub.f32 %v5805, %v6111
        %v6113 = vand.u32 %v6112, 4294901760
        %6114 = vmatpush.msra.mxu0 %v6113
        %v6115 = vand.u32 %v5804, 4294901760
        %v6116 = vsub.f32 %v5804, %v6115
        %v6117 = vand.u32 %v6116, 4294901760
        %6118 = vmatpush.msra.mxu0 %v6117
        %v6119 = vand.u32 %v5803, 4294901760
        %v6120 = vsub.f32 %v5803, %v6119
        %v6121 = vand.u32 %v6120, 4294901760
        %6122 = vmatpush.msra.mxu0 %v6121
        %v6123 = vand.u32 %v5802, 4294901760
        %v6124 = vsub.f32 %v5802, %v6123
        %v6125 = vand.u32 %v6124, 4294901760
        %6126 = vmatpush.msra.mxu0 %v6125
        %v6127 = vand.u32 %v5800, 4294901760
        %6128 = vmatmul.f32.gmra.mxu0 %v6127
        %v6129 = vpop.f32.mrf.mxu0
        %v6130 = vadd.f32 %v6061, %v6129
        %6131 = vdwg.mxu0
        %v6132 = vand.u32 %v5817, 4294901760
        %6133 = vmatpush.msra.mxu0 %v6132
        %v6134 = vand.u32 %v5816, 4294901760
        %6135 = vmatpush.msra.mxu0 %v6134
        %v6136 = vand.u32 %v5815, 4294901760
        %6137 = vmatpush.msra.mxu0 %v6136
        %v6138 = vand.u32 %v5814, 4294901760
        %6139 = vmatpush.msra.mxu0 %v6138
        %v6140 = vand.u32 %v5813, 4294901760
        %6141 = vmatpush.msra.mxu0 %v6140
        %v6142 = vand.u32 %v5812, 4294901760
        %6143 = vmatpush.msra.mxu0 %v6142
        %v6144 = vand.u32 %v5811, 4294901760
        %6145 = vmatpush.msra.mxu0 %v6144
        %v6146 = vand.u32 %v5810, 4294901760
        %6147 = vmatpush.msra.mxu0 %v6146
        %v6148 = vand.u32 %v5809, 4294901760
        %6149 = vmatpush.msra.mxu0 %v6148
        %v6150 = vand.u32 %v5808, 4294901760
        %6151 = vmatpush.msra.mxu0 %v6150
        %v6152 = vand.u32 %v5807, 4294901760
        %6153 = vmatpush.msra.mxu0 %v6152
        %v6154 = vand.u32 %v5806, 4294901760
        %6155 = vmatpush.msra.mxu0 %v6154
        %v6156 = vand.u32 %v5805, 4294901760
        %6157 = vmatpush.msra.mxu0 %v6156
        %v6158 = vand.u32 %v5804, 4294901760
        %6159 = vmatpush.msra.mxu0 %v6158
        %v6160 = vand.u32 %v5803, 4294901760
        %6161 = vmatpush.msra.mxu0 %v6160
        %v6162 = vand.u32 %v5802, 4294901760
        %6163 = vmatpush.msra.mxu0 %v6162
        %v6164 = vand.u32 %v5800, 4294901760
        %6165 = vmatmul.f32.gmra.mxu0 %v6164
        %v6166 = vpop.f32.mrf.mxu0
        %v6167 = vadd.f32 %v6130, %v6166
        %6168 = vdwg.mxu0
        %6169 = vmatpush.msra.mxu0 0.0
        %6170 = vmatpush.msra.mxu0 0.0
        %6171 = vmatpush.msra.mxu0 0.0
        %6172 = vmatpush.msra.mxu0 0.0
        %6173 = vmatpush.msra.mxu0 0.0
        %6174 = vmatpush.msra.mxu0 0.0
        %6175 = vmatpush.msra.mxu0 0.0
        %6176 = vmatpush.msra.mxu0 0.0
        %6177 = vmatpush.msra.mxu0 0.0
        %6178 = vmatpush.msra.mxu0 0.0
        %v6179 = vand.u32 %v5823, 4294901760
        %6180 = vmatpush.msra.mxu0 %v6179
        %v6181 = vand.u32 %v5822, 4294901760
        %6182 = vmatpush.msra.mxu0 %v6181
        %v6183 = vand.u32 %v5821, 4294901760
        %6184 = vmatpush.msra.mxu0 %v6183
        %v6185 = vand.u32 %v5820, 4294901760
        %6186 = vmatpush.msra.mxu0 %v6185
        %v6187 = vand.u32 %v5819, 4294901760
        %6188 = vmatpush.msra.mxu0 %v6187
        %v6189 = vand.u32 %v5818, 4294901760
        %6190 = vmatpush.msra.mxu0 %v6189
        %v6191 = vand.u32 %v5826, 4294901760
        %v6192 = vsub.f32 %v5826, %v6191
        %v6193 = vand.u32 %v6192, 4294901760
        %v6194 = vsub.f32 %v6192, %v6193
        %v6195 = vand.u32 %v6194, 4294901760
        %6196 = vmatmul.f32.gmra.mxu0 %v6195
        %v6197 = vpop.f32.mrf.mxu0
        %v6198 = vadd.f32 %v6167, %v6197
        %6199 = vdwg.mxu0
        %6200 = vmatpush.msra.mxu0 0.0
        %6201 = vmatpush.msra.mxu0 0.0
        %6202 = vmatpush.msra.mxu0 0.0
        %6203 = vmatpush.msra.mxu0 0.0
        %6204 = vmatpush.msra.mxu0 0.0
        %6205 = vmatpush.msra.mxu0 0.0
        %6206 = vmatpush.msra.mxu0 0.0
        %6207 = vmatpush.msra.mxu0 0.0
        %6208 = vmatpush.msra.mxu0 0.0
        %6209 = vmatpush.msra.mxu0 0.0
        %v6210 = vand.u32 %v5823, 4294901760
        %v6211 = vsub.f32 %v5823, %v6210
        %v6212 = vand.u32 %v6211, 4294901760
        %v6213 = vsub.f32 %v6211, %v6212
        %v6214 = vand.u32 %v6213, 4294901760
        %6215 = vmatpush.msra.mxu0 %v6214
        %v6216 = vand.u32 %v5822, 4294901760
        %v6217 = vsub.f32 %v5822, %v6216
        %v6218 = vand.u32 %v6217, 4294901760
        %v6219 = vsub.f32 %v6217, %v6218
        %v6220 = vand.u32 %v6219, 4294901760
        %6221 = vmatpush.msra.mxu0 %v6220
        %v6222 = vand.u32 %v5821, 4294901760
        %v6223 = vsub.f32 %v5821, %v6222
        %v6224 = vand.u32 %v6223, 4294901760
        %v6225 = vsub.f32 %v6223, %v6224
        %v6226 = vand.u32 %v6225, 4294901760
        %6227 = vmatpush.msra.mxu0 %v6226
        %v6228 = vand.u32 %v5820, 4294901760
        %v6229 = vsub.f32 %v5820, %v6228
        %v6230 = vand.u32 %v6229, 4294901760
        %v6231 = vsub.f32 %v6229, %v6230
        %v6232 = vand.u32 %v6231, 4294901760
        %6233 = vmatpush.msra.mxu0 %v6232
        %v6234 = vand.u32 %v5819, 4294901760
        %v6235 = vsub.f32 %v5819, %v6234
        %v6236 = vand.u32 %v6235, 4294901760
        %v6237 = vsub.f32 %v6235, %v6236
        %v6238 = vand.u32 %v6237, 4294901760
        %6239 = vmatpush.msra.mxu0 %v6238
        %v6240 = vand.u32 %v5818, 4294901760
        %v6241 = vsub.f32 %v5818, %v6240
        %v6242 = vand.u32 %v6241, 4294901760
        %v6243 = vsub.f32 %v6241, %v6242
        %v6244 = vand.u32 %v6243, 4294901760
        %6245 = vmatpush.msra.mxu0 %v6244
        %v6246 = vand.u32 %v5826, 4294901760
        %6247 = vmatmul.f32.gmra.mxu0 %v6246
        %v6248 = vpop.f32.mrf.mxu0
        %v6249 = vadd.f32 %v6198, %v6248
        %6250 = vdwg.mxu0
        %6251 = vmatpush.msra.mxu0 0.0
        %6252 = vmatpush.msra.mxu0 0.0
        %6253 = vmatpush.msra.mxu0 0.0
        %6254 = vmatpush.msra.mxu0 0.0
        %6255 = vmatpush.msra.mxu0 0.0
        %6256 = vmatpush.msra.mxu0 0.0
        %6257 = vmatpush.msra.mxu0 0.0
        %6258 = vmatpush.msra.mxu0 0.0
        %6259 = vmatpush.msra.mxu0 0.0
        %6260 = vmatpush.msra.mxu0 0.0
        %v6261 = vand.u32 %v5823, 4294901760
        %v6262 = vsub.f32 %v5823, %v6261
        %6263 = vmatpush.msra.mxu0 %v6262
        %v6264 = vand.u32 %v5822, 4294901760
        %v6265 = vsub.f32 %v5822, %v6264
        %6266 = vmatpush.msra.mxu0 %v6265
        %v6267 = vand.u32 %v5821, 4294901760
        %v6268 = vsub.f32 %v5821, %v6267
        %6269 = vmatpush.msra.mxu0 %v6268
        %v6270 = vand.u32 %v5820, 4294901760
        %v6271 = vsub.f32 %v5820, %v6270
        %6272 = vmatpush.msra.mxu0 %v6271
        %v6273 = vand.u32 %v5819, 4294901760
        %v6274 = vsub.f32 %v5819, %v6273
        %6275 = vmatpush.msra.mxu0 %v6274
        %v6276 = vand.u32 %v5818, 4294901760
        %v6277 = vsub.f32 %v5818, %v6276
        %6278 = vmatpush.msra.mxu0 %v6277
        %v6279 = vand.u32 %v5826, 4294901760
        %v6280 = vsub.f32 %v5826, %v6279
        %6281 = vmatmul.f32.gmra.mxu0 %v6280
        %v6282 = vpop.f32.mrf.mxu0
        %v6283 = vadd.f32 %v6249, %v6282
        %6284 = vdwg.mxu0
        %6285 = vmatpush.msra.mxu0 0.0
        %6286 = vmatpush.msra.mxu0 0.0
        %6287 = vmatpush.msra.mxu0 0.0
        %6288 = vmatpush.msra.mxu0 0.0
        %6289 = vmatpush.msra.mxu0 0.0
        %6290 = vmatpush.msra.mxu0 0.0
        %6291 = vmatpush.msra.mxu0 0.0
        %6292 = vmatpush.msra.mxu0 0.0
        %6293 = vmatpush.msra.mxu0 0.0
        %6294 = vmatpush.msra.mxu0 0.0
        %v6295 = vand.u32 %v5823, 4294901760
        %6296 = vmatpush.msra.mxu0 %v6295
        %v6297 = vand.u32 %v5822, 4294901760
        %6298 = vmatpush.msra.mxu0 %v6297
        %v6299 = vand.u32 %v5821, 4294901760
        %6300 = vmatpush.msra.mxu0 %v6299
        %v6301 = vand.u32 %v5820, 4294901760
        %6302 = vmatpush.msra.mxu0 %v6301
        %v6303 = vand.u32 %v5819, 4294901760
        %6304 = vmatpush.msra.mxu0 %v6303
        %v6305 = vand.u32 %v5818, 4294901760
        %6306 = vmatpush.msra.mxu0 %v6305
        %v6307 = vand.u32 %v5826, 4294901760
        %v6308 = vsub.f32 %v5826, %v6307
        %v6309 = vand.u32 %v6308, 4294901760
        %6310 = vmatmul.f32.gmra.mxu0 %v6309
        %v6311 = vpop.f32.mrf.mxu0
        %v6312 = vadd.f32 %v6283, %v6311
        %6313 = vdwg.mxu0
        %6314 = vmatpush.msra.mxu0 0.0
        %6315 = vmatpush.msra.mxu0 0.0
        %6316 = vmatpush.msra.mxu0 0.0
        %6317 = vmatpush.msra.mxu0 0.0
        %6318 = vmatpush.msra.mxu0 0.0
        %6319 = vmatpush.msra.mxu0 0.0
        %6320 = vmatpush.msra.mxu0 0.0
        %6321 = vmatpush.msra.mxu0 0.0
        %6322 = vmatpush.msra.mxu0 0.0
        %6323 = vmatpush.msra.mxu0 0.0
        %v6324 = vand.u32 %v5823, 4294901760
        %v6325 = vsub.f32 %v5823, %v6324
        %v6326 = vand.u32 %v6325, 4294901760
        %6327 = vmatpush.msra.mxu0 %v6326
        %v6328 = vand.u32 %v5822, 4294901760
        %v6329 = vsub.f32 %v5822, %v6328
        %v6330 = vand.u32 %v6329, 4294901760
        %6331 = vmatpush.msra.mxu0 %v6330
        %v6332 = vand.u32 %v5821, 4294901760
        %v6333 = vsub.f32 %v5821, %v6332
        %v6334 = vand.u32 %v6333, 4294901760
        %6335 = vmatpush.msra.mxu0 %v6334
        %v6336 = vand.u32 %v5820, 4294901760
        %v6337 = vsub.f32 %v5820, %v6336
        %v6338 = vand.u32 %v6337, 4294901760
        %6339 = vmatpush.msra.mxu0 %v6338
        %v6340 = vand.u32 %v5819, 4294901760
        %v6341 = vsub.f32 %v5819, %v6340
        %v6342 = vand.u32 %v6341, 4294901760
        %6343 = vmatpush.msra.mxu0 %v6342
        %v6344 = vand.u32 %v5818, 4294901760
        %v6345 = vsub.f32 %v5818, %v6344
        %v6346 = vand.u32 %v6345, 4294901760
        %6347 = vmatpush.msra.mxu0 %v6346
        %v6348 = vand.u32 %v5826, 4294901760
        %6349 = vmatmul.f32.gmra.mxu0 %v6348
        %v6350 = vpop.f32.mrf.mxu0
        %v6351 = vadd.f32 %v6312, %v6350
        %6352 = vdwg.mxu0
        %6353 = vmatpush.msra.mxu0 0.0
        %6354 = vmatpush.msra.mxu0 0.0
        %6355 = vmatpush.msra.mxu0 0.0
        %6356 = vmatpush.msra.mxu0 0.0
        %6357 = vmatpush.msra.mxu0 0.0
        %6358 = vmatpush.msra.mxu0 0.0
        %6359 = vmatpush.msra.mxu0 0.0
        %6360 = vmatpush.msra.mxu0 0.0
        %6361 = vmatpush.msra.mxu0 0.0
        %6362 = vmatpush.msra.mxu0 0.0
        %v6363 = vand.u32 %v5823, 4294901760
        %6364 = vmatpush.msra.mxu0 %v6363
        %v6365 = vand.u32 %v5822, 4294901760
        %6366 = vmatpush.msra.mxu0 %v6365
        %v6367 = vand.u32 %v5821, 4294901760
        %6368 = vmatpush.msra.mxu0 %v6367
        %v6369 = vand.u32 %v5820, 4294901760
        %6370 = vmatpush.msra.mxu0 %v6369
        %v6371 = vand.u32 %v5819, 4294901760
        %6372 = vmatpush.msra.mxu0 %v6371
        %v6373 = vand.u32 %v5818, 4294901760
        %6374 = vmatpush.msra.mxu0 %v6373
        %v6375 = vand.u32 %v5826, 4294901760
        %6376 = vmatmul.f32.gmra.mxu0 %v6375
        %v6377 = vpop.f32.mrf.mxu0
        %v6378 = vadd.f32 %v6351, %v6377
        %6379 = vdwg.mxu0
        %v6380 = vld [vmem:[%s10] sm:$0x1]
        %v6381 = vld [vmem:[#allocation7] sm:$0xff]
        %v6382 = vld [vmem:[#allocation7 + $0x8] sm:$0xff]
        %v6383 = vld [vmem:[#allocation7 + $0x10] sm:$0xff]
        %v6384 = vld [vmem:[#allocation7 + $0x18] sm:$0xff]
        %v6385 = vld [vmem:[#allocation7 + $0x20] sm:$0xff]
        %v6386 = vld [vmem:[#allocation7 + $0x28] sm:$0xff]
        %v6387 = vld [vmem:[#allocation7 + $0x30] sm:$0xff]
        %v6388 = vld [vmem:[#allocation7 + $0x38] sm:$0xff]
        %v6389 = vld [vmem:[#allocation7 + $0x40] sm:$0xff]
        %v6390 = vld [vmem:[#allocation7 + $0x48] sm:$0xff]
        %v6391 = vld [vmem:[#allocation7 + $0x50] sm:$0xff]
        %v6392 = vld [vmem:[#allocation7 + $0x58] sm:$0xff]
        %vm6393 = vcmask 785408
        %v6395 = vsel %vm6393, %v6378, 0
        %6397 = vmatpush.msra.mxu0 0.0
        %6398 = vmatpush.msra.mxu0 0.0
        %6399 = vmatpush.msra.mxu0 0.0
        %6400 = vmatpush.msra.mxu0 0.0
        %v6401 = vand.u32 %v6392, 4294901760
        %6402 = vmatpush.msra.mxu0 %v6401
        %v6403 = vand.u32 %v6391, 4294901760
        %6404 = vmatpush.msra.mxu0 %v6403
        %v6405 = vand.u32 %v6390, 4294901760
        %6406 = vmatpush.msra.mxu0 %v6405
        %v6407 = vand.u32 %v6389, 4294901760
        %6408 = vmatpush.msra.mxu0 %v6407
        %v6409 = vand.u32 %v6388, 4294901760
        %6410 = vmatpush.msra.mxu0 %v6409
        %v6411 = vand.u32 %v6387, 4294901760
        %6412 = vmatpush.msra.mxu0 %v6411
        %v6413 = vand.u32 %v6386, 4294901760
        %6414 = vmatpush.msra.mxu0 %v6413
        %v6415 = vand.u32 %v6385, 4294901760
        %6416 = vmatpush.msra.mxu0 %v6415
        %v6417 = vand.u32 %v6384, 4294901760
        %6418 = vmatpush.msra.mxu0 %v6417
        %v6419 = vand.u32 %v6383, 4294901760
        %6420 = vmatpush.msra.mxu0 %v6419
        %v6421 = vand.u32 %v6382, 4294901760
        %6422 = vmatpush.msra.mxu0 %v6421
        %v6423 = vand.u32 %v6381, 4294901760
        %6424 = vmatpush.msra.mxu0 %v6423
        %v6425 = vand.u32 %v6395, 4294901760
        %v6426 = vsub.f32 %v6395, %v6425
        %v6427 = vand.u32 %v6426, 4294901760
        %v6428 = vsub.f32 %v6426, %v6427
        %v6429 = vand.u32 %v6428, 4294901760
        %6430 = vmatmul.f32.gmra.mxu0 %v6429
        %v6431 = vpop.f32.mrf.mxu0
        %v6432 = vadd.f32 0.0, %v6431
        %6433 = vdwg.mxu0
        %6434 = vmatpush.msra.mxu0 0.0
        %6435 = vmatpush.msra.mxu0 0.0
        %6436 = vmatpush.msra.mxu0 0.0
        %6437 = vmatpush.msra.mxu0 0.0
        %v6438 = vand.u32 %v6392, 4294901760
        %v6439 = vsub.f32 %v6392, %v6438
        %v6440 = vand.u32 %v6439, 4294901760
        %v6441 = vsub.f32 %v6439, %v6440
        %v6442 = vand.u32 %v6441, 4294901760
        %6443 = vmatpush.msra.mxu0 %v6442
        %v6444 = vand.u32 %v6391, 4294901760
        %v6445 = vsub.f32 %v6391, %v6444
        %v6446 = vand.u32 %v6445, 4294901760
        %v6447 = vsub.f32 %v6445, %v6446
        %v6448 = vand.u32 %v6447, 4294901760
        %6449 = vmatpush.msra.mxu0 %v6448
        %v6450 = vand.u32 %v6390, 4294901760
        %v6451 = vsub.f32 %v6390, %v6450
        %v6452 = vand.u32 %v6451, 4294901760
        %v6453 = vsub.f32 %v6451, %v6452
        %v6454 = vand.u32 %v6453, 4294901760
        %6455 = vmatpush.msra.mxu0 %v6454
        %v6456 = vand.u32 %v6389, 4294901760
        %v6457 = vsub.f32 %v6389, %v6456
        %v6458 = vand.u32 %v6457, 4294901760
        %v6459 = vsub.f32 %v6457, %v6458
        %v6460 = vand.u32 %v6459, 4294901760
        %6461 = vmatpush.msra.mxu0 %v6460
        %v6462 = vand.u32 %v6388, 4294901760
        %v6463 = vsub.f32 %v6388, %v6462
        %v6464 = vand.u32 %v6463, 4294901760
        %v6465 = vsub.f32 %v6463, %v6464
        %v6466 = vand.u32 %v6465, 4294901760
        %6467 = vmatpush.msra.mxu0 %v6466
        %v6468 = vand.u32 %v6387, 4294901760
        %v6469 = vsub.f32 %v6387, %v6468
        %v6470 = vand.u32 %v6469, 4294901760
        %v6471 = vsub.f32 %v6469, %v6470
        %v6472 = vand.u32 %v6471, 4294901760
        %6473 = vmatpush.msra.mxu0 %v6472
        %v6474 = vand.u32 %v6386, 4294901760
        %v6475 = vsub.f32 %v6386, %v6474
        %v6476 = vand.u32 %v6475, 4294901760
        %v6477 = vsub.f32 %v6475, %v6476
        %v6478 = vand.u32 %v6477, 4294901760
        %6479 = vmatpush.msra.mxu0 %v6478
        %v6480 = vand.u32 %v6385, 4294901760
        %v6481 = vsub.f32 %v6385, %v6480
        %v6482 = vand.u32 %v6481, 4294901760
        %v6483 = vsub.f32 %v6481, %v6482
        %v6484 = vand.u32 %v6483, 4294901760
        %6485 = vmatpush.msra.mxu0 %v6484
        %v6486 = vand.u32 %v6384, 4294901760
        %v6487 = vsub.f32 %v6384, %v6486
        %v6488 = vand.u32 %v6487, 4294901760
        %v6489 = vsub.f32 %v6487, %v6488
        %v6490 = vand.u32 %v6489, 4294901760
        %6491 = vmatpush.msra.mxu0 %v6490
        %v6492 = vand.u32 %v6383, 4294901760
        %v6493 = vsub.f32 %v6383, %v6492
        %v6494 = vand.u32 %v6493, 4294901760
        %v6495 = vsub.f32 %v6493, %v6494
        %v6496 = vand.u32 %v6495, 4294901760
        %6497 = vmatpush.msra.mxu0 %v6496
        %v6498 = vand.u32 %v6382, 4294901760
        %v6499 = vsub.f32 %v6382, %v6498
        %v6500 = vand.u32 %v6499, 4294901760
        %v6501 = vsub.f32 %v6499, %v6500
        %v6502 = vand.u32 %v6501, 4294901760
        %6503 = vmatpush.msra.mxu0 %v6502
        %v6504 = vand.u32 %v6381, 4294901760
        %v6505 = vsub.f32 %v6381, %v6504
        %v6506 = vand.u32 %v6505, 4294901760
        %v6507 = vsub.f32 %v6505, %v6506
        %v6508 = vand.u32 %v6507, 4294901760
        %6509 = vmatpush.msra.mxu0 %v6508
        %v6510 = vand.u32 %v6395, 4294901760
        %6511 = vmatmul.f32.gmra.mxu0 %v6510
        %v6512 = vpop.f32.mrf.mxu0
        %v6513 = vadd.f32 %v6432, %v6512
        %6514 = vdwg.mxu0
        %6515 = vmatpush.msra.mxu0 0.0
        %6516 = vmatpush.msra.mxu0 0.0
        %6517 = vmatpush.msra.mxu0 0.0
        %6518 = vmatpush.msra.mxu0 0.0
        %v6519 = vand.u32 %v6392, 4294901760
        %v6520 = vsub.f32 %v6392, %v6519
        %6521 = vmatpush.msra.mxu0 %v6520
        %v6522 = vand.u32 %v6391, 4294901760
        %v6523 = vsub.f32 %v6391, %v6522
        %6524 = vmatpush.msra.mxu0 %v6523
        %v6525 = vand.u32 %v6390, 4294901760
        %v6526 = vsub.f32 %v6390, %v6525
        %6527 = vmatpush.msra.mxu0 %v6526
        %v6528 = vand.u32 %v6389, 4294901760
        %v6529 = vsub.f32 %v6389, %v6528
        %6530 = vmatpush.msra.mxu0 %v6529
        %v6531 = vand.u32 %v6388, 4294901760
        %v6532 = vsub.f32 %v6388, %v6531
        %6533 = vmatpush.msra.mxu0 %v6532
        %v6534 = vand.u32 %v6387, 4294901760
        %v6535 = vsub.f32 %v6387, %v6534
        %6536 = vmatpush.msra.mxu0 %v6535
        %v6537 = vand.u32 %v6386, 4294901760
        %v6538 = vsub.f32 %v6386, %v6537
        %6539 = vmatpush.msra.mxu0 %v6538
        %v6540 = vand.u32 %v6385, 4294901760
        %v6541 = vsub.f32 %v6385, %v6540
        %6542 = vmatpush.msra.mxu0 %v6541
        %v6543 = vand.u32 %v6384, 4294901760
        %v6544 = vsub.f32 %v6384, %v6543
        %6545 = vmatpush.msra.mxu0 %v6544
        %v6546 = vand.u32 %v6383, 4294901760
        %v6547 = vsub.f32 %v6383, %v6546
        %6548 = vmatpush.msra.mxu0 %v6547
        %v6549 = vand.u32 %v6382, 4294901760
        %v6550 = vsub.f32 %v6382, %v6549
        %6551 = vmatpush.msra.mxu0 %v6550
        %v6552 = vand.u32 %v6381, 4294901760
        %v6553 = vsub.f32 %v6381, %v6552
        %6554 = vmatpush.msra.mxu0 %v6553
        %v6555 = vand.u32 %v6395, 4294901760
        %v6556 = vsub.f32 %v6395, %v6555
        %6557 = vmatmul.f32.gmra.mxu0 %v6556
        %v6558 = vpop.f32.mrf.mxu0
        %v6559 = vadd.f32 %v6513, %v6558
        %6560 = vdwg.mxu0
        %6561 = vmatpush.msra.mxu0 0.0
        %6562 = vmatpush.msra.mxu0 0.0
        %6563 = vmatpush.msra.mxu0 0.0
        %6564 = vmatpush.msra.mxu0 0.0
        %v6565 = vand.u32 %v6392, 4294901760
        %6566 = vmatpush.msra.mxu0 %v6565
        %v6567 = vand.u32 %v6391, 4294901760
        %6568 = vmatpush.msra.mxu0 %v6567
        %v6569 = vand.u32 %v6390, 4294901760
        %6570 = vmatpush.msra.mxu0 %v6569
        %v6571 = vand.u32 %v6389, 4294901760
        %6572 = vmatpush.msra.mxu0 %v6571
        %v6573 = vand.u32 %v6388, 4294901760
        %6574 = vmatpush.msra.mxu0 %v6573
        %v6575 = vand.u32 %v6387, 4294901760
        %6576 = vmatpush.msra.mxu0 %v6575
        %v6577 = vand.u32 %v6386, 4294901760
        %6578 = vmatpush.msra.mxu0 %v6577
        %v6579 = vand.u32 %v6385, 4294901760
        %6580 = vmatpush.msra.mxu0 %v6579
        %v6581 = vand.u32 %v6384, 4294901760
        %6582 = vmatpush.msra.mxu0 %v6581
        %v6583 = vand.u32 %v6383, 4294901760
        %6584 = vmatpush.msra.mxu0 %v6583
        %v6585 = vand.u32 %v6382, 4294901760
        %6586 = vmatpush.msra.mxu0 %v6585
        %v6587 = vand.u32 %v6381, 4294901760
        %6588 = vmatpush.msra.mxu0 %v6587
        %v6589 = vand.u32 %v6395, 4294901760
        %v6590 = vsub.f32 %v6395, %v6589
        %v6591 = vand.u32 %v6590, 4294901760
        %6592 = vmatmul.f32.gmra.mxu0 %v6591
        %v6593 = vpop.f32.mrf.mxu0
        %v6594 = vadd.f32 %v6559, %v6593
        %6595 = vdwg.mxu0
        %6596 = vmatpush.msra.mxu0 0.0
        %6597 = vmatpush.msra.mxu0 0.0
        %6598 = vmatpush.msra.mxu0 0.0
        %6599 = vmatpush.msra.mxu0 0.0
        %v6600 = vand.u32 %v6392, 4294901760
        %v6601 = vsub.f32 %v6392, %v6600
        %v6602 = vand.u32 %v6601, 4294901760
        %6603 = vmatpush.msra.mxu0 %v6602
        %v6604 = vand.u32 %v6391, 4294901760
        %v6605 = vsub.f32 %v6391, %v6604
        %v6606 = vand.u32 %v6605, 4294901760
        %6607 = vmatpush.msra.mxu0 %v6606
        %v6608 = vand.u32 %v6390, 4294901760
        %v6609 = vsub.f32 %v6390, %v6608
        %v6610 = vand.u32 %v6609, 4294901760
        %6611 = vmatpush.msra.mxu0 %v6610
        %v6612 = vand.u32 %v6389, 4294901760
        %v6613 = vsub.f32 %v6389, %v6612
        %v6614 = vand.u32 %v6613, 4294901760
        %6615 = vmatpush.msra.mxu0 %v6614
        %v6616 = vand.u32 %v6388, 4294901760
        %v6617 = vsub.f32 %v6388, %v6616
        %v6618 = vand.u32 %v6617, 4294901760
        %6619 = vmatpush.msra.mxu0 %v6618
        %v6620 = vand.u32 %v6387, 4294901760
        %v6621 = vsub.f32 %v6387, %v6620
        %v6622 = vand.u32 %v6621, 4294901760
        %6623 = vmatpush.msra.mxu0 %v6622
        %v6624 = vand.u32 %v6386, 4294901760
        %v6625 = vsub.f32 %v6386, %v6624
        %v6626 = vand.u32 %v6625, 4294901760
        %6627 = vmatpush.msra.mxu0 %v6626
        %v6628 = vand.u32 %v6385, 4294901760
        %v6629 = vsub.f32 %v6385, %v6628
        %v6630 = vand.u32 %v6629, 4294901760
        %6631 = vmatpush.msra.mxu0 %v6630
        %v6632 = vand.u32 %v6384, 4294901760
        %v6633 = vsub.f32 %v6384, %v6632
        %v6634 = vand.u32 %v6633, 4294901760
        %6635 = vmatpush.msra.mxu0 %v6634
        %v6636 = vand.u32 %v6383, 4294901760
        %v6637 = vsub.f32 %v6383, %v6636
        %v6638 = vand.u32 %v6637, 4294901760
        %6639 = vmatpush.msra.mxu0 %v6638
        %v6640 = vand.u32 %v6382, 4294901760
        %v6641 = vsub.f32 %v6382, %v6640
        %v6642 = vand.u32 %v6641, 4294901760
        %6643 = vmatpush.msra.mxu0 %v6642
        %v6644 = vand.u32 %v6381, 4294901760
        %v6645 = vsub.f32 %v6381, %v6644
        %v6646 = vand.u32 %v6645, 4294901760
        %6647 = vmatpush.msra.mxu0 %v6646
        %v6648 = vand.u32 %v6395, 4294901760
        %6649 = vmatmul.f32.gmra.mxu0 %v6648
        %v6650 = vpop.f32.mrf.mxu0
        %v6651 = vadd.f32 %v6594, %v6650
        %6652 = vdwg.mxu0
        %6653 = vmatpush.msra.mxu0 0.0
        %6654 = vmatpush.msra.mxu0 0.0
        %6655 = vmatpush.msra.mxu0 0.0
        %6656 = vmatpush.msra.mxu0 0.0
        %v6657 = vand.u32 %v6392, 4294901760
        %6658 = vmatpush.msra.mxu0 %v6657
        %v6659 = vand.u32 %v6391, 4294901760
        %6660 = vmatpush.msra.mxu0 %v6659
        %v6661 = vand.u32 %v6390, 4294901760
        %6662 = vmatpush.msra.mxu0 %v6661
        %v6663 = vand.u32 %v6389, 4294901760
        %6664 = vmatpush.msra.mxu0 %v6663
        %v6665 = vand.u32 %v6388, 4294901760
        %6666 = vmatpush.msra.mxu0 %v6665
        %v6667 = vand.u32 %v6387, 4294901760
        %6668 = vmatpush.msra.mxu0 %v6667
        %v6669 = vand.u32 %v6386, 4294901760
        %6670 = vmatpush.msra.mxu0 %v6669
        %v6671 = vand.u32 %v6385, 4294901760
        %6672 = vmatpush.msra.mxu0 %v6671
        %v6673 = vand.u32 %v6384, 4294901760
        %6674 = vmatpush.msra.mxu0 %v6673
        %v6675 = vand.u32 %v6383, 4294901760
        %6676 = vmatpush.msra.mxu0 %v6675
        %v6677 = vand.u32 %v6382, 4294901760
        %6678 = vmatpush.msra.mxu0 %v6677
        %v6679 = vand.u32 %v6381, 4294901760
        %6680 = vmatpush.msra.mxu0 %v6679
        %v6681 = vand.u32 %v6395, 4294901760
        %6682 = vmatmul.f32.gmra.mxu0 %v6681
        %v6683 = vpop.f32.mrf.mxu0
        %v6684 = vadd.f32 %v6651, %v6683
        %6685 = vdwg.mxu0
        %v6686 = vadd.f32 %v6380, %v6684
        %s6687 = scalar_lea.vmem [#allocation7], 96
        %v6688 = vld [vmem:[%s6687] sm:$0xff]
        %v6689 = vld [vmem:[%s6687 + $0x8] sm:$0xff]
        %v6690 = vld [vmem:[%s6687 + $0x10] sm:$0xff]
        %v6691 = vld [vmem:[%s6687 + $0x18] sm:$0xff]
        %v6692 = vld [vmem:[%s6687 + $0x20] sm:$0xff]
        %v6693 = vld [vmem:[%s6687 + $0x28] sm:$0xff]
        %v6694 = vld [vmem:[%s6687 + $0x30] sm:$0xff]
        %v6695 = vld [vmem:[%s6687 + $0x38] sm:$0xff]
        %v6696 = vld [vmem:[%s6687 + $0x40] sm:$0xff]
        %v6697 = vld [vmem:[%s6687 + $0x48] sm:$0xff]
        %v6698 = vld [vmem:[%s6687 + $0x50] sm:$0xff]
        %v6699 = vld [vmem:[%s6687 + $0x58] sm:$0xff]
        %v6700 = vrot.slane %v6378, 1
        %v6701 = vsel %vm6393, %v6700, 0
        %6703 = vmatpush.msra.mxu0 0.0
        %6704 = vmatpush.msra.mxu0 0.0
        %6705 = vmatpush.msra.mxu0 0.0
        %6706 = vmatpush.msra.mxu0 0.0
        %v6707 = vand.u32 %v6699, 4294901760
        %6708 = vmatpush.msra.mxu0 %v6707
        %v6709 = vand.u32 %v6698, 4294901760
        %6710 = vmatpush.msra.mxu0 %v6709
        %v6711 = vand.u32 %v6697, 4294901760
        %6712 = vmatpush.msra.mxu0 %v6711
        %v6713 = vand.u32 %v6696, 4294901760
        %6714 = vmatpush.msra.mxu0 %v6713
        %v6715 = vand.u32 %v6695, 4294901760
        %6716 = vmatpush.msra.mxu0 %v6715
        %v6717 = vand.u32 %v6694, 4294901760
        %6718 = vmatpush.msra.mxu0 %v6717
        %v6719 = vand.u32 %v6693, 4294901760
        %6720 = vmatpush.msra.mxu0 %v6719
        %v6721 = vand.u32 %v6692, 4294901760
        %6722 = vmatpush.msra.mxu0 %v6721
        %v6723 = vand.u32 %v6691, 4294901760
        %6724 = vmatpush.msra.mxu0 %v6723
        %v6725 = vand.u32 %v6690, 4294901760
        %6726 = vmatpush.msra.mxu0 %v6725
        %v6727 = vand.u32 %v6689, 4294901760
        %6728 = vmatpush.msra.mxu0 %v6727
        %v6729 = vand.u32 %v6688, 4294901760
        %6730 = vmatpush.msra.mxu0 %v6729
        %v6731 = vand.u32 %v6701, 4294901760
        %v6732 = vsub.f32 %v6701, %v6731
        %v6733 = vand.u32 %v6732, 4294901760
        %v6734 = vsub.f32 %v6732, %v6733
        %v6735 = vand.u32 %v6734, 4294901760
        %6736 = vmatmul.f32.gmra.mxu0 %v6735
        %v6737 = vpop.f32.mrf.mxu0
        %v6738 = vadd.f32 0.0, %v6737
        %6739 = vdwg.mxu0
        %6740 = vmatpush.msra.mxu0 0.0
        %6741 = vmatpush.msra.mxu0 0.0
        %6742 = vmatpush.msra.mxu0 0.0
        %6743 = vmatpush.msra.mxu0 0.0
        %v6744 = vand.u32 %v6699, 4294901760
        %v6745 = vsub.f32 %v6699, %v6744
        %v6746 = vand.u32 %v6745, 4294901760
        %v6747 = vsub.f32 %v6745, %v6746
        %v6748 = vand.u32 %v6747, 4294901760
        %6749 = vmatpush.msra.mxu0 %v6748
        %v6750 = vand.u32 %v6698, 4294901760
        %v6751 = vsub.f32 %v6698, %v6750
        %v6752 = vand.u32 %v6751, 4294901760
        %v6753 = vsub.f32 %v6751, %v6752
        %v6754 = vand.u32 %v6753, 4294901760
        %6755 = vmatpush.msra.mxu0 %v6754
        %v6756 = vand.u32 %v6697, 4294901760
        %v6757 = vsub.f32 %v6697, %v6756
        %v6758 = vand.u32 %v6757, 4294901760
        %v6759 = vsub.f32 %v6757, %v6758
        %v6760 = vand.u32 %v6759, 4294901760
        %6761 = vmatpush.msra.mxu0 %v6760
        %v6762 = vand.u32 %v6696, 4294901760
        %v6763 = vsub.f32 %v6696, %v6762
        %v6764 = vand.u32 %v6763, 4294901760
        %v6765 = vsub.f32 %v6763, %v6764
        %v6766 = vand.u32 %v6765, 4294901760
        %6767 = vmatpush.msra.mxu0 %v6766
        %v6768 = vand.u32 %v6695, 4294901760
        %v6769 = vsub.f32 %v6695, %v6768
        %v6770 = vand.u32 %v6769, 4294901760
        %v6771 = vsub.f32 %v6769, %v6770
        %v6772 = vand.u32 %v6771, 4294901760
        %6773 = vmatpush.msra.mxu0 %v6772
        %v6774 = vand.u32 %v6694, 4294901760
        %v6775 = vsub.f32 %v6694, %v6774
        %v6776 = vand.u32 %v6775, 4294901760
        %v6777 = vsub.f32 %v6775, %v6776
        %v6778 = vand.u32 %v6777, 4294901760
        %6779 = vmatpush.msra.mxu0 %v6778
        %v6780 = vand.u32 %v6693, 4294901760
        %v6781 = vsub.f32 %v6693, %v6780
        %v6782 = vand.u32 %v6781, 4294901760
        %v6783 = vsub.f32 %v6781, %v6782
        %v6784 = vand.u32 %v6783, 4294901760
        %6785 = vmatpush.msra.mxu0 %v6784
        %v6786 = vand.u32 %v6692, 4294901760
        %v6787 = vsub.f32 %v6692, %v6786
        %v6788 = vand.u32 %v6787, 4294901760
        %v6789 = vsub.f32 %v6787, %v6788
        %v6790 = vand.u32 %v6789, 4294901760
        %6791 = vmatpush.msra.mxu0 %v6790
        %v6792 = vand.u32 %v6691, 4294901760
        %v6793 = vsub.f32 %v6691, %v6792
        %v6794 = vand.u32 %v6793, 4294901760
        %v6795 = vsub.f32 %v6793, %v6794
        %v6796 = vand.u32 %v6795, 4294901760
        %6797 = vmatpush.msra.mxu0 %v6796
        %v6798 = vand.u32 %v6690, 4294901760
        %v6799 = vsub.f32 %v6690, %v6798
        %v6800 = vand.u32 %v6799, 4294901760
        %v6801 = vsub.f32 %v6799, %v6800
        %v6802 = vand.u32 %v6801, 4294901760
        %6803 = vmatpush.msra.mxu0 %v6802
        %v6804 = vand.u32 %v6689, 4294901760
        %v6805 = vsub.f32 %v6689, %v6804
        %v6806 = vand.u32 %v6805, 4294901760
        %v6807 = vsub.f32 %v6805, %v6806
        %v6808 = vand.u32 %v6807, 4294901760
        %6809 = vmatpush.msra.mxu0 %v6808
        %v6810 = vand.u32 %v6688, 4294901760
        %v6811 = vsub.f32 %v6688, %v6810
        %v6812 = vand.u32 %v6811, 4294901760
        %v6813 = vsub.f32 %v6811, %v6812
        %v6814 = vand.u32 %v6813, 4294901760
        %6815 = vmatpush.msra.mxu0 %v6814
        %v6816 = vand.u32 %v6701, 4294901760
        %6817 = vmatmul.f32.gmra.mxu0 %v6816
        %v6818 = vpop.f32.mrf.mxu0
        %v6819 = vadd.f32 %v6738, %v6818
        %6820 = vdwg.mxu0
        %6821 = vmatpush.msra.mxu0 0.0
        %6822 = vmatpush.msra.mxu0 0.0
        %6823 = vmatpush.msra.mxu0 0.0
        %6824 = vmatpush.msra.mxu0 0.0
        %v6825 = vand.u32 %v6699, 4294901760
        %v6826 = vsub.f32 %v6699, %v6825
        %6827 = vmatpush.msra.mxu0 %v6826
        %v6828 = vand.u32 %v6698, 4294901760
        %v6829 = vsub.f32 %v6698, %v6828
        %6830 = vmatpush.msra.mxu0 %v6829
        %v6831 = vand.u32 %v6697, 4294901760
        %v6832 = vsub.f32 %v6697, %v6831
        %6833 = vmatpush.msra.mxu0 %v6832
        %v6834 = vand.u32 %v6696, 4294901760
        %v6835 = vsub.f32 %v6696, %v6834
        %6836 = vmatpush.msra.mxu0 %v6835
        %v6837 = vand.u32 %v6695, 4294901760
        %v6838 = vsub.f32 %v6695, %v6837
        %6839 = vmatpush.msra.mxu0 %v6838
        %v6840 = vand.u32 %v6694, 4294901760
        %v6841 = vsub.f32 %v6694, %v6840
        %6842 = vmatpush.msra.mxu0 %v6841
        %v6843 = vand.u32 %v6693, 4294901760
        %v6844 = vsub.f32 %v6693, %v6843
        %6845 = vmatpush.msra.mxu0 %v6844
        %v6846 = vand.u32 %v6692, 4294901760
        %v6847 = vsub.f32 %v6692, %v6846
        %6848 = vmatpush.msra.mxu0 %v6847
        %v6849 = vand.u32 %v6691, 4294901760
        %v6850 = vsub.f32 %v6691, %v6849
        %6851 = vmatpush.msra.mxu0 %v6850
        %v6852 = vand.u32 %v6690, 4294901760
        %v6853 = vsub.f32 %v6690, %v6852
        %6854 = vmatpush.msra.mxu0 %v6853
        %v6855 = vand.u32 %v6689, 4294901760
        %v6856 = vsub.f32 %v6689, %v6855
        %6857 = vmatpush.msra.mxu0 %v6856
        %v6858 = vand.u32 %v6688, 4294901760
        %v6859 = vsub.f32 %v6688, %v6858
        %6860 = vmatpush.msra.mxu0 %v6859
        %v6861 = vand.u32 %v6701, 4294901760
        %v6862 = vsub.f32 %v6701, %v6861
        %6863 = vmatmul.f32.gmra.mxu0 %v6862
        %v6864 = vpop.f32.mrf.mxu0
        %v6865 = vadd.f32 %v6819, %v6864
        %6866 = vdwg.mxu0
        %6867 = vmatpush.msra.mxu0 0.0
        %6868 = vmatpush.msra.mxu0 0.0
        %6869 = vmatpush.msra.mxu0 0.0
        %6870 = vmatpush.msra.mxu0 0.0
        %v6871 = vand.u32 %v6699, 4294901760
        %6872 = vmatpush.msra.mxu0 %v6871
        %v6873 = vand.u32 %v6698, 4294901760
        %6874 = vmatpush.msra.mxu0 %v6873
        %v6875 = vand.u32 %v6697, 4294901760
        %6876 = vmatpush.msra.mxu0 %v6875
        %v6877 = vand.u32 %v6696, 4294901760
        %6878 = vmatpush.msra.mxu0 %v6877
        %v6879 = vand.u32 %v6695, 4294901760
        %6880 = vmatpush.msra.mxu0 %v6879
        %v6881 = vand.u32 %v6694, 4294901760
        %6882 = vmatpush.msra.mxu0 %v6881
        %v6883 = vand.u32 %v6693, 4294901760
        %6884 = vmatpush.msra.mxu0 %v6883
        %v6885 = vand.u32 %v6692, 4294901760
        %6886 = vmatpush.msra.mxu0 %v6885
        %v6887 = vand.u32 %v6691, 4294901760
        %6888 = vmatpush.msra.mxu0 %v6887
        %v6889 = vand.u32 %v6690, 4294901760
        %6890 = vmatpush.msra.mxu0 %v6889
        %v6891 = vand.u32 %v6689, 4294901760
        %6892 = vmatpush.msra.mxu0 %v6891
        %v6893 = vand.u32 %v6688, 4294901760
        %6894 = vmatpush.msra.mxu0 %v6893
        %v6895 = vand.u32 %v6701, 4294901760
        %v6896 = vsub.f32 %v6701, %v6895
        %v6897 = vand.u32 %v6896, 4294901760
        %6898 = vmatmul.f32.gmra.mxu0 %v6897
        %v6899 = vpop.f32.mrf.mxu0
        %v6900 = vadd.f32 %v6865, %v6899
        %6901 = vdwg.mxu0
        %6902 = vmatpush.msra.mxu0 0.0
        %6903 = vmatpush.msra.mxu0 0.0
        %6904 = vmatpush.msra.mxu0 0.0
        %6905 = vmatpush.msra.mxu0 0.0
        %v6906 = vand.u32 %v6699, 4294901760
        %v6907 = vsub.f32 %v6699, %v6906
        %v6908 = vand.u32 %v6907, 4294901760
        %6909 = vmatpush.msra.mxu0 %v6908
        %v6910 = vand.u32 %v6698, 4294901760
        %v6911 = vsub.f32 %v6698, %v6910
        %v6912 = vand.u32 %v6911, 4294901760
        %6913 = vmatpush.msra.mxu0 %v6912
        %v6914 = vand.u32 %v6697, 4294901760
        %v6915 = vsub.f32 %v6697, %v6914
        %v6916 = vand.u32 %v6915, 4294901760
        %6917 = vmatpush.msra.mxu0 %v6916
        %v6918 = vand.u32 %v6696, 4294901760
        %v6919 = vsub.f32 %v6696, %v6918
        %v6920 = vand.u32 %v6919, 4294901760
        %6921 = vmatpush.msra.mxu0 %v6920
        %v6922 = vand.u32 %v6695, 4294901760
        %v6923 = vsub.f32 %v6695, %v6922
        %v6924 = vand.u32 %v6923, 4294901760
        %6925 = vmatpush.msra.mxu0 %v6924
        %v6926 = vand.u32 %v6694, 4294901760
        %v6927 = vsub.f32 %v6694, %v6926
        %v6928 = vand.u32 %v6927, 4294901760
        %6929 = vmatpush.msra.mxu0 %v6928
        %v6930 = vand.u32 %v6693, 4294901760
        %v6931 = vsub.f32 %v6693, %v6930
        %v6932 = vand.u32 %v6931, 4294901760
        %6933 = vmatpush.msra.mxu0 %v6932
        %v6934 = vand.u32 %v6692, 4294901760
        %v6935 = vsub.f32 %v6692, %v6934
        %v6936 = vand.u32 %v6935, 4294901760
        %6937 = vmatpush.msra.mxu0 %v6936
        %v6938 = vand.u32 %v6691, 4294901760
        %v6939 = vsub.f32 %v6691, %v6938
        %v6940 = vand.u32 %v6939, 4294901760
        %6941 = vmatpush.msra.mxu0 %v6940
        %v6942 = vand.u32 %v6690, 4294901760
        %v6943 = vsub.f32 %v6690, %v6942
        %v6944 = vand.u32 %v6943, 4294901760
        %6945 = vmatpush.msra.mxu0 %v6944
        %v6946 = vand.u32 %v6689, 4294901760
        %v6947 = vsub.f32 %v6689, %v6946
        %v6948 = vand.u32 %v6947, 4294901760
        %6949 = vmatpush.msra.mxu0 %v6948
        %v6950 = vand.u32 %v6688, 4294901760
        %v6951 = vsub.f32 %v6688, %v6950
        %v6952 = vand.u32 %v6951, 4294901760
        %6953 = vmatpush.msra.mxu0 %v6952
        %v6954 = vand.u32 %v6701, 4294901760
        %6955 = vmatmul.f32.gmra.mxu0 %v6954
        %v6956 = vpop.f32.mrf.mxu0
        %v6957 = vadd.f32 %v6900, %v6956
        %6958 = vdwg.mxu0
        %6959 = vmatpush.msra.mxu0 0.0
        %6960 = vmatpush.msra.mxu0 0.0
        %6961 = vmatpush.msra.mxu0 0.0
        %6962 = vmatpush.msra.mxu0 0.0
        %v6963 = vand.u32 %v6699, 4294901760
        %6964 = vmatpush.msra.mxu0 %v6963
        %v6965 = vand.u32 %v6698, 4294901760
        %6966 = vmatpush.msra.mxu0 %v6965
        %v6967 = vand.u32 %v6697, 4294901760
        %6968 = vmatpush.msra.mxu0 %v6967
        %v6969 = vand.u32 %v6696, 4294901760
        %6970 = vmatpush.msra.mxu0 %v6969
        %v6971 = vand.u32 %v6695, 4294901760
        %6972 = vmatpush.msra.mxu0 %v6971
        %v6973 = vand.u32 %v6694, 4294901760
        %6974 = vmatpush.msra.mxu0 %v6973
        %v6975 = vand.u32 %v6693, 4294901760
        %6976 = vmatpush.msra.mxu0 %v6975
        %v6977 = vand.u32 %v6692, 4294901760
        %6978 = vmatpush.msra.mxu0 %v6977
        %v6979 = vand.u32 %v6691, 4294901760
        %6980 = vmatpush.msra.mxu0 %v6979
        %v6981 = vand.u32 %v6690, 4294901760
        %6982 = vmatpush.msra.mxu0 %v6981
        %v6983 = vand.u32 %v6689, 4294901760
        %6984 = vmatpush.msra.mxu0 %v6983
        %v6985 = vand.u32 %v6688, 4294901760
        %6986 = vmatpush.msra.mxu0 %v6985
        %v6987 = vand.u32 %v6701, 4294901760
        %6988 = vmatmul.f32.gmra.mxu0 %v6987
        %v6989 = vpop.f32.mrf.mxu0
        %v6990 = vadd.f32 %v6957, %v6989
        %6991 = vdwg.mxu0
        %v6992 = vadd.f32 %v6686, %v6990
        %s6993 = scalar_lea.vmem [#allocation7], 192
        %v6994 = vld [vmem:[%s6993] sm:$0xff]
        %v6995 = vld [vmem:[%s6993 + $0x8] sm:$0xff]
        %v6996 = vld [vmem:[%s6993 + $0x10] sm:$0xff]
        %v6997 = vld [vmem:[%s6993 + $0x18] sm:$0xff]
        %v6998 = vld [vmem:[%s6993 + $0x20] sm:$0xff]
        %v6999 = vld [vmem:[%s6993 + $0x28] sm:$0xff]
        %v7000 = vld [vmem:[%s6993 + $0x30] sm:$0xff]
        %v7001 = vld [vmem:[%s6993 + $0x38] sm:$0xff]
        %v7002 = vld [vmem:[%s6993 + $0x40] sm:$0xff]
        %v7003 = vld [vmem:[%s6993 + $0x48] sm:$0xff]
        %v7004 = vld [vmem:[%s6993 + $0x50] sm:$0xff]
        %v7005 = vld [vmem:[%s6993 + $0x58] sm:$0xff]
        %v7006 = vrot.slane %v6378, 2
        %v7007 = vsel %vm6393, %v7006, 0
        %7009 = vmatpush.msra.mxu0 0.0
        %7010 = vmatpush.msra.mxu0 0.0
        %7011 = vmatpush.msra.mxu0 0.0
        %7012 = vmatpush.msra.mxu0 0.0
        %v7013 = vand.u32 %v7005, 4294901760
        %7014 = vmatpush.msra.mxu0 %v7013
        %v7015 = vand.u32 %v7004, 4294901760
        %7016 = vmatpush.msra.mxu0 %v7015
        %v7017 = vand.u32 %v7003, 4294901760
        %7018 = vmatpush.msra.mxu0 %v7017
        %v7019 = vand.u32 %v7002, 4294901760
        %7020 = vmatpush.msra.mxu0 %v7019
        %v7021 = vand.u32 %v7001, 4294901760
        %7022 = vmatpush.msra.mxu0 %v7021
        %v7023 = vand.u32 %v7000, 4294901760
        %7024 = vmatpush.msra.mxu0 %v7023
        %v7025 = vand.u32 %v6999, 4294901760
        %7026 = vmatpush.msra.mxu0 %v7025
        %v7027 = vand.u32 %v6998, 4294901760
        %7028 = vmatpush.msra.mxu0 %v7027
        %v7029 = vand.u32 %v6997, 4294901760
        %7030 = vmatpush.msra.mxu0 %v7029
        %v7031 = vand.u32 %v6996, 4294901760
        %7032 = vmatpush.msra.mxu0 %v7031
        %v7033 = vand.u32 %v6995, 4294901760
        %7034 = vmatpush.msra.mxu0 %v7033
        %v7035 = vand.u32 %v6994, 4294901760
        %7036 = vmatpush.msra.mxu0 %v7035
        %v7037 = vand.u32 %v7007, 4294901760
        %v7038 = vsub.f32 %v7007, %v7037
        %v7039 = vand.u32 %v7038, 4294901760
        %v7040 = vsub.f32 %v7038, %v7039
        %v7041 = vand.u32 %v7040, 4294901760
        %7042 = vmatmul.f32.gmra.mxu0 %v7041
        %v7043 = vpop.f32.mrf.mxu0
        %v7044 = vadd.f32 0.0, %v7043
        %7045 = vdwg.mxu0
        %7046 = vmatpush.msra.mxu0 0.0
        %7047 = vmatpush.msra.mxu0 0.0
        %7048 = vmatpush.msra.mxu0 0.0
        %7049 = vmatpush.msra.mxu0 0.0
        %v7050 = vand.u32 %v7005, 4294901760
        %v7051 = vsub.f32 %v7005, %v7050
        %v7052 = vand.u32 %v7051, 4294901760
        %v7053 = vsub.f32 %v7051, %v7052
        %v7054 = vand.u32 %v7053, 4294901760
        %7055 = vmatpush.msra.mxu0 %v7054
        %v7056 = vand.u32 %v7004, 4294901760
        %v7057 = vsub.f32 %v7004, %v7056
        %v7058 = vand.u32 %v7057, 4294901760
        %v7059 = vsub.f32 %v7057, %v7058
        %v7060 = vand.u32 %v7059, 4294901760
        %7061 = vmatpush.msra.mxu0 %v7060
        %v7062 = vand.u32 %v7003, 4294901760
        %v7063 = vsub.f32 %v7003, %v7062
        %v7064 = vand.u32 %v7063, 4294901760
        %v7065 = vsub.f32 %v7063, %v7064
        %v7066 = vand.u32 %v7065, 4294901760
        %7067 = vmatpush.msra.mxu0 %v7066
        %v7068 = vand.u32 %v7002, 4294901760
        %v7069 = vsub.f32 %v7002, %v7068
        %v7070 = vand.u32 %v7069, 4294901760
        %v7071 = vsub.f32 %v7069, %v7070
        %v7072 = vand.u32 %v7071, 4294901760
        %7073 = vmatpush.msra.mxu0 %v7072
        %v7074 = vand.u32 %v7001, 4294901760
        %v7075 = vsub.f32 %v7001, %v7074
        %v7076 = vand.u32 %v7075, 4294901760
        %v7077 = vsub.f32 %v7075, %v7076
        %v7078 = vand.u32 %v7077, 4294901760
        %7079 = vmatpush.msra.mxu0 %v7078
        %v7080 = vand.u32 %v7000, 4294901760
        %v7081 = vsub.f32 %v7000, %v7080
        %v7082 = vand.u32 %v7081, 4294901760
        %v7083 = vsub.f32 %v7081, %v7082
        %v7084 = vand.u32 %v7083, 4294901760
        %7085 = vmatpush.msra.mxu0 %v7084
        %v7086 = vand.u32 %v6999, 4294901760
        %v7087 = vsub.f32 %v6999, %v7086
        %v7088 = vand.u32 %v7087, 4294901760
        %v7089 = vsub.f32 %v7087, %v7088
        %v7090 = vand.u32 %v7089, 4294901760
        %7091 = vmatpush.msra.mxu0 %v7090
        %v7092 = vand.u32 %v6998, 4294901760
        %v7093 = vsub.f32 %v6998, %v7092
        %v7094 = vand.u32 %v7093, 4294901760
        %v7095 = vsub.f32 %v7093, %v7094
        %v7096 = vand.u32 %v7095, 4294901760
        %7097 = vmatpush.msra.mxu0 %v7096
        %v7098 = vand.u32 %v6997, 4294901760
        %v7099 = vsub.f32 %v6997, %v7098
        %v7100 = vand.u32 %v7099, 4294901760
        %v7101 = vsub.f32 %v7099, %v7100
        %v7102 = vand.u32 %v7101, 4294901760
        %7103 = vmatpush.msra.mxu0 %v7102
        %v7104 = vand.u32 %v6996, 4294901760
        %v7105 = vsub.f32 %v6996, %v7104
        %v7106 = vand.u32 %v7105, 4294901760
        %v7107 = vsub.f32 %v7105, %v7106
        %v7108 = vand.u32 %v7107, 4294901760
        %7109 = vmatpush.msra.mxu0 %v7108
        %v7110 = vand.u32 %v6995, 4294901760
        %v7111 = vsub.f32 %v6995, %v7110
        %v7112 = vand.u32 %v7111, 4294901760
        %v7113 = vsub.f32 %v7111, %v7112
        %v7114 = vand.u32 %v7113, 4294901760
        %7115 = vmatpush.msra.mxu0 %v7114
        %v7116 = vand.u32 %v6994, 4294901760
        %v7117 = vsub.f32 %v6994, %v7116
        %v7118 = vand.u32 %v7117, 4294901760
        %v7119 = vsub.f32 %v7117, %v7118
        %v7120 = vand.u32 %v7119, 4294901760
        %7121 = vmatpush.msra.mxu0 %v7120
        %v7122 = vand.u32 %v7007, 4294901760
        %7123 = vmatmul.f32.gmra.mxu0 %v7122
        %v7124 = vpop.f32.mrf.mxu0
        %v7125 = vadd.f32 %v7044, %v7124
        %7126 = vdwg.mxu0
        %7127 = vmatpush.msra.mxu0 0.0
        %7128 = vmatpush.msra.mxu0 0.0
        %7129 = vmatpush.msra.mxu0 0.0
        %7130 = vmatpush.msra.mxu0 0.0
        %v7131 = vand.u32 %v7005, 4294901760
        %v7132 = vsub.f32 %v7005, %v7131
        %7133 = vmatpush.msra.mxu0 %v7132
        %v7134 = vand.u32 %v7004, 4294901760
        %v7135 = vsub.f32 %v7004, %v7134
        %7136 = vmatpush.msra.mxu0 %v7135
        %v7137 = vand.u32 %v7003, 4294901760
        %v7138 = vsub.f32 %v7003, %v7137
        %7139 = vmatpush.msra.mxu0 %v7138
        %v7140 = vand.u32 %v7002, 4294901760
        %v7141 = vsub.f32 %v7002, %v7140
        %7142 = vmatpush.msra.mxu0 %v7141
        %v7143 = vand.u32 %v7001, 4294901760
        %v7144 = vsub.f32 %v7001, %v7143
        %7145 = vmatpush.msra.mxu0 %v7144
        %v7146 = vand.u32 %v7000, 4294901760
        %v7147 = vsub.f32 %v7000, %v7146
        %7148 = vmatpush.msra.mxu0 %v7147
        %v7149 = vand.u32 %v6999, 4294901760
        %v7150 = vsub.f32 %v6999, %v7149
        %7151 = vmatpush.msra.mxu0 %v7150
        %v7152 = vand.u32 %v6998, 4294901760
        %v7153 = vsub.f32 %v6998, %v7152
        %7154 = vmatpush.msra.mxu0 %v7153
        %v7155 = vand.u32 %v6997, 4294901760
        %v7156 = vsub.f32 %v6997, %v7155
        %7157 = vmatpush.msra.mxu0 %v7156
        %v7158 = vand.u32 %v6996, 4294901760
        %v7159 = vsub.f32 %v6996, %v7158
        %7160 = vmatpush.msra.mxu0 %v7159
        %v7161 = vand.u32 %v6995, 4294901760
        %v7162 = vsub.f32 %v6995, %v7161
        %7163 = vmatpush.msra.mxu0 %v7162
        %v7164 = vand.u32 %v6994, 4294901760
        %v7165 = vsub.f32 %v6994, %v7164
        %7166 = vmatpush.msra.mxu0 %v7165
        %v7167 = vand.u32 %v7007, 4294901760
        %v7168 = vsub.f32 %v7007, %v7167
        %7169 = vmatmul.f32.gmra.mxu0 %v7168
        %v7170 = vpop.f32.mrf.mxu0
        %v7171 = vadd.f32 %v7125, %v7170
        %7172 = vdwg.mxu0
        %7173 = vmatpush.msra.mxu0 0.0
        %7174 = vmatpush.msra.mxu0 0.0
        %7175 = vmatpush.msra.mxu0 0.0
        %7176 = vmatpush.msra.mxu0 0.0
        %v7177 = vand.u32 %v7005, 4294901760
        %7178 = vmatpush.msra.mxu0 %v7177
        %v7179 = vand.u32 %v7004, 4294901760
        %7180 = vmatpush.msra.mxu0 %v7179
        %v7181 = vand.u32 %v7003, 4294901760
        %7182 = vmatpush.msra.mxu0 %v7181
        %v7183 = vand.u32 %v7002, 4294901760
        %7184 = vmatpush.msra.mxu0 %v7183
        %v7185 = vand.u32 %v7001, 4294901760
        %7186 = vmatpush.msra.mxu0 %v7185
        %v7187 = vand.u32 %v7000, 4294901760
        %7188 = vmatpush.msra.mxu0 %v7187
        %v7189 = vand.u32 %v6999, 4294901760
        %7190 = vmatpush.msra.mxu0 %v7189
        %v7191 = vand.u32 %v6998, 4294901760
        %7192 = vmatpush.msra.mxu0 %v7191
        %v7193 = vand.u32 %v6997, 4294901760
        %7194 = vmatpush.msra.mxu0 %v7193
        %v7195 = vand.u32 %v6996, 4294901760
        %7196 = vmatpush.msra.mxu0 %v7195
        %v7197 = vand.u32 %v6995, 4294901760
        %7198 = vmatpush.msra.mxu0 %v7197
        %v7199 = vand.u32 %v6994, 4294901760
        %7200 = vmatpush.msra.mxu0 %v7199
        %v7201 = vand.u32 %v7007, 4294901760
        %v7202 = vsub.f32 %v7007, %v7201
        %v7203 = vand.u32 %v7202, 4294901760
        %7204 = vmatmul.f32.gmra.mxu0 %v7203
        %v7205 = vpop.f32.mrf.mxu0
        %v7206 = vadd.f32 %v7171, %v7205
        %7207 = vdwg.mxu0
        %7208 = vmatpush.msra.mxu0 0.0
        %7209 = vmatpush.msra.mxu0 0.0
        %7210 = vmatpush.msra.mxu0 0.0
        %7211 = vmatpush.msra.mxu0 0.0
        %v7212 = vand.u32 %v7005, 4294901760
        %v7213 = vsub.f32 %v7005, %v7212
        %v7214 = vand.u32 %v7213, 4294901760
        %7215 = vmatpush.msra.mxu0 %v7214
        %v7216 = vand.u32 %v7004, 4294901760
        %v7217 = vsub.f32 %v7004, %v7216
        %v7218 = vand.u32 %v7217, 4294901760
        %7219 = vmatpush.msra.mxu0 %v7218
        %v7220 = vand.u32 %v7003, 4294901760
        %v7221 = vsub.f32 %v7003, %v7220
        %v7222 = vand.u32 %v7221, 4294901760
        %7223 = vmatpush.msra.mxu0 %v7222
        %v7224 = vand.u32 %v7002, 4294901760
        %v7225 = vsub.f32 %v7002, %v7224
        %v7226 = vand.u32 %v7225, 4294901760
        %7227 = vmatpush.msra.mxu0 %v7226
        %v7228 = vand.u32 %v7001, 4294901760
        %v7229 = vsub.f32 %v7001, %v7228
        %v7230 = vand.u32 %v7229, 4294901760
        %7231 = vmatpush.msra.mxu0 %v7230
        %v7232 = vand.u32 %v7000, 4294901760
        %v7233 = vsub.f32 %v7000, %v7232
        %v7234 = vand.u32 %v7233, 4294901760
        %7235 = vmatpush.msra.mxu0 %v7234
        %v7236 = vand.u32 %v6999, 4294901760
        %v7237 = vsub.f32 %v6999, %v7236
        %v7238 = vand.u32 %v7237, 4294901760
        %7239 = vmatpush.msra.mxu0 %v7238
        %v7240 = vand.u32 %v6998, 4294901760
        %v7241 = vsub.f32 %v6998, %v7240
        %v7242 = vand.u32 %v7241, 4294901760
        %7243 = vmatpush.msra.mxu0 %v7242
        %v7244 = vand.u32 %v6997, 4294901760
        %v7245 = vsub.f32 %v6997, %v7244
        %v7246 = vand.u32 %v7245, 4294901760
        %7247 = vmatpush.msra.mxu0 %v7246
        %v7248 = vand.u32 %v6996, 4294901760
        %v7249 = vsub.f32 %v6996, %v7248
        %v7250 = vand.u32 %v7249, 4294901760
        %7251 = vmatpush.msra.mxu0 %v7250
        %v7252 = vand.u32 %v6995, 4294901760
        %v7253 = vsub.f32 %v6995, %v7252
        %v7254 = vand.u32 %v7253, 4294901760
        %7255 = vmatpush.msra.mxu0 %v7254
        %v7256 = vand.u32 %v6994, 4294901760
        %v7257 = vsub.f32 %v6994, %v7256
        %v7258 = vand.u32 %v7257, 4294901760
        %7259 = vmatpush.msra.mxu0 %v7258
        %v7260 = vand.u32 %v7007, 4294901760
        %7261 = vmatmul.f32.gmra.mxu0 %v7260
        %v7262 = vpop.f32.mrf.mxu0
        %v7263 = vadd.f32 %v7206, %v7262
        %7264 = vdwg.mxu0
        %7265 = vmatpush.msra.mxu0 0.0
        %7266 = vmatpush.msra.mxu0 0.0
        %7267 = vmatpush.msra.mxu0 0.0
        %7268 = vmatpush.msra.mxu0 0.0
        %v7269 = vand.u32 %v7005, 4294901760
        %7270 = vmatpush.msra.mxu0 %v7269
        %v7271 = vand.u32 %v7004, 4294901760
        %7272 = vmatpush.msra.mxu0 %v7271
        %v7273 = vand.u32 %v7003, 4294901760
        %7274 = vmatpush.msra.mxu0 %v7273
        %v7275 = vand.u32 %v7002, 4294901760
        %7276 = vmatpush.msra.mxu0 %v7275
        %v7277 = vand.u32 %v7001, 4294901760
        %7278 = vmatpush.msra.mxu0 %v7277
        %v7279 = vand.u32 %v7000, 4294901760
        %7280 = vmatpush.msra.mxu0 %v7279
        %v7281 = vand.u32 %v6999, 4294901760
        %7282 = vmatpush.msra.mxu0 %v7281
        %v7283 = vand.u32 %v6998, 4294901760
        %7284 = vmatpush.msra.mxu0 %v7283
        %v7285 = vand.u32 %v6997, 4294901760
        %7286 = vmatpush.msra.mxu0 %v7285
        %v7287 = vand.u32 %v6996, 4294901760
        %7288 = vmatpush.msra.mxu0 %v7287
        %v7289 = vand.u32 %v6995, 4294901760
        %7290 = vmatpush.msra.mxu0 %v7289
        %v7291 = vand.u32 %v6994, 4294901760
        %7292 = vmatpush.msra.mxu0 %v7291
        %v7293 = vand.u32 %v7007, 4294901760
        %7294 = vmatmul.f32.gmra.mxu0 %v7293
        %v7295 = vpop.f32.mrf.mxu0
        %v7296 = vadd.f32 %v7263, %v7295
        %7297 = vdwg.mxu0
        %v7298 = vadd.f32 %v6992, %v7296
        %s7299 = scalar_lea.vmem [#allocation7], 288
        %v7300 = vld [vmem:[%s7299] sm:$0xff]
        %v7301 = vld [vmem:[%s7299 + $0x8] sm:$0xff]
        %v7302 = vld [vmem:[%s7299 + $0x10] sm:$0xff]
        %v7303 = vld [vmem:[%s7299 + $0x18] sm:$0xff]
        %v7304 = vld [vmem:[%s7299 + $0x20] sm:$0xff]
        %v7305 = vld [vmem:[%s7299 + $0x28] sm:$0xff]
        %v7306 = vld [vmem:[%s7299 + $0x30] sm:$0xff]
        %v7307 = vld [vmem:[%s7299 + $0x38] sm:$0xff]
        %v7308 = vld [vmem:[%s7299 + $0x40] sm:$0xff]
        %v7309 = vld [vmem:[%s7299 + $0x48] sm:$0xff]
        %v7310 = vld [vmem:[%s7299 + $0x50] sm:$0xff]
        %v7311 = vld [vmem:[%s7299 + $0x58] sm:$0xff]
        %v7312 = vrot.slane %v6378, 3
        %v7313 = vsel %vm6393, %v7312, 0
        %7315 = vmatpush.msra.mxu0 0.0
        %7316 = vmatpush.msra.mxu0 0.0
        %7317 = vmatpush.msra.mxu0 0.0
        %7318 = vmatpush.msra.mxu0 0.0
        %v7319 = vand.u32 %v7311, 4294901760
        %7320 = vmatpush.msra.mxu0 %v7319
        %v7321 = vand.u32 %v7310, 4294901760
        %7322 = vmatpush.msra.mxu0 %v7321
        %v7323 = vand.u32 %v7309, 4294901760
        %7324 = vmatpush.msra.mxu0 %v7323
        %v7325 = vand.u32 %v7308, 4294901760
        %7326 = vmatpush.msra.mxu0 %v7325
        %v7327 = vand.u32 %v7307, 4294901760
        %7328 = vmatpush.msra.mxu0 %v7327
        %v7329 = vand.u32 %v7306, 4294901760
        %7330 = vmatpush.msra.mxu0 %v7329
        %v7331 = vand.u32 %v7305, 4294901760
        %7332 = vmatpush.msra.mxu0 %v7331
        %v7333 = vand.u32 %v7304, 4294901760
        %7334 = vmatpush.msra.mxu0 %v7333
        %v7335 = vand.u32 %v7303, 4294901760
        %7336 = vmatpush.msra.mxu0 %v7335
        %v7337 = vand.u32 %v7302, 4294901760
        %7338 = vmatpush.msra.mxu0 %v7337
        %v7339 = vand.u32 %v7301, 4294901760
        %7340 = vmatpush.msra.mxu0 %v7339
        %v7341 = vand.u32 %v7300, 4294901760
        %7342 = vmatpush.msra.mxu0 %v7341
        %v7343 = vand.u32 %v7313, 4294901760
        %v7344 = vsub.f32 %v7313, %v7343
        %v7345 = vand.u32 %v7344, 4294901760
        %v7346 = vsub.f32 %v7344, %v7345
        %v7347 = vand.u32 %v7346, 4294901760
        %7348 = vmatmul.f32.gmra.mxu0 %v7347
        %v7349 = vpop.f32.mrf.mxu0
        %v7350 = vadd.f32 0.0, %v7349
        %7351 = vdwg.mxu0
        %7352 = vmatpush.msra.mxu0 0.0
        %7353 = vmatpush.msra.mxu0 0.0
        %7354 = vmatpush.msra.mxu0 0.0
        %7355 = vmatpush.msra.mxu0 0.0
        %v7356 = vand.u32 %v7311, 4294901760
        %v7357 = vsub.f32 %v7311, %v7356
        %v7358 = vand.u32 %v7357, 4294901760
        %v7359 = vsub.f32 %v7357, %v7358
        %v7360 = vand.u32 %v7359, 4294901760
        %7361 = vmatpush.msra.mxu0 %v7360
        %v7362 = vand.u32 %v7310, 4294901760
        %v7363 = vsub.f32 %v7310, %v7362
        %v7364 = vand.u32 %v7363, 4294901760
        %v7365 = vsub.f32 %v7363, %v7364
        %v7366 = vand.u32 %v7365, 4294901760
        %7367 = vmatpush.msra.mxu0 %v7366
        %v7368 = vand.u32 %v7309, 4294901760
        %v7369 = vsub.f32 %v7309, %v7368
        %v7370 = vand.u32 %v7369, 4294901760
        %v7371 = vsub.f32 %v7369, %v7370
        %v7372 = vand.u32 %v7371, 4294901760
        %7373 = vmatpush.msra.mxu0 %v7372
        %v7374 = vand.u32 %v7308, 4294901760
        %v7375 = vsub.f32 %v7308, %v7374
        %v7376 = vand.u32 %v7375, 4294901760
        %v7377 = vsub.f32 %v7375, %v7376
        %v7378 = vand.u32 %v7377, 4294901760
        %7379 = vmatpush.msra.mxu0 %v7378
        %v7380 = vand.u32 %v7307, 4294901760
        %v7381 = vsub.f32 %v7307, %v7380
        %v7382 = vand.u32 %v7381, 4294901760
        %v7383 = vsub.f32 %v7381, %v7382
        %v7384 = vand.u32 %v7383, 4294901760
        %7385 = vmatpush.msra.mxu0 %v7384
        %v7386 = vand.u32 %v7306, 4294901760
        %v7387 = vsub.f32 %v7306, %v7386
        %v7388 = vand.u32 %v7387, 4294901760
        %v7389 = vsub.f32 %v7387, %v7388
        %v7390 = vand.u32 %v7389, 4294901760
        %7391 = vmatpush.msra.mxu0 %v7390
        %v7392 = vand.u32 %v7305, 4294901760
        %v7393 = vsub.f32 %v7305, %v7392
        %v7394 = vand.u32 %v7393, 4294901760
        %v7395 = vsub.f32 %v7393, %v7394
        %v7396 = vand.u32 %v7395, 4294901760
        %7397 = vmatpush.msra.mxu0 %v7396
        %v7398 = vand.u32 %v7304, 4294901760
        %v7399 = vsub.f32 %v7304, %v7398
        %v7400 = vand.u32 %v7399, 4294901760
        %v7401 = vsub.f32 %v7399, %v7400
        %v7402 = vand.u32 %v7401, 4294901760
        %7403 = vmatpush.msra.mxu0 %v7402
        %v7404 = vand.u32 %v7303, 4294901760
        %v7405 = vsub.f32 %v7303, %v7404
        %v7406 = vand.u32 %v7405, 4294901760
        %v7407 = vsub.f32 %v7405, %v7406
        %v7408 = vand.u32 %v7407, 4294901760
        %7409 = vmatpush.msra.mxu0 %v7408
        %v7410 = vand.u32 %v7302, 4294901760
        %v7411 = vsub.f32 %v7302, %v7410
        %v7412 = vand.u32 %v7411, 4294901760
        %v7413 = vsub.f32 %v7411, %v7412
        %v7414 = vand.u32 %v7413, 4294901760
        %7415 = vmatpush.msra.mxu0 %v7414
        %v7416 = vand.u32 %v7301, 4294901760
        %v7417 = vsub.f32 %v7301, %v7416
        %v7418 = vand.u32 %v7417, 4294901760
        %v7419 = vsub.f32 %v7417, %v7418
        %v7420 = vand.u32 %v7419, 4294901760
        %7421 = vmatpush.msra.mxu0 %v7420
        %v7422 = vand.u32 %v7300, 4294901760
        %v7423 = vsub.f32 %v7300, %v7422
        %v7424 = vand.u32 %v7423, 4294901760
        %v7425 = vsub.f32 %v7423, %v7424
        %v7426 = vand.u32 %v7425, 4294901760
        %7427 = vmatpush.msra.mxu0 %v7426
        %v7428 = vand.u32 %v7313, 4294901760
        %7429 = vmatmul.f32.gmra.mxu0 %v7428
        %v7430 = vpop.f32.mrf.mxu0
        %v7431 = vadd.f32 %v7350, %v7430
        %7432 = vdwg.mxu0
        %7433 = vmatpush.msra.mxu0 0.0
        %7434 = vmatpush.msra.mxu0 0.0
        %7435 = vmatpush.msra.mxu0 0.0
        %7436 = vmatpush.msra.mxu0 0.0
        %v7437 = vand.u32 %v7311, 4294901760
        %v7438 = vsub.f32 %v7311, %v7437
        %7439 = vmatpush.msra.mxu0 %v7438
        %v7440 = vand.u32 %v7310, 4294901760
        %v7441 = vsub.f32 %v7310, %v7440
        %7442 = vmatpush.msra.mxu0 %v7441
        %v7443 = vand.u32 %v7309, 4294901760
        %v7444 = vsub.f32 %v7309, %v7443
        %7445 = vmatpush.msra.mxu0 %v7444
        %v7446 = vand.u32 %v7308, 4294901760
        %v7447 = vsub.f32 %v7308, %v7446
        %7448 = vmatpush.msra.mxu0 %v7447
        %v7449 = vand.u32 %v7307, 4294901760
        %v7450 = vsub.f32 %v7307, %v7449
        %7451 = vmatpush.msra.mxu0 %v7450
        %v7452 = vand.u32 %v7306, 4294901760
        %v7453 = vsub.f32 %v7306, %v7452
        %7454 = vmatpush.msra.mxu0 %v7453
        %v7455 = vand.u32 %v7305, 4294901760
        %v7456 = vsub.f32 %v7305, %v7455
        %7457 = vmatpush.msra.mxu0 %v7456
        %v7458 = vand.u32 %v7304, 4294901760
        %v7459 = vsub.f32 %v7304, %v7458
        %7460 = vmatpush.msra.mxu0 %v7459
        %v7461 = vand.u32 %v7303, 4294901760
        %v7462 = vsub.f32 %v7303, %v7461
        %7463 = vmatpush.msra.mxu0 %v7462
        %v7464 = vand.u32 %v7302, 4294901760
        %v7465 = vsub.f32 %v7302, %v7464
        %7466 = vmatpush.msra.mxu0 %v7465
        %v7467 = vand.u32 %v7301, 4294901760
        %v7468 = vsub.f32 %v7301, %v7467
        %7469 = vmatpush.msra.mxu0 %v7468
        %v7470 = vand.u32 %v7300, 4294901760
        %v7471 = vsub.f32 %v7300, %v7470
        %7472 = vmatpush.msra.mxu0 %v7471
        %v7473 = vand.u32 %v7313, 4294901760
        %v7474 = vsub.f32 %v7313, %v7473
        %7475 = vmatmul.f32.gmra.mxu0 %v7474
        %v7476 = vpop.f32.mrf.mxu0
        %v7477 = vadd.f32 %v7431, %v7476
        %7478 = vdwg.mxu0
        %7479 = vmatpush.msra.mxu0 0.0
        %7480 = vmatpush.msra.mxu0 0.0
        %7481 = vmatpush.msra.mxu0 0.0
        %7482 = vmatpush.msra.mxu0 0.0
        %v7483 = vand.u32 %v7311, 4294901760
        %7484 = vmatpush.msra.mxu0 %v7483
        %v7485 = vand.u32 %v7310, 4294901760
        %7486 = vmatpush.msra.mxu0 %v7485
        %v7487 = vand.u32 %v7309, 4294901760
        %7488 = vmatpush.msra.mxu0 %v7487
        %v7489 = vand.u32 %v7308, 4294901760
        %7490 = vmatpush.msra.mxu0 %v7489
        %v7491 = vand.u32 %v7307, 4294901760
        %7492 = vmatpush.msra.mxu0 %v7491
        %v7493 = vand.u32 %v7306, 4294901760
        %7494 = vmatpush.msra.mxu0 %v7493
        %v7495 = vand.u32 %v7305, 4294901760
        %7496 = vmatpush.msra.mxu0 %v7495
        %v7497 = vand.u32 %v7304, 4294901760
        %7498 = vmatpush.msra.mxu0 %v7497
        %v7499 = vand.u32 %v7303, 4294901760
        %7500 = vmatpush.msra.mxu0 %v7499
        %v7501 = vand.u32 %v7302, 4294901760
        %7502 = vmatpush.msra.mxu0 %v7501
        %v7503 = vand.u32 %v7301, 4294901760
        %7504 = vmatpush.msra.mxu0 %v7503
        %v7505 = vand.u32 %v7300, 4294901760
        %7506 = vmatpush.msra.mxu0 %v7505
        %v7507 = vand.u32 %v7313, 4294901760
        %v7508 = vsub.f32 %v7313, %v7507
        %v7509 = vand.u32 %v7508, 4294901760
        %7510 = vmatmul.f32.gmra.mxu0 %v7509
        %v7511 = vpop.f32.mrf.mxu0
        %v7512 = vadd.f32 %v7477, %v7511
        %7513 = vdwg.mxu0
        %7514 = vmatpush.msra.mxu0 0.0
        %7515 = vmatpush.msra.mxu0 0.0
        %7516 = vmatpush.msra.mxu0 0.0
        %7517 = vmatpush.msra.mxu0 0.0
        %v7518 = vand.u32 %v7311, 4294901760
        %v7519 = vsub.f32 %v7311, %v7518
        %v7520 = vand.u32 %v7519, 4294901760
        %7521 = vmatpush.msra.mxu0 %v7520
        %v7522 = vand.u32 %v7310, 4294901760
        %v7523 = vsub.f32 %v7310, %v7522
        %v7524 = vand.u32 %v7523, 4294901760
        %7525 = vmatpush.msra.mxu0 %v7524
        %v7526 = vand.u32 %v7309, 4294901760
        %v7527 = vsub.f32 %v7309, %v7526
        %v7528 = vand.u32 %v7527, 4294901760
        %7529 = vmatpush.msra.mxu0 %v7528
        %v7530 = vand.u32 %v7308, 4294901760
        %v7531 = vsub.f32 %v7308, %v7530
        %v7532 = vand.u32 %v7531, 4294901760
        %7533 = vmatpush.msra.mxu0 %v7532
        %v7534 = vand.u32 %v7307, 4294901760
        %v7535 = vsub.f32 %v7307, %v7534
        %v7536 = vand.u32 %v7535, 4294901760
        %7537 = vmatpush.msra.mxu0 %v7536
        %v7538 = vand.u32 %v7306, 4294901760
        %v7539 = vsub.f32 %v7306, %v7538
        %v7540 = vand.u32 %v7539, 4294901760
        %7541 = vmatpush.msra.mxu0 %v7540
        %v7542 = vand.u32 %v7305, 4294901760
        %v7543 = vsub.f32 %v7305, %v7542
        %v7544 = vand.u32 %v7543, 4294901760
        %7545 = vmatpush.msra.mxu0 %v7544
        %v7546 = vand.u32 %v7304, 4294901760
        %v7547 = vsub.f32 %v7304, %v7546
        %v7548 = vand.u32 %v7547, 4294901760
        %7549 = vmatpush.msra.mxu0 %v7548
        %v7550 = vand.u32 %v7303, 4294901760
        %v7551 = vsub.f32 %v7303, %v7550
        %v7552 = vand.u32 %v7551, 4294901760
        %7553 = vmatpush.msra.mxu0 %v7552
        %v7554 = vand.u32 %v7302, 4294901760
        %v7555 = vsub.f32 %v7302, %v7554
        %v7556 = vand.u32 %v7555, 4294901760
        %7557 = vmatpush.msra.mxu0 %v7556
        %v7558 = vand.u32 %v7301, 4294901760
        %v7559 = vsub.f32 %v7301, %v7558
        %v7560 = vand.u32 %v7559, 4294901760
        %7561 = vmatpush.msra.mxu0 %v7560
        %v7562 = vand.u32 %v7300, 4294901760
        %v7563 = vsub.f32 %v7300, %v7562
        %v7564 = vand.u32 %v7563, 4294901760
        %7565 = vmatpush.msra.mxu0 %v7564
        %v7566 = vand.u32 %v7313, 4294901760
        %7567 = vmatmul.f32.gmra.mxu0 %v7566
        %v7568 = vpop.f32.mrf.mxu0
        %v7569 = vadd.f32 %v7512, %v7568
        %7570 = vdwg.mxu0
        %7571 = vmatpush.msra.mxu0 0.0
        %7572 = vmatpush.msra.mxu0 0.0
        %7573 = vmatpush.msra.mxu0 0.0
        %7574 = vmatpush.msra.mxu0 0.0
        %v7575 = vand.u32 %v7311, 4294901760
        %7576 = vmatpush.msra.mxu0 %v7575
        %v7577 = vand.u32 %v7310, 4294901760
        %7578 = vmatpush.msra.mxu0 %v7577
        %v7579 = vand.u32 %v7309, 4294901760
        %7580 = vmatpush.msra.mxu0 %v7579
        %v7581 = vand.u32 %v7308, 4294901760
        %7582 = vmatpush.msra.mxu0 %v7581
        %v7583 = vand.u32 %v7307, 4294901760
        %7584 = vmatpush.msra.mxu0 %v7583
        %v7585 = vand.u32 %v7306, 4294901760
        %7586 = vmatpush.msra.mxu0 %v7585
        %v7587 = vand.u32 %v7305, 4294901760
        %7588 = vmatpush.msra.mxu0 %v7587
        %v7589 = vand.u32 %v7304, 4294901760
        %7590 = vmatpush.msra.mxu0 %v7589
        %v7591 = vand.u32 %v7303, 4294901760
        %7592 = vmatpush.msra.mxu0 %v7591
        %v7593 = vand.u32 %v7302, 4294901760
        %7594 = vmatpush.msra.mxu0 %v7593
        %v7595 = vand.u32 %v7301, 4294901760
        %7596 = vmatpush.msra.mxu0 %v7595
        %v7597 = vand.u32 %v7300, 4294901760
        %7598 = vmatpush.msra.mxu0 %v7597
        %v7599 = vand.u32 %v7313, 4294901760
        %7600 = vmatmul.f32.gmra.mxu0 %v7599
        %v7601 = vpop.f32.mrf.mxu0
        %v7602 = vadd.f32 %v7569, %v7601
        %7603 = vdwg.mxu0
        %v7604 = vadd.f32 %v7298, %v7602
        %s7605 = scalar_lea.vmem [#allocation7], 384
        %v7606 = vld [vmem:[%s7605] sm:$0xff]
        %v7607 = vld [vmem:[%s7605 + $0x8] sm:$0xff]
        %v7608 = vld [vmem:[%s7605 + $0x10] sm:$0xff]
        %v7609 = vld [vmem:[%s7605 + $0x18] sm:$0xff]
        %v7610 = vld [vmem:[%s7605 + $0x20] sm:$0xff]
        %v7611 = vld [vmem:[%s7605 + $0x28] sm:$0xff]
        %v7612 = vld [vmem:[%s7605 + $0x30] sm:$0xff]
        %v7613 = vld [vmem:[%s7605 + $0x38] sm:$0xff]
        %v7614 = vld [vmem:[%s7605 + $0x40] sm:$0xff]
        %v7615 = vld [vmem:[%s7605 + $0x48] sm:$0xff]
        %v7616 = vld [vmem:[%s7605 + $0x50] sm:$0xff]
        %v7617 = vld [vmem:[%s7605 + $0x58] sm:$0xff]
        %v7618 = vrot.slane %v6378, 4
        %v7619 = vsel %vm6393, %v7618, 0
        %7621 = vmatpush.msra.mxu0 0.0
        %7622 = vmatpush.msra.mxu0 0.0
        %7623 = vmatpush.msra.mxu0 0.0
        %7624 = vmatpush.msra.mxu0 0.0
        %v7625 = vand.u32 %v7617, 4294901760
        %7626 = vmatpush.msra.mxu0 %v7625
        %v7627 = vand.u32 %v7616, 4294901760
        %7628 = vmatpush.msra.mxu0 %v7627
        %v7629 = vand.u32 %v7615, 4294901760
        %7630 = vmatpush.msra.mxu0 %v7629
        %v7631 = vand.u32 %v7614, 4294901760
        %7632 = vmatpush.msra.mxu0 %v7631
        %v7633 = vand.u32 %v7613, 4294901760
        %7634 = vmatpush.msra.mxu0 %v7633
        %v7635 = vand.u32 %v7612, 4294901760
        %7636 = vmatpush.msra.mxu0 %v7635
        %v7637 = vand.u32 %v7611, 4294901760
        %7638 = vmatpush.msra.mxu0 %v7637
        %v7639 = vand.u32 %v7610, 4294901760
        %7640 = vmatpush.msra.mxu0 %v7639
        %v7641 = vand.u32 %v7609, 4294901760
        %7642 = vmatpush.msra.mxu0 %v7641
        %v7643 = vand.u32 %v7608, 4294901760
        %7644 = vmatpush.msra.mxu0 %v7643
        %v7645 = vand.u32 %v7607, 4294901760
        %7646 = vmatpush.msra.mxu0 %v7645
        %v7647 = vand.u32 %v7606, 4294901760
        %7648 = vmatpush.msra.mxu0 %v7647
        %v7649 = vand.u32 %v7619, 4294901760
        %v7650 = vsub.f32 %v7619, %v7649
        %v7651 = vand.u32 %v7650, 4294901760
        %v7652 = vsub.f32 %v7650, %v7651
        %v7653 = vand.u32 %v7652, 4294901760
        %7654 = vmatmul.f32.gmra.mxu0 %v7653
        %v7655 = vpop.f32.mrf.mxu0
        %v7656 = vadd.f32 0.0, %v7655
        %7657 = vdwg.mxu0
        %7658 = vmatpush.msra.mxu0 0.0
        %7659 = vmatpush.msra.mxu0 0.0
        %7660 = vmatpush.msra.mxu0 0.0
        %7661 = vmatpush.msra.mxu0 0.0
        %v7662 = vand.u32 %v7617, 4294901760
        %v7663 = vsub.f32 %v7617, %v7662
        %v7664 = vand.u32 %v7663, 4294901760
        %v7665 = vsub.f32 %v7663, %v7664
        %v7666 = vand.u32 %v7665, 4294901760
        %7667 = vmatpush.msra.mxu0 %v7666
        %v7668 = vand.u32 %v7616, 4294901760
        %v7669 = vsub.f32 %v7616, %v7668
        %v7670 = vand.u32 %v7669, 4294901760
        %v7671 = vsub.f32 %v7669, %v7670
        %v7672 = vand.u32 %v7671, 4294901760
        %7673 = vmatpush.msra.mxu0 %v7672
        %v7674 = vand.u32 %v7615, 4294901760
        %v7675 = vsub.f32 %v7615, %v7674
        %v7676 = vand.u32 %v7675, 4294901760
        %v7677 = vsub.f32 %v7675, %v7676
        %v7678 = vand.u32 %v7677, 4294901760
        %7679 = vmatpush.msra.mxu0 %v7678
        %v7680 = vand.u32 %v7614, 4294901760
        %v7681 = vsub.f32 %v7614, %v7680
        %v7682 = vand.u32 %v7681, 4294901760
        %v7683 = vsub.f32 %v7681, %v7682
        %v7684 = vand.u32 %v7683, 4294901760
        %7685 = vmatpush.msra.mxu0 %v7684
        %v7686 = vand.u32 %v7613, 4294901760
        %v7687 = vsub.f32 %v7613, %v7686
        %v7688 = vand.u32 %v7687, 4294901760
        %v7689 = vsub.f32 %v7687, %v7688
        %v7690 = vand.u32 %v7689, 4294901760
        %7691 = vmatpush.msra.mxu0 %v7690
        %v7692 = vand.u32 %v7612, 4294901760
        %v7693 = vsub.f32 %v7612, %v7692
        %v7694 = vand.u32 %v7693, 4294901760
        %v7695 = vsub.f32 %v7693, %v7694
        %v7696 = vand.u32 %v7695, 4294901760
        %7697 = vmatpush.msra.mxu0 %v7696
        %v7698 = vand.u32 %v7611, 4294901760
        %v7699 = vsub.f32 %v7611, %v7698
        %v7700 = vand.u32 %v7699, 4294901760
        %v7701 = vsub.f32 %v7699, %v7700
        %v7702 = vand.u32 %v7701, 4294901760
        %7703 = vmatpush.msra.mxu0 %v7702
        %v7704 = vand.u32 %v7610, 4294901760
        %v7705 = vsub.f32 %v7610, %v7704
        %v7706 = vand.u32 %v7705, 4294901760
        %v7707 = vsub.f32 %v7705, %v7706
        %v7708 = vand.u32 %v7707, 4294901760
        %7709 = vmatpush.msra.mxu0 %v7708
        %v7710 = vand.u32 %v7609, 4294901760
        %v7711 = vsub.f32 %v7609, %v7710
        %v7712 = vand.u32 %v7711, 4294901760
        %v7713 = vsub.f32 %v7711, %v7712
        %v7714 = vand.u32 %v7713, 4294901760
        %7715 = vmatpush.msra.mxu0 %v7714
        %v7716 = vand.u32 %v7608, 4294901760
        %v7717 = vsub.f32 %v7608, %v7716
        %v7718 = vand.u32 %v7717, 4294901760
        %v7719 = vsub.f32 %v7717, %v7718
        %v7720 = vand.u32 %v7719, 4294901760
        %7721 = vmatpush.msra.mxu0 %v7720
        %v7722 = vand.u32 %v7607, 4294901760
        %v7723 = vsub.f32 %v7607, %v7722
        %v7724 = vand.u32 %v7723, 4294901760
        %v7725 = vsub.f32 %v7723, %v7724
        %v7726 = vand.u32 %v7725, 4294901760
        %7727 = vmatpush.msra.mxu0 %v7726
        %v7728 = vand.u32 %v7606, 4294901760
        %v7729 = vsub.f32 %v7606, %v7728
        %v7730 = vand.u32 %v7729, 4294901760
        %v7731 = vsub.f32 %v7729, %v7730
        %v7732 = vand.u32 %v7731, 4294901760
        %7733 = vmatpush.msra.mxu0 %v7732
        %v7734 = vand.u32 %v7619, 4294901760
        %7735 = vmatmul.f32.gmra.mxu0 %v7734
        %v7736 = vpop.f32.mrf.mxu0
        %v7737 = vadd.f32 %v7656, %v7736
        %7738 = vdwg.mxu0
        %7739 = vmatpush.msra.mxu0 0.0
        %7740 = vmatpush.msra.mxu0 0.0
        %7741 = vmatpush.msra.mxu0 0.0
        %7742 = vmatpush.msra.mxu0 0.0
        %v7743 = vand.u32 %v7617, 4294901760
        %v7744 = vsub.f32 %v7617, %v7743
        %7745 = vmatpush.msra.mxu0 %v7744
        %v7746 = vand.u32 %v7616, 4294901760
        %v7747 = vsub.f32 %v7616, %v7746
        %7748 = vmatpush.msra.mxu0 %v7747
        %v7749 = vand.u32 %v7615, 4294901760
        %v7750 = vsub.f32 %v7615, %v7749
        %7751 = vmatpush.msra.mxu0 %v7750
        %v7752 = vand.u32 %v7614, 4294901760
        %v7753 = vsub.f32 %v7614, %v7752
        %7754 = vmatpush.msra.mxu0 %v7753
        %v7755 = vand.u32 %v7613, 4294901760
        %v7756 = vsub.f32 %v7613, %v7755
        %7757 = vmatpush.msra.mxu0 %v7756
        %v7758 = vand.u32 %v7612, 4294901760
        %v7759 = vsub.f32 %v7612, %v7758
        %7760 = vmatpush.msra.mxu0 %v7759
        %v7761 = vand.u32 %v7611, 4294901760
        %v7762 = vsub.f32 %v7611, %v7761
        %7763 = vmatpush.msra.mxu0 %v7762
        %v7764 = vand.u32 %v7610, 4294901760
        %v7765 = vsub.f32 %v7610, %v7764
        %7766 = vmatpush.msra.mxu0 %v7765
        %v7767 = vand.u32 %v7609, 4294901760
        %v7768 = vsub.f32 %v7609, %v7767
        %7769 = vmatpush.msra.mxu0 %v7768
        %v7770 = vand.u32 %v7608, 4294901760
        %v7771 = vsub.f32 %v7608, %v7770
        %7772 = vmatpush.msra.mxu0 %v7771
        %v7773 = vand.u32 %v7607, 4294901760
        %v7774 = vsub.f32 %v7607, %v7773
        %7775 = vmatpush.msra.mxu0 %v7774
        %v7776 = vand.u32 %v7606, 4294901760
        %v7777 = vsub.f32 %v7606, %v7776
        %7778 = vmatpush.msra.mxu0 %v7777
        %v7779 = vand.u32 %v7619, 4294901760
        %v7780 = vsub.f32 %v7619, %v7779
        %7781 = vmatmul.f32.gmra.mxu0 %v7780
        %v7782 = vpop.f32.mrf.mxu0
        %v7783 = vadd.f32 %v7737, %v7782
        %7784 = vdwg.mxu0
        %7785 = vmatpush.msra.mxu0 0.0
        %7786 = vmatpush.msra.mxu0 0.0
        %7787 = vmatpush.msra.mxu0 0.0
        %7788 = vmatpush.msra.mxu0 0.0
        %v7789 = vand.u32 %v7617, 4294901760
        %7790 = vmatpush.msra.mxu0 %v7789
        %v7791 = vand.u32 %v7616, 4294901760
        %7792 = vmatpush.msra.mxu0 %v7791
        %v7793 = vand.u32 %v7615, 4294901760
        %7794 = vmatpush.msra.mxu0 %v7793
        %v7795 = vand.u32 %v7614, 4294901760
        %7796 = vmatpush.msra.mxu0 %v7795
        %v7797 = vand.u32 %v7613, 4294901760
        %7798 = vmatpush.msra.mxu0 %v7797
        %v7799 = vand.u32 %v7612, 4294901760
        %7800 = vmatpush.msra.mxu0 %v7799
        %v7801 = vand.u32 %v7611, 4294901760
        %7802 = vmatpush.msra.mxu0 %v7801
        %v7803 = vand.u32 %v7610, 4294901760
        %7804 = vmatpush.msra.mxu0 %v7803
        %v7805 = vand.u32 %v7609, 4294901760
        %7806 = vmatpush.msra.mxu0 %v7805
        %v7807 = vand.u32 %v7608, 4294901760
        %7808 = vmatpush.msra.mxu0 %v7807
        %v7809 = vand.u32 %v7607, 4294901760
        %7810 = vmatpush.msra.mxu0 %v7809
        %v7811 = vand.u32 %v7606, 4294901760
        %7812 = vmatpush.msra.mxu0 %v7811
        %v7813 = vand.u32 %v7619, 4294901760
        %v7814 = vsub.f32 %v7619, %v7813
        %v7815 = vand.u32 %v7814, 4294901760
        %7816 = vmatmul.f32.gmra.mxu0 %v7815
        %v7817 = vpop.f32.mrf.mxu0
        %v7818 = vadd.f32 %v7783, %v7817
        %7819 = vdwg.mxu0
        %7820 = vmatpush.msra.mxu0 0.0
        %7821 = vmatpush.msra.mxu0 0.0
        %7822 = vmatpush.msra.mxu0 0.0
        %7823 = vmatpush.msra.mxu0 0.0
        %v7824 = vand.u32 %v7617, 4294901760
        %v7825 = vsub.f32 %v7617, %v7824
        %v7826 = vand.u32 %v7825, 4294901760
        %7827 = vmatpush.msra.mxu0 %v7826
        %v7828 = vand.u32 %v7616, 4294901760
        %v7829 = vsub.f32 %v7616, %v7828
        %v7830 = vand.u32 %v7829, 4294901760
        %7831 = vmatpush.msra.mxu0 %v7830
        %v7832 = vand.u32 %v7615, 4294901760
        %v7833 = vsub.f32 %v7615, %v7832
        %v7834 = vand.u32 %v7833, 4294901760
        %7835 = vmatpush.msra.mxu0 %v7834
        %v7836 = vand.u32 %v7614, 4294901760
        %v7837 = vsub.f32 %v7614, %v7836
        %v7838 = vand.u32 %v7837, 4294901760
        %7839 = vmatpush.msra.mxu0 %v7838
        %v7840 = vand.u32 %v7613, 4294901760
        %v7841 = vsub.f32 %v7613, %v7840
        %v7842 = vand.u32 %v7841, 4294901760
        %7843 = vmatpush.msra.mxu0 %v7842
        %v7844 = vand.u32 %v7612, 4294901760
        %v7845 = vsub.f32 %v7612, %v7844
        %v7846 = vand.u32 %v7845, 4294901760
        %7847 = vmatpush.msra.mxu0 %v7846
        %v7848 = vand.u32 %v7611, 4294901760
        %v7849 = vsub.f32 %v7611, %v7848
        %v7850 = vand.u32 %v7849, 4294901760
        %7851 = vmatpush.msra.mxu0 %v7850
        %v7852 = vand.u32 %v7610, 4294901760
        %v7853 = vsub.f32 %v7610, %v7852
        %v7854 = vand.u32 %v7853, 4294901760
        %7855 = vmatpush.msra.mxu0 %v7854
        %v7856 = vand.u32 %v7609, 4294901760
        %v7857 = vsub.f32 %v7609, %v7856
        %v7858 = vand.u32 %v7857, 4294901760
        %7859 = vmatpush.msra.mxu0 %v7858
        %v7860 = vand.u32 %v7608, 4294901760
        %v7861 = vsub.f32 %v7608, %v7860
        %v7862 = vand.u32 %v7861, 4294901760
        %7863 = vmatpush.msra.mxu0 %v7862
        %v7864 = vand.u32 %v7607, 4294901760
        %v7865 = vsub.f32 %v7607, %v7864
        %v7866 = vand.u32 %v7865, 4294901760
        %7867 = vmatpush.msra.mxu0 %v7866
        %v7868 = vand.u32 %v7606, 4294901760
        %v7869 = vsub.f32 %v7606, %v7868
        %v7870 = vand.u32 %v7869, 4294901760
        %7871 = vmatpush.msra.mxu0 %v7870
        %v7872 = vand.u32 %v7619, 4294901760
        %7873 = vmatmul.f32.gmra.mxu0 %v7872
        %v7874 = vpop.f32.mrf.mxu0
        %v7875 = vadd.f32 %v7818, %v7874
        %7876 = vdwg.mxu0
        %7877 = vmatpush.msra.mxu0 0.0
        %7878 = vmatpush.msra.mxu0 0.0
        %7879 = vmatpush.msra.mxu0 0.0
        %7880 = vmatpush.msra.mxu0 0.0
        %v7881 = vand.u32 %v7617, 4294901760
        %7882 = vmatpush.msra.mxu0 %v7881
        %v7883 = vand.u32 %v7616, 4294901760
        %7884 = vmatpush.msra.mxu0 %v7883
        %v7885 = vand.u32 %v7615, 4294901760
        %7886 = vmatpush.msra.mxu0 %v7885
        %v7887 = vand.u32 %v7614, 4294901760
        %7888 = vmatpush.msra.mxu0 %v7887
        %v7889 = vand.u32 %v7613, 4294901760
        %7890 = vmatpush.msra.mxu0 %v7889
        %v7891 = vand.u32 %v7612, 4294901760
        %7892 = vmatpush.msra.mxu0 %v7891
        %v7893 = vand.u32 %v7611, 4294901760
        %7894 = vmatpush.msra.mxu0 %v7893
        %v7895 = vand.u32 %v7610, 4294901760
        %7896 = vmatpush.msra.mxu0 %v7895
        %v7897 = vand.u32 %v7609, 4294901760
        %7898 = vmatpush.msra.mxu0 %v7897
        %v7899 = vand.u32 %v7608, 4294901760
        %7900 = vmatpush.msra.mxu0 %v7899
        %v7901 = vand.u32 %v7607, 4294901760
        %7902 = vmatpush.msra.mxu0 %v7901
        %v7903 = vand.u32 %v7606, 4294901760
        %7904 = vmatpush.msra.mxu0 %v7903
        %v7905 = vand.u32 %v7619, 4294901760
        %7906 = vmatmul.f32.gmra.mxu0 %v7905
        %v7907 = vpop.f32.mrf.mxu0
        %v7908 = vadd.f32 %v7875, %v7907
        %7909 = vdwg.mxu0
        %v7910 = vadd.f32 %v7604, %v7908
        %s7911 = scalar_lea.vmem [#allocation7], 480
        %v7912 = vld [vmem:[%s7911] sm:$0xff]
        %v7913 = vld [vmem:[%s7911 + $0x8] sm:$0xff]
        %v7914 = vld [vmem:[%s7911 + $0x10] sm:$0xff]
        %v7915 = vld [vmem:[%s7911 + $0x18] sm:$0xff]
        %v7916 = vld [vmem:[%s7911 + $0x20] sm:$0xff]
        %v7917 = vld [vmem:[%s7911 + $0x28] sm:$0xff]
        %v7918 = vld [vmem:[%s7911 + $0x30] sm:$0xff]
        %v7919 = vld [vmem:[%s7911 + $0x38] sm:$0xff]
        %v7920 = vld [vmem:[%s7911 + $0x40] sm:$0xff]
        %v7921 = vld [vmem:[%s7911 + $0x48] sm:$0xff]
        %v7922 = vld [vmem:[%s7911 + $0x50] sm:$0xff]
        %v7923 = vld [vmem:[%s7911 + $0x58] sm:$0xff]
        %v7924 = vrot.slane %v6378, 5
        %v7925 = vsel %vm6393, %v7924, 0
        %7927 = vmatpush.msra.mxu0 0.0
        %7928 = vmatpush.msra.mxu0 0.0
        %7929 = vmatpush.msra.mxu0 0.0
        %7930 = vmatpush.msra.mxu0 0.0
        %v7931 = vand.u32 %v7923, 4294901760
        %7932 = vmatpush.msra.mxu0 %v7931
        %v7933 = vand.u32 %v7922, 4294901760
        %7934 = vmatpush.msra.mxu0 %v7933
        %v7935 = vand.u32 %v7921, 4294901760
        %7936 = vmatpush.msra.mxu0 %v7935
        %v7937 = vand.u32 %v7920, 4294901760
        %7938 = vmatpush.msra.mxu0 %v7937
        %v7939 = vand.u32 %v7919, 4294901760
        %7940 = vmatpush.msra.mxu0 %v7939
        %v7941 = vand.u32 %v7918, 4294901760
        %7942 = vmatpush.msra.mxu0 %v7941
        %v7943 = vand.u32 %v7917, 4294901760
        %7944 = vmatpush.msra.mxu0 %v7943
        %v7945 = vand.u32 %v7916, 4294901760
        %7946 = vmatpush.msra.mxu0 %v7945
        %v7947 = vand.u32 %v7915, 4294901760
        %7948 = vmatpush.msra.mxu0 %v7947
        %v7949 = vand.u32 %v7914, 4294901760
        %7950 = vmatpush.msra.mxu0 %v7949
        %v7951 = vand.u32 %v7913, 4294901760
        %7952 = vmatpush.msra.mxu0 %v7951
        %v7953 = vand.u32 %v7912, 4294901760
        %7954 = vmatpush.msra.mxu0 %v7953
        %v7955 = vand.u32 %v7925, 4294901760
        %v7956 = vsub.f32 %v7925, %v7955
        %v7957 = vand.u32 %v7956, 4294901760
        %v7958 = vsub.f32 %v7956, %v7957
        %v7959 = vand.u32 %v7958, 4294901760
        %7960 = vmatmul.f32.gmra.mxu0 %v7959
        %v7961 = vpop.f32.mrf.mxu0
        %v7962 = vadd.f32 0.0, %v7961
        %7963 = vdwg.mxu0
        %7964 = vmatpush.msra.mxu0 0.0
        %7965 = vmatpush.msra.mxu0 0.0
        %7966 = vmatpush.msra.mxu0 0.0
        %7967 = vmatpush.msra.mxu0 0.0
        %v7968 = vand.u32 %v7923, 4294901760
        %v7969 = vsub.f32 %v7923, %v7968
        %v7970 = vand.u32 %v7969, 4294901760
        %v7971 = vsub.f32 %v7969, %v7970
        %v7972 = vand.u32 %v7971, 4294901760
        %7973 = vmatpush.msra.mxu0 %v7972
        %v7974 = vand.u32 %v7922, 4294901760
        %v7975 = vsub.f32 %v7922, %v7974
        %v7976 = vand.u32 %v7975, 4294901760
        %v7977 = vsub.f32 %v7975, %v7976
        %v7978 = vand.u32 %v7977, 4294901760
        %7979 = vmatpush.msra.mxu0 %v7978
        %v7980 = vand.u32 %v7921, 4294901760
        %v7981 = vsub.f32 %v7921, %v7980
        %v7982 = vand.u32 %v7981, 4294901760
        %v7983 = vsub.f32 %v7981, %v7982
        %v7984 = vand.u32 %v7983, 4294901760
        %7985 = vmatpush.msra.mxu0 %v7984
        %v7986 = vand.u32 %v7920, 4294901760
        %v7987 = vsub.f32 %v7920, %v7986
        %v7988 = vand.u32 %v7987, 4294901760
        %v7989 = vsub.f32 %v7987, %v7988
        %v7990 = vand.u32 %v7989, 4294901760
        %7991 = vmatpush.msra.mxu0 %v7990
        %v7992 = vand.u32 %v7919, 4294901760
        %v7993 = vsub.f32 %v7919, %v7992
        %v7994 = vand.u32 %v7993, 4294901760
        %v7995 = vsub.f32 %v7993, %v7994
        %v7996 = vand.u32 %v7995, 4294901760
        %7997 = vmatpush.msra.mxu0 %v7996
        %v7998 = vand.u32 %v7918, 4294901760
        %v7999 = vsub.f32 %v7918, %v7998
        %v8000 = vand.u32 %v7999, 4294901760
        %v8001 = vsub.f32 %v7999, %v8000
        %v8002 = vand.u32 %v8001, 4294901760
        %8003 = vmatpush.msra.mxu0 %v8002
        %v8004 = vand.u32 %v7917, 4294901760
        %v8005 = vsub.f32 %v7917, %v8004
        %v8006 = vand.u32 %v8005, 4294901760
        %v8007 = vsub.f32 %v8005, %v8006
        %v8008 = vand.u32 %v8007, 4294901760
        %8009 = vmatpush.msra.mxu0 %v8008
        %v8010 = vand.u32 %v7916, 4294901760
        %v8011 = vsub.f32 %v7916, %v8010
        %v8012 = vand.u32 %v8011, 4294901760
        %v8013 = vsub.f32 %v8011, %v8012
        %v8014 = vand.u32 %v8013, 4294901760
        %8015 = vmatpush.msra.mxu0 %v8014
        %v8016 = vand.u32 %v7915, 4294901760
        %v8017 = vsub.f32 %v7915, %v8016
        %v8018 = vand.u32 %v8017, 4294901760
        %v8019 = vsub.f32 %v8017, %v8018
        %v8020 = vand.u32 %v8019, 4294901760
        %8021 = vmatpush.msra.mxu0 %v8020
        %v8022 = vand.u32 %v7914, 4294901760
        %v8023 = vsub.f32 %v7914, %v8022
        %v8024 = vand.u32 %v8023, 4294901760
        %v8025 = vsub.f32 %v8023, %v8024
        %v8026 = vand.u32 %v8025, 4294901760
        %8027 = vmatpush.msra.mxu0 %v8026
        %v8028 = vand.u32 %v7913, 4294901760
        %v8029 = vsub.f32 %v7913, %v8028
        %v8030 = vand.u32 %v8029, 4294901760
        %v8031 = vsub.f32 %v8029, %v8030
        %v8032 = vand.u32 %v8031, 4294901760
        %8033 = vmatpush.msra.mxu0 %v8032
        %v8034 = vand.u32 %v7912, 4294901760
        %v8035 = vsub.f32 %v7912, %v8034
        %v8036 = vand.u32 %v8035, 4294901760
        %v8037 = vsub.f32 %v8035, %v8036
        %v8038 = vand.u32 %v8037, 4294901760
        %8039 = vmatpush.msra.mxu0 %v8038
        %v8040 = vand.u32 %v7925, 4294901760
        %8041 = vmatmul.f32.gmra.mxu0 %v8040
        %v8042 = vpop.f32.mrf.mxu0
        %v8043 = vadd.f32 %v7962, %v8042
        %8044 = vdwg.mxu0
        %8045 = vmatpush.msra.mxu0 0.0
        %8046 = vmatpush.msra.mxu0 0.0
        %8047 = vmatpush.msra.mxu0 0.0
        %8048 = vmatpush.msra.mxu0 0.0
        %v8049 = vand.u32 %v7923, 4294901760
        %v8050 = vsub.f32 %v7923, %v8049
        %8051 = vmatpush.msra.mxu0 %v8050
        %v8052 = vand.u32 %v7922, 4294901760
        %v8053 = vsub.f32 %v7922, %v8052
        %8054 = vmatpush.msra.mxu0 %v8053
        %v8055 = vand.u32 %v7921, 4294901760
        %v8056 = vsub.f32 %v7921, %v8055
        %8057 = vmatpush.msra.mxu0 %v8056
        %v8058 = vand.u32 %v7920, 4294901760
        %v8059 = vsub.f32 %v7920, %v8058
        %8060 = vmatpush.msra.mxu0 %v8059
        %v8061 = vand.u32 %v7919, 4294901760
        %v8062 = vsub.f32 %v7919, %v8061
        %8063 = vmatpush.msra.mxu0 %v8062
        %v8064 = vand.u32 %v7918, 4294901760
        %v8065 = vsub.f32 %v7918, %v8064
        %8066 = vmatpush.msra.mxu0 %v8065
        %v8067 = vand.u32 %v7917, 4294901760
        %v8068 = vsub.f32 %v7917, %v8067
        %8069 = vmatpush.msra.mxu0 %v8068
        %v8070 = vand.u32 %v7916, 4294901760
        %v8071 = vsub.f32 %v7916, %v8070
        %8072 = vmatpush.msra.mxu0 %v8071
        %v8073 = vand.u32 %v7915, 4294901760
        %v8074 = vsub.f32 %v7915, %v8073
        %8075 = vmatpush.msra.mxu0 %v8074
        %v8076 = vand.u32 %v7914, 4294901760
        %v8077 = vsub.f32 %v7914, %v8076
        %8078 = vmatpush.msra.mxu0 %v8077
        %v8079 = vand.u32 %v7913, 4294901760
        %v8080 = vsub.f32 %v7913, %v8079
        %8081 = vmatpush.msra.mxu0 %v8080
        %v8082 = vand.u32 %v7912, 4294901760
        %v8083 = vsub.f32 %v7912, %v8082
        %8084 = vmatpush.msra.mxu0 %v8083
        %v8085 = vand.u32 %v7925, 4294901760
        %v8086 = vsub.f32 %v7925, %v8085
        %8087 = vmatmul.f32.gmra.mxu0 %v8086
        %v8088 = vpop.f32.mrf.mxu0
        %v8089 = vadd.f32 %v8043, %v8088
        %8090 = vdwg.mxu0
        %8091 = vmatpush.msra.mxu0 0.0
        %8092 = vmatpush.msra.mxu0 0.0
        %8093 = vmatpush.msra.mxu0 0.0
        %8094 = vmatpush.msra.mxu0 0.0
        %v8095 = vand.u32 %v7923, 4294901760
        %8096 = vmatpush.msra.mxu0 %v8095
        %v8097 = vand.u32 %v7922, 4294901760
        %8098 = vmatpush.msra.mxu0 %v8097
        %v8099 = vand.u32 %v7921, 4294901760
        %8100 = vmatpush.msra.mxu0 %v8099
        %v8101 = vand.u32 %v7920, 4294901760
        %8102 = vmatpush.msra.mxu0 %v8101
        %v8103 = vand.u32 %v7919, 4294901760
        %8104 = vmatpush.msra.mxu0 %v8103
        %v8105 = vand.u32 %v7918, 4294901760
        %8106 = vmatpush.msra.mxu0 %v8105
        %v8107 = vand.u32 %v7917, 4294901760
        %8108 = vmatpush.msra.mxu0 %v8107
        %v8109 = vand.u32 %v7916, 4294901760
        %8110 = vmatpush.msra.mxu0 %v8109
        %v8111 = vand.u32 %v7915, 4294901760
        %8112 = vmatpush.msra.mxu0 %v8111
        %v8113 = vand.u32 %v7914, 4294901760
        %8114 = vmatpush.msra.mxu0 %v8113
        %v8115 = vand.u32 %v7913, 4294901760
        %8116 = vmatpush.msra.mxu0 %v8115
        %v8117 = vand.u32 %v7912, 4294901760
        %8118 = vmatpush.msra.mxu0 %v8117
        %v8119 = vand.u32 %v7925, 4294901760
        %v8120 = vsub.f32 %v7925, %v8119
        %v8121 = vand.u32 %v8120, 4294901760
        %8122 = vmatmul.f32.gmra.mxu0 %v8121
        %v8123 = vpop.f32.mrf.mxu0
        %v8124 = vadd.f32 %v8089, %v8123
        %8125 = vdwg.mxu0
        %8126 = vmatpush.msra.mxu0 0.0
        %8127 = vmatpush.msra.mxu0 0.0
        %8128 = vmatpush.msra.mxu0 0.0
        %8129 = vmatpush.msra.mxu0 0.0
        %v8130 = vand.u32 %v7923, 4294901760
        %v8131 = vsub.f32 %v7923, %v8130
        %v8132 = vand.u32 %v8131, 4294901760
        %8133 = vmatpush.msra.mxu0 %v8132
        %v8134 = vand.u32 %v7922, 4294901760
        %v8135 = vsub.f32 %v7922, %v8134
        %v8136 = vand.u32 %v8135, 4294901760
        %8137 = vmatpush.msra.mxu0 %v8136
        %v8138 = vand.u32 %v7921, 4294901760
        %v8139 = vsub.f32 %v7921, %v8138
        %v8140 = vand.u32 %v8139, 4294901760
        %8141 = vmatpush.msra.mxu0 %v8140
        %v8142 = vand.u32 %v7920, 4294901760
        %v8143 = vsub.f32 %v7920, %v8142
        %v8144 = vand.u32 %v8143, 4294901760
        %8145 = vmatpush.msra.mxu0 %v8144
        %v8146 = vand.u32 %v7919, 4294901760
        %v8147 = vsub.f32 %v7919, %v8146
        %v8148 = vand.u32 %v8147, 4294901760
        %8149 = vmatpush.msra.mxu0 %v8148
        %v8150 = vand.u32 %v7918, 4294901760
        %v8151 = vsub.f32 %v7918, %v8150
        %v8152 = vand.u32 %v8151, 4294901760
        %8153 = vmatpush.msra.mxu0 %v8152
        %v8154 = vand.u32 %v7917, 4294901760
        %v8155 = vsub.f32 %v7917, %v8154
        %v8156 = vand.u32 %v8155, 4294901760
        %8157 = vmatpush.msra.mxu0 %v8156
        %v8158 = vand.u32 %v7916, 4294901760
        %v8159 = vsub.f32 %v7916, %v8158
        %v8160 = vand.u32 %v8159, 4294901760
        %8161 = vmatpush.msra.mxu0 %v8160
        %v8162 = vand.u32 %v7915, 4294901760
        %v8163 = vsub.f32 %v7915, %v8162
        %v8164 = vand.u32 %v8163, 4294901760
        %8165 = vmatpush.msra.mxu0 %v8164
        %v8166 = vand.u32 %v7914, 4294901760
        %v8167 = vsub.f32 %v7914, %v8166
        %v8168 = vand.u32 %v8167, 4294901760
        %8169 = vmatpush.msra.mxu0 %v8168
        %v8170 = vand.u32 %v7913, 4294901760
        %v8171 = vsub.f32 %v7913, %v8170
        %v8172 = vand.u32 %v8171, 4294901760
        %8173 = vmatpush.msra.mxu0 %v8172
        %v8174 = vand.u32 %v7912, 4294901760
        %v8175 = vsub.f32 %v7912, %v8174
        %v8176 = vand.u32 %v8175, 4294901760
        %8177 = vmatpush.msra.mxu0 %v8176
        %v8178 = vand.u32 %v7925, 4294901760
        %8179 = vmatmul.f32.gmra.mxu0 %v8178
        %v8180 = vpop.f32.mrf.mxu0
        %v8181 = vadd.f32 %v8124, %v8180
        %8182 = vdwg.mxu0
        %8183 = vmatpush.msra.mxu0 0.0
        %8184 = vmatpush.msra.mxu0 0.0
        %8185 = vmatpush.msra.mxu0 0.0
        %8186 = vmatpush.msra.mxu0 0.0
        %v8187 = vand.u32 %v7923, 4294901760
        %8188 = vmatpush.msra.mxu0 %v8187
        %v8189 = vand.u32 %v7922, 4294901760
        %8190 = vmatpush.msra.mxu0 %v8189
        %v8191 = vand.u32 %v7921, 4294901760
        %8192 = vmatpush.msra.mxu0 %v8191
        %v8193 = vand.u32 %v7920, 4294901760
        %8194 = vmatpush.msra.mxu0 %v8193
        %v8195 = vand.u32 %v7919, 4294901760
        %8196 = vmatpush.msra.mxu0 %v8195
        %v8197 = vand.u32 %v7918, 4294901760
        %8198 = vmatpush.msra.mxu0 %v8197
        %v8199 = vand.u32 %v7917, 4294901760
        %8200 = vmatpush.msra.mxu0 %v8199
        %v8201 = vand.u32 %v7916, 4294901760
        %8202 = vmatpush.msra.mxu0 %v8201
        %v8203 = vand.u32 %v7915, 4294901760
        %8204 = vmatpush.msra.mxu0 %v8203
        %v8205 = vand.u32 %v7914, 4294901760
        %8206 = vmatpush.msra.mxu0 %v8205
        %v8207 = vand.u32 %v7913, 4294901760
        %8208 = vmatpush.msra.mxu0 %v8207
        %v8209 = vand.u32 %v7912, 4294901760
        %8210 = vmatpush.msra.mxu0 %v8209
        %v8211 = vand.u32 %v7925, 4294901760
        %8212 = vmatmul.f32.gmra.mxu0 %v8211
        %v8213 = vpop.f32.mrf.mxu0
        %v8214 = vadd.f32 %v8181, %v8213
        %8215 = vdwg.mxu0
        %v8216 = vadd.f32 %v7910, %v8214
        %v8217 = vmax.f32 %v8216, 0.0
        %v8218 = vld [vmem:[%s11] sm:$0xff]
        %v8219 = vld [vmem:[%s11 + $0x8] sm:$0xff]
        %v8220 = vld [vmem:[%s11 + $0x10] sm:$0xff]
        %v8221 = vld [vmem:[%s11 + $0x18] sm:$0xff]
        %v8222 = vld [vmem:[%s11 + $0x20] sm:$0xff]
        %v8223 = vld [vmem:[%s11 + $0x28] sm:$0xff]
        %v8224 = vld [vmem:[%s11 + $0x30] sm:$0xff]
        %v8225 = vld [vmem:[%s11 + $0x38] sm:$0xff]
        %v8226 = vld [vmem:[%s11 + $0x40] sm:$0xff]
        %v8227 = vld [vmem:[%s11 + $0x48] sm:$0xff]
        %v8228 = vld [vmem:[%s11 + $0x50] sm:$0xff]
        %v8229 = vld [vmem:[%s11 + $0x58] sm:$0xff]
        %v8230 = vld [vmem:[%s11 + $0x60] sm:$0xff]
        %v8231 = vld [vmem:[%s11 + $0x68] sm:$0xff]
        %v8232 = vld [vmem:[%s11 + $0x70] sm:$0xff]
        %v8233 = vld [vmem:[%s11 + $0x78] sm:$0xff]
        %v8234 = vld [vmem:[%s12] sm:$0x1]
        %v8235 = vand.u32 %v8233, 4294901760
        %8236 = vmatpush.msra.mxu0 %v8235
        %v8237 = vand.u32 %v8232, 4294901760
        %8238 = vmatpush.msra.mxu0 %v8237
        %v8239 = vand.u32 %v8231, 4294901760
        %8240 = vmatpush.msra.mxu0 %v8239
        %v8241 = vand.u32 %v8230, 4294901760
        %8242 = vmatpush.msra.mxu0 %v8241
        %v8243 = vand.u32 %v8229, 4294901760
        %8244 = vmatpush.msra.mxu0 %v8243
        %v8245 = vand.u32 %v8228, 4294901760
        %8246 = vmatpush.msra.mxu0 %v8245
        %v8247 = vand.u32 %v8227, 4294901760
        %8248 = vmatpush.msra.mxu0 %v8247
        %v8249 = vand.u32 %v8226, 4294901760
        %8250 = vmatpush.msra.mxu0 %v8249
        %v8251 = vand.u32 %v8225, 4294901760
        %8252 = vmatpush.msra.mxu0 %v8251
        %v8253 = vand.u32 %v8224, 4294901760
        %8254 = vmatpush.msra.mxu0 %v8253
        %v8255 = vand.u32 %v8223, 4294901760
        %8256 = vmatpush.msra.mxu0 %v8255
        %v8257 = vand.u32 %v8222, 4294901760
        %8258 = vmatpush.msra.mxu0 %v8257
        %v8259 = vand.u32 %v8221, 4294901760
        %8260 = vmatpush.msra.mxu0 %v8259
        %v8261 = vand.u32 %v8220, 4294901760
        %8262 = vmatpush.msra.mxu0 %v8261
        %v8263 = vand.u32 %v8219, 4294901760
        %8264 = vmatpush.msra.mxu0 %v8263
        %v8265 = vand.u32 %v8218, 4294901760
        %8266 = vmatpush.msra.mxu0 %v8265
        %v8267 = vand.u32 %v8217, 4294901760
        %v8268 = vsub.f32 %v8217, %v8267
        %v8269 = vand.u32 %v8268, 4294901760
        %v8270 = vsub.f32 %v8268, %v8269
        %v8271 = vand.u32 %v8270, 4294901760
        %8272 = vmatmul.f32.gmra.mxu0 %v8271
        %v8273 = vpop.f32.mrf.mxu0
        %v8274 = vadd.f32 %v8234, %v8273
        %8275 = vdwg.mxu0
        %v8276 = vand.u32 %v8233, 4294901760
        %v8277 = vsub.f32 %v8233, %v8276
        %v8278 = vand.u32 %v8277, 4294901760
        %v8279 = vsub.f32 %v8277, %v8278
        %v8280 = vand.u32 %v8279, 4294901760
        %8281 = vmatpush.msra.mxu0 %v8280
        %v8282 = vand.u32 %v8232, 4294901760
        %v8283 = vsub.f32 %v8232, %v8282
        %v8284 = vand.u32 %v8283, 4294901760
        %v8285 = vsub.f32 %v8283, %v8284
        %v8286 = vand.u32 %v8285, 4294901760
        %8287 = vmatpush.msra.mxu0 %v8286
        %v8288 = vand.u32 %v8231, 4294901760
        %v8289 = vsub.f32 %v8231, %v8288
        %v8290 = vand.u32 %v8289, 4294901760
        %v8291 = vsub.f32 %v8289, %v8290
        %v8292 = vand.u32 %v8291, 4294901760
        %8293 = vmatpush.msra.mxu0 %v8292
        %v8294 = vand.u32 %v8230, 4294901760
        %v8295 = vsub.f32 %v8230, %v8294
        %v8296 = vand.u32 %v8295, 4294901760
        %v8297 = vsub.f32 %v8295, %v8296
        %v8298 = vand.u32 %v8297, 4294901760
        %8299 = vmatpush.msra.mxu0 %v8298
        %v8300 = vand.u32 %v8229, 4294901760
        %v8301 = vsub.f32 %v8229, %v8300
        %v8302 = vand.u32 %v8301, 4294901760
        %v8303 = vsub.f32 %v8301, %v8302
        %v8304 = vand.u32 %v8303, 4294901760
        %8305 = vmatpush.msra.mxu0 %v8304
        %v8306 = vand.u32 %v8228, 4294901760
        %v8307 = vsub.f32 %v8228, %v8306
        %v8308 = vand.u32 %v8307, 4294901760
        %v8309 = vsub.f32 %v8307, %v8308
        %v8310 = vand.u32 %v8309, 4294901760
        %8311 = vmatpush.msra.mxu0 %v8310
        %v8312 = vand.u32 %v8227, 4294901760
        %v8313 = vsub.f32 %v8227, %v8312
        %v8314 = vand.u32 %v8313, 4294901760
        %v8315 = vsub.f32 %v8313, %v8314
        %v8316 = vand.u32 %v8315, 4294901760
        %8317 = vmatpush.msra.mxu0 %v8316
        %v8318 = vand.u32 %v8226, 4294901760
        %v8319 = vsub.f32 %v8226, %v8318
        %v8320 = vand.u32 %v8319, 4294901760
        %v8321 = vsub.f32 %v8319, %v8320
        %v8322 = vand.u32 %v8321, 4294901760
        %8323 = vmatpush.msra.mxu0 %v8322
        %v8324 = vand.u32 %v8225, 4294901760
        %v8325 = vsub.f32 %v8225, %v8324
        %v8326 = vand.u32 %v8325, 4294901760
        %v8327 = vsub.f32 %v8325, %v8326
        %v8328 = vand.u32 %v8327, 4294901760
        %8329 = vmatpush.msra.mxu0 %v8328
        %v8330 = vand.u32 %v8224, 4294901760
        %v8331 = vsub.f32 %v8224, %v8330
        %v8332 = vand.u32 %v8331, 4294901760
        %v8333 = vsub.f32 %v8331, %v8332
        %v8334 = vand.u32 %v8333, 4294901760
        %8335 = vmatpush.msra.mxu0 %v8334
        %v8336 = vand.u32 %v8223, 4294901760
        %v8337 = vsub.f32 %v8223, %v8336
        %v8338 = vand.u32 %v8337, 4294901760
        %v8339 = vsub.f32 %v8337, %v8338
        %v8340 = vand.u32 %v8339, 4294901760
        %8341 = vmatpush.msra.mxu0 %v8340
        %v8342 = vand.u32 %v8222, 4294901760
        %v8343 = vsub.f32 %v8222, %v8342
        %v8344 = vand.u32 %v8343, 4294901760
        %v8345 = vsub.f32 %v8343, %v8344
        %v8346 = vand.u32 %v8345, 4294901760
        %8347 = vmatpush.msra.mxu0 %v8346
        %v8348 = vand.u32 %v8221, 4294901760
        %v8349 = vsub.f32 %v8221, %v8348
        %v8350 = vand.u32 %v8349, 4294901760
        %v8351 = vsub.f32 %v8349, %v8350
        %v8352 = vand.u32 %v8351, 4294901760
        %8353 = vmatpush.msra.mxu0 %v8352
        %v8354 = vand.u32 %v8220, 4294901760
        %v8355 = vsub.f32 %v8220, %v8354
        %v8356 = vand.u32 %v8355, 4294901760
        %v8357 = vsub.f32 %v8355, %v8356
        %v8358 = vand.u32 %v8357, 4294901760
        %8359 = vmatpush.msra.mxu0 %v8358
        %v8360 = vand.u32 %v8219, 4294901760
        %v8361 = vsub.f32 %v8219, %v8360
        %v8362 = vand.u32 %v8361, 4294901760
        %v8363 = vsub.f32 %v8361, %v8362
        %v8364 = vand.u32 %v8363, 4294901760
        %8365 = vmatpush.msra.mxu0 %v8364
        %v8366 = vand.u32 %v8218, 4294901760
        %v8367 = vsub.f32 %v8218, %v8366
        %v8368 = vand.u32 %v8367, 4294901760
        %v8369 = vsub.f32 %v8367, %v8368
        %v8370 = vand.u32 %v8369, 4294901760
        %8371 = vmatpush.msra.mxu0 %v8370
        %v8372 = vand.u32 %v8217, 4294901760
        %8373 = vmatmul.f32.gmra.mxu0 %v8372
        %v8374 = vpop.f32.mrf.mxu0
        %v8375 = vadd.f32 %v8274, %v8374
        %8376 = vdwg.mxu0
        %v8377 = vand.u32 %v8233, 4294901760
        %v8378 = vsub.f32 %v8233, %v8377
        %8379 = vmatpush.msra.mxu0 %v8378
        %v8380 = vand.u32 %v8232, 4294901760
        %v8381 = vsub.f32 %v8232, %v8380
        %8382 = vmatpush.msra.mxu0 %v8381
        %v8383 = vand.u32 %v8231, 4294901760
        %v8384 = vsub.f32 %v8231, %v8383
        %8385 = vmatpush.msra.mxu0 %v8384
        %v8386 = vand.u32 %v8230, 4294901760
        %v8387 = vsub.f32 %v8230, %v8386
        %8388 = vmatpush.msra.mxu0 %v8387
        %v8389 = vand.u32 %v8229, 4294901760
        %v8390 = vsub.f32 %v8229, %v8389
        %8391 = vmatpush.msra.mxu0 %v8390
        %v8392 = vand.u32 %v8228, 4294901760
        %v8393 = vsub.f32 %v8228, %v8392
        %8394 = vmatpush.msra.mxu0 %v8393
        %v8395 = vand.u32 %v8227, 4294901760
        %v8396 = vsub.f32 %v8227, %v8395
        %8397 = vmatpush.msra.mxu0 %v8396
        %v8398 = vand.u32 %v8226, 4294901760
        %v8399 = vsub.f32 %v8226, %v8398
        %8400 = vmatpush.msra.mxu0 %v8399
        %v8401 = vand.u32 %v8225, 4294901760
        %v8402 = vsub.f32 %v8225, %v8401
        %8403 = vmatpush.msra.mxu0 %v8402
        %v8404 = vand.u32 %v8224, 4294901760
        %v8405 = vsub.f32 %v8224, %v8404
        %8406 = vmatpush.msra.mxu0 %v8405
        %v8407 = vand.u32 %v8223, 4294901760
        %v8408 = vsub.f32 %v8223, %v8407
        %8409 = vmatpush.msra.mxu0 %v8408
        %v8410 = vand.u32 %v8222, 4294901760
        %v8411 = vsub.f32 %v8222, %v8410
        %8412 = vmatpush.msra.mxu0 %v8411
        %v8413 = vand.u32 %v8221, 4294901760
        %v8414 = vsub.f32 %v8221, %v8413
        %8415 = vmatpush.msra.mxu0 %v8414
        %v8416 = vand.u32 %v8220, 4294901760
        %v8417 = vsub.f32 %v8220, %v8416
        %8418 = vmatpush.msra.mxu0 %v8417
        %v8419 = vand.u32 %v8219, 4294901760
        %v8420 = vsub.f32 %v8219, %v8419
        %8421 = vmatpush.msra.mxu0 %v8420
        %v8422 = vand.u32 %v8218, 4294901760
        %v8423 = vsub.f32 %v8218, %v8422
        %8424 = vmatpush.msra.mxu0 %v8423
        %v8425 = vand.u32 %v8217, 4294901760
        %v8426 = vsub.f32 %v8217, %v8425
        %8427 = vmatmul.f32.gmra.mxu0 %v8426
        %v8428 = vpop.f32.mrf.mxu0
        %v8429 = vadd.f32 %v8375, %v8428
        %8430 = vdwg.mxu0
        %v8431 = vand.u32 %v8233, 4294901760
        %8432 = vmatpush.msra.mxu0 %v8431
        %v8433 = vand.u32 %v8232, 4294901760
        %8434 = vmatpush.msra.mxu0 %v8433
        %v8435 = vand.u32 %v8231, 4294901760
        %8436 = vmatpush.msra.mxu0 %v8435
        %v8437 = vand.u32 %v8230, 4294901760
        %8438 = vmatpush.msra.mxu0 %v8437
        %v8439 = vand.u32 %v8229, 4294901760
        %8440 = vmatpush.msra.mxu0 %v8439
        %v8441 = vand.u32 %v8228, 4294901760
        %8442 = vmatpush.msra.mxu0 %v8441
        %v8443 = vand.u32 %v8227, 4294901760
        %8444 = vmatpush.msra.mxu0 %v8443
        %v8445 = vand.u32 %v8226, 4294901760
        %8446 = vmatpush.msra.mxu0 %v8445
        %v8447 = vand.u32 %v8225, 4294901760
        %8448 = vmatpush.msra.mxu0 %v8447
        %v8449 = vand.u32 %v8224, 4294901760
        %8450 = vmatpush.msra.mxu0 %v8449
        %v8451 = vand.u32 %v8223, 4294901760
        %8452 = vmatpush.msra.mxu0 %v8451
        %v8453 = vand.u32 %v8222, 4294901760
        %8454 = vmatpush.msra.mxu0 %v8453
        %v8455 = vand.u32 %v8221, 4294901760
        %8456 = vmatpush.msra.mxu0 %v8455
        %v8457 = vand.u32 %v8220, 4294901760
        %8458 = vmatpush.msra.mxu0 %v8457
        %v8459 = vand.u32 %v8219, 4294901760
        %8460 = vmatpush.msra.mxu0 %v8459
        %v8461 = vand.u32 %v8218, 4294901760
        %8462 = vmatpush.msra.mxu0 %v8461
        %v8463 = vand.u32 %v8217, 4294901760
        %v8464 = vsub.f32 %v8217, %v8463
        %v8465 = vand.u32 %v8464, 4294901760
        %8466 = vmatmul.f32.gmra.mxu0 %v8465
        %v8467 = vpop.f32.mrf.mxu0
        %v8468 = vadd.f32 %v8429, %v8467
        %8469 = vdwg.mxu0
        %v8470 = vand.u32 %v8233, 4294901760
        %v8471 = vsub.f32 %v8233, %v8470
        %v8472 = vand.u32 %v8471, 4294901760
        %8473 = vmatpush.msra.mxu0 %v8472
        %v8474 = vand.u32 %v8232, 4294901760
        %v8475 = vsub.f32 %v8232, %v8474
        %v8476 = vand.u32 %v8475, 4294901760
        %8477 = vmatpush.msra.mxu0 %v8476
        %v8478 = vand.u32 %v8231, 4294901760
        %v8479 = vsub.f32 %v8231, %v8478
        %v8480 = vand.u32 %v8479, 4294901760
        %8481 = vmatpush.msra.mxu0 %v8480
        %v8482 = vand.u32 %v8230, 4294901760
        %v8483 = vsub.f32 %v8230, %v8482
        %v8484 = vand.u32 %v8483, 4294901760
        %8485 = vmatpush.msra.mxu0 %v8484
        %v8486 = vand.u32 %v8229, 4294901760
        %v8487 = vsub.f32 %v8229, %v8486
        %v8488 = vand.u32 %v8487, 4294901760
        %8489 = vmatpush.msra.mxu0 %v8488
        %v8490 = vand.u32 %v8228, 4294901760
        %v8491 = vsub.f32 %v8228, %v8490
        %v8492 = vand.u32 %v8491, 4294901760
        %8493 = vmatpush.msra.mxu0 %v8492
        %v8494 = vand.u32 %v8227, 4294901760
        %v8495 = vsub.f32 %v8227, %v8494
        %v8496 = vand.u32 %v8495, 4294901760
        %8497 = vmatpush.msra.mxu0 %v8496
        %v8498 = vand.u32 %v8226, 4294901760
        %v8499 = vsub.f32 %v8226, %v8498
        %v8500 = vand.u32 %v8499, 4294901760
        %8501 = vmatpush.msra.mxu0 %v8500
        %v8502 = vand.u32 %v8225, 4294901760
        %v8503 = vsub.f32 %v8225, %v8502
        %v8504 = vand.u32 %v8503, 4294901760
        %8505 = vmatpush.msra.mxu0 %v8504
        %v8506 = vand.u32 %v8224, 4294901760
        %v8507 = vsub.f32 %v8224, %v8506
        %v8508 = vand.u32 %v8507, 4294901760
        %8509 = vmatpush.msra.mxu0 %v8508
        %v8510 = vand.u32 %v8223, 4294901760
        %v8511 = vsub.f32 %v8223, %v8510
        %v8512 = vand.u32 %v8511, 4294901760
        %8513 = vmatpush.msra.mxu0 %v8512
        %v8514 = vand.u32 %v8222, 4294901760
        %v8515 = vsub.f32 %v8222, %v8514
        %v8516 = vand.u32 %v8515, 4294901760
        %8517 = vmatpush.msra.mxu0 %v8516
        %v8518 = vand.u32 %v8221, 4294901760
        %v8519 = vsub.f32 %v8221, %v8518
        %v8520 = vand.u32 %v8519, 4294901760
        %8521 = vmatpush.msra.mxu0 %v8520
        %v8522 = vand.u32 %v8220, 4294901760
        %v8523 = vsub.f32 %v8220, %v8522
        %v8524 = vand.u32 %v8523, 4294901760
        %8525 = vmatpush.msra.mxu0 %v8524
        %v8526 = vand.u32 %v8219, 4294901760
        %v8527 = vsub.f32 %v8219, %v8526
        %v8528 = vand.u32 %v8527, 4294901760
        %8529 = vmatpush.msra.mxu0 %v8528
        %v8530 = vand.u32 %v8218, 4294901760
        %v8531 = vsub.f32 %v8218, %v8530
        %v8532 = vand.u32 %v8531, 4294901760
        %8533 = vmatpush.msra.mxu0 %v8532
        %v8534 = vand.u32 %v8217, 4294901760
        %8535 = vmatmul.f32.gmra.mxu0 %v8534
        %v8536 = vpop.f32.mrf.mxu0
        %v8537 = vadd.f32 %v8468, %v8536
        %8538 = vdwg.mxu0
        %v8539 = vand.u32 %v8233, 4294901760
        %8540 = vmatpush.msra.mxu0 %v8539
        %v8541 = vand.u32 %v8232, 4294901760
        %8542 = vmatpush.msra.mxu0 %v8541
        %v8543 = vand.u32 %v8231, 4294901760
        %8544 = vmatpush.msra.mxu0 %v8543
        %v8545 = vand.u32 %v8230, 4294901760
        %8546 = vmatpush.msra.mxu0 %v8545
        %v8547 = vand.u32 %v8229, 4294901760
        %8548 = vmatpush.msra.mxu0 %v8547
        %v8549 = vand.u32 %v8228, 4294901760
        %8550 = vmatpush.msra.mxu0 %v8549
        %v8551 = vand.u32 %v8227, 4294901760
        %8552 = vmatpush.msra.mxu0 %v8551
        %v8553 = vand.u32 %v8226, 4294901760
        %8554 = vmatpush.msra.mxu0 %v8553
        %v8555 = vand.u32 %v8225, 4294901760
        %8556 = vmatpush.msra.mxu0 %v8555
        %v8557 = vand.u32 %v8224, 4294901760
        %8558 = vmatpush.msra.mxu0 %v8557
        %v8559 = vand.u32 %v8223, 4294901760
        %8560 = vmatpush.msra.mxu0 %v8559
        %v8561 = vand.u32 %v8222, 4294901760
        %8562 = vmatpush.msra.mxu0 %v8561
        %v8563 = vand.u32 %v8221, 4294901760
        %8564 = vmatpush.msra.mxu0 %v8563
        %v8565 = vand.u32 %v8220, 4294901760
        %8566 = vmatpush.msra.mxu0 %v8565
        %v8567 = vand.u32 %v8219, 4294901760
        %8568 = vmatpush.msra.mxu0 %v8567
        %v8569 = vand.u32 %v8218, 4294901760
        %8570 = vmatpush.msra.mxu0 %v8569
        %v8571 = vand.u32 %v8217, 4294901760
        %8572 = vmatmul.f32.gmra.mxu0 %v8571
        %v8573 = vpop.f32.mrf.mxu0
        %v8574 = vadd.f32 %v8537, %v8573
        %8575 = vdwg.mxu0
        %v8576 = vmax.f32 %v8574, 0.0
        %v8577 = vld [vmem:[%s13] sm:$0xff]
        %v8578 = vld [vmem:[%s13 + $0x8] sm:$0xff]
        %v8579 = vld [vmem:[%s13 + $0x10] sm:$0xff]
        %v8580 = vld [vmem:[%s13 + $0x18] sm:$0xff]
        %v8581 = vld [vmem:[%s13 + $0x20] sm:$0xff]
        %v8582 = vld [vmem:[%s13 + $0x28] sm:$0xff]
        %v8583 = vld [vmem:[%s13 + $0x30] sm:$0xff]
        %v8584 = vld [vmem:[%s13 + $0x38] sm:$0xff]
        %v8585 = vld [vmem:[%s14] sm:$0x1]
        %vm8586 = vcmask 523264
        %v8588 = vsel %vm8586, %v8576, 0
        %8590 = vmatpush.msra.mxu0 0.0
        %8591 = vmatpush.msra.mxu0 0.0
        %8592 = vmatpush.msra.mxu0 0.0
        %8593 = vmatpush.msra.mxu0 0.0
        %8594 = vmatpush.msra.mxu0 0.0
        %8595 = vmatpush.msra.mxu0 0.0
        %8596 = vmatpush.msra.mxu0 0.0
        %8597 = vmatpush.msra.mxu0 0.0
        %v8598 = vand.u32 %v8584, 4294901760
        %8599 = vmatpush.msra.mxu0 %v8598
        %v8600 = vand.u32 %v8583, 4294901760
        %8601 = vmatpush.msra.mxu0 %v8600
        %v8602 = vand.u32 %v8582, 4294901760
        %8603 = vmatpush.msra.mxu0 %v8602
        %v8604 = vand.u32 %v8581, 4294901760
        %8605 = vmatpush.msra.mxu0 %v8604
        %v8606 = vand.u32 %v8580, 4294901760
        %8607 = vmatpush.msra.mxu0 %v8606
        %v8608 = vand.u32 %v8579, 4294901760
        %8609 = vmatpush.msra.mxu0 %v8608
        %v8610 = vand.u32 %v8578, 4294901760
        %8611 = vmatpush.msra.mxu0 %v8610
        %v8612 = vand.u32 %v8577, 4294901760
        %8613 = vmatpush.msra.mxu0 %v8612
        %v8614 = vand.u32 %v8588, 4294901760
        %v8615 = vsub.f32 %v8588, %v8614
        %v8616 = vand.u32 %v8615, 4294901760
        %v8617 = vsub.f32 %v8615, %v8616
        %v8618 = vand.u32 %v8617, 4294901760
        %8619 = vmatmul.f32.gmra.mxu0 %v8618
        %v8620 = vpop.f32.mrf.mxu0
        %v8621 = vadd.f32 %v8585, %v8620
        %8622 = vdwg.mxu0
        %8623 = vmatpush.msra.mxu0 0.0
        %8624 = vmatpush.msra.mxu0 0.0
        %8625 = vmatpush.msra.mxu0 0.0
        %8626 = vmatpush.msra.mxu0 0.0
        %8627 = vmatpush.msra.mxu0 0.0
        %8628 = vmatpush.msra.mxu0 0.0
        %8629 = vmatpush.msra.mxu0 0.0
        %8630 = vmatpush.msra.mxu0 0.0
        %v8631 = vand.u32 %v8584, 4294901760
        %v8632 = vsub.f32 %v8584, %v8631
        %v8633 = vand.u32 %v8632, 4294901760
        %v8634 = vsub.f32 %v8632, %v8633
        %v8635 = vand.u32 %v8634, 4294901760
        %8636 = vmatpush.msra.mxu0 %v8635
        %v8637 = vand.u32 %v8583, 4294901760
        %v8638 = vsub.f32 %v8583, %v8637
        %v8639 = vand.u32 %v8638, 4294901760
        %v8640 = vsub.f32 %v8638, %v8639
        %v8641 = vand.u32 %v8640, 4294901760
        %8642 = vmatpush.msra.mxu0 %v8641
        %v8643 = vand.u32 %v8582, 4294901760
        %v8644 = vsub.f32 %v8582, %v8643
        %v8645 = vand.u32 %v8644, 4294901760
        %v8646 = vsub.f32 %v8644, %v8645
        %v8647 = vand.u32 %v8646, 4294901760
        %8648 = vmatpush.msra.mxu0 %v8647
        %v8649 = vand.u32 %v8581, 4294901760
        %v8650 = vsub.f32 %v8581, %v8649
        %v8651 = vand.u32 %v8650, 4294901760
        %v8652 = vsub.f32 %v8650, %v8651
        %v8653 = vand.u32 %v8652, 4294901760
        %8654 = vmatpush.msra.mxu0 %v8653
        %v8655 = vand.u32 %v8580, 4294901760
        %v8656 = vsub.f32 %v8580, %v8655
        %v8657 = vand.u32 %v8656, 4294901760
        %v8658 = vsub.f32 %v8656, %v8657
        %v8659 = vand.u32 %v8658, 4294901760
        %8660 = vmatpush.msra.mxu0 %v8659
        %v8661 = vand.u32 %v8579, 4294901760
        %v8662 = vsub.f32 %v8579, %v8661
        %v8663 = vand.u32 %v8662, 4294901760
        %v8664 = vsub.f32 %v8662, %v8663
        %v8665 = vand.u32 %v8664, 4294901760
        %8666 = vmatpush.msra.mxu0 %v8665
        %v8667 = vand.u32 %v8578, 4294901760
        %v8668 = vsub.f32 %v8578, %v8667
        %v8669 = vand.u32 %v8668, 4294901760
        %v8670 = vsub.f32 %v8668, %v8669
        %v8671 = vand.u32 %v8670, 4294901760
        %8672 = vmatpush.msra.mxu0 %v8671
        %v8673 = vand.u32 %v8577, 4294901760
        %v8674 = vsub.f32 %v8577, %v8673
        %v8675 = vand.u32 %v8674, 4294901760
        %v8676 = vsub.f32 %v8674, %v8675
        %v8677 = vand.u32 %v8676, 4294901760
        %8678 = vmatpush.msra.mxu0 %v8677
        %v8679 = vand.u32 %v8588, 4294901760
        %8680 = vmatmul.f32.gmra.mxu0 %v8679
        %v8681 = vpop.f32.mrf.mxu0
        %v8682 = vadd.f32 %v8621, %v8681
        %8683 = vdwg.mxu0
        %8684 = vmatpush.msra.mxu0 0.0
        %8685 = vmatpush.msra.mxu0 0.0
        %8686 = vmatpush.msra.mxu0 0.0
        %8687 = vmatpush.msra.mxu0 0.0
        %8688 = vmatpush.msra.mxu0 0.0
        %8689 = vmatpush.msra.mxu0 0.0
        %8690 = vmatpush.msra.mxu0 0.0
        %8691 = vmatpush.msra.mxu0 0.0
        %v8692 = vand.u32 %v8584, 4294901760
        %v8693 = vsub.f32 %v8584, %v8692
        %8694 = vmatpush.msra.mxu0 %v8693
        %v8695 = vand.u32 %v8583, 4294901760
        %v8696 = vsub.f32 %v8583, %v8695
        %8697 = vmatpush.msra.mxu0 %v8696
        %v8698 = vand.u32 %v8582, 4294901760
        %v8699 = vsub.f32 %v8582, %v8698
        %8700 = vmatpush.msra.mxu0 %v8699
        %v8701 = vand.u32 %v8581, 4294901760
        %v8702 = vsub.f32 %v8581, %v8701
        %8703 = vmatpush.msra.mxu0 %v8702
        %v8704 = vand.u32 %v8580, 4294901760
        %v8705 = vsub.f32 %v8580, %v8704
        %8706 = vmatpush.msra.mxu0 %v8705
        %v8707 = vand.u32 %v8579, 4294901760
        %v8708 = vsub.f32 %v8579, %v8707
        %8709 = vmatpush.msra.mxu0 %v8708
        %v8710 = vand.u32 %v8578, 4294901760
        %v8711 = vsub.f32 %v8578, %v8710
        %8712 = vmatpush.msra.mxu0 %v8711
        %v8713 = vand.u32 %v8577, 4294901760
        %v8714 = vsub.f32 %v8577, %v8713
        %8715 = vmatpush.msra.mxu0 %v8714
        %v8716 = vand.u32 %v8588, 4294901760
        %v8717 = vsub.f32 %v8588, %v8716
        %8718 = vmatmul.f32.gmra.mxu0 %v8717
        %v8719 = vpop.f32.mrf.mxu0
        %v8720 = vadd.f32 %v8682, %v8719
        %8721 = vdwg.mxu0
        %8722 = vmatpush.msra.mxu0 0.0
        %8723 = vmatpush.msra.mxu0 0.0
        %8724 = vmatpush.msra.mxu0 0.0
        %8725 = vmatpush.msra.mxu0 0.0
        %8726 = vmatpush.msra.mxu0 0.0
        %8727 = vmatpush.msra.mxu0 0.0
        %8728 = vmatpush.msra.mxu0 0.0
        %8729 = vmatpush.msra.mxu0 0.0
        %v8730 = vand.u32 %v8584, 4294901760
        %8731 = vmatpush.msra.mxu0 %v8730
        %v8732 = vand.u32 %v8583, 4294901760
        %8733 = vmatpush.msra.mxu0 %v8732
        %v8734 = vand.u32 %v8582, 4294901760
        %8735 = vmatpush.msra.mxu0 %v8734
        %v8736 = vand.u32 %v8581, 4294901760
        %8737 = vmatpush.msra.mxu0 %v8736
        %v8738 = vand.u32 %v8580, 4294901760
        %8739 = vmatpush.msra.mxu0 %v8738
        %v8740 = vand.u32 %v8579, 4294901760
        %8741 = vmatpush.msra.mxu0 %v8740
        %v8742 = vand.u32 %v8578, 4294901760
        %8743 = vmatpush.msra.mxu0 %v8742
        %v8744 = vand.u32 %v8577, 4294901760
        %8745 = vmatpush.msra.mxu0 %v8744
        %v8746 = vand.u32 %v8588, 4294901760
        %v8747 = vsub.f32 %v8588, %v8746
        %v8748 = vand.u32 %v8747, 4294901760
        %8749 = vmatmul.f32.gmra.mxu0 %v8748
        %v8750 = vpop.f32.mrf.mxu0
        %v8751 = vadd.f32 %v8720, %v8750
        %8752 = vdwg.mxu0
        %8753 = vmatpush.msra.mxu0 0.0
        %8754 = vmatpush.msra.mxu0 0.0
        %8755 = vmatpush.msra.mxu0 0.0
        %8756 = vmatpush.msra.mxu0 0.0
        %8757 = vmatpush.msra.mxu0 0.0
        %8758 = vmatpush.msra.mxu0 0.0
        %8759 = vmatpush.msra.mxu0 0.0
        %8760 = vmatpush.msra.mxu0 0.0
        %v8761 = vand.u32 %v8584, 4294901760
        %v8762 = vsub.f32 %v8584, %v8761
        %v8763 = vand.u32 %v8762, 4294901760
        %8764 = vmatpush.msra.mxu0 %v8763
        %v8765 = vand.u32 %v8583, 4294901760
        %v8766 = vsub.f32 %v8583, %v8765
        %v8767 = vand.u32 %v8766, 4294901760
        %8768 = vmatpush.msra.mxu0 %v8767
        %v8769 = vand.u32 %v8582, 4294901760
        %v8770 = vsub.f32 %v8582, %v8769
        %v8771 = vand.u32 %v8770, 4294901760
        %8772 = vmatpush.msra.mxu0 %v8771
        %v8773 = vand.u32 %v8581, 4294901760
        %v8774 = vsub.f32 %v8581, %v8773
        %v8775 = vand.u32 %v8774, 4294901760
        %8776 = vmatpush.msra.mxu0 %v8775
        %v8777 = vand.u32 %v8580, 4294901760
        %v8778 = vsub.f32 %v8580, %v8777
        %v8779 = vand.u32 %v8778, 4294901760
        %8780 = vmatpush.msra.mxu0 %v8779
        %v8781 = vand.u32 %v8579, 4294901760
        %v8782 = vsub.f32 %v8579, %v8781
        %v8783 = vand.u32 %v8782, 4294901760
        %8784 = vmatpush.msra.mxu0 %v8783
        %v8785 = vand.u32 %v8578, 4294901760
        %v8786 = vsub.f32 %v8578, %v8785
        %v8787 = vand.u32 %v8786, 4294901760
        %8788 = vmatpush.msra.mxu0 %v8787
        %v8789 = vand.u32 %v8577, 4294901760
        %v8790 = vsub.f32 %v8577, %v8789
        %v8791 = vand.u32 %v8790, 4294901760
        %8792 = vmatpush.msra.mxu0 %v8791
        %v8793 = vand.u32 %v8588, 4294901760
        %8794 = vmatmul.f32.gmra.mxu0 %v8793
        %v8795 = vpop.f32.mrf.mxu0
        %v8796 = vadd.f32 %v8751, %v8795
        %8797 = vdwg.mxu0
        %8798 = vmatpush.msra.mxu0 0.0
        %8799 = vmatpush.msra.mxu0 0.0
        %8800 = vmatpush.msra.mxu0 0.0
        %8801 = vmatpush.msra.mxu0 0.0
        %8802 = vmatpush.msra.mxu0 0.0
        %8803 = vmatpush.msra.mxu0 0.0
        %8804 = vmatpush.msra.mxu0 0.0
        %8805 = vmatpush.msra.mxu0 0.0
        %v8806 = vand.u32 %v8584, 4294901760
        %8807 = vmatpush.msra.mxu0 %v8806
        %v8808 = vand.u32 %v8583, 4294901760
        %8809 = vmatpush.msra.mxu0 %v8808
        %v8810 = vand.u32 %v8582, 4294901760
        %8811 = vmatpush.msra.mxu0 %v8810
        %v8812 = vand.u32 %v8581, 4294901760
        %8813 = vmatpush.msra.mxu0 %v8812
        %v8814 = vand.u32 %v8580, 4294901760
        %8815 = vmatpush.msra.mxu0 %v8814
        %v8816 = vand.u32 %v8579, 4294901760
        %8817 = vmatpush.msra.mxu0 %v8816
        %v8818 = vand.u32 %v8578, 4294901760
        %8819 = vmatpush.msra.mxu0 %v8818
        %v8820 = vand.u32 %v8577, 4294901760
        %8821 = vmatpush.msra.mxu0 %v8820
        %v8822 = vand.u32 %v8588, 4294901760
        %8823 = vmatmul.f32.gmra.mxu0 %v8822
        %v8824 = vpop.f32.mrf.mxu0
        %v8825 = vadd.f32 %v8796, %v8824
        %8826 = vdwg.mxu0
        %vm8827 = vcmask 73728
        %v8828 = vsel %vm8827, %v8825, -inf
        %8829 = vmax.xlane.f32.xlu0 %v8828
        %v8830 = vpop.xlane.xlu0 %8829
        %v8831 = vsub.f32 %v8825, %v8830
        %v8832 = vmul.f32 %v8831, 1.442695
        %v8833 = vpow.pop %v8832
        %v8834 = vsel %vm8827, %v8833, 0.0
        %8835 = vadd.xlane.f32.xlu0 %v8834
        %v8836 = vpop.xlane.xlu0 %8835
        %v8837 = vlog2.pop %v8836
        %v8838 = vmul.f32 %v8837, 0.6931472
        %v8839 = vadd.f32 %v8830, %v8838
        %v8840 = vsub.f32 %v8825, %v8839
        %8841 = vst.msk [vmem:[%s536] sm:$0x1] %vm8827, %v8840
        %s8842 = sand.u32 %s359, 1
        %s8843 = scalar_lea.sflag [#allocation4], %s8842
        %s8844 = sand.u32 %s359, 1
        %s8845 = scalar_lea.vmem [#allocation8], %s8844
        // Predicated region
        $region93: #{net_forward.1} parent=79 // pred_check
          %p8846 = pneg %p369
        $region94: #{net_forward.1} parent=79 // pred_check_branch
          %8848 = sbr.rel (%p8846) target = $region96
        $region95: #{net_forward.1} parent=79 // pred_region
          %8850 = vsyncadd %s8843, 0
          %s8851 = scalar_lea.hbm %s15, %s31
          %s8853 = sshll.u32 %s8845, 4
          %s8854 = int_to_ptr.vmem [resolvable:$true] %s8853
          %s8855 = sshll.u32 %s8851, 4
          %s8856 = int_to_ptr.hbm [resolvable:$true] %s8855
          %8858 = dma.vmem_to_hbm [thread:$0]  %s8854, 16, %s8856, %s8843
        $region96: #{net_forward.1} parent=79 // pred_fallthru
          _
      $region80: #{net_forward.1} parent=5 // pred_fallthru
        _
      %p8859 = scmp.le.s32.totalorder 2, %s26
      // Predicated region
      $region97: #{net_forward.1} parent=5 // pred_check
        %p8860 = pneg %p8859
      $region98: #{net_forward.1} parent=5 // pred_check_branch
        %8862 = sbr.rel (%p8860) target = $region100
      $region99: #{net_forward.1} parent=5 // pred_region
        %s8863 = ssub.s32 %s26, 2
        // Predicated region
        $region101: #{net_forward.1} parent=99 // pred_check
          %p8864 = pneg %p375
        $region102: #{net_forward.1} parent=99 // pred_check_branch
          %8866 = sbr.rel (%p8864) target = $region104
        $region103: #{net_forward.1} parent=99 // pred_region
          %s8867 = sand.u32 %s360, 1
          %s8868 = scalar_lea.sflag [#allocation4], %s8867
          %s8869 = sand.u32 %s360, 1
          %s8870 = scalar_lea.vmem [#allocation8], %s8869
          %8872 = dma.done %s8868, 16
        $region104: #{net_forward.1} parent=99 // pred_fallthru
          _
      $region100: #{net_forward.1} parent=5 // pred_fallthru
        _
    $region6: #{net_forward.1} parent=1 // loop_footer
      %s30 = sadd.s32 1, %s26
    $region7: #{net_forward.1} parent=1 // loop_footer_branch
      %25 = sbr.rel target = $region3
    $region8: #{net_forward.1} parent=1 // loop_exit
      _
    %8873 = vsyncpa [#allocation3], 1
    %s8874 = scalar_lea.sflag [#allocation3], 1
    %8875 = vsyncpa %s8874, 1
    %8876 = vsyncpa [#allocation6], 1
    %8877 = vsyncpa [#allocation4], 1
    %s8878 = scalar_lea.sflag [#allocation4], 1
    %8879 = vsyncpa %s8878, 1

</llo_original>
